<compile_context>
chip_gen: v5e
topology: v5e:2x2
jax: 0.10.0
libtpu: 0.0.40
codegen_flags: <defaults>
</compile_context>

<pallas_src>
import math
import functools

import jax
import jax.numpy as jnp
from jax import lax
from jax.experimental import pallas as pl
from jax.experimental.pallas import tpu as pltpu


NEG_INF = -1000000000.0          # matches torch masked_fill value
MATMUL_DTYPE = jnp.bfloat16      # MXU operand dtype (accumulation stays f32)


# --------------------------------------------------------------------------
# In-kernel helpers (operate on VMEM-resident values)
# --------------------------------------------------------------------------

def _layernorm(x, g, b):
    # f32 elementwise math (v5e has no bf16 VPU path).
    mean = jnp.mean(x, axis=-1, keepdims=True)
    var = jnp.mean(jnp.square(x - mean), axis=-1, keepdims=True)
    return (x - mean) * lax.rsqrt(var + 1e-5) * g + b


def _bmm(a, b, dims):
    return lax.dot_general(a, b, dims, preferred_element_type=jnp.float32)


_PROJ = (((2,), (1,)), ((0,), (0,)))    # (H,L,D)   @ (H,D,dk)  -> (H,L,dk)
_QKT  = (((2,), (2,)), ((0,), (0,)))    # (H,Lq,dk) @ (H,Lk,dk) -> (H,Lq,Lk)
_PV   = (((2,), (1,)), ((0,), (0,)))    # (H,Lq,Lk) @ (H,Lk,dk) -> (H,Lq,dk)
_CTXO = (((2,), (1,)), ((0,), (0,)))    # (H,Lq,dk) @ (H,dk,D)  -> (H,Lq,D)


def _mha(q_in, kv_in, keep, wq, bq, wk, bk, wv, bv, wo, bo):
    """Multi-head attention + output projection, all heads in batched
    dot_generals (no per-head Python loop, no lane-subrange slicing).

    q_in: (Lq, D) f32, kv_in: (Lk, D) f32, keep: (Lq, Lk) bool.
    wq/wk/wv: (H, D, dk) bf16, bq/bk/bv: (H, 1, dk) f32,
    wo: (H, dk, D) bf16, bo: (1, D) f32.
    """
    H, _, dk = wq.shape
    Lq, D = q_in.shape
    Lk = kv_in.shape[0]
    mmdt = wq.dtype
    inv_scale = 1.0 / math.sqrt(dk)

    qb = jnp.broadcast_to(q_in.astype(mmdt)[None], (H, Lq, D))
    kvb = jnp.broadcast_to(kv_in.astype(mmdt)[None], (H, Lk, D))
    qh = _bmm(qb, wq, _PROJ) + bq            # (H, Lq, dk)  f32
    kh = _bmm(kvb, wk, _PROJ) + bk           # (H, Lk, dk)
    vh = _bmm(kvb, wv, _PROJ) + bv           # (H, Lk, dk)

    s = _bmm(qh.astype(mmdt), kh.astype(mmdt), _QKT) * inv_scale    # (H, Lq, Lk)
    s = jnp.where(keep[None, :, :], s, NEG_INF)
    s = s - jnp.max(s, axis=-1, keepdims=True)      # f32 softmax, exact divide
    p = jnp.exp(s)
    p = p / jnp.sum(p, axis=-1, keepdims=True)

    ctx = _bmm(p.astype(mmdt), vh.astype(mmdt), _PV)    # (H, Lq, dk) f32
    # sum_h ctx_h @ Wo[h]  ==  concat(ctx_h) @ Wo   (Wo hoisted out of any head loop)
    contrib = _bmm(ctx.astype(mmdt), wo, _CTXO)         # (H, Lq, D)  f32
    return jnp.sum(contrib, axis=0) + bo                # (Lq, D)


# --------------------------------------------------------------------------
# One fused kernel for the whole forward pass
# --------------------------------------------------------------------------

def _transformer_kernel(
        src_ref, trg_ref, skeep_ref, qkeep_ref,
        e_ln_ref, e_qkv_w_ref, e_qkv_b_ref, e_wo_ref, e_bo_ref, e_wff_ref, e_bff_ref,
        d_ln_ref, d_sqkv_w_ref, d_sqkv_b_ref, d_swo_ref, d_sbo_ref,
        d_cqkv_w_ref, d_cqkv_b_ref, d_cwo_ref, d_cbo_ref, d_wff_ref, d_bff_ref,
        w_out_ref, b_out_ref,
        o_ref, *, n_layers, bb):
    w_out = w_out_ref[...]     # (D, Vpad) bf16  (lane-dense padded vocab)
    b_out = b_out_ref[...]     # (1, Vpad) f32

    for bi in range(bb):       # static unroll over the batch rows of this block
        src = src_ref[bi]      # (Ls, D) f32
        trg = trg_ref[bi]      # (Lt, D) f32
        Ls = src.shape[0]
        Lt = trg.shape[0]

        # masks built in-kernel from tiny keep vectors
        skeep = skeep_ref[bi] > 0.5                         # (1, Ls)  key-side src pad
        qkeep = qkeep_ref[bi] > 0.5                         # (Lt, 1)  query-side trg pad
        enc_keep = jnp.broadcast_to(skeep, (Ls, Ls))
        cross_keep = jnp.broadcast_to(skeep, (Lt, Ls))
        rows = lax.broadcasted_iota(jnp.int32, (Lt, Lt), 0)
        cols = lax.broadcasted_iota(jnp.int32, (Lt, Lt), 1)
        self_keep = (cols <= rows) & jnp.broadcast_to(qkeep, (Lt, Lt))

        # -------------------- encoder stack --------------------
        x = src
        for l in range(n_layers):
            z = _layernorm(x, e_ln_ref[l, 0, 0], e_ln_ref[l, 0, 1])
            x = x + _mha(z, z, enc_keep,
                         e_qkv_w_ref[l, 0], e_qkv_b_ref[l, 0],
                         e_qkv_w_ref[l, 1], e_qkv_b_ref[l, 1],
                         e_qkv_w_ref[l, 2], e_qkv_b_ref[l, 2],
                         e_wo_ref[l], e_bo_ref[l])
            z = _layernorm(x, e_ln_ref[l, 1, 0], e_ln_ref[l, 1, 1])
            wff = e_wff_ref[l]
            ff = jnp.dot(z.astype(wff.dtype), wff,
                         preferred_element_type=jnp.float32) + e_bff_ref[l]
            x = x + jnp.maximum(ff, 0.0)
        enc = x

        # -------------------- decoder stack --------------------
        y = trg
        for l in range(n_layers):
            z = _layernorm(y, d_ln_ref[l, 0, 0], d_ln_ref[l, 0, 1])
            y = y + _mha(z, z, self_keep,
                         d_sqkv_w_ref[l, 0], d_sqkv_b_ref[l, 0],
                         d_sqkv_w_ref[l, 1], d_sqkv_b_ref[l, 1],
                         d_sqkv_w_ref[l, 2], d_sqkv_b_ref[l, 2],
                         d_swo_ref[l], d_sbo_ref[l])
            z = _layernorm(y, d_ln_ref[l, 1, 0], d_ln_ref[l, 1, 1])
            y = y + _mha(z, enc, cross_keep,
                         d_cqkv_w_ref[l, 0], d_cqkv_b_ref[l, 0],
                         d_cqkv_w_ref[l, 1], d_cqkv_b_ref[l, 1],
                         d_cqkv_w_ref[l, 2], d_cqkv_b_ref[l, 2],
                         d_cwo_ref[l], d_cbo_ref[l])
            z = _layernorm(y, d_ln_ref[l, 2, 0], d_ln_ref[l, 2, 1])
            wff = d_wff_ref[l]
            ff = jnp.dot(z.astype(wff.dtype), wff,
                         preferred_element_type=jnp.float32) + d_bff_ref[l]
            y = y + jnp.maximum(ff, 0.0)

        # -------- final vocab projection (lane-dense padded vocab) --------
        logits = jnp.dot(y.astype(w_out.dtype), w_out,
                         preferred_element_type=jnp.float32) + b_out
        o_ref[bi] = logits


# --------------------------------------------------------------------------
# pallas_call wrapper
# --------------------------------------------------------------------------

def _const_index_map(nd):
    zeros = (0,) * nd
    return lambda b: zeros


def _const_spec(x):
    return pl.BlockSpec(x.shape, _const_index_map(x.ndim))


def transformer_forward(params, src, trg, *, pad_idx, d_vocab):
    emb, pe = params["emb"], params["pe"]
    D = emb.shape[1]
    B, Ls = src.shape
    Lt = trg.shape[1]

    # TODO(synk): embedding gather + positional add kept in plain JAX (table
    # lookup, not a hot matmul).
    src_emb = emb[src] * math.sqrt(D) + pe[None, :Ls, :]
    trg_emb = emb[trg] * math.sqrt(D) + pe[None, :Lt, :]

    src_keep = (src != pad_idx).astype(jnp.float32)[:, None, :]   # (B, 1, Ls) key-side
    trg_keep = (trg != pad_idx).astype(jnp.float32)[:, :, None]   # (B, Lt, 1) query-side

    enc_p, dec_p = params["enc"], params["dec"]
    w_out, b_out = params["out_w"], params["out_b"]
    v_pad = w_out.shape[1]
    n_layers = enc_p["qkv_w"].shape[0]

    # Grid: a 2-way batch split keeps both v7x TensorCores busy while costing
    # only one extra (~0.35us) grid step on single-TC v5e/v6e; fall back to one
    # batch row per step if B is odd or the per-block unroll would get large.
    if B % 2 == 0 and (B // 2) <= 4:
        nb = 2
    else:
        nb = B
    bb = B // nb

    args = (src_emb, trg_emb, src_keep, trg_keep,
            enc_p["ln"], enc_p["qkv_w"], enc_p["qkv_b"], enc_p["wo"], enc_p["bo"],
            enc_p["wff"], enc_p["bff"],
            dec_p["ln"], dec_p["sqkv_w"], dec_p["sqkv_b"], dec_p["swo"], dec_p["sbo"],
            dec_p["cqkv_w"], dec_p["cqkv_b"], dec_p["cwo"], dec_p["cbo"],
            dec_p["wff"], dec_p["bff"],
            w_out, b_out)

    in_specs = [pl.BlockSpec((bb, Ls, D), lambda b: (b, 0, 0)),
                pl.BlockSpec((bb, Lt, D), lambda b: (b, 0, 0)),
                pl.BlockSpec((bb, 1, Ls), lambda b: (b, 0, 0)),
                pl.BlockSpec((bb, Lt, 1), lambda b: (b, 0, 0))]
    in_specs += [_const_spec(a) for a in args[4:]]

    out = pl.pallas_call(
        functools.partial(_transformer_kernel, n_layers=n_layers, bb=bb),
        out_shape=jax.ShapeDtypeStruct((B, Lt, v_pad), jnp.float32),
        grid=(nb,),
        in_specs=in_specs,
        out_specs=pl.BlockSpec((bb, Lt, v_pad), lambda b: (b, 0, 0)),
        compiler_params=pltpu.CompilerParams(dimension_semantics=("parallel",)),
    )(*args)

    return out[:, :, :d_vocab]


# --------------------------------------------------------------------------
# Deterministic parameter init (torch-style uniform(-1/sqrt(fan_in), ...)),
# prepared directly in the stacked / head-major / bf16 kernel layout.
# --------------------------------------------------------------------------

def init_params(key, d_vocab, d_x, n_layers, n_heads, max_length):
    dk = d_x // n_heads
    keys = iter(jax.random.split(key, 512))

    def uniform(shape, bound):
        return jax.random.uniform(next(keys), shape, jnp.float32, -bound, bound)

    def linear(din, dout):
        bound = 1.0 / math.sqrt(din)
        return uniform((din, dout), bound), uniform((dout,), bound)

    def head_major_in(w):            # (D, D) -> (H, D, dk): per-head output columns
        return w.reshape(d_x, n_heads, dk).transpose(1, 0, 2)

    def head_major_bias(b):          # (D,) -> (H, 1, dk)
        return b.reshape(n_heads, dk)[:, None, :]

    def attn_block():
        wq, bq = linear(d_x, d_x)
        wk, bk = linear(d_x, d_x)
        wv, bv = linear(d_x, d_x)
        wo, bo = linear(d_x, d_x)
        qkv_w = jnp.stack([head_major_in(wq), head_major_in(wk), head_major_in(wv)])
        qkv_b = jnp.stack([head_major_bias(bq), head_major_bias(bk), head_major_bias(bv)])
        wo_h = wo.reshape(n_heads, dk, d_x)          # (H, dk, D): per-head input rows
        return qkv_w, qkv_b, wo_h, bo.reshape(1, d_x)

    def ln_pair():                   # (2, 1, D): [gamma, beta]
        return jnp.stack([jnp.ones((1, d_x), jnp.float32),
                          jnp.zeros((1, d_x), jnp.float32)])

    params = {}
    params["emb"] = jax.random.normal(next(keys), (d_vocab, d_x), jnp.float32)

    pos = jnp.arange(max_length, dtype=jnp.float32)[:, None]
    div = jnp.exp(jnp.arange(0, d_x, 2, dtype=jnp.float32)
                  * (-math.log(10000.0) / d_x))
    pe = jnp.zeros((max_length, d_x), jnp.float32)
    pe = pe.at[:, 0::2].set(jnp.sin(pos * div))
    pe = pe.at[:, 1::2].set(jnp.cos(pos * div))
    params["pe"] = pe

    # ---- encoder stack (leading layer axis) ----
    e = {k: [] for k in ("ln", "qkv_w", "qkv_b", "wo", "bo", "wff", "bff")}
    for _ in range(n_layers):
        qkv_w, qkv_b, wo, bo = attn_block()
        wff, bff = linear(d_x, d_x)
        e["ln"].append(jnp.stack([ln_pair(), ln_pair()]))     # (2, 2, 1, D)
        e["qkv_w"].append(qkv_w); e["qkv_b"].append(qkv_b)
        e["wo"].append(wo);       e["bo"].append(bo)
        e["wff"].append(wff);     e["bff"].append(bff.reshape(1, d_x))
    params["enc"] = {
        "ln":    jnp.stack(e["ln"]),
        "qkv_w": jnp.stack(e["qkv_w"]).astype(MATMUL_DTYPE),
        "qkv_b": jnp.stack(e["qkv_b"]),
        "wo":    jnp.stack(e["wo"]).astype(MATMUL_DTYPE),
        "bo":    jnp.stack(e["bo"]),
        "wff":   jnp.stack(e["wff"]).astype(MATMUL_DTYPE),
        "bff":   jnp.stack(e["bff"]),
    }

    # ---- decoder stack ----
    d = {k: [] for k in ("ln", "sqkv_w", "sqkv_b", "swo", "sbo",
                         "cqkv_w", "cqkv_b", "cwo", "cbo", "wff", "bff")}
    for _ in range(n_layers):
        sq_w, sq_b, swo, sbo = attn_block()
        cq_w, cq_b, cwo, cbo = attn_block()
        wff, bff = linear(d_x, d_x)
        d["ln"].append(jnp.stack([ln_pair(), ln_pair(), ln_pair()]))   # (3, 2, 1, D)
        d["sqkv_w"].append(sq_w); d["sqkv_b"].append(sq_b)
        d["swo"].append(swo);     d["sbo"].append(sbo)
        d["cqkv_w"].append(cq_w); d["cqkv_b"].append(cq_b)
        d["cwo"].append(cwo);     d["cbo"].append(cbo)
        d["wff"].append(wff);     d["bff"].append(bff.reshape(1, d_x))
    params["dec"] = {
        "ln":     jnp.stack(d["ln"]),
        "sqkv_w": jnp.stack(d["sqkv_w"]).astype(MATMUL_DTYPE),
        "sqkv_b": jnp.stack(d["sqkv_b"]),
        "swo":    jnp.stack(d["swo"]).astype(MATMUL_DTYPE),
        "sbo":    jnp.stack(d["sbo"]),
        "cqkv_w": jnp.stack(d["cqkv_w"]).astype(MATMUL_DTYPE),
        "cqkv_b": jnp.stack(d["cqkv_b"]),
        "cwo":    jnp.stack(d["cwo"]).astype(MATMUL_DTYPE),
        "cbo":    jnp.stack(d["cbo"]),
        "wff":    jnp.stack(d["wff"]).astype(MATMUL_DTYPE),
        "bff":    jnp.stack(d["bff"]),
    }

    # ---- final vocab projection, zero-padded to a lane-dense multiple of 128 ----
    w_out, b_out = linear(d_x, d_vocab)
    v_pad = max(128, ((d_vocab + 127) // 128) * 128)
    params["out_w"] = (jnp.zeros((d_x, v_pad), jnp.float32)
                       .at[:, :d_vocab].set(w_out).astype(MATMUL_DTYPE))
    params["out_b"] = jnp.zeros((1, v_pad), jnp.float32).at[:, :d_vocab].set(b_out)
    return params


# --------------------------------------------------------------------------
# Main
# --------------------------------------------------------------------------

if __name__ == "__main__":
    d_vocab = 40
    d_x = 32
    n_layers = 2
    n_heads = 4
    max_length = 16
    pad_idx = 0
    B, Ls, Lt = 2, 8, 8

    key = jax.random.PRNGKey(0)
    k_par, k_src, k_trg = jax.random.split(key, 3)

    params = init_params(k_par, d_vocab, d_x, n_layers, n_heads, max_length)

    src = jax.random.randint(k_src, (B, Ls), 1, d_vocab, dtype=jnp.int32)
    trg = jax.random.randint(k_trg, (B, Lt), 1, d_vocab, dtype=jnp.int32)
    # introduce some padding to exercise the masks
    src = src.at[1, -2:].set(pad_idx)
    trg = trg.at[1, -3:].set(pad_idx)

    fwd = jax.jit(functools.partial(transformer_forward,
                                    pad_idx=pad_idx, d_vocab=d_vocab))
    logits = jax.block_until_ready(fwd(params, src, trg))

    assert logits.shape == (B, Lt, d_vocab)
    assert bool(jnp.all(jnp.isfinite(logits)))
    print("KERNEL_OK")
</pallas_src>

<mosaic_0001>
module attributes {stable_mosaic.version = 11 : i64} {
  func.func @_transformer_kernel(%arg0: i32, %arg1: memref<1x8x32xf32, #tpu.memory_space<vmem>>, %arg2: memref<1x8x32xf32, #tpu.memory_space<vmem>>, %arg3: memref<1x1x8xf32, #tpu.memory_space<vmem>>, %arg4: memref<1x8x1xf32, #tpu.memory_space<vmem>>, %arg5: memref<2x2x2x1x32xf32, #tpu.memory_space<vmem>>, %arg6: memref<2x3x4x32x8xbf16, #tpu.memory_space<vmem>>, %arg7: memref<2x3x4x1x8xf32, #tpu.memory_space<vmem>>, %arg8: memref<2x4x8x32xbf16, #tpu.memory_space<vmem>>, %arg9: memref<2x1x32xf32, #tpu.memory_space<vmem>>, %arg10: memref<2x32x32xbf16, #tpu.memory_space<vmem>>, %arg11: memref<2x1x32xf32, #tpu.memory_space<vmem>>, %arg12: memref<2x3x2x1x32xf32, #tpu.memory_space<vmem>>, %arg13: memref<2x3x4x32x8xbf16, #tpu.memory_space<vmem>>, %arg14: memref<2x3x4x1x8xf32, #tpu.memory_space<vmem>>, %arg15: memref<2x4x8x32xbf16, #tpu.memory_space<vmem>>, %arg16: memref<2x1x32xf32, #tpu.memory_space<vmem>>, %arg17: memref<2x3x4x32x8xbf16, #tpu.memory_space<vmem>>, %arg18: memref<2x3x4x1x8xf32, #tpu.memory_space<vmem>>, %arg19: memref<2x4x8x32xbf16, #tpu.memory_space<vmem>>, %arg20: memref<2x1x32xf32, #tpu.memory_space<vmem>>, %arg21: memref<2x32x32xbf16, #tpu.memory_space<vmem>>, %arg22: memref<2x1x32xf32, #tpu.memory_space<vmem>>, %arg23: memref<32x128xbf16, #tpu.memory_space<vmem>>, %arg24: memref<1x128xf32, #tpu.memory_space<vmem>>, %arg25: memref<1x8x128xf32, #tpu.memory_space<vmem>>) attributes {dimension_semantics = [#tpu.dimension_semantics<parallel>], iteration_bounds = array<i64: 2>, scalar_prefetch = 0 : i64, scratch_operands = 0 : i64, tpu.core_type = #tpu.core_type<tc>, window_params = [{transform_indices = @transform_0, window_bounds = array<i64: 1, 8, 32>}, {transform_indices = @transform_1, window_bounds = array<i64: 1, 8, 32>}, {transform_indices = @transform_2, window_bounds = array<i64: 1, 1, 8>}, {transform_indices = @transform_3, window_bounds = array<i64: 1, 8, 1>}, {pipeline_mode = #tpu.pipeline_mode<synchronous>, transform_indices = @transform_4, window_bounds = array<i64: 2, 2, 2, 1, 32>}, {pipeline_mode = #tpu.pipeline_mode<synchronous>, transform_indices = @transform_5, window_bounds = array<i64: 2, 3, 4, 32, 8>}, {pipeline_mode = #tpu.pipeline_mode<synchronous>, transform_indices = @transform_6, window_bounds = array<i64: 2, 3, 4, 1, 8>}, {pipeline_mode = #tpu.pipeline_mode<synchronous>, transform_indices = @transform_7, window_bounds = array<i64: 2, 4, 8, 32>}, {pipeline_mode = #tpu.pipeline_mode<synchronous>, transform_indices = @transform_8, window_bounds = array<i64: 2, 1, 32>}, {pipeline_mode = #tpu.pipeline_mode<synchronous>, transform_indices = @transform_9, window_bounds = array<i64: 2, 32, 32>}, {pipeline_mode = #tpu.pipeline_mode<synchronous>, transform_indices = @transform_10, window_bounds = array<i64: 2, 1, 32>}, {pipeline_mode = #tpu.pipeline_mode<synchronous>, transform_indices = @transform_11, window_bounds = array<i64: 2, 3, 2, 1, 32>}, {pipeline_mode = #tpu.pipeline_mode<synchronous>, transform_indices = @transform_12, window_bounds = array<i64: 2, 3, 4, 32, 8>}, {pipeline_mode = #tpu.pipeline_mode<synchronous>, transform_indices = @transform_13, window_bounds = array<i64: 2, 3, 4, 1, 8>}, {pipeline_mode = #tpu.pipeline_mode<synchronous>, transform_indices = @transform_14, window_bounds = array<i64: 2, 4, 8, 32>}, {pipeline_mode = #tpu.pipeline_mode<synchronous>, transform_indices = @transform_15, window_bounds = array<i64: 2, 1, 32>}, {pipeline_mode = #tpu.pipeline_mode<synchronous>, transform_indices = @transform_16, window_bounds = array<i64: 2, 3, 4, 32, 8>}, {pipeline_mode = #tpu.pipeline_mode<synchronous>, transform_indices = @transform_17, window_bounds = array<i64: 2, 3, 4, 1, 8>}, {pipeline_mode = #tpu.pipeline_mode<synchronous>, transform_indices = @transform_18, window_bounds = array<i64: 2, 4, 8, 32>}, {pipeline_mode = #tpu.pipeline_mode<synchronous>, transform_indices = @transform_19, window_bounds = array<i64: 2, 1, 32>}, {pipeline_mode = #tpu.pipeline_mode<synchronous>, transform_indices = @transform_20, window_bounds = array<i64: 2, 32, 32>}, {pipeline_mode = #tpu.pipeline_mode<synchronous>, transform_indices = @transform_21, window_bounds = array<i64: 2, 1, 32>}, {pipeline_mode = #tpu.pipeline_mode<synchronous>, transform_indices = @transform_22, window_bounds = array<i64: 32, 128>}, {pipeline_mode = #tpu.pipeline_mode<synchronous>, transform_indices = @transform_23, window_bounds = array<i64: 1, 128>}, {transform_indices = @transform_24, window_bounds = array<i64: 1, 8, 128>}]} {
    %c0 = arith.constant 0 : index
    %c0_0 = arith.constant 0 : index
    %0 = vector.load %arg23[%c0, %c0_0] : memref<32x128xbf16, #tpu.memory_space<vmem>>, vector<32x128xbf16>
    %c0_1 = arith.constant 0 : index
    %c0_2 = arith.constant 0 : index
    %1 = vector.load %arg24[%c0_1, %c0_2] : memref<1x128xf32, #tpu.memory_space<vmem>>, vector<1x128xf32>
    %c0_3 = arith.constant 0 : index
    %c0_4 = arith.constant 0 : index
    %c0_5 = arith.constant 0 : index
    %2 = vector.load %arg1[%c0_3, %c0_4, %c0_5] : memref<1x8x32xf32, #tpu.memory_space<vmem>>, vector<1x8x32xf32>
    %3 = vector.shape_cast %2 : vector<1x8x32xf32> to vector<8x32xf32>
    %c0_6 = arith.constant 0 : index
    %c0_7 = arith.constant 0 : index
    %c0_8 = arith.constant 0 : index
    %4 = vector.load %arg2[%c0_6, %c0_7, %c0_8] : memref<1x8x32xf32, #tpu.memory_space<vmem>>, vector<1x8x32xf32>
    %5 = vector.shape_cast %4 : vector<1x8x32xf32> to vector<8x32xf32>
    %c0_9 = arith.constant 0 : index
    %c0_10 = arith.constant 0 : index
    %c0_11 = arith.constant 0 : index
    %6 = vector.load %arg3[%c0_9, %c0_10, %c0_11] : memref<1x1x8xf32, #tpu.memory_space<vmem>>, vector<1x1x8xf32>
    %7 = vector.shape_cast %6 : vector<1x1x8xf32> to vector<1x8xf32>
    %cst = arith.constant 5.000000e-01 : f32
    %8 = vector.broadcast %cst : f32 to vector<1x8xf32>
    %9 = arith.cmpf ogt, %7, %8 : vector<1x8xf32>
    %c0_12 = arith.constant 0 : index
    %c0_13 = arith.constant 0 : index
    %c0_14 = arith.constant 0 : index
    %10 = vector.load %arg4[%c0_12, %c0_13, %c0_14] : memref<1x8x1xf32, #tpu.memory_space<vmem>>, vector<1x8x1xf32>
    %11 = vector.shape_cast %10 : vector<1x8x1xf32> to vector<8x1xf32>
    %cst_15 = arith.constant 5.000000e-01 : f32
    %12 = vector.broadcast %cst_15 : f32 to vector<8x1xf32>
    %13 = arith.cmpf ogt, %11, %12 : vector<8x1xf32>
    %14 = vector.shape_cast %9 : vector<1x8xi1> to vector<1x8xi1>
    %15 = vector.broadcast %14 : vector<1x8xi1> to vector<8x8xi1>
    %16 = vector.shape_cast %9 : vector<1x8xi1> to vector<1x8xi1>
    %17 = vector.broadcast %16 : vector<1x8xi1> to vector<8x8xi1>
    %18 = tpu.iota {dimensions = array<i32: 0>} : vector<8x8xi32>
    %19 = tpu.iota {dimensions = array<i32: 1>} : vector<8x8xi32>
    %20 = arith.cmpi sle, %19, %18 : vector<8x8xi32>
    %21 = vector.shape_cast %13 : vector<8x1xi1> to vector<8x1xi1>
    %22 = vector.broadcast %21 : vector<8x1xi1> to vector<8x8xi1>
    %23 = arith.andi %20, %22 : vector<8x8xi1>
    %c0_16 = arith.constant 0 : index
    %c0_17 = arith.constant 0 : index
    %c0_18 = arith.constant 0 : index
    %c0_19 = arith.constant 0 : index
    %c0_20 = arith.constant 0 : index
    %24 = vector.load %arg5[%c0_16, %c0_17, %c0_18, %c0_19, %c0_20] : memref<2x2x2x1x32xf32, #tpu.memory_space<vmem>>, vector<1x1x1x1x32xf32>
    %25 = vector.shape_cast %24 : vector<1x1x1x1x32xf32> to vector<1x32xf32>
    %c0_21 = arith.constant 0 : index
    %c0_22 = arith.constant 0 : index
    %c1 = arith.constant 1 : index
    %c0_23 = arith.constant 0 : index
    %c0_24 = arith.constant 0 : index
    %26 = vector.load %arg5[%c0_21, %c0_22, %c1, %c0_23, %c0_24] : memref<2x2x2x1x32xf32, #tpu.memory_space<vmem>>, vector<1x1x1x1x32xf32>
    %27 = vector.shape_cast %26 : vector<1x1x1x1x32xf32> to vector<1x32xf32>
    %cst_25 = arith.constant dense<0.000000e+00> : vector<8xf32>
    %28 = vector.multi_reduction <add>, %3, %cst_25 [1] : vector<8x32xf32> to vector<8xf32>
    %29 = vector.shape_cast %28 : vector<8xf32> to vector<8x1xf32>
    %cst_26 = arith.constant 3.200000e+01 : f32
    %30 = vector.broadcast %cst_26 : f32 to vector<8x1xf32>
    %31 = arith.divf %29, %30 : vector<8x1xf32>
    %32 = vector.broadcast %31 : vector<8x1xf32> to vector<8x32xf32>
    %33 = arith.subf %3, %32 : vector<8x32xf32>
    %34 = arith.mulf %33, %33 : vector<8x32xf32>
    %cst_27 = arith.constant dense<0.000000e+00> : vector<8xf32>
    %35 = vector.multi_reduction <add>, %34, %cst_27 [1] : vector<8x32xf32> to vector<8xf32>
    %36 = vector.shape_cast %35 : vector<8xf32> to vector<8x1xf32>
    %cst_28 = arith.constant 3.200000e+01 : f32
    %37 = vector.broadcast %cst_28 : f32 to vector<8x1xf32>
    %38 = arith.divf %36, %37 : vector<8x1xf32>
    %39 = vector.broadcast %31 : vector<8x1xf32> to vector<8x32xf32>
    %40 = arith.subf %3, %39 : vector<8x32xf32>
    %cst_29 = arith.constant 9.99999974E-6 : f32
    %41 = vector.broadcast %cst_29 : f32 to vector<8x1xf32>
    %42 = arith.addf %38, %41 : vector<8x1xf32>
    %43 = math.rsqrt %42 : vector<8x1xf32>
    %44 = vector.broadcast %43 : vector<8x1xf32> to vector<8x32xf32>
    %45 = arith.mulf %40, %44 : vector<8x32xf32>
    %46 = vector.broadcast %25 : vector<1x32xf32> to vector<8x32xf32>
    %47 = arith.mulf %45, %46 : vector<8x32xf32>
    %48 = vector.broadcast %27 : vector<1x32xf32> to vector<8x32xf32>
    %49 = arith.addf %47, %48 : vector<8x32xf32>
    %c0_30 = arith.constant 0 : index
    %c0_31 = arith.constant 0 : index
    %c0_32 = arith.constant 0 : index
    %c0_33 = arith.constant 0 : index
    %c0_34 = arith.constant 0 : index
    %50 = vector.load %arg6[%c0_30, %c0_31, %c0_32, %c0_33, %c0_34] : memref<2x3x4x32x8xbf16, #tpu.memory_space<vmem>>, vector<1x1x4x32x8xbf16>
    %51 = vector.shape_cast %50 : vector<1x1x4x32x8xbf16> to vector<4x32x8xbf16>
    %c0_35 = arith.constant 0 : index
    %c0_36 = arith.constant 0 : index
    %c0_37 = arith.constant 0 : index
    %c0_38 = arith.constant 0 : index
    %c0_39 = arith.constant 0 : index
    %52 = vector.load %arg7[%c0_35, %c0_36, %c0_37, %c0_38, %c0_39] : memref<2x3x4x1x8xf32, #tpu.memory_space<vmem>>, vector<1x1x4x1x8xf32>
    %53 = vector.shape_cast %52 : vector<1x1x4x1x8xf32> to vector<4x1x8xf32>
    %c0_40 = arith.constant 0 : index
    %c1_41 = arith.constant 1 : index
    %c0_42 = arith.constant 0 : index
    %c0_43 = arith.constant 0 : index
    %c0_44 = arith.constant 0 : index
    %54 = vector.load %arg6[%c0_40, %c1_41, %c0_42, %c0_43, %c0_44] : memref<2x3x4x32x8xbf16, #tpu.memory_space<vmem>>, vector<1x1x4x32x8xbf16>
    %55 = vector.shape_cast %54 : vector<1x1x4x32x8xbf16> to vector<4x32x8xbf16>
    %c0_45 = arith.constant 0 : index
    %c1_46 = arith.constant 1 : index
    %c0_47 = arith.constant 0 : index
    %c0_48 = arith.constant 0 : index
    %c0_49 = arith.constant 0 : index
    %56 = vector.load %arg7[%c0_45, %c1_46, %c0_47, %c0_48, %c0_49] : memref<2x3x4x1x8xf32, #tpu.memory_space<vmem>>, vector<1x1x4x1x8xf32>
    %57 = vector.shape_cast %56 : vector<1x1x4x1x8xf32> to vector<4x1x8xf32>
    %c0_50 = arith.constant 0 : index
    %c2 = arith.constant 2 : index
    %c0_51 = arith.constant 0 : index
    %c0_52 = arith.constant 0 : index
    %c0_53 = arith.constant 0 : index
    %58 = vector.load %arg6[%c0_50, %c2, %c0_51, %c0_52, %c0_53] : memref<2x3x4x32x8xbf16, #tpu.memory_space<vmem>>, vector<1x1x4x32x8xbf16>
    %59 = vector.shape_cast %58 : vector<1x1x4x32x8xbf16> to vector<4x32x8xbf16>
    %c0_54 = arith.constant 0 : index
    %c2_55 = arith.constant 2 : index
    %c0_56 = arith.constant 0 : index
    %c0_57 = arith.constant 0 : index
    %c0_58 = arith.constant 0 : index
    %60 = vector.load %arg7[%c0_54, %c2_55, %c0_56, %c0_57, %c0_58] : memref<2x3x4x1x8xf32, #tpu.memory_space<vmem>>, vector<1x1x4x1x8xf32>
    %61 = vector.shape_cast %60 : vector<1x1x4x1x8xf32> to vector<4x1x8xf32>
    %c0_59 = arith.constant 0 : index
    %c0_60 = arith.constant 0 : index
    %c0_61 = arith.constant 0 : index
    %c0_62 = arith.constant 0 : index
    %62 = vector.load %arg8[%c0_59, %c0_60, %c0_61, %c0_62] : memref<2x4x8x32xbf16, #tpu.memory_space<vmem>>, vector<1x4x8x32xbf16>
    %63 = vector.shape_cast %62 : vector<1x4x8x32xbf16> to vector<4x8x32xbf16>
    %c0_63 = arith.constant 0 : index
    %c0_64 = arith.constant 0 : index
    %c0_65 = arith.constant 0 : index
    %64 = vector.load %arg9[%c0_63, %c0_64, %c0_65] : memref<2x1x32xf32, #tpu.memory_space<vmem>>, vector<1x1x32xf32>
    %65 = vector.shape_cast %64 : vector<1x1x32xf32> to vector<1x32xf32>
    %66 = arith.truncf %49 : vector<8x32xf32> to vector<8x32xbf16>
    %67 = vector.shape_cast %66 : vector<8x32xbf16> to vector<1x8x32xbf16>
    %68 = vector.shape_cast %67 : vector<1x8x32xbf16> to vector<1x8x32xbf16>
    %69 = vector.broadcast %68 : vector<1x8x32xbf16> to vector<4x8x32xbf16>
    %70 = arith.truncf %49 : vector<8x32xf32> to vector<8x32xbf16>
    %71 = vector.shape_cast %70 : vector<8x32xbf16> to vector<1x8x32xbf16>
    %72 = vector.shape_cast %71 : vector<1x8x32xbf16> to vector<1x8x32xbf16>
    %73 = vector.broadcast %72 : vector<1x8x32xbf16> to vector<4x8x32xbf16>
    %cst_66 = arith.constant dense<0.000000e+00> : vector<4x8x8xf32>
    %74 = tpu.matmul %69, %51, %cst_66 {dimension_numbers = #tpu.dot_dimension_numbers<[2], [1], [1], [2], [0, 0, 0, 1, 1, 2], [0], [0]>} : vector<4x8x32xbf16>, vector<4x32x8xbf16>, vector<4x8x8xf32> -> vector<4x8x8xf32>
    %75 = vector.broadcast %53 : vector<4x1x8xf32> to vector<4x8x8xf32>
    %76 = arith.addf %74, %75 : vector<4x8x8xf32>
    %cst_67 = arith.constant dense<0.000000e+00> : vector<4x8x8xf32>
    %77 = tpu.matmul %73, %55, %cst_67 {dimension_numbers = #tpu.dot_dimension_numbers<[2], [1], [1], [2], [0, 0, 0, 1, 1, 2], [0], [0]>} : vector<4x8x32xbf16>, vector<4x32x8xbf16>, vector<4x8x8xf32> -> vector<4x8x8xf32>
    %78 = vector.broadcast %57 : vector<4x1x8xf32> to vector<4x8x8xf32>
    %79 = arith.addf %77, %78 : vector<4x8x8xf32>
    %cst_68 = arith.constant dense<0.000000e+00> : vector<4x8x8xf32>
    %80 = tpu.matmul %73, %59, %cst_68 {dimension_numbers = #tpu.dot_dimension_numbers<[2], [1], [1], [2], [0, 0, 0, 1, 1, 2], [0], [0]>} : vector<4x8x32xbf16>, vector<4x32x8xbf16>, vector<4x8x8xf32> -> vector<4x8x8xf32>
    %81 = vector.broadcast %61 : vector<4x1x8xf32> to vector<4x8x8xf32>
    %82 = arith.addf %80, %81 : vector<4x8x8xf32>
    %83 = arith.truncf %76 : vector<4x8x8xf32> to vector<4x8x8xbf16>
    %84 = arith.truncf %79 : vector<4x8x8xf32> to vector<4x8x8xbf16>
    %cst_69 = arith.constant dense<0.000000e+00> : vector<4x8x8xf32>
    %85 = tpu.matmul %83, %84, %cst_69 {dimension_numbers = #tpu.dot_dimension_numbers<[2], [2], [1], [1], [0, 0, 0, 1, 1, 1], [0], [0]>} : vector<4x8x8xbf16>, vector<4x8x8xbf16>, vector<4x8x8xf32> -> vector<4x8x8xf32>
    %cst_70 = arith.constant 0.353553385 : f32
    %86 = vector.broadcast %cst_70 : f32 to vector<4x8x8xf32>
    %87 = arith.mulf %85, %86 : vector<4x8x8xf32>
    %88 = vector.shape_cast %15 : vector<8x8xi1> to vector<1x8x8xi1>
    %cst_71 = arith.constant -1.000000e+09 : f32
    %89 = vector.shape_cast %88 : vector<1x8x8xi1> to vector<1x8x8xi1>
    %90 = vector.broadcast %89 : vector<1x8x8xi1> to vector<4x8x8xi1>
    %91 = vector.broadcast %cst_71 : f32 to vector<4x8x8xf32>
    %92 = arith.select %90, %87, %91 : vector<4x8x8xi1>, vector<4x8x8xf32>
    %cst_72 = arith.constant dense<0xFF800000> : vector<4x8xf32>
    %93 = vector.multi_reduction <maximumf>, %92, %cst_72 [2] : vector<4x8x8xf32> to vector<4x8xf32>
    %94 = vector.shape_cast %93 : vector<4x8xf32> to vector<4x8x1xf32>
    %95 = vector.broadcast %94 : vector<4x8x1xf32> to vector<4x8x8xf32>
    %96 = arith.subf %92, %95 : vector<4x8x8xf32>
    %97 = math.exp %96 : vector<4x8x8xf32>
    %cst_73 = arith.constant dense<0.000000e+00> : vector<4x8xf32>
    %98 = vector.multi_reduction <add>, %97, %cst_73 [2] : vector<4x8x8xf32> to vector<4x8xf32>
    %99 = vector.shape_cast %98 : vector<4x8xf32> to vector<4x8x1xf32>
    %100 = vector.broadcast %99 : vector<4x8x1xf32> to vector<4x8x8xf32>
    %101 = arith.divf %97, %100 : vector<4x8x8xf32>
    %102 = arith.truncf %101 : vector<4x8x8xf32> to vector<4x8x8xbf16>
    %103 = arith.truncf %82 : vector<4x8x8xf32> to vector<4x8x8xbf16>
    %cst_74 = arith.constant dense<0.000000e+00> : vector<4x8x8xf32>
    %104 = tpu.matmul %102, %103, %cst_74 {dimension_numbers = #tpu.dot_dimension_numbers<[2], [1], [1], [2], [0, 0, 0, 1, 1, 2], [0], [0]>} : vector<4x8x8xbf16>, vector<4x8x8xbf16>, vector<4x8x8xf32> -> vector<4x8x8xf32>
    %105 = arith.truncf %104 : vector<4x8x8xf32> to vector<4x8x8xbf16>
    %cst_75 = arith.constant dense<0.000000e+00> : vector<4x8x32xf32>
    %106 = tpu.matmul %105, %63, %cst_75 {dimension_numbers = #tpu.dot_dimension_numbers<[2], [1], [1], [2], [0, 0, 0, 1, 1, 2], [0], [0]>} : vector<4x8x8xbf16>, vector<4x8x32xbf16>, vector<4x8x32xf32> -> vector<4x8x32xf32>
    %cst_76 = arith.constant dense<0.000000e+00> : vector<8x32xf32>
    %107 = vector.multi_reduction <add>, %106, %cst_76 [0] : vector<4x8x32xf32> to vector<8x32xf32>
    %108 = vector.broadcast %65 : vector<1x32xf32> to vector<8x32xf32>
    %109 = arith.addf %107, %108 : vector<8x32xf32>
    %110 = arith.addf %3, %109 : vector<8x32xf32>
    %c0_77 = arith.constant 0 : index
    %c1_78 = arith.constant 1 : index
    %c0_79 = arith.constant 0 : index
    %c0_80 = arith.constant 0 : index
    %c0_81 = arith.constant 0 : index
    %111 = vector.load %arg5[%c0_77, %c1_78, %c0_79, %c0_80, %c0_81] : memref<2x2x2x1x32xf32, #tpu.memory_space<vmem>>, vector<1x1x1x1x32xf32>
    %112 = vector.shape_cast %111 : vector<1x1x1x1x32xf32> to vector<1x32xf32>
    %c0_82 = arith.constant 0 : index
    %c1_83 = arith.constant 1 : index
    %c1_84 = arith.constant 1 : index
    %c0_85 = arith.constant 0 : index
    %c0_86 = arith.constant 0 : index
    %113 = vector.load %arg5[%c0_82, %c1_83, %c1_84, %c0_85, %c0_86] : memref<2x2x2x1x32xf32, #tpu.memory_space<vmem>>, vector<1x1x1x1x32xf32>
    %114 = vector.shape_cast %113 : vector<1x1x1x1x32xf32> to vector<1x32xf32>
    %cst_87 = arith.constant dense<0.000000e+00> : vector<8xf32>
    %115 = vector.multi_reduction <add>, %110, %cst_87 [1] : vector<8x32xf32> to vector<8xf32>
    %116 = vector.shape_cast %115 : vector<8xf32> to vector<8x1xf32>
    %cst_88 = arith.constant 3.200000e+01 : f32
    %117 = vector.broadcast %cst_88 : f32 to vector<8x1xf32>
    %118 = arith.divf %116, %117 : vector<8x1xf32>
    %119 = vector.broadcast %118 : vector<8x1xf32> to vector<8x32xf32>
    %120 = arith.subf %110, %119 : vector<8x32xf32>
    %121 = arith.mulf %120, %120 : vector<8x32xf32>
    %cst_89 = arith.constant dense<0.000000e+00> : vector<8xf32>
    %122 = vector.multi_reduction <add>, %121, %cst_89 [1] : vector<8x32xf32> to vector<8xf32>
    %123 = vector.shape_cast %122 : vector<8xf32> to vector<8x1xf32>
    %cst_90 = arith.constant 3.200000e+01 : f32
    %124 = vector.broadcast %cst_90 : f32 to vector<8x1xf32>
    %125 = arith.divf %123, %124 : vector<8x1xf32>
    %126 = vector.broadcast %118 : vector<8x1xf32> to vector<8x32xf32>
    %127 = arith.subf %110, %126 : vector<8x32xf32>
    %cst_91 = arith.constant 9.99999974E-6 : f32
    %128 = vector.broadcast %cst_91 : f32 to vector<8x1xf32>
    %129 = arith.addf %125, %128 : vector<8x1xf32>
    %130 = math.rsqrt %129 : vector<8x1xf32>
    %131 = vector.broadcast %130 : vector<8x1xf32> to vector<8x32xf32>
    %132 = arith.mulf %127, %131 : vector<8x32xf32>
    %133 = vector.broadcast %112 : vector<1x32xf32> to vector<8x32xf32>
    %134 = arith.mulf %132, %133 : vector<8x32xf32>
    %135 = vector.broadcast %114 : vector<1x32xf32> to vector<8x32xf32>
    %136 = arith.addf %134, %135 : vector<8x32xf32>
    %c0_92 = arith.constant 0 : index
    %c0_93 = arith.constant 0 : index
    %c0_94 = arith.constant 0 : index
    %137 = vector.load %arg10[%c0_92, %c0_93, %c0_94] : memref<2x32x32xbf16, #tpu.memory_space<vmem>>, vector<1x32x32xbf16>
    %138 = vector.shape_cast %137 : vector<1x32x32xbf16> to vector<32x32xbf16>
    %139 = arith.truncf %136 : vector<8x32xf32> to vector<8x32xbf16>
    %cst_95 = arith.constant dense<0.000000e+00> : vector<8x32xf32>
    %140 = tpu.matmul %139, %138, %cst_95 {dimension_numbers = #tpu.dot_dimension_numbers<[1], [0], [0], [1], [0, 0, 1, 1], [], []>} : vector<8x32xbf16>, vector<32x32xbf16>, vector<8x32xf32> -> vector<8x32xf32>
    %c0_96 = arith.constant 0 : index
    %c0_97 = arith.constant 0 : index
    %c0_98 = arith.constant 0 : index
    %141 = vector.load %arg11[%c0_96, %c0_97, %c0_98] : memref<2x1x32xf32, #tpu.memory_space<vmem>>, vector<1x1x32xf32>
    %142 = vector.shape_cast %141 : vector<1x1x32xf32> to vector<1x32xf32>
    %143 = vector.broadcast %142 : vector<1x32xf32> to vector<8x32xf32>
    %144 = arith.addf %140, %143 : vector<8x32xf32>
    %cst_99 = arith.constant 0.000000e+00 : f32
    %145 = vector.broadcast %cst_99 : f32 to vector<8x32xf32>
    %146 = arith.maximumf %144, %145 : vector<8x32xf32>
    %147 = arith.addf %110, %146 : vector<8x32xf32>
    %c1_100 = arith.constant 1 : index
    %c0_101 = arith.constant 0 : index
    %c0_102 = arith.constant 0 : index
    %c0_103 = arith.constant 0 : index
    %c0_104 = arith.constant 0 : index
    %148 = vector.load %arg5[%c1_100, %c0_101, %c0_102, %c0_103, %c0_104] : memref<2x2x2x1x32xf32, #tpu.memory_space<vmem>>, vector<1x1x1x1x32xf32>
    %149 = vector.shape_cast %148 : vector<1x1x1x1x32xf32> to vector<1x32xf32>
    %c1_105 = arith.constant 1 : index
    %c0_106 = arith.constant 0 : index
    %c1_107 = arith.constant 1 : index
    %c0_108 = arith.constant 0 : index
    %c0_109 = arith.constant 0 : index
    %150 = vector.load %arg5[%c1_105, %c0_106, %c1_107, %c0_108, %c0_109] : memref<2x2x2x1x32xf32, #tpu.memory_space<vmem>>, vector<1x1x1x1x32xf32>
    %151 = vector.shape_cast %150 : vector<1x1x1x1x32xf32> to vector<1x32xf32>
    %cst_110 = arith.constant dense<0.000000e+00> : vector<8xf32>
    %152 = vector.multi_reduction <add>, %147, %cst_110 [1] : vector<8x32xf32> to vector<8xf32>
    %153 = vector.shape_cast %152 : vector<8xf32> to vector<8x1xf32>
    %cst_111 = arith.constant 3.200000e+01 : f32
    %154 = vector.broadcast %cst_111 : f32 to vector<8x1xf32>
    %155 = arith.divf %153, %154 : vector<8x1xf32>
    %156 = vector.broadcast %155 : vector<8x1xf32> to vector<8x32xf32>
    %157 = arith.subf %147, %156 : vector<8x32xf32>
    %158 = arith.mulf %157, %157 : vector<8x32xf32>
    %cst_112 = arith.constant dense<0.000000e+00> : vector<8xf32>
    %159 = vector.multi_reduction <add>, %158, %cst_112 [1] : vector<8x32xf32> to vector<8xf32>
    %160 = vector.shape_cast %159 : vector<8xf32> to vector<8x1xf32>
    %cst_113 = arith.constant 3.200000e+01 : f32
    %161 = vector.broadcast %cst_113 : f32 to vector<8x1xf32>
    %162 = arith.divf %160, %161 : vector<8x1xf32>
    %163 = vector.broadcast %155 : vector<8x1xf32> to vector<8x32xf32>
    %164 = arith.subf %147, %163 : vector<8x32xf32>
    %cst_114 = arith.constant 9.99999974E-6 : f32
    %165 = vector.broadcast %cst_114 : f32 to vector<8x1xf32>
    %166 = arith.addf %162, %165 : vector<8x1xf32>
    %167 = math.rsqrt %166 : vector<8x1xf32>
    %168 = vector.broadcast %167 : vector<8x1xf32> to vector<8x32xf32>
    %169 = arith.mulf %164, %168 : vector<8x32xf32>
    %170 = vector.broadcast %149 : vector<1x32xf32> to vector<8x32xf32>
    %171 = arith.mulf %169, %170 : vector<8x32xf32>
    %172 = vector.broadcast %151 : vector<1x32xf32> to vector<8x32xf32>
    %173 = arith.addf %171, %172 : vector<8x32xf32>
    %c1_115 = arith.constant 1 : index
    %c0_116 = arith.constant 0 : index
    %c0_117 = arith.constant 0 : index
    %c0_118 = arith.constant 0 : index
    %c0_119 = arith.constant 0 : index
    %174 = vector.load %arg6[%c1_115, %c0_116, %c0_117, %c0_118, %c0_119] : memref<2x3x4x32x8xbf16, #tpu.memory_space<vmem>>, vector<1x1x4x32x8xbf16>
    %175 = vector.shape_cast %174 : vector<1x1x4x32x8xbf16> to vector<4x32x8xbf16>
    %c1_120 = arith.constant 1 : index
    %c0_121 = arith.constant 0 : index
    %c0_122 = arith.constant 0 : index
    %c0_123 = arith.constant 0 : index
    %c0_124 = arith.constant 0 : index
    %176 = vector.load %arg7[%c1_120, %c0_121, %c0_122, %c0_123, %c0_124] : memref<2x3x4x1x8xf32, #tpu.memory_space<vmem>>, vector<1x1x4x1x8xf32>
    %177 = vector.shape_cast %176 : vector<1x1x4x1x8xf32> to vector<4x1x8xf32>
    %c1_125 = arith.constant 1 : index
    %c1_126 = arith.constant 1 : index
    %c0_127 = arith.constant 0 : index
    %c0_128 = arith.constant 0 : index
    %c0_129 = arith.constant 0 : index
    %178 = vector.load %arg6[%c1_125, %c1_126, %c0_127, %c0_128, %c0_129] : memref<2x3x4x32x8xbf16, #tpu.memory_space<vmem>>, vector<1x1x4x32x8xbf16>
    %179 = vector.shape_cast %178 : vector<1x1x4x32x8xbf16> to vector<4x32x8xbf16>
    %c1_130 = arith.constant 1 : index
    %c1_131 = arith.constant 1 : index
    %c0_132 = arith.constant 0 : index
    %c0_133 = arith.constant 0 : index
    %c0_134 = arith.constant 0 : index
    %180 = vector.load %arg7[%c1_130, %c1_131, %c0_132, %c0_133, %c0_134] : memref<2x3x4x1x8xf32, #tpu.memory_space<vmem>>, vector<1x1x4x1x8xf32>
    %181 = vector.shape_cast %180 : vector<1x1x4x1x8xf32> to vector<4x1x8xf32>
    %c1_135 = arith.constant 1 : index
    %c2_136 = arith.constant 2 : index
    %c0_137 = arith.constant 0 : index
    %c0_138 = arith.constant 0 : index
    %c0_139 = arith.constant 0 : index
    %182 = vector.load %arg6[%c1_135, %c2_136, %c0_137, %c0_138, %c0_139] : memref<2x3x4x32x8xbf16, #tpu.memory_space<vmem>>, vector<1x1x4x32x8xbf16>
    %183 = vector.shape_cast %182 : vector<1x1x4x32x8xbf16> to vector<4x32x8xbf16>
    %c1_140 = arith.constant 1 : index
    %c2_141 = arith.constant 2 : index
    %c0_142 = arith.constant 0 : index
    %c0_143 = arith.constant 0 : index
    %c0_144 = arith.constant 0 : index
    %184 = vector.load %arg7[%c1_140, %c2_141, %c0_142, %c0_143, %c0_144] : memref<2x3x4x1x8xf32, #tpu.memory_space<vmem>>, vector<1x1x4x1x8xf32>
    %185 = vector.shape_cast %184 : vector<1x1x4x1x8xf32> to vector<4x1x8xf32>
    %c1_145 = arith.constant 1 : index
    %c0_146 = arith.constant 0 : index
    %c0_147 = arith.constant 0 : index
    %c0_148 = arith.constant 0 : index
    %186 = vector.load %arg8[%c1_145, %c0_146, %c0_147, %c0_148] : memref<2x4x8x32xbf16, #tpu.memory_space<vmem>>, vector<1x4x8x32xbf16>
    %187 = vector.shape_cast %186 : vector<1x4x8x32xbf16> to vector<4x8x32xbf16>
    %c1_149 = arith.constant 1 : index
    %c0_150 = arith.constant 0 : index
    %c0_151 = arith.constant 0 : index
    %188 = vector.load %arg9[%c1_149, %c0_150, %c0_151] : memref<2x1x32xf32, #tpu.memory_space<vmem>>, vector<1x1x32xf32>
    %189 = vector.shape_cast %188 : vector<1x1x32xf32> to vector<1x32xf32>
    %190 = arith.truncf %173 : vector<8x32xf32> to vector<8x32xbf16>
    %191 = vector.shape_cast %190 : vector<8x32xbf16> to vector<1x8x32xbf16>
    %192 = vector.shape_cast %191 : vector<1x8x32xbf16> to vector<1x8x32xbf16>
    %193 = vector.broadcast %192 : vector<1x8x32xbf16> to vector<4x8x32xbf16>
    %194 = arith.truncf %173 : vector<8x32xf32> to vector<8x32xbf16>
    %195 = vector.shape_cast %194 : vector<8x32xbf16> to vector<1x8x32xbf16>
    %196 = vector.shape_cast %195 : vector<1x8x32xbf16> to vector<1x8x32xbf16>
    %197 = vector.broadcast %196 : vector<1x8x32xbf16> to vector<4x8x32xbf16>
    %cst_152 = arith.constant dense<0.000000e+00> : vector<4x8x8xf32>
    %198 = tpu.matmul %193, %175, %cst_152 {dimension_numbers = #tpu.dot_dimension_numbers<[2], [1], [1], [2], [0, 0, 0, 1, 1, 2], [0], [0]>} : vector<4x8x32xbf16>, vector<4x32x8xbf16>, vector<4x8x8xf32> -> vector<4x8x8xf32>
    %199 = vector.broadcast %177 : vector<4x1x8xf32> to vector<4x8x8xf32>
    %200 = arith.addf %198, %199 : vector<4x8x8xf32>
    %cst_153 = arith.constant dense<0.000000e+00> : vector<4x8x8xf32>
    %201 = tpu.matmul %197, %179, %cst_153 {dimension_numbers = #tpu.dot_dimension_numbers<[2], [1], [1], [2], [0, 0, 0, 1, 1, 2], [0], [0]>} : vector<4x8x32xbf16>, vector<4x32x8xbf16>, vector<4x8x8xf32> -> vector<4x8x8xf32>
    %202 = vector.broadcast %181 : vector<4x1x8xf32> to vector<4x8x8xf32>
    %203 = arith.addf %201, %202 : vector<4x8x8xf32>
    %cst_154 = arith.constant dense<0.000000e+00> : vector<4x8x8xf32>
    %204 = tpu.matmul %197, %183, %cst_154 {dimension_numbers = #tpu.dot_dimension_numbers<[2], [1], [1], [2], [0, 0, 0, 1, 1, 2], [0], [0]>} : vector<4x8x32xbf16>, vector<4x32x8xbf16>, vector<4x8x8xf32> -> vector<4x8x8xf32>
    %205 = vector.broadcast %185 : vector<4x1x8xf32> to vector<4x8x8xf32>
    %206 = arith.addf %204, %205 : vector<4x8x8xf32>
    %207 = arith.truncf %200 : vector<4x8x8xf32> to vector<4x8x8xbf16>
    %208 = arith.truncf %203 : vector<4x8x8xf32> to vector<4x8x8xbf16>
    %cst_155 = arith.constant dense<0.000000e+00> : vector<4x8x8xf32>
    %209 = tpu.matmul %207, %208, %cst_155 {dimension_numbers = #tpu.dot_dimension_numbers<[2], [2], [1], [1], [0, 0, 0, 1, 1, 1], [0], [0]>} : vector<4x8x8xbf16>, vector<4x8x8xbf16>, vector<4x8x8xf32> -> vector<4x8x8xf32>
    %cst_156 = arith.constant 0.353553385 : f32
    %210 = vector.broadcast %cst_156 : f32 to vector<4x8x8xf32>
    %211 = arith.mulf %209, %210 : vector<4x8x8xf32>
    %212 = vector.shape_cast %15 : vector<8x8xi1> to vector<1x8x8xi1>
    %cst_157 = arith.constant -1.000000e+09 : f32
    %213 = vector.shape_cast %212 : vector<1x8x8xi1> to vector<1x8x8xi1>
    %214 = vector.broadcast %213 : vector<1x8x8xi1> to vector<4x8x8xi1>
    %215 = vector.broadcast %cst_157 : f32 to vector<4x8x8xf32>
    %216 = arith.select %214, %211, %215 : vector<4x8x8xi1>, vector<4x8x8xf32>
    %cst_158 = arith.constant dense<0xFF800000> : vector<4x8xf32>
    %217 = vector.multi_reduction <maximumf>, %216, %cst_158 [2] : vector<4x8x8xf32> to vector<4x8xf32>
    %218 = vector.shape_cast %217 : vector<4x8xf32> to vector<4x8x1xf32>
    %219 = vector.broadcast %218 : vector<4x8x1xf32> to vector<4x8x8xf32>
    %220 = arith.subf %216, %219 : vector<4x8x8xf32>
    %221 = math.exp %220 : vector<4x8x8xf32>
    %cst_159 = arith.constant dense<0.000000e+00> : vector<4x8xf32>
    %222 = vector.multi_reduction <add>, %221, %cst_159 [2] : vector<4x8x8xf32> to vector<4x8xf32>
    %223 = vector.shape_cast %222 : vector<4x8xf32> to vector<4x8x1xf32>
    %224 = vector.broadcast %223 : vector<4x8x1xf32> to vector<4x8x8xf32>
    %225 = arith.divf %221, %224 : vector<4x8x8xf32>
    %226 = arith.truncf %225 : vector<4x8x8xf32> to vector<4x8x8xbf16>
    %227 = arith.truncf %206 : vector<4x8x8xf32> to vector<4x8x8xbf16>
    %cst_160 = arith.constant dense<0.000000e+00> : vector<4x8x8xf32>
    %228 = tpu.matmul %226, %227, %cst_160 {dimension_numbers = #tpu.dot_dimension_numbers<[2], [1], [1], [2], [0, 0, 0, 1, 1, 2], [0], [0]>} : vector<4x8x8xbf16>, vector<4x8x8xbf16>, vector<4x8x8xf32> -> vector<4x8x8xf32>
    %229 = arith.truncf %228 : vector<4x8x8xf32> to vector<4x8x8xbf16>
    %cst_161 = arith.constant dense<0.000000e+00> : vector<4x8x32xf32>
    %230 = tpu.matmul %229, %187, %cst_161 {dimension_numbers = #tpu.dot_dimension_numbers<[2], [1], [1], [2], [0, 0, 0, 1, 1, 2], [0], [0]>} : vector<4x8x8xbf16>, vector<4x8x32xbf16>, vector<4x8x32xf32> -> vector<4x8x32xf32>
    %cst_162 = arith.constant dense<0.000000e+00> : vector<8x32xf32>
    %231 = vector.multi_reduction <add>, %230, %cst_162 [0] : vector<4x8x32xf32> to vector<8x32xf32>
    %232 = vector.broadcast %189 : vector<1x32xf32> to vector<8x32xf32>
    %233 = arith.addf %231, %232 : vector<8x32xf32>
    %234 = arith.addf %147, %233 : vector<8x32xf32>
    %c1_163 = arith.constant 1 : index
    %c1_164 = arith.constant 1 : index
    %c0_165 = arith.constant 0 : index
    %c0_166 = arith.constant 0 : index
    %c0_167 = arith.constant 0 : index
    %235 = vector.load %arg5[%c1_163, %c1_164, %c0_165, %c0_166, %c0_167] : memref<2x2x2x1x32xf32, #tpu.memory_space<vmem>>, vector<1x1x1x1x32xf32>
    %236 = vector.shape_cast %235 : vector<1x1x1x1x32xf32> to vector<1x32xf32>
    %c1_168 = arith.constant 1 : index
    %c1_169 = arith.constant 1 : index
    %c1_170 = arith.constant 1 : index
    %c0_171 = arith.constant 0 : index
    %c0_172 = arith.constant 0 : index
    %237 = vector.load %arg5[%c1_168, %c1_169, %c1_170, %c0_171, %c0_172] : memref<2x2x2x1x32xf32, #tpu.memory_space<vmem>>, vector<1x1x1x1x32xf32>
    %238 = vector.shape_cast %237 : vector<1x1x1x1x32xf32> to vector<1x32xf32>
    %cst_173 = arith.constant dense<0.000000e+00> : vector<8xf32>
    %239 = vector.multi_reduction <add>, %234, %cst_173 [1] : vector<8x32xf32> to vector<8xf32>
    %240 = vector.shape_cast %239 : vector<8xf32> to vector<8x1xf32>
    %cst_174 = arith.constant 3.200000e+01 : f32
    %241 = vector.broadcast %cst_174 : f32 to vector<8x1xf32>
    %242 = arith.divf %240, %241 : vector<8x1xf32>
    %243 = vector.broadcast %242 : vector<8x1xf32> to vector<8x32xf32>
    %244 = arith.subf %234, %243 : vector<8x32xf32>
    %245 = arith.mulf %244, %244 : vector<8x32xf32>
    %cst_175 = arith.constant dense<0.000000e+00> : vector<8xf32>
    %246 = vector.multi_reduction <add>, %245, %cst_175 [1] : vector<8x32xf32> to vector<8xf32>
    %247 = vector.shape_cast %246 : vector<8xf32> to vector<8x1xf32>
    %cst_176 = arith.constant 3.200000e+01 : f32
    %248 = vector.broadcast %cst_176 : f32 to vector<8x1xf32>
    %249 = arith.divf %247, %248 : vector<8x1xf32>
    %250 = vector.broadcast %242 : vector<8x1xf32> to vector<8x32xf32>
    %251 = arith.subf %234, %250 : vector<8x32xf32>
    %cst_177 = arith.constant 9.99999974E-6 : f32
    %252 = vector.broadcast %cst_177 : f32 to vector<8x1xf32>
    %253 = arith.addf %249, %252 : vector<8x1xf32>
    %254 = math.rsqrt %253 : vector<8x1xf32>
    %255 = vector.broadcast %254 : vector<8x1xf32> to vector<8x32xf32>
    %256 = arith.mulf %251, %255 : vector<8x32xf32>
    %257 = vector.broadcast %236 : vector<1x32xf32> to vector<8x32xf32>
    %258 = arith.mulf %256, %257 : vector<8x32xf32>
    %259 = vector.broadcast %238 : vector<1x32xf32> to vector<8x32xf32>
    %260 = arith.addf %258, %259 : vector<8x32xf32>
    %c1_178 = arith.constant 1 : index
    %c0_179 = arith.constant 0 : index
    %c0_180 = arith.constant 0 : index
    %261 = vector.load %arg10[%c1_178, %c0_179, %c0_180] : memref<2x32x32xbf16, #tpu.memory_space<vmem>>, vector<1x32x32xbf16>
    %262 = vector.shape_cast %261 : vector<1x32x32xbf16> to vector<32x32xbf16>
    %263 = arith.truncf %260 : vector<8x32xf32> to vector<8x32xbf16>
    %cst_181 = arith.constant dense<0.000000e+00> : vector<8x32xf32>
    %264 = tpu.matmul %263, %262, %cst_181 {dimension_numbers = #tpu.dot_dimension_numbers<[1], [0], [0], [1], [0, 0, 1, 1], [], []>} : vector<8x32xbf16>, vector<32x32xbf16>, vector<8x32xf32> -> vector<8x32xf32>
    %c1_182 = arith.constant 1 : index
    %c0_183 = arith.constant 0 : index
    %c0_184 = arith.constant 0 : index
    %265 = vector.load %arg11[%c1_182, %c0_183, %c0_184] : memref<2x1x32xf32, #tpu.memory_space<vmem>>, vector<1x1x32xf32>
    %266 = vector.shape_cast %265 : vector<1x1x32xf32> to vector<1x32xf32>
    %267 = vector.broadcast %266 : vector<1x32xf32> to vector<8x32xf32>
    %268 = arith.addf %264, %267 : vector<8x32xf32>
    %cst_185 = arith.constant 0.000000e+00 : f32
    %269 = vector.broadcast %cst_185 : f32 to vector<8x32xf32>
    %270 = arith.maximumf %268, %269 : vector<8x32xf32>
    %271 = arith.addf %234, %270 : vector<8x32xf32>
    %c0_186 = arith.constant 0 : index
    %c0_187 = arith.constant 0 : index
    %c0_188 = arith.constant 0 : index
    %c0_189 = arith.constant 0 : index
    %c0_190 = arith.constant 0 : index
    %272 = vector.load %arg12[%c0_186, %c0_187, %c0_188, %c0_189, %c0_190] : memref<2x3x2x1x32xf32, #tpu.memory_space<vmem>>, vector<1x1x1x1x32xf32>
    %273 = vector.shape_cast %272 : vector<1x1x1x1x32xf32> to vector<1x32xf32>
    %c0_191 = arith.constant 0 : index
    %c0_192 = arith.constant 0 : index
    %c1_193 = arith.constant 1 : index
    %c0_194 = arith.constant 0 : index
    %c0_195 = arith.constant 0 : index
    %274 = vector.load %arg12[%c0_191, %c0_192, %c1_193, %c0_194, %c0_195] : memref<2x3x2x1x32xf32, #tpu.memory_space<vmem>>, vector<1x1x1x1x32xf32>
    %275 = vector.shape_cast %274 : vector<1x1x1x1x32xf32> to vector<1x32xf32>
    %cst_196 = arith.constant dense<0.000000e+00> : vector<8xf32>
    %276 = vector.multi_reduction <add>, %5, %cst_196 [1] : vector<8x32xf32> to vector<8xf32>
    %277 = vector.shape_cast %276 : vector<8xf32> to vector<8x1xf32>
    %cst_197 = arith.constant 3.200000e+01 : f32
    %278 = vector.broadcast %cst_197 : f32 to vector<8x1xf32>
    %279 = arith.divf %277, %278 : vector<8x1xf32>
    %280 = vector.broadcast %279 : vector<8x1xf32> to vector<8x32xf32>
    %281 = arith.subf %5, %280 : vector<8x32xf32>
    %282 = arith.mulf %281, %281 : vector<8x32xf32>
    %cst_198 = arith.constant dense<0.000000e+00> : vector<8xf32>
    %283 = vector.multi_reduction <add>, %282, %cst_198 [1] : vector<8x32xf32> to vector<8xf32>
    %284 = vector.shape_cast %283 : vector<8xf32> to vector<8x1xf32>
    %cst_199 = arith.constant 3.200000e+01 : f32
    %285 = vector.broadcast %cst_199 : f32 to vector<8x1xf32>
    %286 = arith.divf %284, %285 : vector<8x1xf32>
    %287 = vector.broadcast %279 : vector<8x1xf32> to vector<8x32xf32>
    %288 = arith.subf %5, %287 : vector<8x32xf32>
    %cst_200 = arith.constant 9.99999974E-6 : f32
    %289 = vector.broadcast %cst_200 : f32 to vector<8x1xf32>
    %290 = arith.addf %286, %289 : vector<8x1xf32>
    %291 = math.rsqrt %290 : vector<8x1xf32>
    %292 = vector.broadcast %291 : vector<8x1xf32> to vector<8x32xf32>
    %293 = arith.mulf %288, %292 : vector<8x32xf32>
    %294 = vector.broadcast %273 : vector<1x32xf32> to vector<8x32xf32>
    %295 = arith.mulf %293, %294 : vector<8x32xf32>
    %296 = vector.broadcast %275 : vector<1x32xf32> to vector<8x32xf32>
    %297 = arith.addf %295, %296 : vector<8x32xf32>
    %c0_201 = arith.constant 0 : index
    %c0_202 = arith.constant 0 : index
    %c0_203 = arith.constant 0 : index
    %c0_204 = arith.constant 0 : index
    %c0_205 = arith.constant 0 : index
    %298 = vector.load %arg13[%c0_201, %c0_202, %c0_203, %c0_204, %c0_205] : memref<2x3x4x32x8xbf16, #tpu.memory_space<vmem>>, vector<1x1x4x32x8xbf16>
    %299 = vector.shape_cast %298 : vector<1x1x4x32x8xbf16> to vector<4x32x8xbf16>
    %c0_206 = arith.constant 0 : index
    %c0_207 = arith.constant 0 : index
    %c0_208 = arith.constant 0 : index
    %c0_209 = arith.constant 0 : index
    %c0_210 = arith.constant 0 : index
    %300 = vector.load %arg14[%c0_206, %c0_207, %c0_208, %c0_209, %c0_210] : memref<2x3x4x1x8xf32, #tpu.memory_space<vmem>>, vector<1x1x4x1x8xf32>
    %301 = vector.shape_cast %300 : vector<1x1x4x1x8xf32> to vector<4x1x8xf32>
    %c0_211 = arith.constant 0 : index
    %c1_212 = arith.constant 1 : index
    %c0_213 = arith.constant 0 : index
    %c0_214 = arith.constant 0 : index
    %c0_215 = arith.constant 0 : index
    %302 = vector.load %arg13[%c0_211, %c1_212, %c0_213, %c0_214, %c0_215] : memref<2x3x4x32x8xbf16, #tpu.memory_space<vmem>>, vector<1x1x4x32x8xbf16>
    %303 = vector.shape_cast %302 : vector<1x1x4x32x8xbf16> to vector<4x32x8xbf16>
    %c0_216 = arith.constant 0 : index
    %c1_217 = arith.constant 1 : index
    %c0_218 = arith.constant 0 : index
    %c0_219 = arith.constant 0 : index
    %c0_220 = arith.constant 0 : index
    %304 = vector.load %arg14[%c0_216, %c1_217, %c0_218, %c0_219, %c0_220] : memref<2x3x4x1x8xf32, #tpu.memory_space<vmem>>, vector<1x1x4x1x8xf32>
    %305 = vector.shape_cast %304 : vector<1x1x4x1x8xf32> to vector<4x1x8xf32>
    %c0_221 = arith.constant 0 : index
    %c2_222 = arith.constant 2 : index
    %c0_223 = arith.constant 0 : index
    %c0_224 = arith.constant 0 : index
    %c0_225 = arith.constant 0 : index
    %306 = vector.load %arg13[%c0_221, %c2_222, %c0_223, %c0_224, %c0_225] : memref<2x3x4x32x8xbf16, #tpu.memory_space<vmem>>, vector<1x1x4x32x8xbf16>
    %307 = vector.shape_cast %306 : vector<1x1x4x32x8xbf16> to vector<4x32x8xbf16>
    %c0_226 = arith.constant 0 : index
    %c2_227 = arith.constant 2 : index
    %c0_228 = arith.constant 0 : index
    %c0_229 = arith.constant 0 : index
    %c0_230 = arith.constant 0 : index
    %308 = vector.load %arg14[%c0_226, %c2_227, %c0_228, %c0_229, %c0_230] : memref<2x3x4x1x8xf32, #tpu.memory_space<vmem>>, vector<1x1x4x1x8xf32>
    %309 = vector.shape_cast %308 : vector<1x1x4x1x8xf32> to vector<4x1x8xf32>
    %c0_231 = arith.constant 0 : index
    %c0_232 = arith.constant 0 : index
    %c0_233 = arith.constant 0 : index
    %c0_234 = arith.constant 0 : index
    %310 = vector.load %arg15[%c0_231, %c0_232, %c0_233, %c0_234] : memref<2x4x8x32xbf16, #tpu.memory_space<vmem>>, vector<1x4x8x32xbf16>
    %311 = vector.shape_cast %310 : vector<1x4x8x32xbf16> to vector<4x8x32xbf16>
    %c0_235 = arith.constant 0 : index
    %c0_236 = arith.constant 0 : index
    %c0_237 = arith.constant 0 : index
    %312 = vector.load %arg16[%c0_235, %c0_236, %c0_237] : memref<2x1x32xf32, #tpu.memory_space<vmem>>, vector<1x1x32xf32>
    %313 = vector.shape_cast %312 : vector<1x1x32xf32> to vector<1x32xf32>
    %314 = arith.truncf %297 : vector<8x32xf32> to vector<8x32xbf16>
    %315 = vector.shape_cast %314 : vector<8x32xbf16> to vector<1x8x32xbf16>
    %316 = vector.shape_cast %315 : vector<1x8x32xbf16> to vector<1x8x32xbf16>
    %317 = vector.broadcast %316 : vector<1x8x32xbf16> to vector<4x8x32xbf16>
    %318 = arith.truncf %297 : vector<8x32xf32> to vector<8x32xbf16>
    %319 = vector.shape_cast %318 : vector<8x32xbf16> to vector<1x8x32xbf16>
    %320 = vector.shape_cast %319 : vector<1x8x32xbf16> to vector<1x8x32xbf16>
    %321 = vector.broadcast %320 : vector<1x8x32xbf16> to vector<4x8x32xbf16>
    %cst_238 = arith.constant dense<0.000000e+00> : vector<4x8x8xf32>
    %322 = tpu.matmul %317, %299, %cst_238 {dimension_numbers = #tpu.dot_dimension_numbers<[2], [1], [1], [2], [0, 0, 0, 1, 1, 2], [0], [0]>} : vector<4x8x32xbf16>, vector<4x32x8xbf16>, vector<4x8x8xf32> -> vector<4x8x8xf32>
    %323 = vector.broadcast %301 : vector<4x1x8xf32> to vector<4x8x8xf32>
    %324 = arith.addf %322, %323 : vector<4x8x8xf32>
    %cst_239 = arith.constant dense<0.000000e+00> : vector<4x8x8xf32>
    %325 = tpu.matmul %321, %303, %cst_239 {dimension_numbers = #tpu.dot_dimension_numbers<[2], [1], [1], [2], [0, 0, 0, 1, 1, 2], [0], [0]>} : vector<4x8x32xbf16>, vector<4x32x8xbf16>, vector<4x8x8xf32> -> vector<4x8x8xf32>
    %326 = vector.broadcast %305 : vector<4x1x8xf32> to vector<4x8x8xf32>
    %327 = arith.addf %325, %326 : vector<4x8x8xf32>
    %cst_240 = arith.constant dense<0.000000e+00> : vector<4x8x8xf32>
    %328 = tpu.matmul %321, %307, %cst_240 {dimension_numbers = #tpu.dot_dimension_numbers<[2], [1], [1], [2], [0, 0, 0, 1, 1, 2], [0], [0]>} : vector<4x8x32xbf16>, vector<4x32x8xbf16>, vector<4x8x8xf32> -> vector<4x8x8xf32>
    %329 = vector.broadcast %309 : vector<4x1x8xf32> to vector<4x8x8xf32>
    %330 = arith.addf %328, %329 : vector<4x8x8xf32>
    %331 = arith.truncf %324 : vector<4x8x8xf32> to vector<4x8x8xbf16>
    %332 = arith.truncf %327 : vector<4x8x8xf32> to vector<4x8x8xbf16>
    %cst_241 = arith.constant dense<0.000000e+00> : vector<4x8x8xf32>
    %333 = tpu.matmul %331, %332, %cst_241 {dimension_numbers = #tpu.dot_dimension_numbers<[2], [2], [1], [1], [0, 0, 0, 1, 1, 1], [0], [0]>} : vector<4x8x8xbf16>, vector<4x8x8xbf16>, vector<4x8x8xf32> -> vector<4x8x8xf32>
    %cst_242 = arith.constant 0.353553385 : f32
    %334 = vector.broadcast %cst_242 : f32 to vector<4x8x8xf32>
    %335 = arith.mulf %333, %334 : vector<4x8x8xf32>
    %336 = vector.shape_cast %23 : vector<8x8xi1> to vector<1x8x8xi1>
    %cst_243 = arith.constant -1.000000e+09 : f32
    %337 = vector.shape_cast %336 : vector<1x8x8xi1> to vector<1x8x8xi1>
    %338 = vector.broadcast %337 : vector<1x8x8xi1> to vector<4x8x8xi1>
    %339 = vector.broadcast %cst_243 : f32 to vector<4x8x8xf32>
    %340 = arith.select %338, %335, %339 : vector<4x8x8xi1>, vector<4x8x8xf32>
    %cst_244 = arith.constant dense<0xFF800000> : vector<4x8xf32>
    %341 = vector.multi_reduction <maximumf>, %340, %cst_244 [2] : vector<4x8x8xf32> to vector<4x8xf32>
    %342 = vector.shape_cast %341 : vector<4x8xf32> to vector<4x8x1xf32>
    %343 = vector.broadcast %342 : vector<4x8x1xf32> to vector<4x8x8xf32>
    %344 = arith.subf %340, %343 : vector<4x8x8xf32>
    %345 = math.exp %344 : vector<4x8x8xf32>
    %cst_245 = arith.constant dense<0.000000e+00> : vector<4x8xf32>
    %346 = vector.multi_reduction <add>, %345, %cst_245 [2] : vector<4x8x8xf32> to vector<4x8xf32>
    %347 = vector.shape_cast %346 : vector<4x8xf32> to vector<4x8x1xf32>
    %348 = vector.broadcast %347 : vector<4x8x1xf32> to vector<4x8x8xf32>
    %349 = arith.divf %345, %348 : vector<4x8x8xf32>
    %350 = arith.truncf %349 : vector<4x8x8xf32> to vector<4x8x8xbf16>
    %351 = arith.truncf %330 : vector<4x8x8xf32> to vector<4x8x8xbf16>
    %cst_246 = arith.constant dense<0.000000e+00> : vector<4x8x8xf32>
    %352 = tpu.matmul %350, %351, %cst_246 {dimension_numbers = #tpu.dot_dimension_numbers<[2], [1], [1], [2], [0, 0, 0, 1, 1, 2], [0], [0]>} : vector<4x8x8xbf16>, vector<4x8x8xbf16>, vector<4x8x8xf32> -> vector<4x8x8xf32>
    %353 = arith.truncf %352 : vector<4x8x8xf32> to vector<4x8x8xbf16>
    %cst_247 = arith.constant dense<0.000000e+00> : vector<4x8x32xf32>
    %354 = tpu.matmul %353, %311, %cst_247 {dimension_numbers = #tpu.dot_dimension_numbers<[2], [1], [1], [2], [0, 0, 0, 1, 1, 2], [0], [0]>} : vector<4x8x8xbf16>, vector<4x8x32xbf16>, vector<4x8x32xf32> -> vector<4x8x32xf32>
    %cst_248 = arith.constant dense<0.000000e+00> : vector<8x32xf32>
    %355 = vector.multi_reduction <add>, %354, %cst_248 [0] : vector<4x8x32xf32> to vector<8x32xf32>
    %356 = vector.broadcast %313 : vector<1x32xf32> to vector<8x32xf32>
    %357 = arith.addf %355, %356 : vector<8x32xf32>
    %358 = arith.addf %5, %357 : vector<8x32xf32>
    %c0_249 = arith.constant 0 : index
    %c1_250 = arith.constant 1 : index
    %c0_251 = arith.constant 0 : index
    %c0_252 = arith.constant 0 : index
    %c0_253 = arith.constant 0 : index
    %359 = vector.load %arg12[%c0_249, %c1_250, %c0_251, %c0_252, %c0_253] : memref<2x3x2x1x32xf32, #tpu.memory_space<vmem>>, vector<1x1x1x1x32xf32>
    %360 = vector.shape_cast %359 : vector<1x1x1x1x32xf32> to vector<1x32xf32>
    %c0_254 = arith.constant 0 : index
    %c1_255 = arith.constant 1 : index
    %c1_256 = arith.constant 1 : index
    %c0_257 = arith.constant 0 : index
    %c0_258 = arith.constant 0 : index
    %361 = vector.load %arg12[%c0_254, %c1_255, %c1_256, %c0_257, %c0_258] : memref<2x3x2x1x32xf32, #tpu.memory_space<vmem>>, vector<1x1x1x1x32xf32>
    %362 = vector.shape_cast %361 : vector<1x1x1x1x32xf32> to vector<1x32xf32>
    %cst_259 = arith.constant dense<0.000000e+00> : vector<8xf32>
    %363 = vector.multi_reduction <add>, %358, %cst_259 [1] : vector<8x32xf32> to vector<8xf32>
    %364 = vector.shape_cast %363 : vector<8xf32> to vector<8x1xf32>
    %cst_260 = arith.constant 3.200000e+01 : f32
    %365 = vector.broadcast %cst_260 : f32 to vector<8x1xf32>
    %366 = arith.divf %364, %365 : vector<8x1xf32>
    %367 = vector.broadcast %366 : vector<8x1xf32> to vector<8x32xf32>
    %368 = arith.subf %358, %367 : vector<8x32xf32>
    %369 = arith.mulf %368, %368 : vector<8x32xf32>
    %cst_261 = arith.constant dense<0.000000e+00> : vector<8xf32>
    %370 = vector.multi_reduction <add>, %369, %cst_261 [1] : vector<8x32xf32> to vector<8xf32>
    %371 = vector.shape_cast %370 : vector<8xf32> to vector<8x1xf32>
    %cst_262 = arith.constant 3.200000e+01 : f32
    %372 = vector.broadcast %cst_262 : f32 to vector<8x1xf32>
    %373 = arith.divf %371, %372 : vector<8x1xf32>
    %374 = vector.broadcast %366 : vector<8x1xf32> to vector<8x32xf32>
    %375 = arith.subf %358, %374 : vector<8x32xf32>
    %cst_263 = arith.constant 9.99999974E-6 : f32
    %376 = vector.broadcast %cst_263 : f32 to vector<8x1xf32>
    %377 = arith.addf %373, %376 : vector<8x1xf32>
    %378 = math.rsqrt %377 : vector<8x1xf32>
    %379 = vector.broadcast %378 : vector<8x1xf32> to vector<8x32xf32>
    %380 = arith.mulf %375, %379 : vector<8x32xf32>
    %381 = vector.broadcast %360 : vector<1x32xf32> to vector<8x32xf32>
    %382 = arith.mulf %380, %381 : vector<8x32xf32>
    %383 = vector.broadcast %362 : vector<1x32xf32> to vector<8x32xf32>
    %384 = arith.addf %382, %383 : vector<8x32xf32>
    %c0_264 = arith.constant 0 : index
    %c0_265 = arith.constant 0 : index
    %c0_266 = arith.constant 0 : index
    %c0_267 = arith.constant 0 : index
    %c0_268 = arith.constant 0 : index
    %385 = vector.load %arg17[%c0_264, %c0_265, %c0_266, %c0_267, %c0_268] : memref<2x3x4x32x8xbf16, #tpu.memory_space<vmem>>, vector<1x1x4x32x8xbf16>
    %386 = vector.shape_cast %385 : vector<1x1x4x32x8xbf16> to vector<4x32x8xbf16>
    %c0_269 = arith.constant 0 : index
    %c0_270 = arith.constant 0 : index
    %c0_271 = arith.constant 0 : index
    %c0_272 = arith.constant 0 : index
    %c0_273 = arith.constant 0 : index
    %387 = vector.load %arg18[%c0_269, %c0_270, %c0_271, %c0_272, %c0_273] : memref<2x3x4x1x8xf32, #tpu.memory_space<vmem>>, vector<1x1x4x1x8xf32>
    %388 = vector.shape_cast %387 : vector<1x1x4x1x8xf32> to vector<4x1x8xf32>
    %c0_274 = arith.constant 0 : index
    %c1_275 = arith.constant 1 : index
    %c0_276 = arith.constant 0 : index
    %c0_277 = arith.constant 0 : index
    %c0_278 = arith.constant 0 : index
    %389 = vector.load %arg17[%c0_274, %c1_275, %c0_276, %c0_277, %c0_278] : memref<2x3x4x32x8xbf16, #tpu.memory_space<vmem>>, vector<1x1x4x32x8xbf16>
    %390 = vector.shape_cast %389 : vector<1x1x4x32x8xbf16> to vector<4x32x8xbf16>
    %c0_279 = arith.constant 0 : index
    %c1_280 = arith.constant 1 : index
    %c0_281 = arith.constant 0 : index
    %c0_282 = arith.constant 0 : index
    %c0_283 = arith.constant 0 : index
    %391 = vector.load %arg18[%c0_279, %c1_280, %c0_281, %c0_282, %c0_283] : memref<2x3x4x1x8xf32, #tpu.memory_space<vmem>>, vector<1x1x4x1x8xf32>
    %392 = vector.shape_cast %391 : vector<1x1x4x1x8xf32> to vector<4x1x8xf32>
    %c0_284 = arith.constant 0 : index
    %c2_285 = arith.constant 2 : index
    %c0_286 = arith.constant 0 : index
    %c0_287 = arith.constant 0 : index
    %c0_288 = arith.constant 0 : index
    %393 = vector.load %arg17[%c0_284, %c2_285, %c0_286, %c0_287, %c0_288] : memref<2x3x4x32x8xbf16, #tpu.memory_space<vmem>>, vector<1x1x4x32x8xbf16>
    %394 = vector.shape_cast %393 : vector<1x1x4x32x8xbf16> to vector<4x32x8xbf16>
    %c0_289 = arith.constant 0 : index
    %c2_290 = arith.constant 2 : index
    %c0_291 = arith.constant 0 : index
    %c0_292 = arith.constant 0 : index
    %c0_293 = arith.constant 0 : index
    %395 = vector.load %arg18[%c0_289, %c2_290, %c0_291, %c0_292, %c0_293] : memref<2x3x4x1x8xf32, #tpu.memory_space<vmem>>, vector<1x1x4x1x8xf32>
    %396 = vector.shape_cast %395 : vector<1x1x4x1x8xf32> to vector<4x1x8xf32>
    %c0_294 = arith.constant 0 : index
    %c0_295 = arith.constant 0 : index
    %c0_296 = arith.constant 0 : index
    %c0_297 = arith.constant 0 : index
    %397 = vector.load %arg19[%c0_294, %c0_295, %c0_296, %c0_297] : memref<2x4x8x32xbf16, #tpu.memory_space<vmem>>, vector<1x4x8x32xbf16>
    %398 = vector.shape_cast %397 : vector<1x4x8x32xbf16> to vector<4x8x32xbf16>
    %c0_298 = arith.constant 0 : index
    %c0_299 = arith.constant 0 : index
    %c0_300 = arith.constant 0 : index
    %399 = vector.load %arg20[%c0_298, %c0_299, %c0_300] : memref<2x1x32xf32, #tpu.memory_space<vmem>>, vector<1x1x32xf32>
    %400 = vector.shape_cast %399 : vector<1x1x32xf32> to vector<1x32xf32>
    %401 = arith.truncf %384 : vector<8x32xf32> to vector<8x32xbf16>
    %402 = vector.shape_cast %401 : vector<8x32xbf16> to vector<1x8x32xbf16>
    %403 = vector.shape_cast %402 : vector<1x8x32xbf16> to vector<1x8x32xbf16>
    %404 = vector.broadcast %403 : vector<1x8x32xbf16> to vector<4x8x32xbf16>
    %405 = arith.truncf %271 : vector<8x32xf32> to vector<8x32xbf16>
    %406 = vector.shape_cast %405 : vector<8x32xbf16> to vector<1x8x32xbf16>
    %407 = vector.shape_cast %406 : vector<1x8x32xbf16> to vector<1x8x32xbf16>
    %408 = vector.broadcast %407 : vector<1x8x32xbf16> to vector<4x8x32xbf16>
    %cst_301 = arith.constant dense<0.000000e+00> : vector<4x8x8xf32>
    %409 = tpu.matmul %404, %386, %cst_301 {dimension_numbers = #tpu.dot_dimension_numbers<[2], [1], [1], [2], [0, 0, 0, 1, 1, 2], [0], [0]>} : vector<4x8x32xbf16>, vector<4x32x8xbf16>, vector<4x8x8xf32> -> vector<4x8x8xf32>
    %410 = vector.broadcast %388 : vector<4x1x8xf32> to vector<4x8x8xf32>
    %411 = arith.addf %409, %410 : vector<4x8x8xf32>
    %cst_302 = arith.constant dense<0.000000e+00> : vector<4x8x8xf32>
    %412 = tpu.matmul %408, %390, %cst_302 {dimension_numbers = #tpu.dot_dimension_numbers<[2], [1], [1], [2], [0, 0, 0, 1, 1, 2], [0], [0]>} : vector<4x8x32xbf16>, vector<4x32x8xbf16>, vector<4x8x8xf32> -> vector<4x8x8xf32>
    %413 = vector.broadcast %392 : vector<4x1x8xf32> to vector<4x8x8xf32>
    %414 = arith.addf %412, %413 : vector<4x8x8xf32>
    %cst_303 = arith.constant dense<0.000000e+00> : vector<4x8x8xf32>
    %415 = tpu.matmul %408, %394, %cst_303 {dimension_numbers = #tpu.dot_dimension_numbers<[2], [1], [1], [2], [0, 0, 0, 1, 1, 2], [0], [0]>} : vector<4x8x32xbf16>, vector<4x32x8xbf16>, vector<4x8x8xf32> -> vector<4x8x8xf32>
    %416 = vector.broadcast %396 : vector<4x1x8xf32> to vector<4x8x8xf32>
    %417 = arith.addf %415, %416 : vector<4x8x8xf32>
    %418 = arith.truncf %411 : vector<4x8x8xf32> to vector<4x8x8xbf16>
    %419 = arith.truncf %414 : vector<4x8x8xf32> to vector<4x8x8xbf16>
    %cst_304 = arith.constant dense<0.000000e+00> : vector<4x8x8xf32>
    %420 = tpu.matmul %418, %419, %cst_304 {dimension_numbers = #tpu.dot_dimension_numbers<[2], [2], [1], [1], [0, 0, 0, 1, 1, 1], [0], [0]>} : vector<4x8x8xbf16>, vector<4x8x8xbf16>, vector<4x8x8xf32> -> vector<4x8x8xf32>
    %cst_305 = arith.constant 0.353553385 : f32
    %421 = vector.broadcast %cst_305 : f32 to vector<4x8x8xf32>
    %422 = arith.mulf %420, %421 : vector<4x8x8xf32>
    %423 = vector.shape_cast %17 : vector<8x8xi1> to vector<1x8x8xi1>
    %cst_306 = arith.constant -1.000000e+09 : f32
    %424 = vector.shape_cast %423 : vector<1x8x8xi1> to vector<1x8x8xi1>
    %425 = vector.broadcast %424 : vector<1x8x8xi1> to vector<4x8x8xi1>
    %426 = vector.broadcast %cst_306 : f32 to vector<4x8x8xf32>
    %427 = arith.select %425, %422, %426 : vector<4x8x8xi1>, vector<4x8x8xf32>
    %cst_307 = arith.constant dense<0xFF800000> : vector<4x8xf32>
    %428 = vector.multi_reduction <maximumf>, %427, %cst_307 [2] : vector<4x8x8xf32> to vector<4x8xf32>
    %429 = vector.shape_cast %428 : vector<4x8xf32> to vector<4x8x1xf32>
    %430 = vector.broadcast %429 : vector<4x8x1xf32> to vector<4x8x8xf32>
    %431 = arith.subf %427, %430 : vector<4x8x8xf32>
    %432 = math.exp %431 : vector<4x8x8xf32>
    %cst_308 = arith.constant dense<0.000000e+00> : vector<4x8xf32>
    %433 = vector.multi_reduction <add>, %432, %cst_308 [2] : vector<4x8x8xf32> to vector<4x8xf32>
    %434 = vector.shape_cast %433 : vector<4x8xf32> to vector<4x8x1xf32>
    %435 = vector.broadcast %434 : vector<4x8x1xf32> to vector<4x8x8xf32>
    %436 = arith.divf %432, %435 : vector<4x8x8xf32>
    %437 = arith.truncf %436 : vector<4x8x8xf32> to vector<4x8x8xbf16>
    %438 = arith.truncf %417 : vector<4x8x8xf32> to vector<4x8x8xbf16>
    %cst_309 = arith.constant dense<0.000000e+00> : vector<4x8x8xf32>
    %439 = tpu.matmul %437, %438, %cst_309 {dimension_numbers = #tpu.dot_dimension_numbers<[2], [1], [1], [2], [0, 0, 0, 1, 1, 2], [0], [0]>} : vector<4x8x8xbf16>, vector<4x8x8xbf16>, vector<4x8x8xf32> -> vector<4x8x8xf32>
    %440 = arith.truncf %439 : vector<4x8x8xf32> to vector<4x8x8xbf16>
    %cst_310 = arith.constant dense<0.000000e+00> : vector<4x8x32xf32>
    %441 = tpu.matmul %440, %398, %cst_310 {dimension_numbers = #tpu.dot_dimension_numbers<[2], [1], [1], [2], [0, 0, 0, 1, 1, 2], [0], [0]>} : vector<4x8x8xbf16>, vector<4x8x32xbf16>, vector<4x8x32xf32> -> vector<4x8x32xf32>
    %cst_311 = arith.constant dense<0.000000e+00> : vector<8x32xf32>
    %442 = vector.multi_reduction <add>, %441, %cst_311 [0] : vector<4x8x32xf32> to vector<8x32xf32>
    %443 = vector.broadcast %400 : vector<1x32xf32> to vector<8x32xf32>
    %444 = arith.addf %442, %443 : vector<8x32xf32>
    %445 = arith.addf %358, %444 : vector<8x32xf32>
    %c0_312 = arith.constant 0 : index
    %c2_313 = arith.constant 2 : index
    %c0_314 = arith.constant 0 : index
    %c0_315 = arith.constant 0 : index
    %c0_316 = arith.constant 0 : index
    %446 = vector.load %arg12[%c0_312, %c2_313, %c0_314, %c0_315, %c0_316] : memref<2x3x2x1x32xf32, #tpu.memory_space<vmem>>, vector<1x1x1x1x32xf32>
    %447 = vector.shape_cast %446 : vector<1x1x1x1x32xf32> to vector<1x32xf32>
    %c0_317 = arith.constant 0 : index
    %c2_318 = arith.constant 2 : index
    %c1_319 = arith.constant 1 : index
    %c0_320 = arith.constant 0 : index
    %c0_321 = arith.constant 0 : index
    %448 = vector.load %arg12[%c0_317, %c2_318, %c1_319, %c0_320, %c0_321] : memref<2x3x2x1x32xf32, #tpu.memory_space<vmem>>, vector<1x1x1x1x32xf32>
    %449 = vector.shape_cast %448 : vector<1x1x1x1x32xf32> to vector<1x32xf32>
    %cst_322 = arith.constant dense<0.000000e+00> : vector<8xf32>
    %450 = vector.multi_reduction <add>, %445, %cst_322 [1] : vector<8x32xf32> to vector<8xf32>
    %451 = vector.shape_cast %450 : vector<8xf32> to vector<8x1xf32>
    %cst_323 = arith.constant 3.200000e+01 : f32
    %452 = vector.broadcast %cst_323 : f32 to vector<8x1xf32>
    %453 = arith.divf %451, %452 : vector<8x1xf32>
    %454 = vector.broadcast %453 : vector<8x1xf32> to vector<8x32xf32>
    %455 = arith.subf %445, %454 : vector<8x32xf32>
    %456 = arith.mulf %455, %455 : vector<8x32xf32>
    %cst_324 = arith.constant dense<0.000000e+00> : vector<8xf32>
    %457 = vector.multi_reduction <add>, %456, %cst_324 [1] : vector<8x32xf32> to vector<8xf32>
    %458 = vector.shape_cast %457 : vector<8xf32> to vector<8x1xf32>
    %cst_325 = arith.constant 3.200000e+01 : f32
    %459 = vector.broadcast %cst_325 : f32 to vector<8x1xf32>
    %460 = arith.divf %458, %459 : vector<8x1xf32>
    %461 = vector.broadcast %453 : vector<8x1xf32> to vector<8x32xf32>
    %462 = arith.subf %445, %461 : vector<8x32xf32>
    %cst_326 = arith.constant 9.99999974E-6 : f32
    %463 = vector.broadcast %cst_326 : f32 to vector<8x1xf32>
    %464 = arith.addf %460, %463 : vector<8x1xf32>
    %465 = math.rsqrt %464 : vector<8x1xf32>
    %466 = vector.broadcast %465 : vector<8x1xf32> to vector<8x32xf32>
    %467 = arith.mulf %462, %466 : vector<8x32xf32>
    %468 = vector.broadcast %447 : vector<1x32xf32> to vector<8x32xf32>
    %469 = arith.mulf %467, %468 : vector<8x32xf32>
    %470 = vector.broadcast %449 : vector<1x32xf32> to vector<8x32xf32>
    %471 = arith.addf %469, %470 : vector<8x32xf32>
    %c0_327 = arith.constant 0 : index
    %c0_328 = arith.constant 0 : index
    %c0_329 = arith.constant 0 : index
    %472 = vector.load %arg21[%c0_327, %c0_328, %c0_329] : memref<2x32x32xbf16, #tpu.memory_space<vmem>>, vector<1x32x32xbf16>
    %473 = vector.shape_cast %472 : vector<1x32x32xbf16> to vector<32x32xbf16>
    %474 = arith.truncf %471 : vector<8x32xf32> to vector<8x32xbf16>
    %cst_330 = arith.constant dense<0.000000e+00> : vector<8x32xf32>
    %475 = tpu.matmul %474, %473, %cst_330 {dimension_numbers = #tpu.dot_dimension_numbers<[1], [0], [0], [1], [0, 0, 1, 1], [], []>} : vector<8x32xbf16>, vector<32x32xbf16>, vector<8x32xf32> -> vector<8x32xf32>
    %c0_331 = arith.constant 0 : index
    %c0_332 = arith.constant 0 : index
    %c0_333 = arith.constant 0 : index
    %476 = vector.load %arg22[%c0_331, %c0_332, %c0_333] : memref<2x1x32xf32, #tpu.memory_space<vmem>>, vector<1x1x32xf32>
    %477 = vector.shape_cast %476 : vector<1x1x32xf32> to vector<1x32xf32>
    %478 = vector.broadcast %477 : vector<1x32xf32> to vector<8x32xf32>
    %479 = arith.addf %475, %478 : vector<8x32xf32>
    %cst_334 = arith.constant 0.000000e+00 : f32
    %480 = vector.broadcast %cst_334 : f32 to vector<8x32xf32>
    %481 = arith.maximumf %479, %480 : vector<8x32xf32>
    %482 = arith.addf %445, %481 : vector<8x32xf32>
    %c1_335 = arith.constant 1 : index
    %c0_336 = arith.constant 0 : index
    %c0_337 = arith.constant 0 : index
    %c0_338 = arith.constant 0 : index
    %c0_339 = arith.constant 0 : index
    %483 = vector.load %arg12[%c1_335, %c0_336, %c0_337, %c0_338, %c0_339] : memref<2x3x2x1x32xf32, #tpu.memory_space<vmem>>, vector<1x1x1x1x32xf32>
    %484 = vector.shape_cast %483 : vector<1x1x1x1x32xf32> to vector<1x32xf32>
    %c1_340 = arith.constant 1 : index
    %c0_341 = arith.constant 0 : index
    %c1_342 = arith.constant 1 : index
    %c0_343 = arith.constant 0 : index
    %c0_344 = arith.constant 0 : index
    %485 = vector.load %arg12[%c1_340, %c0_341, %c1_342, %c0_343, %c0_344] : memref<2x3x2x1x32xf32, #tpu.memory_space<vmem>>, vector<1x1x1x1x32xf32>
    %486 = vector.shape_cast %485 : vector<1x1x1x1x32xf32> to vector<1x32xf32>
    %cst_345 = arith.constant dense<0.000000e+00> : vector<8xf32>
    %487 = vector.multi_reduction <add>, %482, %cst_345 [1] : vector<8x32xf32> to vector<8xf32>
    %488 = vector.shape_cast %487 : vector<8xf32> to vector<8x1xf32>
    %cst_346 = arith.constant 3.200000e+01 : f32
    %489 = vector.broadcast %cst_346 : f32 to vector<8x1xf32>
    %490 = arith.divf %488, %489 : vector<8x1xf32>
    %491 = vector.broadcast %490 : vector<8x1xf32> to vector<8x32xf32>
    %492 = arith.subf %482, %491 : vector<8x32xf32>
    %493 = arith.mulf %492, %492 : vector<8x32xf32>
    %cst_347 = arith.constant dense<0.000000e+00> : vector<8xf32>
    %494 = vector.multi_reduction <add>, %493, %cst_347 [1] : vector<8x32xf32> to vector<8xf32>
    %495 = vector.shape_cast %494 : vector<8xf32> to vector<8x1xf32>
    %cst_348 = arith.constant 3.200000e+01 : f32
    %496 = vector.broadcast %cst_348 : f32 to vector<8x1xf32>
    %497 = arith.divf %495, %496 : vector<8x1xf32>
    %498 = vector.broadcast %490 : vector<8x1xf32> to vector<8x32xf32>
    %499 = arith.subf %482, %498 : vector<8x32xf32>
    %cst_349 = arith.constant 9.99999974E-6 : f32
    %500 = vector.broadcast %cst_349 : f32 to vector<8x1xf32>
    %501 = arith.addf %497, %500 : vector<8x1xf32>
    %502 = math.rsqrt %501 : vector<8x1xf32>
    %503 = vector.broadcast %502 : vector<8x1xf32> to vector<8x32xf32>
    %504 = arith.mulf %499, %503 : vector<8x32xf32>
    %505 = vector.broadcast %484 : vector<1x32xf32> to vector<8x32xf32>
    %506 = arith.mulf %504, %505 : vector<8x32xf32>
    %507 = vector.broadcast %486 : vector<1x32xf32> to vector<8x32xf32>
    %508 = arith.addf %506, %507 : vector<8x32xf32>
    %c1_350 = arith.constant 1 : index
    %c0_351 = arith.constant 0 : index
    %c0_352 = arith.constant 0 : index
    %c0_353 = arith.constant 0 : index
    %c0_354 = arith.constant 0 : index
    %509 = vector.load %arg13[%c1_350, %c0_351, %c0_352, %c0_353, %c0_354] : memref<2x3x4x32x8xbf16, #tpu.memory_space<vmem>>, vector<1x1x4x32x8xbf16>
    %510 = vector.shape_cast %509 : vector<1x1x4x32x8xbf16> to vector<4x32x8xbf16>
    %c1_355 = arith.constant 1 : index
    %c0_356 = arith.constant 0 : index
    %c0_357 = arith.constant 0 : index
    %c0_358 = arith.constant 0 : index
    %c0_359 = arith.constant 0 : index
    %511 = vector.load %arg14[%c1_355, %c0_356, %c0_357, %c0_358, %c0_359] : memref<2x3x4x1x8xf32, #tpu.memory_space<vmem>>, vector<1x1x4x1x8xf32>
    %512 = vector.shape_cast %511 : vector<1x1x4x1x8xf32> to vector<4x1x8xf32>
    %c1_360 = arith.constant 1 : index
    %c1_361 = arith.constant 1 : index
    %c0_362 = arith.constant 0 : index
    %c0_363 = arith.constant 0 : index
    %c0_364 = arith.constant 0 : index
    %513 = vector.load %arg13[%c1_360, %c1_361, %c0_362, %c0_363, %c0_364] : memref<2x3x4x32x8xbf16, #tpu.memory_space<vmem>>, vector<1x1x4x32x8xbf16>
    %514 = vector.shape_cast %513 : vector<1x1x4x32x8xbf16> to vector<4x32x8xbf16>
    %c1_365 = arith.constant 1 : index
    %c1_366 = arith.constant 1 : index
    %c0_367 = arith.constant 0 : index
    %c0_368 = arith.constant 0 : index
    %c0_369 = arith.constant 0 : index
    %515 = vector.load %arg14[%c1_365, %c1_366, %c0_367, %c0_368, %c0_369] : memref<2x3x4x1x8xf32, #tpu.memory_space<vmem>>, vector<1x1x4x1x8xf32>
    %516 = vector.shape_cast %515 : vector<1x1x4x1x8xf32> to vector<4x1x8xf32>
    %c1_370 = arith.constant 1 : index
    %c2_371 = arith.constant 2 : index
    %c0_372 = arith.constant 0 : index
    %c0_373 = arith.constant 0 : index
    %c0_374 = arith.constant 0 : index
    %517 = vector.load %arg13[%c1_370, %c2_371, %c0_372, %c0_373, %c0_374] : memref<2x3x4x32x8xbf16, #tpu.memory_space<vmem>>, vector<1x1x4x32x8xbf16>
    %518 = vector.shape_cast %517 : vector<1x1x4x32x8xbf16> to vector<4x32x8xbf16>
    %c1_375 = arith.constant 1 : index
    %c2_376 = arith.constant 2 : index
    %c0_377 = arith.constant 0 : index
    %c0_378 = arith.constant 0 : index
    %c0_379 = arith.constant 0 : index
    %519 = vector.load %arg14[%c1_375, %c2_376, %c0_377, %c0_378, %c0_379] : memref<2x3x4x1x8xf32, #tpu.memory_space<vmem>>, vector<1x1x4x1x8xf32>
    %520 = vector.shape_cast %519 : vector<1x1x4x1x8xf32> to vector<4x1x8xf32>
    %c1_380 = arith.constant 1 : index
    %c0_381 = arith.constant 0 : index
    %c0_382 = arith.constant 0 : index
    %c0_383 = arith.constant 0 : index
    %521 = vector.load %arg15[%c1_380, %c0_381, %c0_382, %c0_383] : memref<2x4x8x32xbf16, #tpu.memory_space<vmem>>, vector<1x4x8x32xbf16>
    %522 = vector.shape_cast %521 : vector<1x4x8x32xbf16> to vector<4x8x32xbf16>
    %c1_384 = arith.constant 1 : index
    %c0_385 = arith.constant 0 : index
    %c0_386 = arith.constant 0 : index
    %523 = vector.load %arg16[%c1_384, %c0_385, %c0_386] : memref<2x1x32xf32, #tpu.memory_space<vmem>>, vector<1x1x32xf32>
    %524 = vector.shape_cast %523 : vector<1x1x32xf32> to vector<1x32xf32>
    %525 = arith.truncf %508 : vector<8x32xf32> to vector<8x32xbf16>
    %526 = vector.shape_cast %525 : vector<8x32xbf16> to vector<1x8x32xbf16>
    %527 = vector.shape_cast %526 : vector<1x8x32xbf16> to vector<1x8x32xbf16>
    %528 = vector.broadcast %527 : vector<1x8x32xbf16> to vector<4x8x32xbf16>
    %529 = arith.truncf %508 : vector<8x32xf32> to vector<8x32xbf16>
    %530 = vector.shape_cast %529 : vector<8x32xbf16> to vector<1x8x32xbf16>
    %531 = vector.shape_cast %530 : vector<1x8x32xbf16> to vector<1x8x32xbf16>
    %532 = vector.broadcast %531 : vector<1x8x32xbf16> to vector<4x8x32xbf16>
    %cst_387 = arith.constant dense<0.000000e+00> : vector<4x8x8xf32>
    %533 = tpu.matmul %528, %510, %cst_387 {dimension_numbers = #tpu.dot_dimension_numbers<[2], [1], [1], [2], [0, 0, 0, 1, 1, 2], [0], [0]>} : vector<4x8x32xbf16>, vector<4x32x8xbf16>, vector<4x8x8xf32> -> vector<4x8x8xf32>
    %534 = vector.broadcast %512 : vector<4x1x8xf32> to vector<4x8x8xf32>
    %535 = arith.addf %533, %534 : vector<4x8x8xf32>
    %cst_388 = arith.constant dense<0.000000e+00> : vector<4x8x8xf32>
    %536 = tpu.matmul %532, %514, %cst_388 {dimension_numbers = #tpu.dot_dimension_numbers<[2], [1], [1], [2], [0, 0, 0, 1, 1, 2], [0], [0]>} : vector<4x8x32xbf16>, vector<4x32x8xbf16>, vector<4x8x8xf32> -> vector<4x8x8xf32>
    %537 = vector.broadcast %516 : vector<4x1x8xf32> to vector<4x8x8xf32>
    %538 = arith.addf %536, %537 : vector<4x8x8xf32>
    %cst_389 = arith.constant dense<0.000000e+00> : vector<4x8x8xf32>
    %539 = tpu.matmul %532, %518, %cst_389 {dimension_numbers = #tpu.dot_dimension_numbers<[2], [1], [1], [2], [0, 0, 0, 1, 1, 2], [0], [0]>} : vector<4x8x32xbf16>, vector<4x32x8xbf16>, vector<4x8x8xf32> -> vector<4x8x8xf32>
    %540 = vector.broadcast %520 : vector<4x1x8xf32> to vector<4x8x8xf32>
    %541 = arith.addf %539, %540 : vector<4x8x8xf32>
    %542 = arith.truncf %535 : vector<4x8x8xf32> to vector<4x8x8xbf16>
    %543 = arith.truncf %538 : vector<4x8x8xf32> to vector<4x8x8xbf16>
    %cst_390 = arith.constant dense<0.000000e+00> : vector<4x8x8xf32>
    %544 = tpu.matmul %542, %543, %cst_390 {dimension_numbers = #tpu.dot_dimension_numbers<[2], [2], [1], [1], [0, 0, 0, 1, 1, 1], [0], [0]>} : vector<4x8x8xbf16>, vector<4x8x8xbf16>, vector<4x8x8xf32> -> vector<4x8x8xf32>
    %cst_391 = arith.constant 0.353553385 : f32
    %545 = vector.broadcast %cst_391 : f32 to vector<4x8x8xf32>
    %546 = arith.mulf %544, %545 : vector<4x8x8xf32>
    %547 = vector.shape_cast %23 : vector<8x8xi1> to vector<1x8x8xi1>
    %cst_392 = arith.constant -1.000000e+09 : f32
    %548 = vector.shape_cast %547 : vector<1x8x8xi1> to vector<1x8x8xi1>
    %549 = vector.broadcast %548 : vector<1x8x8xi1> to vector<4x8x8xi1>
    %550 = vector.broadcast %cst_392 : f32 to vector<4x8x8xf32>
    %551 = arith.select %549, %546, %550 : vector<4x8x8xi1>, vector<4x8x8xf32>
    %cst_393 = arith.constant dense<0xFF800000> : vector<4x8xf32>
    %552 = vector.multi_reduction <maximumf>, %551, %cst_393 [2] : vector<4x8x8xf32> to vector<4x8xf32>
    %553 = vector.shape_cast %552 : vector<4x8xf32> to vector<4x8x1xf32>
    %554 = vector.broadcast %553 : vector<4x8x1xf32> to vector<4x8x8xf32>
    %555 = arith.subf %551, %554 : vector<4x8x8xf32>
    %556 = math.exp %555 : vector<4x8x8xf32>
    %cst_394 = arith.constant dense<0.000000e+00> : vector<4x8xf32>
    %557 = vector.multi_reduction <add>, %556, %cst_394 [2] : vector<4x8x8xf32> to vector<4x8xf32>
    %558 = vector.shape_cast %557 : vector<4x8xf32> to vector<4x8x1xf32>
    %559 = vector.broadcast %558 : vector<4x8x1xf32> to vector<4x8x8xf32>
    %560 = arith.divf %556, %559 : vector<4x8x8xf32>
    %561 = arith.truncf %560 : vector<4x8x8xf32> to vector<4x8x8xbf16>
    %562 = arith.truncf %541 : vector<4x8x8xf32> to vector<4x8x8xbf16>
    %cst_395 = arith.constant dense<0.000000e+00> : vector<4x8x8xf32>
    %563 = tpu.matmul %561, %562, %cst_395 {dimension_numbers = #tpu.dot_dimension_numbers<[2], [1], [1], [2], [0, 0, 0, 1, 1, 2], [0], [0]>} : vector<4x8x8xbf16>, vector<4x8x8xbf16>, vector<4x8x8xf32> -> vector<4x8x8xf32>
    %564 = arith.truncf %563 : vector<4x8x8xf32> to vector<4x8x8xbf16>
    %cst_396 = arith.constant dense<0.000000e+00> : vector<4x8x32xf32>
    %565 = tpu.matmul %564, %522, %cst_396 {dimension_numbers = #tpu.dot_dimension_numbers<[2], [1], [1], [2], [0, 0, 0, 1, 1, 2], [0], [0]>} : vector<4x8x8xbf16>, vector<4x8x32xbf16>, vector<4x8x32xf32> -> vector<4x8x32xf32>
    %cst_397 = arith.constant dense<0.000000e+00> : vector<8x32xf32>
    %566 = vector.multi_reduction <add>, %565, %cst_397 [0] : vector<4x8x32xf32> to vector<8x32xf32>
    %567 = vector.broadcast %524 : vector<1x32xf32> to vector<8x32xf32>
    %568 = arith.addf %566, %567 : vector<8x32xf32>
    %569 = arith.addf %482, %568 : vector<8x32xf32>
    %c1_398 = arith.constant 1 : index
    %c1_399 = arith.constant 1 : index
    %c0_400 = arith.constant 0 : index
    %c0_401 = arith.constant 0 : index
    %c0_402 = arith.constant 0 : index
    %570 = vector.load %arg12[%c1_398, %c1_399, %c0_400, %c0_401, %c0_402] : memref<2x3x2x1x32xf32, #tpu.memory_space<vmem>>, vector<1x1x1x1x32xf32>
    %571 = vector.shape_cast %570 : vector<1x1x1x1x32xf32> to vector<1x32xf32>
    %c1_403 = arith.constant 1 : index
    %c1_404 = arith.constant 1 : index
    %c1_405 = arith.constant 1 : index
    %c0_406 = arith.constant 0 : index
    %c0_407 = arith.constant 0 : index
    %572 = vector.load %arg12[%c1_403, %c1_404, %c1_405, %c0_406, %c0_407] : memref<2x3x2x1x32xf32, #tpu.memory_space<vmem>>, vector<1x1x1x1x32xf32>
    %573 = vector.shape_cast %572 : vector<1x1x1x1x32xf32> to vector<1x32xf32>
    %cst_408 = arith.constant dense<0.000000e+00> : vector<8xf32>
    %574 = vector.multi_reduction <add>, %569, %cst_408 [1] : vector<8x32xf32> to vector<8xf32>
    %575 = vector.shape_cast %574 : vector<8xf32> to vector<8x1xf32>
    %cst_409 = arith.constant 3.200000e+01 : f32
    %576 = vector.broadcast %cst_409 : f32 to vector<8x1xf32>
    %577 = arith.divf %575, %576 : vector<8x1xf32>
    %578 = vector.broadcast %577 : vector<8x1xf32> to vector<8x32xf32>
    %579 = arith.subf %569, %578 : vector<8x32xf32>
    %580 = arith.mulf %579, %579 : vector<8x32xf32>
    %cst_410 = arith.constant dense<0.000000e+00> : vector<8xf32>
    %581 = vector.multi_reduction <add>, %580, %cst_410 [1] : vector<8x32xf32> to vector<8xf32>
    %582 = vector.shape_cast %581 : vector<8xf32> to vector<8x1xf32>
    %cst_411 = arith.constant 3.200000e+01 : f32
    %583 = vector.broadcast %cst_411 : f32 to vector<8x1xf32>
    %584 = arith.divf %582, %583 : vector<8x1xf32>
    %585 = vector.broadcast %577 : vector<8x1xf32> to vector<8x32xf32>
    %586 = arith.subf %569, %585 : vector<8x32xf32>
    %cst_412 = arith.constant 9.99999974E-6 : f32
    %587 = vector.broadcast %cst_412 : f32 to vector<8x1xf32>
    %588 = arith.addf %584, %587 : vector<8x1xf32>
    %589 = math.rsqrt %588 : vector<8x1xf32>
    %590 = vector.broadcast %589 : vector<8x1xf32> to vector<8x32xf32>
    %591 = arith.mulf %586, %590 : vector<8x32xf32>
    %592 = vector.broadcast %571 : vector<1x32xf32> to vector<8x32xf32>
    %593 = arith.mulf %591, %592 : vector<8x32xf32>
    %594 = vector.broadcast %573 : vector<1x32xf32> to vector<8x32xf32>
    %595 = arith.addf %593, %594 : vector<8x32xf32>
    %c1_413 = arith.constant 1 : index
    %c0_414 = arith.constant 0 : index
    %c0_415 = arith.constant 0 : index
    %c0_416 = arith.constant 0 : index
    %c0_417 = arith.constant 0 : index
    %596 = vector.load %arg17[%c1_413, %c0_414, %c0_415, %c0_416, %c0_417] : memref<2x3x4x32x8xbf16, #tpu.memory_space<vmem>>, vector<1x1x4x32x8xbf16>
    %597 = vector.shape_cast %596 : vector<1x1x4x32x8xbf16> to vector<4x32x8xbf16>
    %c1_418 = arith.constant 1 : index
    %c0_419 = arith.constant 0 : index
    %c0_420 = arith.constant 0 : index
    %c0_421 = arith.constant 0 : index
    %c0_422 = arith.constant 0 : index
    %598 = vector.load %arg18[%c1_418, %c0_419, %c0_420, %c0_421, %c0_422] : memref<2x3x4x1x8xf32, #tpu.memory_space<vmem>>, vector<1x1x4x1x8xf32>
    %599 = vector.shape_cast %598 : vector<1x1x4x1x8xf32> to vector<4x1x8xf32>
    %c1_423 = arith.constant 1 : index
    %c1_424 = arith.constant 1 : index
    %c0_425 = arith.constant 0 : index
    %c0_426 = arith.constant 0 : index
    %c0_427 = arith.constant 0 : index
    %600 = vector.load %arg17[%c1_423, %c1_424, %c0_425, %c0_426, %c0_427] : memref<2x3x4x32x8xbf16, #tpu.memory_space<vmem>>, vector<1x1x4x32x8xbf16>
    %601 = vector.shape_cast %600 : vector<1x1x4x32x8xbf16> to vector<4x32x8xbf16>
    %c1_428 = arith.constant 1 : index
    %c1_429 = arith.constant 1 : index
    %c0_430 = arith.constant 0 : index
    %c0_431 = arith.constant 0 : index
    %c0_432 = arith.constant 0 : index
    %602 = vector.load %arg18[%c1_428, %c1_429, %c0_430, %c0_431, %c0_432] : memref<2x3x4x1x8xf32, #tpu.memory_space<vmem>>, vector<1x1x4x1x8xf32>
    %603 = vector.shape_cast %602 : vector<1x1x4x1x8xf32> to vector<4x1x8xf32>
    %c1_433 = arith.constant 1 : index
    %c2_434 = arith.constant 2 : index
    %c0_435 = arith.constant 0 : index
    %c0_436 = arith.constant 0 : index
    %c0_437 = arith.constant 0 : index
    %604 = vector.load %arg17[%c1_433, %c2_434, %c0_435, %c0_436, %c0_437] : memref<2x3x4x32x8xbf16, #tpu.memory_space<vmem>>, vector<1x1x4x32x8xbf16>
    %605 = vector.shape_cast %604 : vector<1x1x4x32x8xbf16> to vector<4x32x8xbf16>
    %c1_438 = arith.constant 1 : index
    %c2_439 = arith.constant 2 : index
    %c0_440 = arith.constant 0 : index
    %c0_441 = arith.constant 0 : index
    %c0_442 = arith.constant 0 : index
    %606 = vector.load %arg18[%c1_438, %c2_439, %c0_440, %c0_441, %c0_442] : memref<2x3x4x1x8xf32, #tpu.memory_space<vmem>>, vector<1x1x4x1x8xf32>
    %607 = vector.shape_cast %606 : vector<1x1x4x1x8xf32> to vector<4x1x8xf32>
    %c1_443 = arith.constant 1 : index
    %c0_444 = arith.constant 0 : index
    %c0_445 = arith.constant 0 : index
    %c0_446 = arith.constant 0 : index
    %608 = vector.load %arg19[%c1_443, %c0_444, %c0_445, %c0_446] : memref<2x4x8x32xbf16, #tpu.memory_space<vmem>>, vector<1x4x8x32xbf16>
    %609 = vector.shape_cast %608 : vector<1x4x8x32xbf16> to vector<4x8x32xbf16>
    %c1_447 = arith.constant 1 : index
    %c0_448 = arith.constant 0 : index
    %c0_449 = arith.constant 0 : index
    %610 = vector.load %arg20[%c1_447, %c0_448, %c0_449] : memref<2x1x32xf32, #tpu.memory_space<vmem>>, vector<1x1x32xf32>
    %611 = vector.shape_cast %610 : vector<1x1x32xf32> to vector<1x32xf32>
    %612 = arith.truncf %595 : vector<8x32xf32> to vector<8x32xbf16>
    %613 = vector.shape_cast %612 : vector<8x32xbf16> to vector<1x8x32xbf16>
    %614 = vector.shape_cast %613 : vector<1x8x32xbf16> to vector<1x8x32xbf16>
    %615 = vector.broadcast %614 : vector<1x8x32xbf16> to vector<4x8x32xbf16>
    %616 = arith.truncf %271 : vector<8x32xf32> to vector<8x32xbf16>
    %617 = vector.shape_cast %616 : vector<8x32xbf16> to vector<1x8x32xbf16>
    %618 = vector.shape_cast %617 : vector<1x8x32xbf16> to vector<1x8x32xbf16>
    %619 = vector.broadcast %618 : vector<1x8x32xbf16> to vector<4x8x32xbf16>
    %cst_450 = arith.constant dense<0.000000e+00> : vector<4x8x8xf32>
    %620 = tpu.matmul %615, %597, %cst_450 {dimension_numbers = #tpu.dot_dimension_numbers<[2], [1], [1], [2], [0, 0, 0, 1, 1, 2], [0], [0]>} : vector<4x8x32xbf16>, vector<4x32x8xbf16>, vector<4x8x8xf32> -> vector<4x8x8xf32>
    %621 = vector.broadcast %599 : vector<4x1x8xf32> to vector<4x8x8xf32>
    %622 = arith.addf %620, %621 : vector<4x8x8xf32>
    %cst_451 = arith.constant dense<0.000000e+00> : vector<4x8x8xf32>
    %623 = tpu.matmul %619, %601, %cst_451 {dimension_numbers = #tpu.dot_dimension_numbers<[2], [1], [1], [2], [0, 0, 0, 1, 1, 2], [0], [0]>} : vector<4x8x32xbf16>, vector<4x32x8xbf16>, vector<4x8x8xf32> -> vector<4x8x8xf32>
    %624 = vector.broadcast %603 : vector<4x1x8xf32> to vector<4x8x8xf32>
    %625 = arith.addf %623, %624 : vector<4x8x8xf32>
    %cst_452 = arith.constant dense<0.000000e+00> : vector<4x8x8xf32>
    %626 = tpu.matmul %619, %605, %cst_452 {dimension_numbers = #tpu.dot_dimension_numbers<[2], [1], [1], [2], [0, 0, 0, 1, 1, 2], [0], [0]>} : vector<4x8x32xbf16>, vector<4x32x8xbf16>, vector<4x8x8xf32> -> vector<4x8x8xf32>
    %627 = vector.broadcast %607 : vector<4x1x8xf32> to vector<4x8x8xf32>
    %628 = arith.addf %626, %627 : vector<4x8x8xf32>
    %629 = arith.truncf %622 : vector<4x8x8xf32> to vector<4x8x8xbf16>
    %630 = arith.truncf %625 : vector<4x8x8xf32> to vector<4x8x8xbf16>
    %cst_453 = arith.constant dense<0.000000e+00> : vector<4x8x8xf32>
    %631 = tpu.matmul %629, %630, %cst_453 {dimension_numbers = #tpu.dot_dimension_numbers<[2], [2], [1], [1], [0, 0, 0, 1, 1, 1], [0], [0]>} : vector<4x8x8xbf16>, vector<4x8x8xbf16>, vector<4x8x8xf32> -> vector<4x8x8xf32>
    %cst_454 = arith.constant 0.353553385 : f32
    %632 = vector.broadcast %cst_454 : f32 to vector<4x8x8xf32>
    %633 = arith.mulf %631, %632 : vector<4x8x8xf32>
    %634 = vector.shape_cast %17 : vector<8x8xi1> to vector<1x8x8xi1>
    %cst_455 = arith.constant -1.000000e+09 : f32
    %635 = vector.shape_cast %634 : vector<1x8x8xi1> to vector<1x8x8xi1>
    %636 = vector.broadcast %635 : vector<1x8x8xi1> to vector<4x8x8xi1>
    %637 = vector.broadcast %cst_455 : f32 to vector<4x8x8xf32>
    %638 = arith.select %636, %633, %637 : vector<4x8x8xi1>, vector<4x8x8xf32>
    %cst_456 = arith.constant dense<0xFF800000> : vector<4x8xf32>
    %639 = vector.multi_reduction <maximumf>, %638, %cst_456 [2] : vector<4x8x8xf32> to vector<4x8xf32>
    %640 = vector.shape_cast %639 : vector<4x8xf32> to vector<4x8x1xf32>
    %641 = vector.broadcast %640 : vector<4x8x1xf32> to vector<4x8x8xf32>
    %642 = arith.subf %638, %641 : vector<4x8x8xf32>
    %643 = math.exp %642 : vector<4x8x8xf32>
    %cst_457 = arith.constant dense<0.000000e+00> : vector<4x8xf32>
    %644 = vector.multi_reduction <add>, %643, %cst_457 [2] : vector<4x8x8xf32> to vector<4x8xf32>
    %645 = vector.shape_cast %644 : vector<4x8xf32> to vector<4x8x1xf32>
    %646 = vector.broadcast %645 : vector<4x8x1xf32> to vector<4x8x8xf32>
    %647 = arith.divf %643, %646 : vector<4x8x8xf32>
    %648 = arith.truncf %647 : vector<4x8x8xf32> to vector<4x8x8xbf16>
    %649 = arith.truncf %628 : vector<4x8x8xf32> to vector<4x8x8xbf16>
    %cst_458 = arith.constant dense<0.000000e+00> : vector<4x8x8xf32>
    %650 = tpu.matmul %648, %649, %cst_458 {dimension_numbers = #tpu.dot_dimension_numbers<[2], [1], [1], [2], [0, 0, 0, 1, 1, 2], [0], [0]>} : vector<4x8x8xbf16>, vector<4x8x8xbf16>, vector<4x8x8xf32> -> vector<4x8x8xf32>
    %651 = arith.truncf %650 : vector<4x8x8xf32> to vector<4x8x8xbf16>
    %cst_459 = arith.constant dense<0.000000e+00> : vector<4x8x32xf32>
    %652 = tpu.matmul %651, %609, %cst_459 {dimension_numbers = #tpu.dot_dimension_numbers<[2], [1], [1], [2], [0, 0, 0, 1, 1, 2], [0], [0]>} : vector<4x8x8xbf16>, vector<4x8x32xbf16>, vector<4x8x32xf32> -> vector<4x8x32xf32>
    %cst_460 = arith.constant dense<0.000000e+00> : vector<8x32xf32>
    %653 = vector.multi_reduction <add>, %652, %cst_460 [0] : vector<4x8x32xf32> to vector<8x32xf32>
    %654 = vector.broadcast %611 : vector<1x32xf32> to vector<8x32xf32>
    %655 = arith.addf %653, %654 : vector<8x32xf32>
    %656 = arith.addf %569, %655 : vector<8x32xf32>
    %c1_461 = arith.constant 1 : index
    %c2_462 = arith.constant 2 : index
    %c0_463 = arith.constant 0 : index
    %c0_464 = arith.constant 0 : index
    %c0_465 = arith.constant 0 : index
    %657 = vector.load %arg12[%c1_461, %c2_462, %c0_463, %c0_464, %c0_465] : memref<2x3x2x1x32xf32, #tpu.memory_space<vmem>>, vector<1x1x1x1x32xf32>
    %658 = vector.shape_cast %657 : vector<1x1x1x1x32xf32> to vector<1x32xf32>
    %c1_466 = arith.constant 1 : index
    %c2_467 = arith.constant 2 : index
    %c1_468 = arith.constant 1 : index
    %c0_469 = arith.constant 0 : index
    %c0_470 = arith.constant 0 : index
    %659 = vector.load %arg12[%c1_466, %c2_467, %c1_468, %c0_469, %c0_470] : memref<2x3x2x1x32xf32, #tpu.memory_space<vmem>>, vector<1x1x1x1x32xf32>
    %660 = vector.shape_cast %659 : vector<1x1x1x1x32xf32> to vector<1x32xf32>
    %cst_471 = arith.constant dense<0.000000e+00> : vector<8xf32>
    %661 = vector.multi_reduction <add>, %656, %cst_471 [1] : vector<8x32xf32> to vector<8xf32>
    %662 = vector.shape_cast %661 : vector<8xf32> to vector<8x1xf32>
    %cst_472 = arith.constant 3.200000e+01 : f32
    %663 = vector.broadcast %cst_472 : f32 to vector<8x1xf32>
    %664 = arith.divf %662, %663 : vector<8x1xf32>
    %665 = vector.broadcast %664 : vector<8x1xf32> to vector<8x32xf32>
    %666 = arith.subf %656, %665 : vector<8x32xf32>
    %667 = arith.mulf %666, %666 : vector<8x32xf32>
    %cst_473 = arith.constant dense<0.000000e+00> : vector<8xf32>
    %668 = vector.multi_reduction <add>, %667, %cst_473 [1] : vector<8x32xf32> to vector<8xf32>
    %669 = vector.shape_cast %668 : vector<8xf32> to vector<8x1xf32>
    %cst_474 = arith.constant 3.200000e+01 : f32
    %670 = vector.broadcast %cst_474 : f32 to vector<8x1xf32>
    %671 = arith.divf %669, %670 : vector<8x1xf32>
    %672 = vector.broadcast %664 : vector<8x1xf32> to vector<8x32xf32>
    %673 = arith.subf %656, %672 : vector<8x32xf32>
    %cst_475 = arith.constant 9.99999974E-6 : f32
    %674 = vector.broadcast %cst_475 : f32 to vector<8x1xf32>
    %675 = arith.addf %671, %674 : vector<8x1xf32>
    %676 = math.rsqrt %675 : vector<8x1xf32>
    %677 = vector.broadcast %676 : vector<8x1xf32> to vector<8x32xf32>
    %678 = arith.mulf %673, %677 : vector<8x32xf32>
    %679 = vector.broadcast %658 : vector<1x32xf32> to vector<8x32xf32>
    %680 = arith.mulf %678, %679 : vector<8x32xf32>
    %681 = vector.broadcast %660 : vector<1x32xf32> to vector<8x32xf32>
    %682 = arith.addf %680, %681 : vector<8x32xf32>
    %c1_476 = arith.constant 1 : index
    %c0_477 = arith.constant 0 : index
    %c0_478 = arith.constant 0 : index
    %683 = vector.load %arg21[%c1_476, %c0_477, %c0_478] : memref<2x32x32xbf16, #tpu.memory_space<vmem>>, vector<1x32x32xbf16>
    %684 = vector.shape_cast %683 : vector<1x32x32xbf16> to vector<32x32xbf16>
    %685 = arith.truncf %682 : vector<8x32xf32> to vector<8x32xbf16>
    %cst_479 = arith.constant dense<0.000000e+00> : vector<8x32xf32>
    %686 = tpu.matmul %685, %684, %cst_479 {dimension_numbers = #tpu.dot_dimension_numbers<[1], [0], [0], [1], [0, 0, 1, 1], [], []>} : vector<8x32xbf16>, vector<32x32xbf16>, vector<8x32xf32> -> vector<8x32xf32>
    %c1_480 = arith.constant 1 : index
    %c0_481 = arith.constant 0 : index
    %c0_482 = arith.constant 0 : index
    %687 = vector.load %arg22[%c1_480, %c0_481, %c0_482] : memref<2x1x32xf32, #tpu.memory_space<vmem>>, vector<1x1x32xf32>
    %688 = vector.shape_cast %687 : vector<1x1x32xf32> to vector<1x32xf32>
    %689 = vector.broadcast %688 : vector<1x32xf32> to vector<8x32xf32>
    %690 = arith.addf %686, %689 : vector<8x32xf32>
    %cst_483 = arith.constant 0.000000e+00 : f32
    %691 = vector.broadcast %cst_483 : f32 to vector<8x32xf32>
    %692 = arith.maximumf %690, %691 : vector<8x32xf32>
    %693 = arith.addf %656, %692 : vector<8x32xf32>
    %694 = arith.truncf %693 : vector<8x32xf32> to vector<8x32xbf16>
    %cst_484 = arith.constant dense<0.000000e+00> : vector<8x128xf32>
    %695 = tpu.matmul %694, %0, %cst_484 {dimension_numbers = #tpu.dot_dimension_numbers<[1], [0], [0], [1], [0, 0, 1, 1], [], []>} : vector<8x32xbf16>, vector<32x128xbf16>, vector<8x128xf32> -> vector<8x128xf32>
    %696 = vector.broadcast %1 : vector<1x128xf32> to vector<8x128xf32>
    %697 = arith.addf %695, %696 : vector<8x128xf32>
    %c0_485 = arith.constant 0 : index
    %c0_486 = arith.constant 0 : index
    %c0_487 = arith.constant 0 : index
    %698 = vector.load %arg25[%c0_485, %c0_486, %c0_487] : memref<1x8x128xf32, #tpu.memory_space<vmem>>, vector<1x8x128xf32>
    %699 = vector.shape_cast %698 : vector<1x8x128xf32> to vector<8x128xf32>
    %700 = vector.shape_cast %697 : vector<8x128xf32> to vector<1x8x128xf32>
    tpu.vector_store %arg25[%c0_485, %c0_486, %c0_487], %700 {strides = array<i32>} : memref<1x8x128xf32, #tpu.memory_space<vmem>>, vector<1x8x128xf32>,
    return
  }
  func.func @transform_0(%arg0: i32) -> (i32, i32, i32) {
    %c0_i32 = arith.constant 0 : i32
    %c0_i32_0 = arith.constant 0 : i32
    %c0_i32_1 = arith.constant 0 : i32
    return %arg0, %c0_i32, %c0_i32_0 : i32, i32, i32
  }
  func.func @transform_1(%arg0: i32) -> (i32, i32, i32) {
    %c0_i32 = arith.constant 0 : i32
    %c0_i32_0 = arith.constant 0 : i32
    %c0_i32_1 = arith.constant 0 : i32
    return %arg0, %c0_i32, %c0_i32_0 : i32, i32, i32
  }
  func.func @transform_2(%arg0: i32) -> (i32, i32, i32) {
    %c0_i32 = arith.constant 0 : i32
    %c0_i32_0 = arith.constant 0 : i32
    %c0_i32_1 = arith.constant 0 : i32
    return %arg0, %c0_i32, %c0_i32_0 : i32, i32, i32
  }
  func.func @transform_3(%arg0: i32) -> (i32, i32, i32) {
    %c0_i32 = arith.constant 0 : i32
    %c0_i32_0 = arith.constant 0 : i32
    %c0_i32_1 = arith.constant 0 : i32
    return %arg0, %c0_i32, %c0_i32_0 : i32, i32, i32
  }
  func.func @transform_4(%arg0: i32) -> (i32, i32, i32, i32, i32) {
    %c0_i32 = arith.constant 0 : i32
    %c0_i32_0 = arith.constant 0 : i32
    %c0_i32_1 = arith.constant 0 : i32
    %c0_i32_2 = arith.constant 0 : i32
    %c0_i32_3 = arith.constant 0 : i32
    %c0_i32_4 = arith.constant 0 : i32
    return %c0_i32, %c0_i32_0, %c0_i32_1, %c0_i32_2, %c0_i32_3 : i32, i32, i32, i32, i32
  }
  func.func @transform_5(%arg0: i32) -> (i32, i32, i32, i32, i32) {
    %c0_i32 = arith.constant 0 : i32
    %c0_i32_0 = arith.constant 0 : i32
    %c0_i32_1 = arith.constant 0 : i32
    %c0_i32_2 = arith.constant 0 : i32
    %c0_i32_3 = arith.constant 0 : i32
    %c0_i32_4 = arith.constant 0 : i32
    return %c0_i32, %c0_i32_0, %c0_i32_1, %c0_i32_2, %c0_i32_3 : i32, i32, i32, i32, i32
  }
  func.func @transform_6(%arg0: i32) -> (i32, i32, i32, i32, i32) {
    %c0_i32 = arith.constant 0 : i32
    %c0_i32_0 = arith.constant 0 : i32
    %c0_i32_1 = arith.constant 0 : i32
    %c0_i32_2 = arith.constant 0 : i32
    %c0_i32_3 = arith.constant 0 : i32
    %c0_i32_4 = arith.constant 0 : i32
    return %c0_i32, %c0_i32_0, %c0_i32_1, %c0_i32_2, %c0_i32_3 : i32, i32, i32, i32, i32
  }
  func.func @transform_7(%arg0: i32) -> (i32, i32, i32, i32) {
    %c0_i32 = arith.constant 0 : i32
    %c0_i32_0 = arith.constant 0 : i32
    %c0_i32_1 = arith.constant 0 : i32
    %c0_i32_2 = arith.constant 0 : i32
    %c0_i32_3 = arith.constant 0 : i32
    return %c0_i32, %c0_i32_0, %c0_i32_1, %c0_i32_2 : i32, i32, i32, i32
  }
  func.func @transform_8(%arg0: i32) -> (i32, i32, i32) {
    %c0_i32 = arith.constant 0 : i32
    %c0_i32_0 = arith.constant 0 : i32
    %c0_i32_1 = arith.constant 0 : i32
    %c0_i32_2 = arith.constant 0 : i32
    return %c0_i32, %c0_i32_0, %c0_i32_1 : i32, i32, i32
  }
  func.func @transform_9(%arg0: i32) -> (i32, i32, i32) {
    %c0_i32 = arith.constant 0 : i32
    %c0_i32_0 = arith.constant 0 : i32
    %c0_i32_1 = arith.constant 0 : i32
    %c0_i32_2 = arith.constant 0 : i32
    return %c0_i32, %c0_i32_0, %c0_i32_1 : i32, i32, i32
  }
  func.func @transform_10(%arg0: i32) -> (i32, i32, i32) {
    %c0_i32 = arith.constant 0 : i32
    %c0_i32_0 = arith.constant 0 : i32
    %c0_i32_1 = arith.constant 0 : i32
    %c0_i32_2 = arith.constant 0 : i32
    return %c0_i32, %c0_i32_0, %c0_i32_1 : i32, i32, i32
  }
  func.func @transform_11(%arg0: i32) -> (i32, i32, i32, i32, i32) {
    %c0_i32 = arith.constant 0 : i32
    %c0_i32_0 = arith.constant 0 : i32
    %c0_i32_1 = arith.constant 0 : i32
    %c0_i32_2 = arith.constant 0 : i32
    %c0_i32_3 = arith.constant 0 : i32
    %c0_i32_4 = arith.constant 0 : i32
    return %c0_i32, %c0_i32_0, %c0_i32_1, %c0_i32_2, %c0_i32_3 : i32, i32, i32, i32, i32
  }
  func.func @transform_12(%arg0: i32) -> (i32, i32, i32, i32, i32) {
    %c0_i32 = arith.constant 0 : i32
    %c0_i32_0 = arith.constant 0 : i32
    %c0_i32_1 = arith.constant 0 : i32
    %c0_i32_2 = arith.constant 0 : i32
    %c0_i32_3 = arith.constant 0 : i32
    %c0_i32_4 = arith.constant 0 : i32
    return %c0_i32, %c0_i32_0, %c0_i32_1, %c0_i32_2, %c0_i32_3 : i32, i32, i32, i32, i32
  }
  func.func @transform_13(%arg0: i32) -> (i32, i32, i32, i32, i32) {
    %c0_i32 = arith.constant 0 : i32
    %c0_i32_0 = arith.constant 0 : i32
    %c0_i32_1 = arith.constant 0 : i32
    %c0_i32_2 = arith.constant 0 : i32
    %c0_i32_3 = arith.constant 0 : i32
    %c0_i32_4 = arith.constant 0 : i32
    return %c0_i32, %c0_i32_0, %c0_i32_1, %c0_i32_2, %c0_i32_3 : i32, i32, i32, i32, i32
  }
  func.func @transform_14(%arg0: i32) -> (i32, i32, i32, i32) {
    %c0_i32 = arith.constant 0 : i32
    %c0_i32_0 = arith.constant 0 : i32
    %c0_i32_1 = arith.constant 0 : i32
    %c0_i32_2 = arith.constant 0 : i32
    %c0_i32_3 = arith.constant 0 : i32
    return %c0_i32, %c0_i32_0, %c0_i32_1, %c0_i32_2 : i32, i32, i32, i32
  }
  func.func @transform_15(%arg0: i32) -> (i32, i32, i32) {
    %c0_i32 = arith.constant 0 : i32
    %c0_i32_0 = arith.constant 0 : i32
    %c0_i32_1 = arith.constant 0 : i32
    %c0_i32_2 = arith.constant 0 : i32
    return %c0_i32, %c0_i32_0, %c0_i32_1 : i32, i32, i32
  }
  func.func @transform_16(%arg0: i32) -> (i32, i32, i32, i32, i32) {
    %c0_i32 = arith.constant 0 : i32
    %c0_i32_0 = arith.constant 0 : i32
    %c0_i32_1 = arith.constant 0 : i32
    %c0_i32_2 = arith.constant 0 : i32
    %c0_i32_3 = arith.constant 0 : i32
    %c0_i32_4 = arith.constant 0 : i32
    return %c0_i32, %c0_i32_0, %c0_i32_1, %c0_i32_2, %c0_i32_3 : i32, i32, i32, i32, i32
  }
  func.func @transform_17(%arg0: i32) -> (i32, i32, i32, i32, i32) {
    %c0_i32 = arith.constant 0 : i32
    %c0_i32_0 = arith.constant 0 : i32
    %c0_i32_1 = arith.constant 0 : i32
    %c0_i32_2 = arith.constant 0 : i32
    %c0_i32_3 = arith.constant 0 : i32
    %c0_i32_4 = arith.constant 0 : i32
    return %c0_i32, %c0_i32_0, %c0_i32_1, %c0_i32_2, %c0_i32_3 : i32, i32, i32, i32, i32
  }
  func.func @transform_18(%arg0: i32) -> (i32, i32, i32, i32) {
    %c0_i32 = arith.constant 0 : i32
    %c0_i32_0 = arith.constant 0 : i32
    %c0_i32_1 = arith.constant 0 : i32
    %c0_i32_2 = arith.constant 0 : i32
    %c0_i32_3 = arith.constant 0 : i32
    return %c0_i32, %c0_i32_0, %c0_i32_1, %c0_i32_2 : i32, i32, i32, i32
  }
  func.func @transform_19(%arg0: i32) -> (i32, i32, i32) {
    %c0_i32 = arith.constant 0 : i32
    %c0_i32_0 = arith.constant 0 : i32
    %c0_i32_1 = arith.constant 0 : i32
    %c0_i32_2 = arith.constant 0 : i32
    return %c0_i32, %c0_i32_0, %c0_i32_1 : i32, i32, i32
  }
  func.func @transform_20(%arg0: i32) -> (i32, i32, i32) {
    %c0_i32 = arith.constant 0 : i32
    %c0_i32_0 = arith.constant 0 : i32
    %c0_i32_1 = arith.constant 0 : i32
    %c0_i32_2 = arith.constant 0 : i32
    return %c0_i32, %c0_i32_0, %c0_i32_1 : i32, i32, i32
  }
  func.func @transform_21(%arg0: i32) -> (i32, i32, i32) {
    %c0_i32 = arith.constant 0 : i32
    %c0_i32_0 = arith.constant 0 : i32
    %c0_i32_1 = arith.constant 0 : i32
    %c0_i32_2 = arith.constant 0 : i32
    return %c0_i32, %c0_i32_0, %c0_i32_1 : i32, i32, i32
  }
  func.func @transform_22(%arg0: i32) -> (i32, i32) {
    %c0_i32 = arith.constant 0 : i32
    %c0_i32_0 = arith.constant 0 : i32
    %c0_i32_1 = arith.constant 0 : i32
    return %c0_i32, %c0_i32_0 : i32, i32
  }
  func.func @transform_23(%arg0: i32) -> (i32, i32) {
    %c0_i32 = arith.constant 0 : i32
    %c0_i32_0 = arith.constant 0 : i32
    %c0_i32_1 = arith.constant 0 : i32
    return %c0_i32, %c0_i32_0 : i32, i32
  }
  func.func @transform_24(%arg0: i32) -> (i32, i32, i32) {
    %c0_i32 = arith.constant 0 : i32
    %c0_i32_0 = arith.constant 0 : i32
    %c0_i32_1 = arith.constant 0 : i32
    return %arg0, %c0_i32, %c0_i32_0 : i32, i32, i32
  }
}

</mosaic_0001>

<llo_original>
// kernel: transformer_forward.1
$region0: #{transformer_forward.1}
  #allocation0 [shape = 'u32[]', space=smem, size = 0x4, offset = 0x4, fixed_abs, tag = 'smem constant byte address 0x4 - core index']
  #allocation1 [shape = 'u32[72,128]{1,0:T(1,128)}', space=vmem, size = 0x9000, scoped, tag = 'internal scratch']
  %s0 = inlined_call_operand.vmem [shape: f32[2,8,32], index: 0, kind: input, shape index: {}]
  %s1 = inlined_call_operand.vmem [shape: f32[2,8,32], index: 1, kind: input, shape index: {}]
  %s2 = inlined_call_operand.vmem [shape: f32[2,1,8], index: 2, kind: input, shape index: {}]
  %s3 = inlined_call_operand.vmem [shape: f32[2,8,1], index: 3, kind: input, shape index: {}]
  %s4 = inlined_call_operand.vmem [shape: f32[2,2,2,1,32], index: 4, kind: input, shape index: {}]
  %s5 = inlined_call_operand.vmem [shape: bf16[2,3,4,32,8], index: 5, kind: input, shape index: {}]
  %s6 = inlined_call_operand.vmem [shape: f32[2,3,4,1,8], index: 6, kind: input, shape index: {}]
  %s7 = inlined_call_operand.vmem [shape: bf16[2,4,8,32], index: 7, kind: input, shape index: {}]
  %s8 = inlined_call_operand.vmem [shape: f32[2,1,32], index: 8, kind: input, shape index: {}]
  %s9 = inlined_call_operand.vmem [shape: bf16[2,32,32], index: 9, kind: input, shape index: {}]
  %s10 = inlined_call_operand.vmem [shape: f32[2,1,32], index: 10, kind: input, shape index: {}]
  %s11 = inlined_call_operand.vmem [shape: f32[2,3,2,1,32], index: 11, kind: input, shape index: {}]
  %s12 = inlined_call_operand.vmem [shape: bf16[2,3,4,32,8], index: 12, kind: input, shape index: {}]
  %s13 = inlined_call_operand.vmem [shape: f32[2,3,4,1,8], index: 13, kind: input, shape index: {}]
  %s14 = inlined_call_operand.vmem [shape: bf16[2,4,8,32], index: 14, kind: input, shape index: {}]
  %s15 = inlined_call_operand.vmem [shape: f32[2,1,32], index: 15, kind: input, shape index: {}]
  %s16 = inlined_call_operand.vmem [shape: bf16[2,3,4,32,8], index: 16, kind: input, shape index: {}]
  %s17 = inlined_call_operand.vmem [shape: f32[2,3,4,1,8], index: 17, kind: input, shape index: {}]
  %s18 = inlined_call_operand.vmem [shape: bf16[2,4,8,32], index: 18, kind: input, shape index: {}]
  %s19 = inlined_call_operand.vmem [shape: f32[2,1,32], index: 19, kind: input, shape index: {}]
  %s20 = inlined_call_operand.vmem [shape: bf16[2,32,32], index: 20, kind: input, shape index: {}]
  %s21 = inlined_call_operand.vmem [shape: f32[2,1,32], index: 21, kind: input, shape index: {}]
  %s22 = inlined_call_operand.vmem [shape: bf16[32,128], index: 22, kind: input, shape index: {}]
  %s23 = inlined_call_operand.vmem [shape: f32[1,128], index: 23, kind: input, shape index: {}]
  %s24 = inlined_call_operand.hbm [shape: f32[2,8,128], index: 24, kind: output, shape index: {}]
  %s25 = sld [smem:[#allocation0]]
  $region129: #{transformer_forward.1} parent=0
    _
  %s27 = ssub.s32 1, %s25
  %s28 = scalar_select 0, %s27, %s25
  $region1: #{transformer_forward.1} parent=0
    #allocation2 [shape = 'u8[8192]{0}', space=vmem, size = 0x2000, scoped, tag = 'output window, operand 0']
    #allocation3 [shape = 's32[2]{0}', space=sflag, size = 0x8, scoped, tag = 'scoped memory for transformer_forward.1']
    %29 = vsyncpa [#allocation3], 0
    %s30 = scalar_lea.sflag [#allocation3], 1
    %31 = vsyncpa %s30, 0
    loop: start=0, step=1, limit=4
    $region2: #{transformer_forward.1} parent=1 // loop_pre_header
      _
    $region3: #{transformer_forward.1} parent=1 // loop_header
      %s33 = sphi 0, %s37
      %p34 = scmp.ge.s32.totalorder %s33, 4
      %s43 = sphi 0, %s45
      %s46 = sphi 0, %s43
      %s47 = sphi 0, %s46
      %s63 = sphi 0, %s47
      %s69 = sphi 0, %s71
      %s72 = sphi 0, %s69
      %s73 = sphi 0, %s72
      %s89 = sphi 0, %s73
      %s95 = sphi 0, %s97
      %s98 = sphi 0, %s95
      %s99 = sphi 0, %s98
      %s115 = sphi 0, %s99
      %s121 = sphi 0, %s123
      %s124 = sphi 0, %s121
      %s125 = sphi 0, %s124
      %s141 = sphi 0, %s125
      %s145 = sphi 0, %s145
      %s147 = sphi 0, %s145
      %s148 = sphi 0, %s147
      %s162 = sphi 0, %s148
      %s166 = sphi 0, %s166
      %s168 = sphi 0, %s166
      %s169 = sphi 0, %s168
      %s183 = sphi 0, %s169
      %s187 = sphi 0, %s187
      %s189 = sphi 0, %s187
      %s190 = sphi 0, %s189
      %s204 = sphi 0, %s190
      %s208 = sphi 0, %s208
      %s210 = sphi 0, %s208
      %s211 = sphi 0, %s210
      %s225 = sphi 0, %s211
      %s229 = sphi 0, %s229
      %s231 = sphi 0, %s229
      %s232 = sphi 0, %s231
      %s246 = sphi 0, %s232
      %s250 = sphi 0, %s250
      %s252 = sphi 0, %s250
      %s253 = sphi 0, %s252
      %s267 = sphi 0, %s253
      %s271 = sphi 0, %s271
      %s273 = sphi 0, %s271
      %s274 = sphi 0, %s273
      %s288 = sphi 0, %s274
      %s292 = sphi 0, %s292
      %s294 = sphi 0, %s292
      %s295 = sphi 0, %s294
      %s309 = sphi 0, %s295
      %s313 = sphi 0, %s313
      %s315 = sphi 0, %s313
      %s316 = sphi 0, %s315
      %s330 = sphi 0, %s316
      %s334 = sphi 0, %s334
      %s336 = sphi 0, %s334
      %s337 = sphi 0, %s336
      %s351 = sphi 0, %s337
      %s355 = sphi 0, %s355
      %s357 = sphi 0, %s355
      %s358 = sphi 0, %s357
      %s372 = sphi 0, %s358
      %s376 = sphi 0, %s376
      %s378 = sphi 0, %s376
      %s379 = sphi 0, %s378
      %s393 = sphi 0, %s379
      %s397 = sphi 0, %s397
      %s399 = sphi 0, %s397
      %s400 = sphi 0, %s399
      %s414 = sphi 0, %s400
      %s418 = sphi 0, %s418
      %s420 = sphi 0, %s418
      %s421 = sphi 0, %s420
      %s435 = sphi 0, %s421
      %s439 = sphi 0, %s439
      %s441 = sphi 0, %s439
      %s442 = sphi 0, %s441
      %s456 = sphi 0, %s442
      %s460 = sphi 0, %s460
      %s462 = sphi 0, %s460
      %s463 = sphi 0, %s462
      %s477 = sphi 0, %s463
      %s481 = sphi 0, %s481
      %s483 = sphi 0, %s481
      %s484 = sphi 0, %s483
      %s498 = sphi 0, %s484
      %s502 = sphi 0, %s502
      %s504 = sphi 0, %s502
      %s505 = sphi 0, %s504
      %s519 = sphi 0, %s505
      %s523 = sphi 0, %s523
      %s525 = sphi 0, %s523
      %s526 = sphi 0, %s525
      %s540 = sphi 0, %s526
      %s544 = sphi 0, %s544
      %s546 = sphi 0, %s544
      %s547 = sphi 0, %s546
      %s561 = sphi 0, %s547
      %s567 = sphi 0, %s569
      %s570 = sphi 0, %s567
      %s571 = sphi 0, %s570
      %s587 = sphi 0, %s571
    $region4: #{transformer_forward.1} parent=1 // loop_header_branch
      %36 = sbr.rel (%p34) target = $region8
    $region5: #{transformer_forward.1} parent=1 // loop_body
      %s38 = ssub.s32 %s33, 1
      %s39 = ssub.s32 %s33, 2
      %s40 = sadd.s32 %s33, 1
      %s41 = ssub.s32 %s33, %s40
      %p42 = scmp.eq.s32.totalorder %s41, 0
      %s44 = sadd.s32 %s43, 1
      %s45 = scalar_select %p42, %s43, %s44
      %p48 = pneg %p42
      %p49 = scmp.eq.s32.totalorder %s33, 1
      %p50 = por %p48, %p49
      %p51 = scmp.ne.s32.totalorder %s43, %s46
      %p52 = scmp.eq.s32.totalorder %s33, 0
      %p53 = por %p51, %p52
      %p54 = scmp.ne.s32.totalorder %s43, %s46
      %p55 = scmp.eq.s32.totalorder %s38, 1
      %p56 = por %p54, %p55
      %p57 = scmp.ne.s32.totalorder %s46, %s47
      %p58 = scmp.eq.s32.totalorder %s38, 0
      %p59 = por %p57, %p58
      %p60 = scmp.ne.s32.totalorder %s46, %s47
      %p61 = scmp.eq.s32.totalorder %s39, 1
      %p62 = por %p60, %p61
      %p64 = scmp.ne.s32.totalorder %s47, %s63
      %p65 = scmp.eq.s32.totalorder %s39, 0
      %p66 = por %p64, %p65
      %s67 = ssub.s32 %s33, %s40
      %p68 = scmp.eq.s32.totalorder %s67, 0
      %s70 = sadd.s32 %s69, 1
      %s71 = scalar_select %p68, %s69, %s70
      %p74 = pneg %p68
      %p75 = scmp.eq.s32.totalorder %s33, 1
      %p76 = por %p74, %p75
      %p77 = scmp.ne.s32.totalorder %s69, %s72
      %p78 = scmp.eq.s32.totalorder %s33, 0
      %p79 = por %p77, %p78
      %p80 = scmp.ne.s32.totalorder %s69, %s72
      %p81 = scmp.eq.s32.totalorder %s38, 1
      %p82 = por %p80, %p81
      %p83 = scmp.ne.s32.totalorder %s72, %s73
      %p84 = scmp.eq.s32.totalorder %s38, 0
      %p85 = por %p83, %p84
      %p86 = scmp.ne.s32.totalorder %s72, %s73
      %p87 = scmp.eq.s32.totalorder %s39, 1
      %p88 = por %p86, %p87
      %p90 = scmp.ne.s32.totalorder %s73, %s89
      %p91 = scmp.eq.s32.totalorder %s39, 0
      %p92 = por %p90, %p91
      %s93 = ssub.s32 %s33, %s40
      %p94 = scmp.eq.s32.totalorder %s93, 0
      %s96 = sadd.s32 %s95, 1
      %s97 = scalar_select %p94, %s95, %s96
      %p100 = pneg %p94
      %p101 = scmp.eq.s32.totalorder %s33, 1
      %p102 = por %p100, %p101
      %p103 = scmp.ne.s32.totalorder %s95, %s98
      %p104 = scmp.eq.s32.totalorder %s33, 0
      %p105 = por %p103, %p104
      %p106 = scmp.ne.s32.totalorder %s95, %s98
      %p107 = scmp.eq.s32.totalorder %s38, 1
      %p108 = por %p106, %p107
      %p109 = scmp.ne.s32.totalorder %s98, %s99
      %p110 = scmp.eq.s32.totalorder %s38, 0
      %p111 = por %p109, %p110
      %p112 = scmp.ne.s32.totalorder %s98, %s99
      %p113 = scmp.eq.s32.totalorder %s39, 1
      %p114 = por %p112, %p113
      %p116 = scmp.ne.s32.totalorder %s99, %s115
      %p117 = scmp.eq.s32.totalorder %s39, 0
      %p118 = por %p116, %p117
      %s119 = ssub.s32 %s33, %s40
      %p120 = scmp.eq.s32.totalorder %s119, 0
      %s122 = sadd.s32 %s121, 1
      %s123 = scalar_select %p120, %s121, %s122
      %p126 = pneg %p120
      %p127 = scmp.eq.s32.totalorder %s33, 1
      %p128 = por %p126, %p127
      %p129 = scmp.ne.s32.totalorder %s121, %s124
      %p130 = scmp.eq.s32.totalorder %s33, 0
      %p131 = por %p129, %p130
      %p132 = scmp.ne.s32.totalorder %s121, %s124
      %p133 = scmp.eq.s32.totalorder %s38, 1
      %p134 = por %p132, %p133
      %p135 = scmp.ne.s32.totalorder %s124, %s125
      %p136 = scmp.eq.s32.totalorder %s38, 0
      %p137 = por %p135, %p136
      %p138 = scmp.ne.s32.totalorder %s124, %s125
      %p139 = scmp.eq.s32.totalorder %s39, 1
      %p140 = por %p138, %p139
      %p142 = scmp.ne.s32.totalorder %s125, %s141
      %p143 = scmp.eq.s32.totalorder %s39, 0
      %p144 = por %p142, %p143
      %s146 = sadd.s32 %s145, 1
      %p149 = scmp.eq.s32.totalorder %s33, 1
      %p150 = scmp.ne.s32.totalorder %s145, %s147
      %p151 = scmp.eq.s32.totalorder %s33, 0
      %p152 = por %p150, %p151
      %p153 = scmp.ne.s32.totalorder %s145, %s147
      %p154 = scmp.eq.s32.totalorder %s38, 1
      %p155 = por %p153, %p154
      %p156 = scmp.ne.s32.totalorder %s147, %s148
      %p157 = scmp.eq.s32.totalorder %s38, 0
      %p158 = por %p156, %p157
      %p159 = scmp.ne.s32.totalorder %s147, %s148
      %p160 = scmp.eq.s32.totalorder %s39, 1
      %p161 = por %p159, %p160
      %p163 = scmp.ne.s32.totalorder %s148, %s162
      %p164 = scmp.eq.s32.totalorder %s39, 0
      %p165 = por %p163, %p164
      %s167 = sadd.s32 %s166, 1
      %p170 = scmp.eq.s32.totalorder %s33, 1
      %p171 = scmp.ne.s32.totalorder %s166, %s168
      %p172 = scmp.eq.s32.totalorder %s33, 0
      %p173 = por %p171, %p172
      %p174 = scmp.ne.s32.totalorder %s166, %s168
      %p175 = scmp.eq.s32.totalorder %s38, 1
      %p176 = por %p174, %p175
      %p177 = scmp.ne.s32.totalorder %s168, %s169
      %p178 = scmp.eq.s32.totalorder %s38, 0
      %p179 = por %p177, %p178
      %p180 = scmp.ne.s32.totalorder %s168, %s169
      %p181 = scmp.eq.s32.totalorder %s39, 1
      %p182 = por %p180, %p181
      %p184 = scmp.ne.s32.totalorder %s169, %s183
      %p185 = scmp.eq.s32.totalorder %s39, 0
      %p186 = por %p184, %p185
      %s188 = sadd.s32 %s187, 1
      %p191 = scmp.eq.s32.totalorder %s33, 1
      %p192 = scmp.ne.s32.totalorder %s187, %s189
      %p193 = scmp.eq.s32.totalorder %s33, 0
      %p194 = por %p192, %p193
      %p195 = scmp.ne.s32.totalorder %s187, %s189
      %p196 = scmp.eq.s32.totalorder %s38, 1
      %p197 = por %p195, %p196
      %p198 = scmp.ne.s32.totalorder %s189, %s190
      %p199 = scmp.eq.s32.totalorder %s38, 0
      %p200 = por %p198, %p199
      %p201 = scmp.ne.s32.totalorder %s189, %s190
      %p202 = scmp.eq.s32.totalorder %s39, 1
      %p203 = por %p201, %p202
      %p205 = scmp.ne.s32.totalorder %s190, %s204
      %p206 = scmp.eq.s32.totalorder %s39, 0
      %p207 = por %p205, %p206
      %s209 = sadd.s32 %s208, 1
      %p212 = scmp.eq.s32.totalorder %s33, 1
      %p213 = scmp.ne.s32.totalorder %s208, %s210
      %p214 = scmp.eq.s32.totalorder %s33, 0
      %p215 = por %p213, %p214
      %p216 = scmp.ne.s32.totalorder %s208, %s210
      %p217 = scmp.eq.s32.totalorder %s38, 1
      %p218 = por %p216, %p217
      %p219 = scmp.ne.s32.totalorder %s210, %s211
      %p220 = scmp.eq.s32.totalorder %s38, 0
      %p221 = por %p219, %p220
      %p222 = scmp.ne.s32.totalorder %s210, %s211
      %p223 = scmp.eq.s32.totalorder %s39, 1
      %p224 = por %p222, %p223
      %p226 = scmp.ne.s32.totalorder %s211, %s225
      %p227 = scmp.eq.s32.totalorder %s39, 0
      %p228 = por %p226, %p227
      %s230 = sadd.s32 %s229, 1
      %p233 = scmp.eq.s32.totalorder %s33, 1
      %p234 = scmp.ne.s32.totalorder %s229, %s231
      %p235 = scmp.eq.s32.totalorder %s33, 0
      %p236 = por %p234, %p235
      %p237 = scmp.ne.s32.totalorder %s229, %s231
      %p238 = scmp.eq.s32.totalorder %s38, 1
      %p239 = por %p237, %p238
      %p240 = scmp.ne.s32.totalorder %s231, %s232
      %p241 = scmp.eq.s32.totalorder %s38, 0
      %p242 = por %p240, %p241
      %p243 = scmp.ne.s32.totalorder %s231, %s232
      %p244 = scmp.eq.s32.totalorder %s39, 1
      %p245 = por %p243, %p244
      %p247 = scmp.ne.s32.totalorder %s232, %s246
      %p248 = scmp.eq.s32.totalorder %s39, 0
      %p249 = por %p247, %p248
      %s251 = sadd.s32 %s250, 1
      %p254 = scmp.eq.s32.totalorder %s33, 1
      %p255 = scmp.ne.s32.totalorder %s250, %s252
      %p256 = scmp.eq.s32.totalorder %s33, 0
      %p257 = por %p255, %p256
      %p258 = scmp.ne.s32.totalorder %s250, %s252
      %p259 = scmp.eq.s32.totalorder %s38, 1
      %p260 = por %p258, %p259
      %p261 = scmp.ne.s32.totalorder %s252, %s253
      %p262 = scmp.eq.s32.totalorder %s38, 0
      %p263 = por %p261, %p262
      %p264 = scmp.ne.s32.totalorder %s252, %s253
      %p265 = scmp.eq.s32.totalorder %s39, 1
      %p266 = por %p264, %p265
      %p268 = scmp.ne.s32.totalorder %s253, %s267
      %p269 = scmp.eq.s32.totalorder %s39, 0
      %p270 = por %p268, %p269
      %s272 = sadd.s32 %s271, 1
      %p275 = scmp.eq.s32.totalorder %s33, 1
      %p276 = scmp.ne.s32.totalorder %s271, %s273
      %p277 = scmp.eq.s32.totalorder %s33, 0
      %p278 = por %p276, %p277
      %p279 = scmp.ne.s32.totalorder %s271, %s273
      %p280 = scmp.eq.s32.totalorder %s38, 1
      %p281 = por %p279, %p280
      %p282 = scmp.ne.s32.totalorder %s273, %s274
      %p283 = scmp.eq.s32.totalorder %s38, 0
      %p284 = por %p282, %p283
      %p285 = scmp.ne.s32.totalorder %s273, %s274
      %p286 = scmp.eq.s32.totalorder %s39, 1
      %p287 = por %p285, %p286
      %p289 = scmp.ne.s32.totalorder %s274, %s288
      %p290 = scmp.eq.s32.totalorder %s39, 0
      %p291 = por %p289, %p290
      %s293 = sadd.s32 %s292, 1
      %p296 = scmp.eq.s32.totalorder %s33, 1
      %p297 = scmp.ne.s32.totalorder %s292, %s294
      %p298 = scmp.eq.s32.totalorder %s33, 0
      %p299 = por %p297, %p298
      %p300 = scmp.ne.s32.totalorder %s292, %s294
      %p301 = scmp.eq.s32.totalorder %s38, 1
      %p302 = por %p300, %p301
      %p303 = scmp.ne.s32.totalorder %s294, %s295
      %p304 = scmp.eq.s32.totalorder %s38, 0
      %p305 = por %p303, %p304
      %p306 = scmp.ne.s32.totalorder %s294, %s295
      %p307 = scmp.eq.s32.totalorder %s39, 1
      %p308 = por %p306, %p307
      %p310 = scmp.ne.s32.totalorder %s295, %s309
      %p311 = scmp.eq.s32.totalorder %s39, 0
      %p312 = por %p310, %p311
      %s314 = sadd.s32 %s313, 1
      %p317 = scmp.eq.s32.totalorder %s33, 1
      %p318 = scmp.ne.s32.totalorder %s313, %s315
      %p319 = scmp.eq.s32.totalorder %s33, 0
      %p320 = por %p318, %p319
      %p321 = scmp.ne.s32.totalorder %s313, %s315
      %p322 = scmp.eq.s32.totalorder %s38, 1
      %p323 = por %p321, %p322
      %p324 = scmp.ne.s32.totalorder %s315, %s316
      %p325 = scmp.eq.s32.totalorder %s38, 0
      %p326 = por %p324, %p325
      %p327 = scmp.ne.s32.totalorder %s315, %s316
      %p328 = scmp.eq.s32.totalorder %s39, 1
      %p329 = por %p327, %p328
      %p331 = scmp.ne.s32.totalorder %s316, %s330
      %p332 = scmp.eq.s32.totalorder %s39, 0
      %p333 = por %p331, %p332
      %s335 = sadd.s32 %s334, 1
      %p338 = scmp.eq.s32.totalorder %s33, 1
      %p339 = scmp.ne.s32.totalorder %s334, %s336
      %p340 = scmp.eq.s32.totalorder %s33, 0
      %p341 = por %p339, %p340
      %p342 = scmp.ne.s32.totalorder %s334, %s336
      %p343 = scmp.eq.s32.totalorder %s38, 1
      %p344 = por %p342, %p343
      %p345 = scmp.ne.s32.totalorder %s336, %s337
      %p346 = scmp.eq.s32.totalorder %s38, 0
      %p347 = por %p345, %p346
      %p348 = scmp.ne.s32.totalorder %s336, %s337
      %p349 = scmp.eq.s32.totalorder %s39, 1
      %p350 = por %p348, %p349
      %p352 = scmp.ne.s32.totalorder %s337, %s351
      %p353 = scmp.eq.s32.totalorder %s39, 0
      %p354 = por %p352, %p353
      %s356 = sadd.s32 %s355, 1
      %p359 = scmp.eq.s32.totalorder %s33, 1
      %p360 = scmp.ne.s32.totalorder %s355, %s357
      %p361 = scmp.eq.s32.totalorder %s33, 0
      %p362 = por %p360, %p361
      %p363 = scmp.ne.s32.totalorder %s355, %s357
      %p364 = scmp.eq.s32.totalorder %s38, 1
      %p365 = por %p363, %p364
      %p366 = scmp.ne.s32.totalorder %s357, %s358
      %p367 = scmp.eq.s32.totalorder %s38, 0
      %p368 = por %p366, %p367
      %p369 = scmp.ne.s32.totalorder %s357, %s358
      %p370 = scmp.eq.s32.totalorder %s39, 1
      %p371 = por %p369, %p370
      %p373 = scmp.ne.s32.totalorder %s358, %s372
      %p374 = scmp.eq.s32.totalorder %s39, 0
      %p375 = por %p373, %p374
      %s377 = sadd.s32 %s376, 1
      %p380 = scmp.eq.s32.totalorder %s33, 1
      %p381 = scmp.ne.s32.totalorder %s376, %s378
      %p382 = scmp.eq.s32.totalorder %s33, 0
      %p383 = por %p381, %p382
      %p384 = scmp.ne.s32.totalorder %s376, %s378
      %p385 = scmp.eq.s32.totalorder %s38, 1
      %p386 = por %p384, %p385
      %p387 = scmp.ne.s32.totalorder %s378, %s379
      %p388 = scmp.eq.s32.totalorder %s38, 0
      %p389 = por %p387, %p388
      %p390 = scmp.ne.s32.totalorder %s378, %s379
      %p391 = scmp.eq.s32.totalorder %s39, 1
      %p392 = por %p390, %p391
      %p394 = scmp.ne.s32.totalorder %s379, %s393
      %p395 = scmp.eq.s32.totalorder %s39, 0
      %p396 = por %p394, %p395
      %s398 = sadd.s32 %s397, 1
      %p401 = scmp.eq.s32.totalorder %s33, 1
      %p402 = scmp.ne.s32.totalorder %s397, %s399
      %p403 = scmp.eq.s32.totalorder %s33, 0
      %p404 = por %p402, %p403
      %p405 = scmp.ne.s32.totalorder %s397, %s399
      %p406 = scmp.eq.s32.totalorder %s38, 1
      %p407 = por %p405, %p406
      %p408 = scmp.ne.s32.totalorder %s399, %s400
      %p409 = scmp.eq.s32.totalorder %s38, 0
      %p410 = por %p408, %p409
      %p411 = scmp.ne.s32.totalorder %s399, %s400
      %p412 = scmp.eq.s32.totalorder %s39, 1
      %p413 = por %p411, %p412
      %p415 = scmp.ne.s32.totalorder %s400, %s414
      %p416 = scmp.eq.s32.totalorder %s39, 0
      %p417 = por %p415, %p416
      %s419 = sadd.s32 %s418, 1
      %p422 = scmp.eq.s32.totalorder %s33, 1
      %p423 = scmp.ne.s32.totalorder %s418, %s420
      %p424 = scmp.eq.s32.totalorder %s33, 0
      %p425 = por %p423, %p424
      %p426 = scmp.ne.s32.totalorder %s418, %s420
      %p427 = scmp.eq.s32.totalorder %s38, 1
      %p428 = por %p426, %p427
      %p429 = scmp.ne.s32.totalorder %s420, %s421
      %p430 = scmp.eq.s32.totalorder %s38, 0
      %p431 = por %p429, %p430
      %p432 = scmp.ne.s32.totalorder %s420, %s421
      %p433 = scmp.eq.s32.totalorder %s39, 1
      %p434 = por %p432, %p433
      %p436 = scmp.ne.s32.totalorder %s421, %s435
      %p437 = scmp.eq.s32.totalorder %s39, 0
      %p438 = por %p436, %p437
      %s440 = sadd.s32 %s439, 1
      %p443 = scmp.eq.s32.totalorder %s33, 1
      %p444 = scmp.ne.s32.totalorder %s439, %s441
      %p445 = scmp.eq.s32.totalorder %s33, 0
      %p446 = por %p444, %p445
      %p447 = scmp.ne.s32.totalorder %s439, %s441
      %p448 = scmp.eq.s32.totalorder %s38, 1
      %p449 = por %p447, %p448
      %p450 = scmp.ne.s32.totalorder %s441, %s442
      %p451 = scmp.eq.s32.totalorder %s38, 0
      %p452 = por %p450, %p451
      %p453 = scmp.ne.s32.totalorder %s441, %s442
      %p454 = scmp.eq.s32.totalorder %s39, 1
      %p455 = por %p453, %p454
      %p457 = scmp.ne.s32.totalorder %s442, %s456
      %p458 = scmp.eq.s32.totalorder %s39, 0
      %p459 = por %p457, %p458
      %s461 = sadd.s32 %s460, 1
      %p464 = scmp.eq.s32.totalorder %s33, 1
      %p465 = scmp.ne.s32.totalorder %s460, %s462
      %p466 = scmp.eq.s32.totalorder %s33, 0
      %p467 = por %p465, %p466
      %p468 = scmp.ne.s32.totalorder %s460, %s462
      %p469 = scmp.eq.s32.totalorder %s38, 1
      %p470 = por %p468, %p469
      %p471 = scmp.ne.s32.totalorder %s462, %s463
      %p472 = scmp.eq.s32.totalorder %s38, 0
      %p473 = por %p471, %p472
      %p474 = scmp.ne.s32.totalorder %s462, %s463
      %p475 = scmp.eq.s32.totalorder %s39, 1
      %p476 = por %p474, %p475
      %p478 = scmp.ne.s32.totalorder %s463, %s477
      %p479 = scmp.eq.s32.totalorder %s39, 0
      %p480 = por %p478, %p479
      %s482 = sadd.s32 %s481, 1
      %p485 = scmp.eq.s32.totalorder %s33, 1
      %p486 = scmp.ne.s32.totalorder %s481, %s483
      %p487 = scmp.eq.s32.totalorder %s33, 0
      %p488 = por %p486, %p487
      %p489 = scmp.ne.s32.totalorder %s481, %s483
      %p490 = scmp.eq.s32.totalorder %s38, 1
      %p491 = por %p489, %p490
      %p492 = scmp.ne.s32.totalorder %s483, %s484
      %p493 = scmp.eq.s32.totalorder %s38, 0
      %p494 = por %p492, %p493
      %p495 = scmp.ne.s32.totalorder %s483, %s484
      %p496 = scmp.eq.s32.totalorder %s39, 1
      %p497 = por %p495, %p496
      %p499 = scmp.ne.s32.totalorder %s484, %s498
      %p500 = scmp.eq.s32.totalorder %s39, 0
      %p501 = por %p499, %p500
      %s503 = sadd.s32 %s502, 1
      %p506 = scmp.eq.s32.totalorder %s33, 1
      %p507 = scmp.ne.s32.totalorder %s502, %s504
      %p508 = scmp.eq.s32.totalorder %s33, 0
      %p509 = por %p507, %p508
      %p510 = scmp.ne.s32.totalorder %s502, %s504
      %p511 = scmp.eq.s32.totalorder %s38, 1
      %p512 = por %p510, %p511
      %p513 = scmp.ne.s32.totalorder %s504, %s505
      %p514 = scmp.eq.s32.totalorder %s38, 0
      %p515 = por %p513, %p514
      %p516 = scmp.ne.s32.totalorder %s504, %s505
      %p517 = scmp.eq.s32.totalorder %s39, 1
      %p518 = por %p516, %p517
      %p520 = scmp.ne.s32.totalorder %s505, %s519
      %p521 = scmp.eq.s32.totalorder %s39, 0
      %p522 = por %p520, %p521
      %s524 = sadd.s32 %s523, 1
      %p527 = scmp.eq.s32.totalorder %s33, 1
      %p528 = scmp.ne.s32.totalorder %s523, %s525
      %p529 = scmp.eq.s32.totalorder %s33, 0
      %p530 = por %p528, %p529
      %p531 = scmp.ne.s32.totalorder %s523, %s525
      %p532 = scmp.eq.s32.totalorder %s38, 1
      %p533 = por %p531, %p532
      %p534 = scmp.ne.s32.totalorder %s525, %s526
      %p535 = scmp.eq.s32.totalorder %s38, 0
      %p536 = por %p534, %p535
      %p537 = scmp.ne.s32.totalorder %s525, %s526
      %p538 = scmp.eq.s32.totalorder %s39, 1
      %p539 = por %p537, %p538
      %p541 = scmp.ne.s32.totalorder %s526, %s540
      %p542 = scmp.eq.s32.totalorder %s39, 0
      %p543 = por %p541, %p542
      %s545 = sadd.s32 %s544, 1
      %p548 = scmp.eq.s32.totalorder %s33, 1
      %p549 = scmp.ne.s32.totalorder %s544, %s546
      %p550 = scmp.eq.s32.totalorder %s33, 0
      %p551 = por %p549, %p550
      %p552 = scmp.ne.s32.totalorder %s544, %s546
      %p553 = scmp.eq.s32.totalorder %s38, 1
      %p554 = por %p552, %p553
      %p555 = scmp.ne.s32.totalorder %s546, %s547
      %p556 = scmp.eq.s32.totalorder %s38, 0
      %p557 = por %p555, %p556
      %p558 = scmp.ne.s32.totalorder %s546, %s547
      %p559 = scmp.eq.s32.totalorder %s39, 1
      %p560 = por %p558, %p559
      %p562 = scmp.ne.s32.totalorder %s547, %s561
      %p563 = scmp.eq.s32.totalorder %s39, 0
      %p564 = por %p562, %p563
      %s565 = ssub.s32 %s33, %s40
      %p566 = scmp.eq.s32.totalorder %s565, 0
      %s568 = sadd.s32 %s567, 1
      %s569 = scalar_select %p566, %s567, %s568
      %p572 = pneg %p566
      %p573 = scmp.eq.s32.totalorder %s33, 1
      %p574 = por %p572, %p573
      %p575 = scmp.ne.s32.totalorder %s567, %s570
      %p576 = scmp.eq.s32.totalorder %s33, 0
      %p577 = por %p575, %p576
      %p578 = scmp.ne.s32.totalorder %s567, %s570
      %p579 = scmp.eq.s32.totalorder %s38, 1
      %p580 = por %p578, %p579
      %p581 = scmp.ne.s32.totalorder %s570, %s571
      %p582 = scmp.eq.s32.totalorder %s38, 0
      %p583 = por %p581, %p582
      %p584 = scmp.ne.s32.totalorder %s570, %s571
      %p585 = scmp.eq.s32.totalorder %s39, 1
      %p586 = por %p584, %p585
      %p588 = scmp.ne.s32.totalorder %s571, %s587
      %p589 = scmp.eq.s32.totalorder %s39, 0
      %p590 = por %p588, %p589
      %p591 = scmp.le.s32.totalorder 1, %s33
      %p592 = scmp.lt.s32.totalorder %s33, 3
      %p593 = pnand %p591, %p592
      %p594 = pneg %p593
      // Predicated region
      $region9: #{transformer_forward.1} parent=5 // pred_check
        _
      $region10: #{transformer_forward.1} parent=5 // pred_check_branch
        %596 = sbr.rel (%p593) target = $region12
      $region11: #{transformer_forward.1} parent=5 // pred_region
        %s597 = ssub.s32 %s33, 1
        // Predicated region
        $region13: #{transformer_forward.1} parent=11 // pred_check
          %p598 = pneg %p158
        $region14: #{transformer_forward.1} parent=11 // pred_check_branch
          %600 = sbr.rel (%p598) target = $region16
        $region15: #{transformer_forward.1} parent=11 // pred_region
          _
        $region16: #{transformer_forward.1} parent=11 // pred_fallthru
          _
        // Predicated region
        $region17: #{transformer_forward.1} parent=11 // pred_check
          %p601 = pneg %p179
        $region18: #{transformer_forward.1} parent=11 // pred_check_branch
          %603 = sbr.rel (%p601) target = $region20
        $region19: #{transformer_forward.1} parent=11 // pred_region
          _
        $region20: #{transformer_forward.1} parent=11 // pred_fallthru
          _
        // Predicated region
        $region21: #{transformer_forward.1} parent=11 // pred_check
          %p604 = pneg %p200
        $region22: #{transformer_forward.1} parent=11 // pred_check_branch
          %606 = sbr.rel (%p604) target = $region24
        $region23: #{transformer_forward.1} parent=11 // pred_region
          _
        $region24: #{transformer_forward.1} parent=11 // pred_fallthru
          _
        // Predicated region
        $region25: #{transformer_forward.1} parent=11 // pred_check
          %p607 = pneg %p221
        $region26: #{transformer_forward.1} parent=11 // pred_check_branch
          %609 = sbr.rel (%p607) target = $region28
        $region27: #{transformer_forward.1} parent=11 // pred_region
          _
        $region28: #{transformer_forward.1} parent=11 // pred_fallthru
          _
        // Predicated region
        $region29: #{transformer_forward.1} parent=11 // pred_check
          %p610 = pneg %p242
        $region30: #{transformer_forward.1} parent=11 // pred_check_branch
          %612 = sbr.rel (%p610) target = $region32
        $region31: #{transformer_forward.1} parent=11 // pred_region
          _
        $region32: #{transformer_forward.1} parent=11 // pred_fallthru
          _
        // Predicated region
        $region33: #{transformer_forward.1} parent=11 // pred_check
          %p613 = pneg %p263
        $region34: #{transformer_forward.1} parent=11 // pred_check_branch
          %615 = sbr.rel (%p613) target = $region36
        $region35: #{transformer_forward.1} parent=11 // pred_region
          _
        $region36: #{transformer_forward.1} parent=11 // pred_fallthru
          _
        // Predicated region
        $region37: #{transformer_forward.1} parent=11 // pred_check
          %p616 = pneg %p284
        $region38: #{transformer_forward.1} parent=11 // pred_check_branch
          %618 = sbr.rel (%p616) target = $region40
        $region39: #{transformer_forward.1} parent=11 // pred_region
          _
        $region40: #{transformer_forward.1} parent=11 // pred_fallthru
          _
        // Predicated region
        $region41: #{transformer_forward.1} parent=11 // pred_check
          %p619 = pneg %p305
        $region42: #{transformer_forward.1} parent=11 // pred_check_branch
          %621 = sbr.rel (%p619) target = $region44
        $region43: #{transformer_forward.1} parent=11 // pred_region
          _
        $region44: #{transformer_forward.1} parent=11 // pred_fallthru
          _
        // Predicated region
        $region45: #{transformer_forward.1} parent=11 // pred_check
          %p622 = pneg %p326
        $region46: #{transformer_forward.1} parent=11 // pred_check_branch
          %624 = sbr.rel (%p622) target = $region48
        $region47: #{transformer_forward.1} parent=11 // pred_region
          _
        $region48: #{transformer_forward.1} parent=11 // pred_fallthru
          _
        // Predicated region
        $region49: #{transformer_forward.1} parent=11 // pred_check
          %p625 = pneg %p347
        $region50: #{transformer_forward.1} parent=11 // pred_check_branch
          %627 = sbr.rel (%p625) target = $region52
        $region51: #{transformer_forward.1} parent=11 // pred_region
          _
        $region52: #{transformer_forward.1} parent=11 // pred_fallthru
          _
        // Predicated region
        $region53: #{transformer_forward.1} parent=11 // pred_check
          %p628 = pneg %p368
        $region54: #{transformer_forward.1} parent=11 // pred_check_branch
          %630 = sbr.rel (%p628) target = $region56
        $region55: #{transformer_forward.1} parent=11 // pred_region
          _
        $region56: #{transformer_forward.1} parent=11 // pred_fallthru
          _
        // Predicated region
        $region57: #{transformer_forward.1} parent=11 // pred_check
          %p631 = pneg %p389
        $region58: #{transformer_forward.1} parent=11 // pred_check_branch
          %633 = sbr.rel (%p631) target = $region60
        $region59: #{transformer_forward.1} parent=11 // pred_region
          _
        $region60: #{transformer_forward.1} parent=11 // pred_fallthru
          _
        // Predicated region
        $region61: #{transformer_forward.1} parent=11 // pred_check
          %p634 = pneg %p410
        $region62: #{transformer_forward.1} parent=11 // pred_check_branch
          %636 = sbr.rel (%p634) target = $region64
        $region63: #{transformer_forward.1} parent=11 // pred_region
          _
        $region64: #{transformer_forward.1} parent=11 // pred_fallthru
          _
        // Predicated region
        $region65: #{transformer_forward.1} parent=11 // pred_check
          %p637 = pneg %p431
        $region66: #{transformer_forward.1} parent=11 // pred_check_branch
          %639 = sbr.rel (%p637) target = $region68
        $region67: #{transformer_forward.1} parent=11 // pred_region
          _
        $region68: #{transformer_forward.1} parent=11 // pred_fallthru
          _
        // Predicated region
        $region69: #{transformer_forward.1} parent=11 // pred_check
          %p640 = pneg %p452
        $region70: #{transformer_forward.1} parent=11 // pred_check_branch
          %642 = sbr.rel (%p640) target = $region72
        $region71: #{transformer_forward.1} parent=11 // pred_region
          _
        $region72: #{transformer_forward.1} parent=11 // pred_fallthru
          _
        // Predicated region
        $region73: #{transformer_forward.1} parent=11 // pred_check
          %p643 = pneg %p473
        $region74: #{transformer_forward.1} parent=11 // pred_check_branch
          %645 = sbr.rel (%p643) target = $region76
        $region75: #{transformer_forward.1} parent=11 // pred_region
          _
        $region76: #{transformer_forward.1} parent=11 // pred_fallthru
          _
        // Predicated region
        $region77: #{transformer_forward.1} parent=11 // pred_check
          %p646 = pneg %p494
        $region78: #{transformer_forward.1} parent=11 // pred_check_branch
          %648 = sbr.rel (%p646) target = $region80
        $region79: #{transformer_forward.1} parent=11 // pred_region
          _
        $region80: #{transformer_forward.1} parent=11 // pred_fallthru
          _
        // Predicated region
        $region81: #{transformer_forward.1} parent=11 // pred_check
          %p649 = pneg %p515
        $region82: #{transformer_forward.1} parent=11 // pred_check_branch
          %651 = sbr.rel (%p649) target = $region84
        $region83: #{transformer_forward.1} parent=11 // pred_region
          _
        $region84: #{transformer_forward.1} parent=11 // pred_fallthru
          _
        // Predicated region
        $region85: #{transformer_forward.1} parent=11 // pred_check
          %p652 = pneg %p536
        $region86: #{transformer_forward.1} parent=11 // pred_check_branch
          %654 = sbr.rel (%p652) target = $region88
        $region87: #{transformer_forward.1} parent=11 // pred_region
          _
        $region88: #{transformer_forward.1} parent=11 // pred_fallthru
          _
        // Predicated region
        $region89: #{transformer_forward.1} parent=11 // pred_check
          %p655 = pneg %p557
        $region90: #{transformer_forward.1} parent=11 // pred_check_branch
          %657 = sbr.rel (%p655) target = $region92
        $region91: #{transformer_forward.1} parent=11 // pred_region
          _
        $region92: #{transformer_forward.1} parent=11 // pred_fallthru
          _
      $region12: #{transformer_forward.1} parent=5 // pred_fallthru
        _
      %p658 = scmp.lt.s32.totalorder %s33, 2
      // Predicated region
      $region93: #{transformer_forward.1} parent=5 // pred_check
        %p659 = pneg %p658
      $region94: #{transformer_forward.1} parent=5 // pred_check_branch
        %661 = sbr.rel (%p659) target = $region96
      $region95: #{transformer_forward.1} parent=5 // pred_region
        // Predicated region
        $region97: #{transformer_forward.1} parent=95 // pred_check
          %p662 = pneg %p53
        $region98: #{transformer_forward.1} parent=95 // pred_check_branch
          %664 = sbr.rel (%p662) target = $region100
        $region99: #{transformer_forward.1} parent=95 // pred_region
          %p665 = scmp.lt.s32.totalorder %s33, 1
          %s666 = scalar_select %p665, %s33, 1
          %s667 = smul.addr %s666, 8
          %s668 = scalar_lea.vmem %s0, %s667
        $region100: #{transformer_forward.1} parent=95 // pred_fallthru
          _
        // Predicated region
        $region101: #{transformer_forward.1} parent=95 // pred_check
          %p669 = pneg %p79
        $region102: #{transformer_forward.1} parent=95 // pred_check_branch
          %671 = sbr.rel (%p669) target = $region104
        $region103: #{transformer_forward.1} parent=95 // pred_region
          %p672 = scmp.lt.s32.totalorder %s33, 1
          %s673 = scalar_select %p672, %s33, 1
          %s674 = smul.addr %s673, 8
          %s675 = scalar_lea.vmem %s1, %s674
        $region104: #{transformer_forward.1} parent=95 // pred_fallthru
          _
        // Predicated region
        $region105: #{transformer_forward.1} parent=95 // pred_check
          %p676 = pneg %p105
        $region106: #{transformer_forward.1} parent=95 // pred_check_branch
          %678 = sbr.rel (%p676) target = $region108
        $region107: #{transformer_forward.1} parent=95 // pred_region
          %p679 = scmp.lt.s32.totalorder %s33, 1
          %s680 = scalar_select %p679, %s33, 1
          %s681 = scalar_lea.vmem %s2, %s680
        $region108: #{transformer_forward.1} parent=95 // pred_fallthru
          _
        // Predicated region
        $region109: #{transformer_forward.1} parent=95 // pred_check
          %p682 = pneg %p131
        $region110: #{transformer_forward.1} parent=95 // pred_check_branch
          %684 = sbr.rel (%p682) target = $region112
        $region111: #{transformer_forward.1} parent=95 // pred_region
          %p685 = scmp.lt.s32.totalorder %s33, 1
          %s686 = scalar_select %p685, %s33, 1
          %s687 = smul.addr %s686, 8
          %s688 = scalar_lea.vmem %s3, %s687
        $region112: #{transformer_forward.1} parent=95 // pred_fallthru
          _
      $region96: #{transformer_forward.1} parent=5 // pred_fallthru
        _
      %p689 = scmp.le.s32.totalorder 1, %s33
      %p690 = scmp.lt.s32.totalorder %s33, 3
      %p691 = pnand %p689, %p690
      %p692 = pneg %p691
      // Predicated region
      $region113: #{transformer_forward.1} parent=5 // pred_check
        _
      $region114: #{transformer_forward.1} parent=5 // pred_check_branch
        %694 = sbr.rel (%p691) target = $region116
      $region115: #{transformer_forward.1} parent=5 // pred_region
        %s695 = ssub.s32 %s33, 1
        %p696 = scmp.lt.s32.totalorder %s38, 1
        %s697 = scalar_select %p696, %s38, 1
        %s698 = smul.addr %s697, 8
        %s699 = scalar_lea.vmem %s0, %s698
        %p700 = pneg %p59
        %p701 = pneg %p56
        %p702 = scmp.lt.s32.totalorder %s38, 1
        %s703 = scalar_select %p702, %s38, 1
        %s704 = smul.addr %s703, 8
        %s705 = scalar_lea.vmem %s1, %s704
        %p706 = pneg %p85
        %p707 = pneg %p82
        %p708 = scmp.lt.s32.totalorder %s38, 1
        %s709 = scalar_select %p708, %s38, 1
        %s710 = scalar_lea.vmem %s2, %s709
        %p711 = pneg %p111
        %p712 = pneg %p108
        %p713 = scmp.lt.s32.totalorder %s38, 1
        %s714 = scalar_select %p713, %s38, 1
        %s715 = smul.addr %s714, 8
        %s716 = scalar_lea.vmem %s3, %s715
        %p717 = pneg %p137
        %p718 = pneg %p134
        %p719 = pneg %p158
        %p720 = pneg %p155
        %p721 = pneg %p179
        %p722 = pneg %p176
        %p723 = pneg %p200
        %p724 = pneg %p197
        %p725 = pneg %p221
        %p726 = pneg %p218
        %p727 = pneg %p242
        %p728 = pneg %p239
        %p729 = pneg %p263
        %p730 = pneg %p260
        %p731 = pneg %p284
        %p732 = pneg %p281
        %p733 = pneg %p305
        %p734 = pneg %p302
        %p735 = pneg %p326
        %p736 = pneg %p323
        %p737 = pneg %p347
        %p738 = pneg %p344
        %p739 = pneg %p368
        %p740 = pneg %p365
        %p741 = pneg %p389
        %p742 = pneg %p386
        %p743 = pneg %p410
        %p744 = pneg %p407
        %p745 = pneg %p431
        %p746 = pneg %p428
        %p747 = pneg %p452
        %p748 = pneg %p449
        %p749 = pneg %p473
        %p750 = pneg %p470
        %p751 = pneg %p494
        %p752 = pneg %p491
        %p753 = pneg %p515
        %p754 = pneg %p512
        %p755 = pneg %p536
        %p756 = pneg %p533
        %p757 = pneg %p557
        %p758 = pneg %p554
        %p759 = pneg %p583
        %p760 = pneg %p580
        %s761 = sand.u32 %s570, 1
        %s762 = scalar_lea.sflag [#allocation3], %s761
        %s763 = sand.u32 %s570, 1
        %s764 = smul.addr %s763, 8
        %s765 = scalar_lea.vmem [#allocation2], %s764
        %p766 = scmp.lt.s32.totalorder %s38, 1
        %s767 = scalar_select %p766, %s38, 1
        %s768 = smul.addr %s767, 8
        %s769 = scalar_lea.vmem %s0, %s768
        %p770 = scmp.lt.s32.totalorder %s38, 1
        %s771 = scalar_select %p770, %s38, 1
        %s772 = smul.addr %s771, 8
        %s773 = scalar_lea.vmem %s1, %s772
        %p774 = scmp.lt.s32.totalorder %s38, 1
        %s775 = scalar_select %p774, %s38, 1
        %s776 = scalar_lea.vmem %s2, %s775
        %p777 = scmp.lt.s32.totalorder %s38, 1
        %s778 = scalar_select %p777, %s38, 1
        %s779 = smul.addr %s778, 8
        %s780 = scalar_lea.vmem %s3, %s779
        %v782 = vld [vmem:[%s22] sm:$0xf]
        %v783 = vld [vmem:[%s22 + $0x4] sm:$0xf]
        %v784 = vld [vmem:[%s22 + $0x8] sm:$0xf]
        %v785 = vld [vmem:[%s22 + $0xc] sm:$0xf]
        %v786 = vld [vmem:[%s23] sm:$0x1]
        %v787 = vld [vmem:[%s769] sm:$0xff]
        %v788 = vld [vmem:[%s773] sm:$0xff]
        %v789 = vld [vmem:[%s776] sm:$0x1]
        %vm790 = vcmp.gt.f32.partialorder %v789, 0.5
        %v791 = vld [vmem:[%s780] sm:$0xff]
        %vm792 = vcmp.gt.f32.partialorder %v791, 0.5
        %v793 = vlaneseq
        %v794 = vshrl.u32 %v793, 7
        %v795 = vlaneseq
        %v796 = vand.u32 %v795, 127
        %vm797 = vcmp.le.s32.totalorder %v796, %v794
        %v798 = vsel %vm792, 1, 0
        %799 = vset.pattern.permute.xlu0 0
        %800 = vperm.xlu0 %799, %v798
        %v801 = vpop.permute.xlu0 %800
        %vm802 = vcmp.eq.s32.totalorder %v801, 1
        %vm803 = vmand %vm797, %vm802
        %v804 = vld [vmem:[%s4] sm:$0x1]
        %s805 = scalar_lea.vmem %s4, 1
        %v806 = vld [vmem:[%s805] sm:$0x1]
        %vm807 = vcmask 261120
        %v808 = vsel %vm807, %v787, 0.0
        %809 = vadd.xlane.f32.xlu0 %v808
        %v810 = vpop.xlane.xlu0 %809
        %v811 = vrcp.pop 32.0
        %v812 = vmul.f32 32.0, %v811
        %v813 = vsub.f32 1.0, %v812
        %v814 = vmul.f32 %v811, %v813
        %v815 = vadd.f32 %v811, %v814
        %vm816 = vweird.f32 %v811
        %v817 = vsel %vm816, %v811, %v815
        %v818 = vmul.f32 %v810, %v817
        %v819 = vsub.f32 %v787, %v818
        %v820 = vmul.f32 %v819, %v819
        %v821 = vsel %vm807, %v820, 0.0
        %822 = vadd.xlane.f32.xlu0 %v821
        %v823 = vpop.xlane.xlu0 %822
        %v824 = vmul.f32 %v823, %v817
        %v825 = vadd.f32 %v824, 1e-05
        %v826 = vrsqrt.pop %v825
        %v827 = vmul.f32 %v826, %v825
        %v828 = vmul.f32 %v827, %v826
        %v829 = vmul.f32 0.5, %v828
        %v830 = vsub.f32 1.5, %v829
        %v831 = vmul.f32 %v826, %v830
        %vm832 = vweird.f32 %v825
        %vm833 = vweird.f32 %v826
        %vm834 = vmor %vm832, %vm833
        %v835 = vsel %vm834, %v826, %v831
        %v836 = vmul.f32 %v819, %v835
        %v838 = vperm.slane %v804, 0
        %v840 = vmul.f32 %v836, %v838
        %v842 = vperm.slane %v806, 0
        %v844 = vadd.f32 %v840, %v842
        %v845 = vld [vmem:[%s5] sm:$0xf]
        %v846 = vld [vmem:[%s5 + $0x4] sm:$0xf]
        %v847 = vld [vmem:[%s5 + $0x8] sm:$0xf]
        %v848 = vld [vmem:[%s5 + $0xc] sm:$0xf]
        %v849 = vld [vmem:[%s5 + $0x10] sm:$0xf]
        %v850 = vld [vmem:[%s5 + $0x14] sm:$0xf]
        %v851 = vld [vmem:[%s5 + $0x18] sm:$0xf]
        %v852 = vld [vmem:[%s5 + $0x1c] sm:$0xf]
        %v853 = vld [vmem:[%s5 + $0x20] sm:$0xf]
        %v854 = vld [vmem:[%s5 + $0x24] sm:$0xf]
        %v855 = vld [vmem:[%s5 + $0x28] sm:$0xf]
        %v856 = vld [vmem:[%s5 + $0x2c] sm:$0xf]
        %v857 = vld [vmem:[%s5 + $0x30] sm:$0xf]
        %v858 = vld [vmem:[%s5 + $0x34] sm:$0xf]
        %v859 = vld [vmem:[%s5 + $0x38] sm:$0xf]
        %v860 = vld [vmem:[%s5 + $0x3c] sm:$0xf]
        %v861 = vld [vmem:[%s6] sm:$0x1]
        %v862 = vld [vmem:[%s6 + $0x1] sm:$0x1]
        %v863 = vld [vmem:[%s6 + $0x2] sm:$0x1]
        %v864 = vld [vmem:[%s6 + $0x3] sm:$0x1]
        %s865 = scalar_lea.vmem %s5, 64
        %v866 = vld [vmem:[%s865] sm:$0xf]
        %v867 = vld [vmem:[%s865 + $0x4] sm:$0xf]
        %v868 = vld [vmem:[%s865 + $0x8] sm:$0xf]
        %v869 = vld [vmem:[%s865 + $0xc] sm:$0xf]
        %v870 = vld [vmem:[%s865 + $0x10] sm:$0xf]
        %v871 = vld [vmem:[%s865 + $0x14] sm:$0xf]
        %v872 = vld [vmem:[%s865 + $0x18] sm:$0xf]
        %v873 = vld [vmem:[%s865 + $0x1c] sm:$0xf]
        %v874 = vld [vmem:[%s865 + $0x20] sm:$0xf]
        %v875 = vld [vmem:[%s865 + $0x24] sm:$0xf]
        %v876 = vld [vmem:[%s865 + $0x28] sm:$0xf]
        %v877 = vld [vmem:[%s865 + $0x2c] sm:$0xf]
        %v878 = vld [vmem:[%s865 + $0x30] sm:$0xf]
        %v879 = vld [vmem:[%s865 + $0x34] sm:$0xf]
        %v880 = vld [vmem:[%s865 + $0x38] sm:$0xf]
        %v881 = vld [vmem:[%s865 + $0x3c] sm:$0xf]
        %s882 = scalar_lea.vmem %s6, 4
        %v883 = vld [vmem:[%s882] sm:$0x1]
        %v884 = vld [vmem:[%s882 + $0x1] sm:$0x1]
        %v885 = vld [vmem:[%s882 + $0x2] sm:$0x1]
        %v886 = vld [vmem:[%s882 + $0x3] sm:$0x1]
        %s887 = scalar_lea.vmem %s5, 128
        %v888 = vld [vmem:[%s887] sm:$0xf]
        %v889 = vld [vmem:[%s887 + $0x4] sm:$0xf]
        %v890 = vld [vmem:[%s887 + $0x8] sm:$0xf]
        %v891 = vld [vmem:[%s887 + $0xc] sm:$0xf]
        %v892 = vld [vmem:[%s887 + $0x10] sm:$0xf]
        %v893 = vld [vmem:[%s887 + $0x14] sm:$0xf]
        %v894 = vld [vmem:[%s887 + $0x18] sm:$0xf]
        %v895 = vld [vmem:[%s887 + $0x1c] sm:$0xf]
        %v896 = vld [vmem:[%s887 + $0x20] sm:$0xf]
        %v897 = vld [vmem:[%s887 + $0x24] sm:$0xf]
        %v898 = vld [vmem:[%s887 + $0x28] sm:$0xf]
        %v899 = vld [vmem:[%s887 + $0x2c] sm:$0xf]
        %v900 = vld [vmem:[%s887 + $0x30] sm:$0xf]
        %v901 = vld [vmem:[%s887 + $0x34] sm:$0xf]
        %v902 = vld [vmem:[%s887 + $0x38] sm:$0xf]
        %v903 = vld [vmem:[%s887 + $0x3c] sm:$0xf]
        %s904 = scalar_lea.vmem %s6, 8
        %v905 = vld [vmem:[%s904] sm:$0x1]
        %v906 = vld [vmem:[%s904 + $0x1] sm:$0x1]
        %v907 = vld [vmem:[%s904 + $0x2] sm:$0x1]
        %v908 = vld [vmem:[%s904 + $0x3] sm:$0x1]
        %v909 = vld [vmem:[%s7] sm:$0xf]
        %v910 = vld [vmem:[%s7 + $0x4] sm:$0xf]
        %v911 = vld [vmem:[%s7 + $0x8] sm:$0xf]
        %v912 = vld [vmem:[%s7 + $0xc] sm:$0xf]
        %v913 = vld [vmem:[%s8] sm:$0x1]
        %v914 = vpack.c.bf16 %v844, %v844
        %v919 = vperm.slane %v861, 0
        %v920 = vperm.slane %v862, 0
        %v921 = vperm.slane %v863, 0
        %v922 = vperm.slane %v864, 0
        %v931 = vunpack.c.l.b16 %v845
        %v932 = vunpack.c.l.b16 %v846
        %v933 = vunpack.c.l.b16 %v847
        %v934 = vunpack.c.l.b16 %v848
        %v935 = vpack.c.b16 %v932, %v931
        %v936 = vpack.c.b16 %v934, %v933
        %v940 = vsel %vm807, %v914, 0
        %942 = vmatpush.bf16.msra.mxu0 0
        %943 = vmatpush.bf16.msra.mxu0 0
        %944 = vmatpush.bf16.msra.mxu0 0
        %945 = vmatpush.bf16.msra.mxu0 0
        %946 = vmatpush.bf16.msra.mxu0 0
        %947 = vmatpush.bf16.msra.mxu0 0
        %948 = vmatpush.bf16.msra.mxu0 %v936
        %949 = vmatpush.bf16.msra.mxu0 %v935
        %950 = vmatmul.bf16.gmra.mxu0 %v940
        %v951 = vpop.f32.mrf.mxu0
        %v952 = vadd.f32 %v919, %v951
        %v953 = vpop.f32.mrf.mxu0
        %954 = vdwg.mxu0
        %v959 = vunpack.c.l.b16 %v849
        %v960 = vunpack.c.l.b16 %v850
        %v961 = vunpack.c.l.b16 %v851
        %v962 = vunpack.c.l.b16 %v852
        %v963 = vpack.c.b16 %v960, %v959
        %v964 = vpack.c.b16 %v962, %v961
        %967 = vmatpush.bf16.msra.mxu0 0
        %968 = vmatpush.bf16.msra.mxu0 0
        %969 = vmatpush.bf16.msra.mxu0 0
        %970 = vmatpush.bf16.msra.mxu0 0
        %971 = vmatpush.bf16.msra.mxu0 0
        %972 = vmatpush.bf16.msra.mxu0 0
        %973 = vmatpush.bf16.msra.mxu0 %v964
        %974 = vmatpush.bf16.msra.mxu0 %v963
        %975 = vmatmul.bf16.gmra.mxu0 %v940
        %v976 = vpop.f32.mrf.mxu0
        %v977 = vadd.f32 %v920, %v976
        %v978 = vpop.f32.mrf.mxu0
        %979 = vdwg.mxu0
        %v984 = vunpack.c.l.b16 %v853
        %v985 = vunpack.c.l.b16 %v854
        %v986 = vunpack.c.l.b16 %v855
        %v987 = vunpack.c.l.b16 %v856
        %v988 = vpack.c.b16 %v985, %v984
        %v989 = vpack.c.b16 %v987, %v986
        %992 = vmatpush.bf16.msra.mxu0 0
        %993 = vmatpush.bf16.msra.mxu0 0
        %994 = vmatpush.bf16.msra.mxu0 0
        %995 = vmatpush.bf16.msra.mxu0 0
        %996 = vmatpush.bf16.msra.mxu0 0
        %997 = vmatpush.bf16.msra.mxu0 0
        %998 = vmatpush.bf16.msra.mxu0 %v989
        %999 = vmatpush.bf16.msra.mxu0 %v988
        %1000 = vmatmul.bf16.gmra.mxu0 %v940
        %v1001 = vpop.f32.mrf.mxu0
        %v1002 = vadd.f32 %v921, %v1001
        %v1003 = vpop.f32.mrf.mxu0
        %1004 = vdwg.mxu0
        %v1009 = vunpack.c.l.b16 %v857
        %v1010 = vunpack.c.l.b16 %v858
        %v1011 = vunpack.c.l.b16 %v859
        %v1012 = vunpack.c.l.b16 %v860
        %v1013 = vpack.c.b16 %v1010, %v1009
        %v1014 = vpack.c.b16 %v1012, %v1011
        %1017 = vmatpush.bf16.msra.mxu0 0
        %1018 = vmatpush.bf16.msra.mxu0 0
        %1019 = vmatpush.bf16.msra.mxu0 0
        %1020 = vmatpush.bf16.msra.mxu0 0
        %1021 = vmatpush.bf16.msra.mxu0 0
        %1022 = vmatpush.bf16.msra.mxu0 0
        %1023 = vmatpush.bf16.msra.mxu0 %v1014
        %1024 = vmatpush.bf16.msra.mxu0 %v1013
        %1025 = vmatmul.bf16.gmra.mxu0 %v940
        %v1026 = vpop.f32.mrf.mxu0
        %v1027 = vadd.f32 %v922, %v1026
        %v1028 = vpop.f32.mrf.mxu0
        %1029 = vdwg.mxu0
        %v1034 = vperm.slane %v883, 0
        %v1035 = vperm.slane %v884, 0
        %v1036 = vperm.slane %v885, 0
        %v1037 = vperm.slane %v886, 0
        %v1046 = vunpack.c.l.b16 %v866
        %v1047 = vunpack.c.l.b16 %v867
        %v1048 = vunpack.c.l.b16 %v868
        %v1049 = vunpack.c.l.b16 %v869
        %v1050 = vpack.c.b16 %v1047, %v1046
        %v1051 = vpack.c.b16 %v1049, %v1048
        %1054 = vmatpush.bf16.msra.mxu0 0
        %1055 = vmatpush.bf16.msra.mxu0 0
        %1056 = vmatpush.bf16.msra.mxu0 0
        %1057 = vmatpush.bf16.msra.mxu0 0
        %1058 = vmatpush.bf16.msra.mxu0 0
        %1059 = vmatpush.bf16.msra.mxu0 0
        %1060 = vmatpush.bf16.msra.mxu0 %v1051
        %1061 = vmatpush.bf16.msra.mxu0 %v1050
        %1062 = vmatmul.bf16.gmra.mxu0 %v940
        %v1063 = vpop.f32.mrf.mxu0
        %v1064 = vadd.f32 %v1034, %v1063
        %v1065 = vpop.f32.mrf.mxu0
        %1066 = vdwg.mxu0
        %v1071 = vunpack.c.l.b16 %v870
        %v1072 = vunpack.c.l.b16 %v871
        %v1073 = vunpack.c.l.b16 %v872
        %v1074 = vunpack.c.l.b16 %v873
        %v1075 = vpack.c.b16 %v1072, %v1071
        %v1076 = vpack.c.b16 %v1074, %v1073
        %1079 = vmatpush.bf16.msra.mxu0 0
        %1080 = vmatpush.bf16.msra.mxu0 0
        %1081 = vmatpush.bf16.msra.mxu0 0
        %1082 = vmatpush.bf16.msra.mxu0 0
        %1083 = vmatpush.bf16.msra.mxu0 0
        %1084 = vmatpush.bf16.msra.mxu0 0
        %1085 = vmatpush.bf16.msra.mxu0 %v1076
        %1086 = vmatpush.bf16.msra.mxu0 %v1075
        %1087 = vmatmul.bf16.gmra.mxu0 %v940
        %v1088 = vpop.f32.mrf.mxu0
        %v1089 = vadd.f32 %v1035, %v1088
        %v1090 = vpop.f32.mrf.mxu0
        %1091 = vdwg.mxu0
        %v1096 = vunpack.c.l.b16 %v874
        %v1097 = vunpack.c.l.b16 %v875
        %v1098 = vunpack.c.l.b16 %v876
        %v1099 = vunpack.c.l.b16 %v877
        %v1100 = vpack.c.b16 %v1097, %v1096
        %v1101 = vpack.c.b16 %v1099, %v1098
        %1104 = vmatpush.bf16.msra.mxu0 0
        %1105 = vmatpush.bf16.msra.mxu0 0
        %1106 = vmatpush.bf16.msra.mxu0 0
        %1107 = vmatpush.bf16.msra.mxu0 0
        %1108 = vmatpush.bf16.msra.mxu0 0
        %1109 = vmatpush.bf16.msra.mxu0 0
        %1110 = vmatpush.bf16.msra.mxu0 %v1101
        %1111 = vmatpush.bf16.msra.mxu0 %v1100
        %1112 = vmatmul.bf16.gmra.mxu0 %v940
        %v1113 = vpop.f32.mrf.mxu0
        %v1114 = vadd.f32 %v1036, %v1113
        %v1115 = vpop.f32.mrf.mxu0
        %1116 = vdwg.mxu0
        %v1121 = vunpack.c.l.b16 %v878
        %v1122 = vunpack.c.l.b16 %v879
        %v1123 = vunpack.c.l.b16 %v880
        %v1124 = vunpack.c.l.b16 %v881
        %v1125 = vpack.c.b16 %v1122, %v1121
        %v1126 = vpack.c.b16 %v1124, %v1123
        %1129 = vmatpush.bf16.msra.mxu0 0
        %1130 = vmatpush.bf16.msra.mxu0 0
        %1131 = vmatpush.bf16.msra.mxu0 0
        %1132 = vmatpush.bf16.msra.mxu0 0
        %1133 = vmatpush.bf16.msra.mxu0 0
        %1134 = vmatpush.bf16.msra.mxu0 0
        %1135 = vmatpush.bf16.msra.mxu0 %v1126
        %1136 = vmatpush.bf16.msra.mxu0 %v1125
        %1137 = vmatmul.bf16.gmra.mxu0 %v940
        %v1138 = vpop.f32.mrf.mxu0
        %v1139 = vadd.f32 %v1037, %v1138
        %v1140 = vpop.f32.mrf.mxu0
        %1141 = vdwg.mxu0
        %v1146 = vperm.slane %v905, 0
        %v1147 = vperm.slane %v906, 0
        %v1148 = vperm.slane %v907, 0
        %v1149 = vperm.slane %v908, 0
        %v1158 = vunpack.c.l.b16 %v888
        %v1159 = vunpack.c.l.b16 %v889
        %v1160 = vunpack.c.l.b16 %v890
        %v1161 = vunpack.c.l.b16 %v891
        %v1162 = vpack.c.b16 %v1159, %v1158
        %v1163 = vpack.c.b16 %v1161, %v1160
        %1166 = vmatpush.bf16.msra.mxu0 0
        %1167 = vmatpush.bf16.msra.mxu0 0
        %1168 = vmatpush.bf16.msra.mxu0 0
        %1169 = vmatpush.bf16.msra.mxu0 0
        %1170 = vmatpush.bf16.msra.mxu0 0
        %1171 = vmatpush.bf16.msra.mxu0 0
        %1172 = vmatpush.bf16.msra.mxu0 %v1163
        %1173 = vmatpush.bf16.msra.mxu0 %v1162
        %1174 = vmatmul.bf16.gmra.mxu0 %v940
        %v1175 = vpop.f32.mrf.mxu0
        %v1176 = vadd.f32 %v1146, %v1175
        %v1177 = vpop.f32.mrf.mxu0
        %1178 = vdwg.mxu0
        %v1183 = vunpack.c.l.b16 %v892
        %v1184 = vunpack.c.l.b16 %v893
        %v1185 = vunpack.c.l.b16 %v894
        %v1186 = vunpack.c.l.b16 %v895
        %v1187 = vpack.c.b16 %v1184, %v1183
        %v1188 = vpack.c.b16 %v1186, %v1185
        %1191 = vmatpush.bf16.msra.mxu0 0
        %1192 = vmatpush.bf16.msra.mxu0 0
        %1193 = vmatpush.bf16.msra.mxu0 0
        %1194 = vmatpush.bf16.msra.mxu0 0
        %1195 = vmatpush.bf16.msra.mxu0 0
        %1196 = vmatpush.bf16.msra.mxu0 0
        %1197 = vmatpush.bf16.msra.mxu0 %v1188
        %1198 = vmatpush.bf16.msra.mxu0 %v1187
        %1199 = vmatmul.bf16.gmra.mxu0 %v940
        %v1200 = vpop.f32.mrf.mxu0
        %v1201 = vadd.f32 %v1147, %v1200
        %v1202 = vpop.f32.mrf.mxu0
        %1203 = vdwg.mxu0
        %v1208 = vunpack.c.l.b16 %v896
        %v1209 = vunpack.c.l.b16 %v897
        %v1210 = vunpack.c.l.b16 %v898
        %v1211 = vunpack.c.l.b16 %v899
        %v1212 = vpack.c.b16 %v1209, %v1208
        %v1213 = vpack.c.b16 %v1211, %v1210
        %1216 = vmatpush.bf16.msra.mxu0 0
        %1217 = vmatpush.bf16.msra.mxu0 0
        %1218 = vmatpush.bf16.msra.mxu0 0
        %1219 = vmatpush.bf16.msra.mxu0 0
        %1220 = vmatpush.bf16.msra.mxu0 0
        %1221 = vmatpush.bf16.msra.mxu0 0
        %1222 = vmatpush.bf16.msra.mxu0 %v1213
        %1223 = vmatpush.bf16.msra.mxu0 %v1212
        %1224 = vmatmul.bf16.gmra.mxu0 %v940
        %v1225 = vpop.f32.mrf.mxu0
        %v1226 = vadd.f32 %v1148, %v1225
        %v1227 = vpop.f32.mrf.mxu0
        %1228 = vdwg.mxu0
        %v1233 = vunpack.c.l.b16 %v900
        %v1234 = vunpack.c.l.b16 %v901
        %v1235 = vunpack.c.l.b16 %v902
        %v1236 = vunpack.c.l.b16 %v903
        %v1237 = vpack.c.b16 %v1234, %v1233
        %v1238 = vpack.c.b16 %v1236, %v1235
        %1241 = vmatpush.bf16.msra.mxu0 0
        %1242 = vmatpush.bf16.msra.mxu0 0
        %1243 = vmatpush.bf16.msra.mxu0 0
        %1244 = vmatpush.bf16.msra.mxu0 0
        %1245 = vmatpush.bf16.msra.mxu0 0
        %1246 = vmatpush.bf16.msra.mxu0 0
        %1247 = vmatpush.bf16.msra.mxu0 %v1238
        %1248 = vmatpush.bf16.msra.mxu0 %v1237
        %1249 = vmatmul.bf16.gmra.mxu0 %v940
        %v1250 = vpop.f32.mrf.mxu0
        %v1251 = vadd.f32 %v1149, %v1250
        %v1252 = vpop.f32.mrf.mxu0
        %1253 = vdwg.mxu0
        %v1254 = vpack.c.bf16 %v952, %v952
        %v1255 = vpack.c.bf16 %v977, %v977
        %v1256 = vpack.c.bf16 %v1002, %v1002
        %v1257 = vpack.c.bf16 %v1027, %v1027
        %v1258 = vpack.c.bf16 %v1064, %v1064
        %v1259 = vpack.c.bf16 %v1089, %v1089
        %v1260 = vpack.c.bf16 %v1114, %v1114
        %v1261 = vpack.c.bf16 %v1139, %v1139
        %vm1262 = vcmask 64512
        %v1264 = vsel %vm1262, %v1254, 0
        %v1267 = vsel %vm1262, %v1258, 0
        %1269 = vmatpush.bf16.xpose.msra.mxu0 0
        %1270 = vmatpush.bf16.xpose.msra.mxu0 0
        %1271 = vmatpush.bf16.xpose.msra.mxu0 0
        %1272 = vmatpush.bf16.xpose.msra.mxu0 0
        %1273 = vmatpush.bf16.xpose.msra.mxu0 0
        %1274 = vmatpush.bf16.xpose.msra.mxu0 0
        %1275 = vmatpush.bf16.xpose.msra.mxu0 0
        %1276 = vmatpush.bf16.xpose.msra.mxu0 %v1267
        %1277 = vmatmul.bf16.gmra.mxu0 %v1264
        %v1278 = vpop.f32.mrf.mxu0
        %v1279 = vadd.f32 0.0, %v1278
        %v1280 = vpop.f32.mrf.mxu0
        %1281 = vdwg.mxu0
        %v1283 = vsel %vm1262, %v1255, 0
        %v1286 = vsel %vm1262, %v1259, 0
        %1288 = vmatpush.bf16.xpose.msra.mxu0 0
        %1289 = vmatpush.bf16.xpose.msra.mxu0 0
        %1290 = vmatpush.bf16.xpose.msra.mxu0 0
        %1291 = vmatpush.bf16.xpose.msra.mxu0 0
        %1292 = vmatpush.bf16.xpose.msra.mxu0 0
        %1293 = vmatpush.bf16.xpose.msra.mxu0 0
        %1294 = vmatpush.bf16.xpose.msra.mxu0 0
        %1295 = vmatpush.bf16.xpose.msra.mxu0 %v1286
        %1296 = vmatmul.bf16.gmra.mxu0 %v1283
        %v1297 = vpop.f32.mrf.mxu0
        %v1298 = vadd.f32 0.0, %v1297
        %v1299 = vpop.f32.mrf.mxu0
        %1300 = vdwg.mxu0
        %v1302 = vsel %vm1262, %v1256, 0
        %v1305 = vsel %vm1262, %v1260, 0
        %1307 = vmatpush.bf16.xpose.msra.mxu0 0
        %1308 = vmatpush.bf16.xpose.msra.mxu0 0
        %1309 = vmatpush.bf16.xpose.msra.mxu0 0
        %1310 = vmatpush.bf16.xpose.msra.mxu0 0
        %1311 = vmatpush.bf16.xpose.msra.mxu0 0
        %1312 = vmatpush.bf16.xpose.msra.mxu0 0
        %1313 = vmatpush.bf16.xpose.msra.mxu0 0
        %1314 = vmatpush.bf16.xpose.msra.mxu0 %v1305
        %1315 = vmatmul.bf16.gmra.mxu0 %v1302
        %v1316 = vpop.f32.mrf.mxu0
        %v1317 = vadd.f32 0.0, %v1316
        %v1318 = vpop.f32.mrf.mxu0
        %1319 = vdwg.mxu0
        %v1321 = vsel %vm1262, %v1257, 0
        %v1324 = vsel %vm1262, %v1261, 0
        %1326 = vmatpush.bf16.xpose.msra.mxu0 0
        %1327 = vmatpush.bf16.xpose.msra.mxu0 0
        %1328 = vmatpush.bf16.xpose.msra.mxu0 0
        %1329 = vmatpush.bf16.xpose.msra.mxu0 0
        %1330 = vmatpush.bf16.xpose.msra.mxu0 0
        %1331 = vmatpush.bf16.xpose.msra.mxu0 0
        %1332 = vmatpush.bf16.xpose.msra.mxu0 0
        %1333 = vmatpush.bf16.xpose.msra.mxu0 %v1324
        %1334 = vmatmul.bf16.gmra.mxu0 %v1321
        %v1335 = vpop.f32.mrf.mxu0
        %v1336 = vadd.f32 0.0, %v1335
        %v1337 = vpop.f32.mrf.mxu0
        %1338 = vdwg.mxu0
        %v1339 = vmul.f32 %v1279, 0.35355338
        %v1340 = vmul.f32 %v1298, 0.35355338
        %v1341 = vmul.f32 %v1317, 0.35355338
        %v1342 = vmul.f32 %v1336, 0.35355338
        %v1343 = vsel %vm790, 1, 0
        %v1344 = vperm.slane %v1343, 0
        %vm1345 = vcmp.eq.s32.totalorder %v1344, 1
        %v1346 = vsel %vm1345, %v1339, -1e+09
        %v1347 = vsel %vm1345, %v1340, -1e+09
        %v1348 = vsel %vm1345, %v1341, -1e+09
        %v1349 = vsel %vm1345, %v1342, -1e+09
        %v1350 = vsel %vm1262, %v1346, -inf
        %1351 = vmax.xlane.f32.xlu0 %v1350
        %v1352 = vpop.xlane.xlu0 %1351
        %v1353 = vsel %vm1262, %v1347, -inf
        %1354 = vmax.xlane.f32.xlu0 %v1353
        %v1355 = vpop.xlane.xlu0 %1354
        %v1356 = vsel %vm1262, %v1348, -inf
        %1357 = vmax.xlane.f32.xlu0 %v1356
        %v1358 = vpop.xlane.xlu0 %1357
        %v1359 = vsel %vm1262, %v1349, -inf
        %1360 = vmax.xlane.f32.xlu0 %v1359
        %v1361 = vpop.xlane.xlu0 %1360
        %v1362 = vsub.f32 %v1346, %v1352
        %v1363 = vsub.f32 %v1347, %v1355
        %v1364 = vsub.f32 %v1348, %v1358
        %v1365 = vsub.f32 %v1349, %v1361
        %v1366 = vmul.f32 %v1362, 1.442695
        %v1367 = vpow.pop %v1366
        %v1368 = vmul.f32 %v1363, 1.442695
        %v1369 = vpow.pop %v1368
        %v1370 = vmul.f32 %v1364, 1.442695
        %v1371 = vpow.pop %v1370
        %v1372 = vmul.f32 %v1365, 1.442695
        %v1373 = vpow.pop %v1372
        %v1374 = vsel %vm1262, %v1367, 0.0
        %1375 = vadd.xlane.f32.xlu0 %v1374
        %v1376 = vpop.xlane.xlu0 %1375
        %v1377 = vsel %vm1262, %v1369, 0.0
        %1378 = vadd.xlane.f32.xlu0 %v1377
        %v1379 = vpop.xlane.xlu0 %1378
        %v1380 = vsel %vm1262, %v1371, 0.0
        %1381 = vadd.xlane.f32.xlu0 %v1380
        %v1382 = vpop.xlane.xlu0 %1381
        %v1383 = vsel %vm1262, %v1373, 0.0
        %1384 = vadd.xlane.f32.xlu0 %v1383
        %v1385 = vpop.xlane.xlu0 %1384
        %v1386 = vrcp.pop %v1376
        %v1387 = vmul.f32 %v1376, %v1386
        %v1388 = vsub.f32 1.0, %v1387
        %v1389 = vmul.f32 %v1386, %v1388
        %v1390 = vadd.f32 %v1386, %v1389
        %vm1391 = vweird.f32 %v1376
        %vm1392 = vweird.f32 %v1386
        %vm1393 = vmor %vm1391, %vm1392
        %v1394 = vsel %vm1393, %v1386, %v1390
        %v1395 = vand.u32 2147483647, %v1376
        %vm1396 = vcmp.eq.f32.partialorder %v1395, 8.507059e+37
        %v1397 = vand.u32 %v1376, 2147483648
        %v1398 = vor.u32 1.1754944e-38, %v1397
        %v1399 = vsel %vm1396, %v1398, %v1394
        %v1400 = vmul.f32 %v1367, %v1399
        %v1401 = vrcp.pop %v1379
        %v1402 = vmul.f32 %v1379, %v1401
        %v1403 = vsub.f32 1.0, %v1402
        %v1404 = vmul.f32 %v1401, %v1403
        %v1405 = vadd.f32 %v1401, %v1404
        %vm1406 = vweird.f32 %v1379
        %vm1407 = vweird.f32 %v1401
        %vm1408 = vmor %vm1406, %vm1407
        %v1409 = vsel %vm1408, %v1401, %v1405
        %v1410 = vand.u32 2147483647, %v1379
        %vm1411 = vcmp.eq.f32.partialorder %v1410, 8.507059e+37
        %v1412 = vand.u32 %v1379, 2147483648
        %v1413 = vor.u32 1.1754944e-38, %v1412
        %v1414 = vsel %vm1411, %v1413, %v1409
        %v1415 = vmul.f32 %v1369, %v1414
        %v1416 = vrcp.pop %v1382
        %v1417 = vmul.f32 %v1382, %v1416
        %v1418 = vsub.f32 1.0, %v1417
        %v1419 = vmul.f32 %v1416, %v1418
        %v1420 = vadd.f32 %v1416, %v1419
        %vm1421 = vweird.f32 %v1382
        %vm1422 = vweird.f32 %v1416
        %vm1423 = vmor %vm1421, %vm1422
        %v1424 = vsel %vm1423, %v1416, %v1420
        %v1425 = vand.u32 2147483647, %v1382
        %vm1426 = vcmp.eq.f32.partialorder %v1425, 8.507059e+37
        %v1427 = vand.u32 %v1382, 2147483648
        %v1428 = vor.u32 1.1754944e-38, %v1427
        %v1429 = vsel %vm1426, %v1428, %v1424
        %v1430 = vmul.f32 %v1371, %v1429
        %v1431 = vrcp.pop %v1385
        %v1432 = vmul.f32 %v1385, %v1431
        %v1433 = vsub.f32 1.0, %v1432
        %v1434 = vmul.f32 %v1431, %v1433
        %v1435 = vadd.f32 %v1431, %v1434
        %vm1436 = vweird.f32 %v1385
        %vm1437 = vweird.f32 %v1431
        %vm1438 = vmor %vm1436, %vm1437
        %v1439 = vsel %vm1438, %v1431, %v1435
        %v1440 = vand.u32 2147483647, %v1385
        %vm1441 = vcmp.eq.f32.partialorder %v1440, 8.507059e+37
        %v1442 = vand.u32 %v1385, 2147483648
        %v1443 = vor.u32 1.1754944e-38, %v1442
        %v1444 = vsel %vm1441, %v1443, %v1439
        %v1445 = vmul.f32 %v1373, %v1444
        %v1446 = vpack.c.bf16 %v1400, %v1400
        %v1447 = vpack.c.bf16 %v1415, %v1415
        %v1448 = vpack.c.bf16 %v1430, %v1430
        %v1449 = vpack.c.bf16 %v1445, %v1445
        %v1450 = vpack.c.bf16 %v1176, %v1176
        %v1451 = vpack.c.bf16 %v1201, %v1201
        %v1452 = vpack.c.bf16 %v1226, %v1226
        %v1453 = vpack.c.bf16 %v1251, %v1251
        %v1455 = vsel %vm1262, %v1446, 0
        %vm1457 = vcmask 1043456
        %v1459 = vsel %vm1457, %v1450, 0
        %1461 = vmatpush.bf16.msra.mxu0 0
        %1462 = vmatpush.bf16.msra.mxu0 0
        %1463 = vmatpush.bf16.msra.mxu0 0
        %1464 = vmatpush.bf16.msra.mxu0 0
        %1465 = vmatpush.bf16.msra.mxu0 0
        %1466 = vmatpush.bf16.msra.mxu0 0
        %1467 = vmatpush.bf16.msra.mxu0 0
        %1468 = vmatpush.bf16.msra.mxu0 %v1459
        %1469 = vmatmul.bf16.gmra.mxu0 %v1455
        %v1470 = vpop.f32.mrf.mxu0
        %v1471 = vadd.f32 0.0, %v1470
        %v1472 = vpop.f32.mrf.mxu0
        %1473 = vdwg.mxu0
        %v1475 = vsel %vm1262, %v1447, 0
        %v1478 = vsel %vm1457, %v1451, 0
        %1480 = vmatpush.bf16.msra.mxu0 0
        %1481 = vmatpush.bf16.msra.mxu0 0
        %1482 = vmatpush.bf16.msra.mxu0 0
        %1483 = vmatpush.bf16.msra.mxu0 0
        %1484 = vmatpush.bf16.msra.mxu0 0
        %1485 = vmatpush.bf16.msra.mxu0 0
        %1486 = vmatpush.bf16.msra.mxu0 0
        %1487 = vmatpush.bf16.msra.mxu0 %v1478
        %1488 = vmatmul.bf16.gmra.mxu0 %v1475
        %v1489 = vpop.f32.mrf.mxu0
        %v1490 = vadd.f32 0.0, %v1489
        %v1491 = vpop.f32.mrf.mxu0
        %1492 = vdwg.mxu0
        %v1494 = vsel %vm1262, %v1448, 0
        %v1497 = vsel %vm1457, %v1452, 0
        %1499 = vmatpush.bf16.msra.mxu0 0
        %1500 = vmatpush.bf16.msra.mxu0 0
        %1501 = vmatpush.bf16.msra.mxu0 0
        %1502 = vmatpush.bf16.msra.mxu0 0
        %1503 = vmatpush.bf16.msra.mxu0 0
        %1504 = vmatpush.bf16.msra.mxu0 0
        %1505 = vmatpush.bf16.msra.mxu0 0
        %1506 = vmatpush.bf16.msra.mxu0 %v1497
        %1507 = vmatmul.bf16.gmra.mxu0 %v1494
        %v1508 = vpop.f32.mrf.mxu0
        %v1509 = vadd.f32 0.0, %v1508
        %v1510 = vpop.f32.mrf.mxu0
        %1511 = vdwg.mxu0
        %v1513 = vsel %vm1262, %v1449, 0
        %v1516 = vsel %vm1457, %v1453, 0
        %1518 = vmatpush.bf16.msra.mxu0 0
        %1519 = vmatpush.bf16.msra.mxu0 0
        %1520 = vmatpush.bf16.msra.mxu0 0
        %1521 = vmatpush.bf16.msra.mxu0 0
        %1522 = vmatpush.bf16.msra.mxu0 0
        %1523 = vmatpush.bf16.msra.mxu0 0
        %1524 = vmatpush.bf16.msra.mxu0 0
        %1525 = vmatpush.bf16.msra.mxu0 %v1516
        %1526 = vmatmul.bf16.gmra.mxu0 %v1513
        %v1527 = vpop.f32.mrf.mxu0
        %v1528 = vadd.f32 0.0, %v1527
        %v1529 = vpop.f32.mrf.mxu0
        %1530 = vdwg.mxu0
        %v1531 = vpack.c.bf16 %v1471, %v1471
        %v1532 = vpack.c.bf16 %v1490, %v1490
        %v1533 = vpack.c.bf16 %v1509, %v1509
        %v1534 = vpack.c.bf16 %v1528, %v1528
        %v1536 = vsel %vm1262, %v1531, 0
        %v1539 = vsel %vm1457, %v909, 0
        %1541 = vmatpush.bf16.msra.mxu0 0
        %1542 = vmatpush.bf16.msra.mxu0 0
        %1543 = vmatpush.bf16.msra.mxu0 0
        %1544 = vmatpush.bf16.msra.mxu0 0
        %1545 = vmatpush.bf16.msra.mxu0 0
        %1546 = vmatpush.bf16.msra.mxu0 0
        %1547 = vmatpush.bf16.msra.mxu0 0
        %1548 = vmatpush.bf16.msra.mxu0 %v1539
        %1549 = vmatmul.bf16.gmra.mxu0 %v1536
        %v1550 = vpop.f32.mrf.mxu0
        %v1551 = vadd.f32 0.0, %v1550
        %v1552 = vpop.f32.mrf.mxu0
        %1553 = vdwg.mxu0
        %v1555 = vsel %vm1262, %v1532, 0
        %v1558 = vsel %vm1457, %v910, 0
        %1560 = vmatpush.bf16.msra.mxu0 0
        %1561 = vmatpush.bf16.msra.mxu0 0
        %1562 = vmatpush.bf16.msra.mxu0 0
        %1563 = vmatpush.bf16.msra.mxu0 0
        %1564 = vmatpush.bf16.msra.mxu0 0
        %1565 = vmatpush.bf16.msra.mxu0 0
        %1566 = vmatpush.bf16.msra.mxu0 0
        %1567 = vmatpush.bf16.msra.mxu0 %v1558
        %1568 = vmatmul.bf16.gmra.mxu0 %v1555
        %v1569 = vpop.f32.mrf.mxu0
        %v1570 = vadd.f32 0.0, %v1569
        %v1571 = vpop.f32.mrf.mxu0
        %1572 = vdwg.mxu0
        %v1574 = vsel %vm1262, %v1533, 0
        %v1577 = vsel %vm1457, %v911, 0
        %1579 = vmatpush.bf16.msra.mxu0 0
        %1580 = vmatpush.bf16.msra.mxu0 0
        %1581 = vmatpush.bf16.msra.mxu0 0
        %1582 = vmatpush.bf16.msra.mxu0 0
        %1583 = vmatpush.bf16.msra.mxu0 0
        %1584 = vmatpush.bf16.msra.mxu0 0
        %1585 = vmatpush.bf16.msra.mxu0 0
        %1586 = vmatpush.bf16.msra.mxu0 %v1577
        %1587 = vmatmul.bf16.gmra.mxu0 %v1574
        %v1588 = vpop.f32.mrf.mxu0
        %v1589 = vadd.f32 0.0, %v1588
        %v1590 = vpop.f32.mrf.mxu0
        %1591 = vdwg.mxu0
        %v1593 = vsel %vm1262, %v1534, 0
        %v1596 = vsel %vm1457, %v912, 0
        %1598 = vmatpush.bf16.msra.mxu0 0
        %1599 = vmatpush.bf16.msra.mxu0 0
        %1600 = vmatpush.bf16.msra.mxu0 0
        %1601 = vmatpush.bf16.msra.mxu0 0
        %1602 = vmatpush.bf16.msra.mxu0 0
        %1603 = vmatpush.bf16.msra.mxu0 0
        %1604 = vmatpush.bf16.msra.mxu0 0
        %1605 = vmatpush.bf16.msra.mxu0 %v1596
        %1606 = vmatmul.bf16.gmra.mxu0 %v1593
        %v1607 = vpop.f32.mrf.mxu0
        %v1608 = vadd.f32 0.0, %v1607
        %v1609 = vpop.f32.mrf.mxu0
        %1610 = vdwg.mxu0
        %v1611 = vsel %vm807, %v1551, 0.0
        %v1612 = vsel %vm807, %v1570, 0.0
        %v1613 = vadd.f32 %v1611, %v1612
        %v1614 = vsel %vm807, %v1589, 0.0
        %v1615 = vadd.f32 %v1613, %v1614
        %v1616 = vsel %vm807, %v1608, 0.0
        %v1617 = vadd.f32 %v1615, %v1616
        %v1619 = vperm.slane %v913, 0
        %v1621 = vadd.f32 %v1617, %v1619
        %v1622 = vadd.f32 %v787, %v1621
        %s1623 = scalar_lea.vmem %s4, 2
        %v1624 = vld [vmem:[%s1623] sm:$0x1]
        %s1625 = scalar_lea.vmem %s4, 3
        %v1626 = vld [vmem:[%s1625] sm:$0x1]
        %v1627 = vsel %vm807, %v1622, 0.0
        %1628 = vadd.xlane.f32.xlu0 %v1627
        %v1629 = vpop.xlane.xlu0 %1628
        %v1630 = vmul.f32 %v1629, %v817
        %v1631 = vsub.f32 %v1622, %v1630
        %v1632 = vmul.f32 %v1631, %v1631
        %v1633 = vsel %vm807, %v1632, 0.0
        %1634 = vadd.xlane.f32.xlu0 %v1633
        %v1635 = vpop.xlane.xlu0 %1634
        %v1636 = vmul.f32 %v1635, %v817
        %v1637 = vadd.f32 %v1636, 1e-05
        %v1638 = vrsqrt.pop %v1637
        %v1639 = vmul.f32 %v1638, %v1637
        %v1640 = vmul.f32 %v1639, %v1638
        %v1641 = vmul.f32 0.5, %v1640
        %v1642 = vsub.f32 1.5, %v1641
        %v1643 = vmul.f32 %v1638, %v1642
        %vm1644 = vweird.f32 %v1637
        %vm1645 = vweird.f32 %v1638
        %vm1646 = vmor %vm1644, %vm1645
        %v1647 = vsel %vm1646, %v1638, %v1643
        %v1648 = vmul.f32 %v1631, %v1647
        %v1650 = vperm.slane %v1624, 0
        %v1652 = vmul.f32 %v1648, %v1650
        %v1654 = vperm.slane %v1626, 0
        %v1656 = vadd.f32 %v1652, %v1654
        %v1657 = vld [vmem:[%s9] sm:$0xf]
        %v1658 = vld [vmem:[%s9 + $0x4] sm:$0xf]
        %v1659 = vld [vmem:[%s9 + $0x8] sm:$0xf]
        %v1660 = vld [vmem:[%s9 + $0xc] sm:$0xf]
        %v1661 = vpack.c.bf16 %v1656, %v1656
        %v1662 = vld [vmem:[%s10] sm:$0x1]
        %v1664 = vperm.slane %v1662, 0
        %v1670 = vunpack.c.l.b16 %v1657
        %v1671 = vunpack.c.l.b16 %v1658
        %v1672 = vunpack.c.l.b16 %v1659
        %v1673 = vunpack.c.l.b16 %v1660
        %v1674 = vpack.c.b16 %v1671, %v1670
        %v1675 = vpack.c.b16 %v1673, %v1672
        %v1679 = vsel %vm807, %v1661, 0
        %1681 = vmatpush.bf16.msra.mxu0 0
        %1682 = vmatpush.bf16.msra.mxu0 0
        %1683 = vmatpush.bf16.msra.mxu0 0
        %1684 = vmatpush.bf16.msra.mxu0 0
        %1685 = vmatpush.bf16.msra.mxu0 0
        %1686 = vmatpush.bf16.msra.mxu0 0
        %1687 = vmatpush.bf16.msra.mxu0 %v1675
        %1688 = vmatpush.bf16.msra.mxu0 %v1674
        %1689 = vmatmul.bf16.gmra.mxu0 %v1679
        %v1690 = vpop.f32.mrf.mxu0
        %v1691 = vadd.f32 %v1664, %v1690
        %v1692 = vpop.f32.mrf.mxu0
        %1693 = vdwg.mxu0
        %v1694 = vmax.f32 %v1691, 0.0
        %v1695 = vadd.f32 %v1622, %v1694
        %s1696 = scalar_lea.vmem %s4, 4
        %v1697 = vld [vmem:[%s1696] sm:$0x1]
        %s1698 = scalar_lea.vmem %s4, 5
        %v1699 = vld [vmem:[%s1698] sm:$0x1]
        %v1700 = vsel %vm807, %v1695, 0.0
        %1701 = vadd.xlane.f32.xlu0 %v1700
        %v1702 = vpop.xlane.xlu0 %1701
        %v1703 = vmul.f32 %v1702, %v817
        %v1704 = vsub.f32 %v1695, %v1703
        %v1705 = vmul.f32 %v1704, %v1704
        %v1706 = vsel %vm807, %v1705, 0.0
        %1707 = vadd.xlane.f32.xlu0 %v1706
        %v1708 = vpop.xlane.xlu0 %1707
        %v1709 = vmul.f32 %v1708, %v817
        %v1710 = vadd.f32 %v1709, 1e-05
        %v1711 = vrsqrt.pop %v1710
        %v1712 = vmul.f32 %v1711, %v1710
        %v1713 = vmul.f32 %v1712, %v1711
        %v1714 = vmul.f32 0.5, %v1713
        %v1715 = vsub.f32 1.5, %v1714
        %v1716 = vmul.f32 %v1711, %v1715
        %vm1717 = vweird.f32 %v1710
        %vm1718 = vweird.f32 %v1711
        %vm1719 = vmor %vm1717, %vm1718
        %v1720 = vsel %vm1719, %v1711, %v1716
        %v1721 = vmul.f32 %v1704, %v1720
        %v1723 = vperm.slane %v1697, 0
        %v1725 = vmul.f32 %v1721, %v1723
        %v1727 = vperm.slane %v1699, 0
        %v1729 = vadd.f32 %v1725, %v1727
        %s1730 = scalar_lea.vmem %s5, 192
        %v1731 = vld [vmem:[%s1730] sm:$0xf]
        %v1732 = vld [vmem:[%s1730 + $0x4] sm:$0xf]
        %v1733 = vld [vmem:[%s1730 + $0x8] sm:$0xf]
        %v1734 = vld [vmem:[%s1730 + $0xc] sm:$0xf]
        %v1735 = vld [vmem:[%s1730 + $0x10] sm:$0xf]
        %v1736 = vld [vmem:[%s1730 + $0x14] sm:$0xf]
        %v1737 = vld [vmem:[%s1730 + $0x18] sm:$0xf]
        %v1738 = vld [vmem:[%s1730 + $0x1c] sm:$0xf]
        %v1739 = vld [vmem:[%s1730 + $0x20] sm:$0xf]
        %v1740 = vld [vmem:[%s1730 + $0x24] sm:$0xf]
        %v1741 = vld [vmem:[%s1730 + $0x28] sm:$0xf]
        %v1742 = vld [vmem:[%s1730 + $0x2c] sm:$0xf]
        %v1743 = vld [vmem:[%s1730 + $0x30] sm:$0xf]
        %v1744 = vld [vmem:[%s1730 + $0x34] sm:$0xf]
        %v1745 = vld [vmem:[%s1730 + $0x38] sm:$0xf]
        %v1746 = vld [vmem:[%s1730 + $0x3c] sm:$0xf]
        %s1747 = scalar_lea.vmem %s6, 12
        %v1748 = vld [vmem:[%s1747] sm:$0x1]
        %v1749 = vld [vmem:[%s1747 + $0x1] sm:$0x1]
        %v1750 = vld [vmem:[%s1747 + $0x2] sm:$0x1]
        %v1751 = vld [vmem:[%s1747 + $0x3] sm:$0x1]
        %s1752 = scalar_lea.vmem %s5, 256
        %v1753 = vld [vmem:[%s1752] sm:$0xf]
        %v1754 = vld [vmem:[%s1752 + $0x4] sm:$0xf]
        %v1755 = vld [vmem:[%s1752 + $0x8] sm:$0xf]
        %v1756 = vld [vmem:[%s1752 + $0xc] sm:$0xf]
        %v1757 = vld [vmem:[%s1752 + $0x10] sm:$0xf]
        %v1758 = vld [vmem:[%s1752 + $0x14] sm:$0xf]
        %v1759 = vld [vmem:[%s1752 + $0x18] sm:$0xf]
        %v1760 = vld [vmem:[%s1752 + $0x1c] sm:$0xf]
        %v1761 = vld [vmem:[%s1752 + $0x20] sm:$0xf]
        %v1762 = vld [vmem:[%s1752 + $0x24] sm:$0xf]
        %v1763 = vld [vmem:[%s1752 + $0x28] sm:$0xf]
        %v1764 = vld [vmem:[%s1752 + $0x2c] sm:$0xf]
        %v1765 = vld [vmem:[%s1752 + $0x30] sm:$0xf]
        %v1766 = vld [vmem:[%s1752 + $0x34] sm:$0xf]
        %v1767 = vld [vmem:[%s1752 + $0x38] sm:$0xf]
        %v1768 = vld [vmem:[%s1752 + $0x3c] sm:$0xf]
        %s1769 = scalar_lea.vmem %s6, 16
        %v1770 = vld [vmem:[%s1769] sm:$0x1]
        %v1771 = vld [vmem:[%s1769 + $0x1] sm:$0x1]
        %v1772 = vld [vmem:[%s1769 + $0x2] sm:$0x1]
        %v1773 = vld [vmem:[%s1769 + $0x3] sm:$0x1]
        %s1774 = scalar_lea.vmem %s5, 320
        %v1775 = vld [vmem:[%s1774] sm:$0xf]
        %v1776 = vld [vmem:[%s1774 + $0x4] sm:$0xf]
        %v1777 = vld [vmem:[%s1774 + $0x8] sm:$0xf]
        %v1778 = vld [vmem:[%s1774 + $0xc] sm:$0xf]
        %v1779 = vld [vmem:[%s1774 + $0x10] sm:$0xf]
        %v1780 = vld [vmem:[%s1774 + $0x14] sm:$0xf]
        %v1781 = vld [vmem:[%s1774 + $0x18] sm:$0xf]
        %v1782 = vld [vmem:[%s1774 + $0x1c] sm:$0xf]
        %v1783 = vld [vmem:[%s1774 + $0x20] sm:$0xf]
        %v1784 = vld [vmem:[%s1774 + $0x24] sm:$0xf]
        %v1785 = vld [vmem:[%s1774 + $0x28] sm:$0xf]
        %v1786 = vld [vmem:[%s1774 + $0x2c] sm:$0xf]
        %v1787 = vld [vmem:[%s1774 + $0x30] sm:$0xf]
        %v1788 = vld [vmem:[%s1774 + $0x34] sm:$0xf]
        %v1789 = vld [vmem:[%s1774 + $0x38] sm:$0xf]
        %v1790 = vld [vmem:[%s1774 + $0x3c] sm:$0xf]
        %s1791 = scalar_lea.vmem %s6, 20
        %v1792 = vld [vmem:[%s1791] sm:$0x1]
        %v1793 = vld [vmem:[%s1791 + $0x1] sm:$0x1]
        %v1794 = vld [vmem:[%s1791 + $0x2] sm:$0x1]
        %v1795 = vld [vmem:[%s1791 + $0x3] sm:$0x1]
        %s1796 = scalar_lea.vmem %s7, 16
        %v1797 = vld [vmem:[%s1796] sm:$0xf]
        %v1798 = vld [vmem:[%s1796 + $0x4] sm:$0xf]
        %v1799 = vld [vmem:[%s1796 + $0x8] sm:$0xf]
        %v1800 = vld [vmem:[%s1796 + $0xc] sm:$0xf]
        %s1801 = scalar_lea.vmem %s8, 1
        %v1802 = vld [vmem:[%s1801] sm:$0x1]
        %v1803 = vpack.c.bf16 %v1729, %v1729
        %v1808 = vperm.slane %v1748, 0
        %v1809 = vperm.slane %v1749, 0
        %v1810 = vperm.slane %v1750, 0
        %v1811 = vperm.slane %v1751, 0
        %v1820 = vunpack.c.l.b16 %v1731
        %v1821 = vunpack.c.l.b16 %v1732
        %v1822 = vunpack.c.l.b16 %v1733
        %v1823 = vunpack.c.l.b16 %v1734
        %v1824 = vpack.c.b16 %v1821, %v1820
        %v1825 = vpack.c.b16 %v1823, %v1822
        %v1829 = vsel %vm807, %v1803, 0
        %1831 = vmatpush.bf16.msra.mxu0 0
        %1832 = vmatpush.bf16.msra.mxu0 0
        %1833 = vmatpush.bf16.msra.mxu0 0
        %1834 = vmatpush.bf16.msra.mxu0 0
        %1835 = vmatpush.bf16.msra.mxu0 0
        %1836 = vmatpush.bf16.msra.mxu0 0
        %1837 = vmatpush.bf16.msra.mxu0 %v1825
        %1838 = vmatpush.bf16.msra.mxu0 %v1824
        %1839 = vmatmul.bf16.gmra.mxu0 %v1829
        %v1840 = vpop.f32.mrf.mxu0
        %v1841 = vadd.f32 %v1808, %v1840
        %v1842 = vpop.f32.mrf.mxu0
        %1843 = vdwg.mxu0
        %v1848 = vunpack.c.l.b16 %v1735
        %v1849 = vunpack.c.l.b16 %v1736
        %v1850 = vunpack.c.l.b16 %v1737
        %v1851 = vunpack.c.l.b16 %v1738
        %v1852 = vpack.c.b16 %v1849, %v1848
        %v1853 = vpack.c.b16 %v1851, %v1850
        %1856 = vmatpush.bf16.msra.mxu0 0
        %1857 = vmatpush.bf16.msra.mxu0 0
        %1858 = vmatpush.bf16.msra.mxu0 0
        %1859 = vmatpush.bf16.msra.mxu0 0
        %1860 = vmatpush.bf16.msra.mxu0 0
        %1861 = vmatpush.bf16.msra.mxu0 0
        %1862 = vmatpush.bf16.msra.mxu0 %v1853
        %1863 = vmatpush.bf16.msra.mxu0 %v1852
        %1864 = vmatmul.bf16.gmra.mxu0 %v1829
        %v1865 = vpop.f32.mrf.mxu0
        %v1866 = vadd.f32 %v1809, %v1865
        %v1867 = vpop.f32.mrf.mxu0
        %1868 = vdwg.mxu0
        %v1873 = vunpack.c.l.b16 %v1739
        %v1874 = vunpack.c.l.b16 %v1740
        %v1875 = vunpack.c.l.b16 %v1741
        %v1876 = vunpack.c.l.b16 %v1742
        %v1877 = vpack.c.b16 %v1874, %v1873
        %v1878 = vpack.c.b16 %v1876, %v1875
        %1881 = vmatpush.bf16.msra.mxu0 0
        %1882 = vmatpush.bf16.msra.mxu0 0
        %1883 = vmatpush.bf16.msra.mxu0 0
        %1884 = vmatpush.bf16.msra.mxu0 0
        %1885 = vmatpush.bf16.msra.mxu0 0
        %1886 = vmatpush.bf16.msra.mxu0 0
        %1887 = vmatpush.bf16.msra.mxu0 %v1878
        %1888 = vmatpush.bf16.msra.mxu0 %v1877
        %1889 = vmatmul.bf16.gmra.mxu0 %v1829
        %v1890 = vpop.f32.mrf.mxu0
        %v1891 = vadd.f32 %v1810, %v1890
        %v1892 = vpop.f32.mrf.mxu0
        %1893 = vdwg.mxu0
        %v1898 = vunpack.c.l.b16 %v1743
        %v1899 = vunpack.c.l.b16 %v1744
        %v1900 = vunpack.c.l.b16 %v1745
        %v1901 = vunpack.c.l.b16 %v1746
        %v1902 = vpack.c.b16 %v1899, %v1898
        %v1903 = vpack.c.b16 %v1901, %v1900
        %1906 = vmatpush.bf16.msra.mxu0 0
        %1907 = vmatpush.bf16.msra.mxu0 0
        %1908 = vmatpush.bf16.msra.mxu0 0
        %1909 = vmatpush.bf16.msra.mxu0 0
        %1910 = vmatpush.bf16.msra.mxu0 0
        %1911 = vmatpush.bf16.msra.mxu0 0
        %1912 = vmatpush.bf16.msra.mxu0 %v1903
        %1913 = vmatpush.bf16.msra.mxu0 %v1902
        %1914 = vmatmul.bf16.gmra.mxu0 %v1829
        %v1915 = vpop.f32.mrf.mxu0
        %v1916 = vadd.f32 %v1811, %v1915
        %v1917 = vpop.f32.mrf.mxu0
        %1918 = vdwg.mxu0
        %v1923 = vperm.slane %v1770, 0
        %v1924 = vperm.slane %v1771, 0
        %v1925 = vperm.slane %v1772, 0
        %v1926 = vperm.slane %v1773, 0
        %v1935 = vunpack.c.l.b16 %v1753
        %v1936 = vunpack.c.l.b16 %v1754
        %v1937 = vunpack.c.l.b16 %v1755
        %v1938 = vunpack.c.l.b16 %v1756
        %v1939 = vpack.c.b16 %v1936, %v1935
        %v1940 = vpack.c.b16 %v1938, %v1937
        %1943 = vmatpush.bf16.msra.mxu0 0
        %1944 = vmatpush.bf16.msra.mxu0 0
        %1945 = vmatpush.bf16.msra.mxu0 0
        %1946 = vmatpush.bf16.msra.mxu0 0
        %1947 = vmatpush.bf16.msra.mxu0 0
        %1948 = vmatpush.bf16.msra.mxu0 0
        %1949 = vmatpush.bf16.msra.mxu0 %v1940
        %1950 = vmatpush.bf16.msra.mxu0 %v1939
        %1951 = vmatmul.bf16.gmra.mxu0 %v1829
        %v1952 = vpop.f32.mrf.mxu0
        %v1953 = vadd.f32 %v1923, %v1952
        %v1954 = vpop.f32.mrf.mxu0
        %1955 = vdwg.mxu0
        %v1960 = vunpack.c.l.b16 %v1757
        %v1961 = vunpack.c.l.b16 %v1758
        %v1962 = vunpack.c.l.b16 %v1759
        %v1963 = vunpack.c.l.b16 %v1760
        %v1964 = vpack.c.b16 %v1961, %v1960
        %v1965 = vpack.c.b16 %v1963, %v1962
        %1968 = vmatpush.bf16.msra.mxu0 0
        %1969 = vmatpush.bf16.msra.mxu0 0
        %1970 = vmatpush.bf16.msra.mxu0 0
        %1971 = vmatpush.bf16.msra.mxu0 0
        %1972 = vmatpush.bf16.msra.mxu0 0
        %1973 = vmatpush.bf16.msra.mxu0 0
        %1974 = vmatpush.bf16.msra.mxu0 %v1965
        %1975 = vmatpush.bf16.msra.mxu0 %v1964
        %1976 = vmatmul.bf16.gmra.mxu0 %v1829
        %v1977 = vpop.f32.mrf.mxu0
        %v1978 = vadd.f32 %v1924, %v1977
        %v1979 = vpop.f32.mrf.mxu0
        %1980 = vdwg.mxu0
        %v1985 = vunpack.c.l.b16 %v1761
        %v1986 = vunpack.c.l.b16 %v1762
        %v1987 = vunpack.c.l.b16 %v1763
        %v1988 = vunpack.c.l.b16 %v1764
        %v1989 = vpack.c.b16 %v1986, %v1985
        %v1990 = vpack.c.b16 %v1988, %v1987
        %1993 = vmatpush.bf16.msra.mxu0 0
        %1994 = vmatpush.bf16.msra.mxu0 0
        %1995 = vmatpush.bf16.msra.mxu0 0
        %1996 = vmatpush.bf16.msra.mxu0 0
        %1997 = vmatpush.bf16.msra.mxu0 0
        %1998 = vmatpush.bf16.msra.mxu0 0
        %1999 = vmatpush.bf16.msra.mxu0 %v1990
        %2000 = vmatpush.bf16.msra.mxu0 %v1989
        %2001 = vmatmul.bf16.gmra.mxu0 %v1829
        %v2002 = vpop.f32.mrf.mxu0
        %v2003 = vadd.f32 %v1925, %v2002
        %v2004 = vpop.f32.mrf.mxu0
        %2005 = vdwg.mxu0
        %v2010 = vunpack.c.l.b16 %v1765
        %v2011 = vunpack.c.l.b16 %v1766
        %v2012 = vunpack.c.l.b16 %v1767
        %v2013 = vunpack.c.l.b16 %v1768
        %v2014 = vpack.c.b16 %v2011, %v2010
        %v2015 = vpack.c.b16 %v2013, %v2012
        %2018 = vmatpush.bf16.msra.mxu0 0
        %2019 = vmatpush.bf16.msra.mxu0 0
        %2020 = vmatpush.bf16.msra.mxu0 0
        %2021 = vmatpush.bf16.msra.mxu0 0
        %2022 = vmatpush.bf16.msra.mxu0 0
        %2023 = vmatpush.bf16.msra.mxu0 0
        %2024 = vmatpush.bf16.msra.mxu0 %v2015
        %2025 = vmatpush.bf16.msra.mxu0 %v2014
        %2026 = vmatmul.bf16.gmra.mxu0 %v1829
        %v2027 = vpop.f32.mrf.mxu0
        %v2028 = vadd.f32 %v1926, %v2027
        %v2029 = vpop.f32.mrf.mxu0
        %2030 = vdwg.mxu0
        %v2035 = vperm.slane %v1792, 0
        %v2036 = vperm.slane %v1793, 0
        %v2037 = vperm.slane %v1794, 0
        %v2038 = vperm.slane %v1795, 0
        %v2047 = vunpack.c.l.b16 %v1775
        %v2048 = vunpack.c.l.b16 %v1776
        %v2049 = vunpack.c.l.b16 %v1777
        %v2050 = vunpack.c.l.b16 %v1778
        %v2051 = vpack.c.b16 %v2048, %v2047
        %v2052 = vpack.c.b16 %v2050, %v2049
        %2055 = vmatpush.bf16.msra.mxu0 0
        %2056 = vmatpush.bf16.msra.mxu0 0
        %2057 = vmatpush.bf16.msra.mxu0 0
        %2058 = vmatpush.bf16.msra.mxu0 0
        %2059 = vmatpush.bf16.msra.mxu0 0
        %2060 = vmatpush.bf16.msra.mxu0 0
        %2061 = vmatpush.bf16.msra.mxu0 %v2052
        %2062 = vmatpush.bf16.msra.mxu0 %v2051
        %2063 = vmatmul.bf16.gmra.mxu0 %v1829
        %v2064 = vpop.f32.mrf.mxu0
        %v2065 = vadd.f32 %v2035, %v2064
        %v2066 = vpop.f32.mrf.mxu0
        %2067 = vdwg.mxu0
        %v2072 = vunpack.c.l.b16 %v1779
        %v2073 = vunpack.c.l.b16 %v1780
        %v2074 = vunpack.c.l.b16 %v1781
        %v2075 = vunpack.c.l.b16 %v1782
        %v2076 = vpack.c.b16 %v2073, %v2072
        %v2077 = vpack.c.b16 %v2075, %v2074
        %2080 = vmatpush.bf16.msra.mxu0 0
        %2081 = vmatpush.bf16.msra.mxu0 0
        %2082 = vmatpush.bf16.msra.mxu0 0
        %2083 = vmatpush.bf16.msra.mxu0 0
        %2084 = vmatpush.bf16.msra.mxu0 0
        %2085 = vmatpush.bf16.msra.mxu0 0
        %2086 = vmatpush.bf16.msra.mxu0 %v2077
        %2087 = vmatpush.bf16.msra.mxu0 %v2076
        %2088 = vmatmul.bf16.gmra.mxu0 %v1829
        %v2089 = vpop.f32.mrf.mxu0
        %v2090 = vadd.f32 %v2036, %v2089
        %v2091 = vpop.f32.mrf.mxu0
        %2092 = vdwg.mxu0
        %v2097 = vunpack.c.l.b16 %v1783
        %v2098 = vunpack.c.l.b16 %v1784
        %v2099 = vunpack.c.l.b16 %v1785
        %v2100 = vunpack.c.l.b16 %v1786
        %v2101 = vpack.c.b16 %v2098, %v2097
        %v2102 = vpack.c.b16 %v2100, %v2099
        %2105 = vmatpush.bf16.msra.mxu0 0
        %2106 = vmatpush.bf16.msra.mxu0 0
        %2107 = vmatpush.bf16.msra.mxu0 0
        %2108 = vmatpush.bf16.msra.mxu0 0
        %2109 = vmatpush.bf16.msra.mxu0 0
        %2110 = vmatpush.bf16.msra.mxu0 0
        %2111 = vmatpush.bf16.msra.mxu0 %v2102
        %2112 = vmatpush.bf16.msra.mxu0 %v2101
        %2113 = vmatmul.bf16.gmra.mxu0 %v1829
        %v2114 = vpop.f32.mrf.mxu0
        %v2115 = vadd.f32 %v2037, %v2114
        %v2116 = vpop.f32.mrf.mxu0
        %2117 = vdwg.mxu0
        %v2122 = vunpack.c.l.b16 %v1787
        %v2123 = vunpack.c.l.b16 %v1788
        %v2124 = vunpack.c.l.b16 %v1789
        %v2125 = vunpack.c.l.b16 %v1790
        %v2126 = vpack.c.b16 %v2123, %v2122
        %v2127 = vpack.c.b16 %v2125, %v2124
        %2130 = vmatpush.bf16.msra.mxu0 0
        %2131 = vmatpush.bf16.msra.mxu0 0
        %2132 = vmatpush.bf16.msra.mxu0 0
        %2133 = vmatpush.bf16.msra.mxu0 0
        %2134 = vmatpush.bf16.msra.mxu0 0
        %2135 = vmatpush.bf16.msra.mxu0 0
        %2136 = vmatpush.bf16.msra.mxu0 %v2127
        %2137 = vmatpush.bf16.msra.mxu0 %v2126
        %2138 = vmatmul.bf16.gmra.mxu0 %v1829
        %v2139 = vpop.f32.mrf.mxu0
        %v2140 = vadd.f32 %v2038, %v2139
        %v2141 = vpop.f32.mrf.mxu0
        %2142 = vdwg.mxu0
        %v2143 = vpack.c.bf16 %v1841, %v1841
        %v2144 = vpack.c.bf16 %v1866, %v1866
        %v2145 = vpack.c.bf16 %v1891, %v1891
        %v2146 = vpack.c.bf16 %v1916, %v1916
        %v2147 = vpack.c.bf16 %v1953, %v1953
        %v2148 = vpack.c.bf16 %v1978, %v1978
        %v2149 = vpack.c.bf16 %v2003, %v2003
        %v2150 = vpack.c.bf16 %v2028, %v2028
        %v2152 = vsel %vm1262, %v2143, 0
        %v2155 = vsel %vm1262, %v2147, 0
        %2157 = vmatpush.bf16.xpose.msra.mxu0 0
        %2158 = vmatpush.bf16.xpose.msra.mxu0 0
        %2159 = vmatpush.bf16.xpose.msra.mxu0 0
        %2160 = vmatpush.bf16.xpose.msra.mxu0 0
        %2161 = vmatpush.bf16.xpose.msra.mxu0 0
        %2162 = vmatpush.bf16.xpose.msra.mxu0 0
        %2163 = vmatpush.bf16.xpose.msra.mxu0 0
        %2164 = vmatpush.bf16.xpose.msra.mxu0 %v2155
        %2165 = vmatmul.bf16.gmra.mxu0 %v2152
        %v2166 = vpop.f32.mrf.mxu0
        %v2167 = vadd.f32 0.0, %v2166
        %v2168 = vpop.f32.mrf.mxu0
        %2169 = vdwg.mxu0
        %v2171 = vsel %vm1262, %v2144, 0
        %v2174 = vsel %vm1262, %v2148, 0
        %2176 = vmatpush.bf16.xpose.msra.mxu0 0
        %2177 = vmatpush.bf16.xpose.msra.mxu0 0
        %2178 = vmatpush.bf16.xpose.msra.mxu0 0
        %2179 = vmatpush.bf16.xpose.msra.mxu0 0
        %2180 = vmatpush.bf16.xpose.msra.mxu0 0
        %2181 = vmatpush.bf16.xpose.msra.mxu0 0
        %2182 = vmatpush.bf16.xpose.msra.mxu0 0
        %2183 = vmatpush.bf16.xpose.msra.mxu0 %v2174
        %2184 = vmatmul.bf16.gmra.mxu0 %v2171
        %v2185 = vpop.f32.mrf.mxu0
        %v2186 = vadd.f32 0.0, %v2185
        %v2187 = vpop.f32.mrf.mxu0
        %2188 = vdwg.mxu0
        %v2190 = vsel %vm1262, %v2145, 0
        %v2193 = vsel %vm1262, %v2149, 0
        %2195 = vmatpush.bf16.xpose.msra.mxu0 0
        %2196 = vmatpush.bf16.xpose.msra.mxu0 0
        %2197 = vmatpush.bf16.xpose.msra.mxu0 0
        %2198 = vmatpush.bf16.xpose.msra.mxu0 0
        %2199 = vmatpush.bf16.xpose.msra.mxu0 0
        %2200 = vmatpush.bf16.xpose.msra.mxu0 0
        %2201 = vmatpush.bf16.xpose.msra.mxu0 0
        %2202 = vmatpush.bf16.xpose.msra.mxu0 %v2193
        %2203 = vmatmul.bf16.gmra.mxu0 %v2190
        %v2204 = vpop.f32.mrf.mxu0
        %v2205 = vadd.f32 0.0, %v2204
        %v2206 = vpop.f32.mrf.mxu0
        %2207 = vdwg.mxu0
        %v2209 = vsel %vm1262, %v2146, 0
        %v2212 = vsel %vm1262, %v2150, 0
        %2214 = vmatpush.bf16.xpose.msra.mxu0 0
        %2215 = vmatpush.bf16.xpose.msra.mxu0 0
        %2216 = vmatpush.bf16.xpose.msra.mxu0 0
        %2217 = vmatpush.bf16.xpose.msra.mxu0 0
        %2218 = vmatpush.bf16.xpose.msra.mxu0 0
        %2219 = vmatpush.bf16.xpose.msra.mxu0 0
        %2220 = vmatpush.bf16.xpose.msra.mxu0 0
        %2221 = vmatpush.bf16.xpose.msra.mxu0 %v2212
        %2222 = vmatmul.bf16.gmra.mxu0 %v2209
        %v2223 = vpop.f32.mrf.mxu0
        %v2224 = vadd.f32 0.0, %v2223
        %v2225 = vpop.f32.mrf.mxu0
        %2226 = vdwg.mxu0
        %v2227 = vmul.f32 %v2167, 0.35355338
        %v2228 = vmul.f32 %v2186, 0.35355338
        %v2229 = vmul.f32 %v2205, 0.35355338
        %v2230 = vmul.f32 %v2224, 0.35355338
        %v2231 = vsel %vm1345, %v2227, -1e+09
        %v2232 = vsel %vm1345, %v2228, -1e+09
        %v2233 = vsel %vm1345, %v2229, -1e+09
        %v2234 = vsel %vm1345, %v2230, -1e+09
        %v2235 = vsel %vm1262, %v2231, -inf
        %2236 = vmax.xlane.f32.xlu0 %v2235
        %v2237 = vpop.xlane.xlu0 %2236
        %v2238 = vsel %vm1262, %v2232, -inf
        %2239 = vmax.xlane.f32.xlu0 %v2238
        %v2240 = vpop.xlane.xlu0 %2239
        %v2241 = vsel %vm1262, %v2233, -inf
        %2242 = vmax.xlane.f32.xlu0 %v2241
        %v2243 = vpop.xlane.xlu0 %2242
        %v2244 = vsel %vm1262, %v2234, -inf
        %2245 = vmax.xlane.f32.xlu0 %v2244
        %v2246 = vpop.xlane.xlu0 %2245
        %v2247 = vsub.f32 %v2231, %v2237
        %v2248 = vsub.f32 %v2232, %v2240
        %v2249 = vsub.f32 %v2233, %v2243
        %v2250 = vsub.f32 %v2234, %v2246
        %v2251 = vmul.f32 %v2247, 1.442695
        %v2252 = vpow.pop %v2251
        %v2253 = vmul.f32 %v2248, 1.442695
        %v2254 = vpow.pop %v2253
        %v2255 = vmul.f32 %v2249, 1.442695
        %v2256 = vpow.pop %v2255
        %v2257 = vmul.f32 %v2250, 1.442695
        %v2258 = vpow.pop %v2257
        %v2259 = vsel %vm1262, %v2252, 0.0
        %2260 = vadd.xlane.f32.xlu0 %v2259
        %v2261 = vpop.xlane.xlu0 %2260
        %v2262 = vsel %vm1262, %v2254, 0.0
        %2263 = vadd.xlane.f32.xlu0 %v2262
        %v2264 = vpop.xlane.xlu0 %2263
        %v2265 = vsel %vm1262, %v2256, 0.0
        %2266 = vadd.xlane.f32.xlu0 %v2265
        %v2267 = vpop.xlane.xlu0 %2266
        %v2268 = vsel %vm1262, %v2258, 0.0
        %2269 = vadd.xlane.f32.xlu0 %v2268
        %v2270 = vpop.xlane.xlu0 %2269
        %v2271 = vrcp.pop %v2261
        %v2272 = vmul.f32 %v2261, %v2271
        %v2273 = vsub.f32 1.0, %v2272
        %v2274 = vmul.f32 %v2271, %v2273
        %v2275 = vadd.f32 %v2271, %v2274
        %vm2276 = vweird.f32 %v2261
        %vm2277 = vweird.f32 %v2271
        %vm2278 = vmor %vm2276, %vm2277
        %v2279 = vsel %vm2278, %v2271, %v2275
        %v2280 = vand.u32 2147483647, %v2261
        %vm2281 = vcmp.eq.f32.partialorder %v2280, 8.507059e+37
        %v2282 = vand.u32 %v2261, 2147483648
        %v2283 = vor.u32 1.1754944e-38, %v2282
        %v2284 = vsel %vm2281, %v2283, %v2279
        %v2285 = vmul.f32 %v2252, %v2284
        %v2286 = vrcp.pop %v2264
        %v2287 = vmul.f32 %v2264, %v2286
        %v2288 = vsub.f32 1.0, %v2287
        %v2289 = vmul.f32 %v2286, %v2288
        %v2290 = vadd.f32 %v2286, %v2289
        %vm2291 = vweird.f32 %v2264
        %vm2292 = vweird.f32 %v2286
        %vm2293 = vmor %vm2291, %vm2292
        %v2294 = vsel %vm2293, %v2286, %v2290
        %v2295 = vand.u32 2147483647, %v2264
        %vm2296 = vcmp.eq.f32.partialorder %v2295, 8.507059e+37
        %v2297 = vand.u32 %v2264, 2147483648
        %v2298 = vor.u32 1.1754944e-38, %v2297
        %v2299 = vsel %vm2296, %v2298, %v2294
        %v2300 = vmul.f32 %v2254, %v2299
        %v2301 = vrcp.pop %v2267
        %v2302 = vmul.f32 %v2267, %v2301
        %v2303 = vsub.f32 1.0, %v2302
        %v2304 = vmul.f32 %v2301, %v2303
        %v2305 = vadd.f32 %v2301, %v2304
        %vm2306 = vweird.f32 %v2267
        %vm2307 = vweird.f32 %v2301
        %vm2308 = vmor %vm2306, %vm2307
        %v2309 = vsel %vm2308, %v2301, %v2305
        %v2310 = vand.u32 2147483647, %v2267
        %vm2311 = vcmp.eq.f32.partialorder %v2310, 8.507059e+37
        %v2312 = vand.u32 %v2267, 2147483648
        %v2313 = vor.u32 1.1754944e-38, %v2312
        %v2314 = vsel %vm2311, %v2313, %v2309
        %v2315 = vmul.f32 %v2256, %v2314
        %v2316 = vrcp.pop %v2270
        %v2317 = vmul.f32 %v2270, %v2316
        %v2318 = vsub.f32 1.0, %v2317
        %v2319 = vmul.f32 %v2316, %v2318
        %v2320 = vadd.f32 %v2316, %v2319
        %vm2321 = vweird.f32 %v2270
        %vm2322 = vweird.f32 %v2316
        %vm2323 = vmor %vm2321, %vm2322
        %v2324 = vsel %vm2323, %v2316, %v2320
        %v2325 = vand.u32 2147483647, %v2270
        %vm2326 = vcmp.eq.f32.partialorder %v2325, 8.507059e+37
        %v2327 = vand.u32 %v2270, 2147483648
        %v2328 = vor.u32 1.1754944e-38, %v2327
        %v2329 = vsel %vm2326, %v2328, %v2324
        %v2330 = vmul.f32 %v2258, %v2329
        %v2331 = vpack.c.bf16 %v2285, %v2285
        %v2332 = vpack.c.bf16 %v2300, %v2300
        %v2333 = vpack.c.bf16 %v2315, %v2315
        %v2334 = vpack.c.bf16 %v2330, %v2330
        %v2335 = vpack.c.bf16 %v2065, %v2065
        %v2336 = vpack.c.bf16 %v2090, %v2090
        %v2337 = vpack.c.bf16 %v2115, %v2115
        %v2338 = vpack.c.bf16 %v2140, %v2140
        %v2340 = vsel %vm1262, %v2331, 0
        %v2343 = vsel %vm1457, %v2335, 0
        %2345 = vmatpush.bf16.msra.mxu0 0
        %2346 = vmatpush.bf16.msra.mxu0 0
        %2347 = vmatpush.bf16.msra.mxu0 0
        %2348 = vmatpush.bf16.msra.mxu0 0
        %2349 = vmatpush.bf16.msra.mxu0 0
        %2350 = vmatpush.bf16.msra.mxu0 0
        %2351 = vmatpush.bf16.msra.mxu0 0
        %2352 = vmatpush.bf16.msra.mxu0 %v2343
        %2353 = vmatmul.bf16.gmra.mxu0 %v2340
        %v2354 = vpop.f32.mrf.mxu0
        %v2355 = vadd.f32 0.0, %v2354
        %v2356 = vpop.f32.mrf.mxu0
        %2357 = vdwg.mxu0
        %v2359 = vsel %vm1262, %v2332, 0
        %v2362 = vsel %vm1457, %v2336, 0
        %2364 = vmatpush.bf16.msra.mxu0 0
        %2365 = vmatpush.bf16.msra.mxu0 0
        %2366 = vmatpush.bf16.msra.mxu0 0
        %2367 = vmatpush.bf16.msra.mxu0 0
        %2368 = vmatpush.bf16.msra.mxu0 0
        %2369 = vmatpush.bf16.msra.mxu0 0
        %2370 = vmatpush.bf16.msra.mxu0 0
        %2371 = vmatpush.bf16.msra.mxu0 %v2362
        %2372 = vmatmul.bf16.gmra.mxu0 %v2359
        %v2373 = vpop.f32.mrf.mxu0
        %v2374 = vadd.f32 0.0, %v2373
        %v2375 = vpop.f32.mrf.mxu0
        %2376 = vdwg.mxu0
        %v2378 = vsel %vm1262, %v2333, 0
        %v2381 = vsel %vm1457, %v2337, 0
        %2383 = vmatpush.bf16.msra.mxu0 0
        %2384 = vmatpush.bf16.msra.mxu0 0
        %2385 = vmatpush.bf16.msra.mxu0 0
        %2386 = vmatpush.bf16.msra.mxu0 0
        %2387 = vmatpush.bf16.msra.mxu0 0
        %2388 = vmatpush.bf16.msra.mxu0 0
        %2389 = vmatpush.bf16.msra.mxu0 0
        %2390 = vmatpush.bf16.msra.mxu0 %v2381
        %2391 = vmatmul.bf16.gmra.mxu0 %v2378
        %v2392 = vpop.f32.mrf.mxu0
        %v2393 = vadd.f32 0.0, %v2392
        %v2394 = vpop.f32.mrf.mxu0
        %2395 = vdwg.mxu0
        %v2397 = vsel %vm1262, %v2334, 0
        %v2400 = vsel %vm1457, %v2338, 0
        %2402 = vmatpush.bf16.msra.mxu0 0
        %2403 = vmatpush.bf16.msra.mxu0 0
        %2404 = vmatpush.bf16.msra.mxu0 0
        %2405 = vmatpush.bf16.msra.mxu0 0
        %2406 = vmatpush.bf16.msra.mxu0 0
        %2407 = vmatpush.bf16.msra.mxu0 0
        %2408 = vmatpush.bf16.msra.mxu0 0
        %2409 = vmatpush.bf16.msra.mxu0 %v2400
        %2410 = vmatmul.bf16.gmra.mxu0 %v2397
        %v2411 = vpop.f32.mrf.mxu0
        %v2412 = vadd.f32 0.0, %v2411
        %v2413 = vpop.f32.mrf.mxu0
        %2414 = vdwg.mxu0
        %v2415 = vpack.c.bf16 %v2355, %v2355
        %v2416 = vpack.c.bf16 %v2374, %v2374
        %v2417 = vpack.c.bf16 %v2393, %v2393
        %v2418 = vpack.c.bf16 %v2412, %v2412
        %v2420 = vsel %vm1262, %v2415, 0
        %v2423 = vsel %vm1457, %v1797, 0
        %2425 = vmatpush.bf16.msra.mxu0 0
        %2426 = vmatpush.bf16.msra.mxu0 0
        %2427 = vmatpush.bf16.msra.mxu0 0
        %2428 = vmatpush.bf16.msra.mxu0 0
        %2429 = vmatpush.bf16.msra.mxu0 0
        %2430 = vmatpush.bf16.msra.mxu0 0
        %2431 = vmatpush.bf16.msra.mxu0 0
        %2432 = vmatpush.bf16.msra.mxu0 %v2423
        %2433 = vmatmul.bf16.gmra.mxu0 %v2420
        %v2434 = vpop.f32.mrf.mxu0
        %v2435 = vadd.f32 0.0, %v2434
        %v2436 = vpop.f32.mrf.mxu0
        %2437 = vdwg.mxu0
        %v2439 = vsel %vm1262, %v2416, 0
        %v2442 = vsel %vm1457, %v1798, 0
        %2444 = vmatpush.bf16.msra.mxu0 0
        %2445 = vmatpush.bf16.msra.mxu0 0
        %2446 = vmatpush.bf16.msra.mxu0 0
        %2447 = vmatpush.bf16.msra.mxu0 0
        %2448 = vmatpush.bf16.msra.mxu0 0
        %2449 = vmatpush.bf16.msra.mxu0 0
        %2450 = vmatpush.bf16.msra.mxu0 0
        %2451 = vmatpush.bf16.msra.mxu0 %v2442
        %2452 = vmatmul.bf16.gmra.mxu0 %v2439
        %v2453 = vpop.f32.mrf.mxu0
        %v2454 = vadd.f32 0.0, %v2453
        %v2455 = vpop.f32.mrf.mxu0
        %2456 = vdwg.mxu0
        %v2458 = vsel %vm1262, %v2417, 0
        %v2461 = vsel %vm1457, %v1799, 0
        %2463 = vmatpush.bf16.msra.mxu0 0
        %2464 = vmatpush.bf16.msra.mxu0 0
        %2465 = vmatpush.bf16.msra.mxu0 0
        %2466 = vmatpush.bf16.msra.mxu0 0
        %2467 = vmatpush.bf16.msra.mxu0 0
        %2468 = vmatpush.bf16.msra.mxu0 0
        %2469 = vmatpush.bf16.msra.mxu0 0
        %2470 = vmatpush.bf16.msra.mxu0 %v2461
        %2471 = vmatmul.bf16.gmra.mxu0 %v2458
        %v2472 = vpop.f32.mrf.mxu0
        %v2473 = vadd.f32 0.0, %v2472
        %v2474 = vpop.f32.mrf.mxu0
        %2475 = vdwg.mxu0
        %v2477 = vsel %vm1262, %v2418, 0
        %v2480 = vsel %vm1457, %v1800, 0
        %2482 = vmatpush.bf16.msra.mxu0 0
        %2483 = vmatpush.bf16.msra.mxu0 0
        %2484 = vmatpush.bf16.msra.mxu0 0
        %2485 = vmatpush.bf16.msra.mxu0 0
        %2486 = vmatpush.bf16.msra.mxu0 0
        %2487 = vmatpush.bf16.msra.mxu0 0
        %2488 = vmatpush.bf16.msra.mxu0 0
        %2489 = vmatpush.bf16.msra.mxu0 %v2480
        %2490 = vmatmul.bf16.gmra.mxu0 %v2477
        %v2491 = vpop.f32.mrf.mxu0
        %v2492 = vadd.f32 0.0, %v2491
        %v2493 = vpop.f32.mrf.mxu0
        %2494 = vdwg.mxu0
        %v2495 = vsel %vm807, %v2435, 0.0
        %v2496 = vsel %vm807, %v2454, 0.0
        %v2497 = vadd.f32 %v2495, %v2496
        %v2498 = vsel %vm807, %v2473, 0.0
        %v2499 = vadd.f32 %v2497, %v2498
        %v2500 = vsel %vm807, %v2492, 0.0
        %v2501 = vadd.f32 %v2499, %v2500
        %v2503 = vperm.slane %v1802, 0
        %v2505 = vadd.f32 %v2501, %v2503
        %v2506 = vadd.f32 %v1695, %v2505
        %s2507 = scalar_lea.vmem %s4, 6
        %v2508 = vld [vmem:[%s2507] sm:$0x1]
        %s2509 = scalar_lea.vmem %s4, 7
        %v2510 = vld [vmem:[%s2509] sm:$0x1]
        %v2511 = vsel %vm807, %v2506, 0.0
        %2512 = vadd.xlane.f32.xlu0 %v2511
        %v2513 = vpop.xlane.xlu0 %2512
        %v2514 = vmul.f32 %v2513, %v817
        %v2515 = vsub.f32 %v2506, %v2514
        %v2516 = vmul.f32 %v2515, %v2515
        %v2517 = vsel %vm807, %v2516, 0.0
        %2518 = vadd.xlane.f32.xlu0 %v2517
        %v2519 = vpop.xlane.xlu0 %2518
        %v2520 = vmul.f32 %v2519, %v817
        %v2521 = vadd.f32 %v2520, 1e-05
        %v2522 = vrsqrt.pop %v2521
        %v2523 = vmul.f32 %v2522, %v2521
        %v2524 = vmul.f32 %v2523, %v2522
        %v2525 = vmul.f32 0.5, %v2524
        %v2526 = vsub.f32 1.5, %v2525
        %v2527 = vmul.f32 %v2522, %v2526
        %vm2528 = vweird.f32 %v2521
        %vm2529 = vweird.f32 %v2522
        %vm2530 = vmor %vm2528, %vm2529
        %v2531 = vsel %vm2530, %v2522, %v2527
        %v2532 = vmul.f32 %v2515, %v2531
        %v2534 = vperm.slane %v2508, 0
        %v2536 = vmul.f32 %v2532, %v2534
        %v2538 = vperm.slane %v2510, 0
        %v2540 = vadd.f32 %v2536, %v2538
        %s2541 = scalar_lea.vmem %s9, 16
        %v2542 = vld [vmem:[%s2541] sm:$0xf]
        %v2543 = vld [vmem:[%s2541 + $0x4] sm:$0xf]
        %v2544 = vld [vmem:[%s2541 + $0x8] sm:$0xf]
        %v2545 = vld [vmem:[%s2541 + $0xc] sm:$0xf]
        %v2546 = vpack.c.bf16 %v2540, %v2540
        %s2547 = scalar_lea.vmem %s10, 1
        %v2548 = vld [vmem:[%s2547] sm:$0x1]
        %v2550 = vperm.slane %v2548, 0
        %v2556 = vunpack.c.l.b16 %v2542
        %v2557 = vunpack.c.l.b16 %v2543
        %v2558 = vunpack.c.l.b16 %v2544
        %v2559 = vunpack.c.l.b16 %v2545
        %v2560 = vpack.c.b16 %v2557, %v2556
        %v2561 = vpack.c.b16 %v2559, %v2558
        %v2565 = vsel %vm807, %v2546, 0
        %2567 = vmatpush.bf16.msra.mxu0 0
        %2568 = vmatpush.bf16.msra.mxu0 0
        %2569 = vmatpush.bf16.msra.mxu0 0
        %2570 = vmatpush.bf16.msra.mxu0 0
        %2571 = vmatpush.bf16.msra.mxu0 0
        %2572 = vmatpush.bf16.msra.mxu0 0
        %2573 = vmatpush.bf16.msra.mxu0 %v2561
        %2574 = vmatpush.bf16.msra.mxu0 %v2560
        %2575 = vmatmul.bf16.gmra.mxu0 %v2565
        %v2576 = vpop.f32.mrf.mxu0
        %v2577 = vadd.f32 %v2550, %v2576
        %v2578 = vpop.f32.mrf.mxu0
        %2579 = vdwg.mxu0
        %v2580 = vmax.f32 %v2577, 0.0
        %v2581 = vadd.f32 %v2506, %v2580
        %v2582 = vld [vmem:[%s11] sm:$0x1]
        %s2583 = scalar_lea.vmem %s11, 1
        %v2584 = vld [vmem:[%s2583] sm:$0x1]
        %v2585 = vsel %vm807, %v788, 0.0
        %2586 = vadd.xlane.f32.xlu0 %v2585
        %v2587 = vpop.xlane.xlu0 %2586
        %v2588 = vmul.f32 %v2587, %v817
        %v2589 = vsub.f32 %v788, %v2588
        %v2590 = vmul.f32 %v2589, %v2589
        %v2591 = vsel %vm807, %v2590, 0.0
        %2592 = vadd.xlane.f32.xlu0 %v2591
        %v2593 = vpop.xlane.xlu0 %2592
        %v2594 = vmul.f32 %v2593, %v817
        %v2595 = vadd.f32 %v2594, 1e-05
        %v2596 = vrsqrt.pop %v2595
        %v2597 = vmul.f32 %v2596, %v2595
        %v2598 = vmul.f32 %v2597, %v2596
        %v2599 = vmul.f32 0.5, %v2598
        %v2600 = vsub.f32 1.5, %v2599
        %v2601 = vmul.f32 %v2596, %v2600
        %vm2602 = vweird.f32 %v2595
        %vm2603 = vweird.f32 %v2596
        %vm2604 = vmor %vm2602, %vm2603
        %v2605 = vsel %vm2604, %v2596, %v2601
        %v2606 = vmul.f32 %v2589, %v2605
        %v2608 = vperm.slane %v2582, 0
        %v2610 = vmul.f32 %v2606, %v2608
        %v2612 = vperm.slane %v2584, 0
        %v2614 = vadd.f32 %v2610, %v2612
        %v2615 = vld [vmem:[%s12] sm:$0xf]
        %v2616 = vld [vmem:[%s12 + $0x4] sm:$0xf]
        %v2617 = vld [vmem:[%s12 + $0x8] sm:$0xf]
        %v2618 = vld [vmem:[%s12 + $0xc] sm:$0xf]
        %v2619 = vld [vmem:[%s12 + $0x10] sm:$0xf]
        %v2620 = vld [vmem:[%s12 + $0x14] sm:$0xf]
        %v2621 = vld [vmem:[%s12 + $0x18] sm:$0xf]
        %v2622 = vld [vmem:[%s12 + $0x1c] sm:$0xf]
        %v2623 = vld [vmem:[%s12 + $0x20] sm:$0xf]
        %v2624 = vld [vmem:[%s12 + $0x24] sm:$0xf]
        %v2625 = vld [vmem:[%s12 + $0x28] sm:$0xf]
        %v2626 = vld [vmem:[%s12 + $0x2c] sm:$0xf]
        %v2627 = vld [vmem:[%s12 + $0x30] sm:$0xf]
        %v2628 = vld [vmem:[%s12 + $0x34] sm:$0xf]
        %v2629 = vld [vmem:[%s12 + $0x38] sm:$0xf]
        %v2630 = vld [vmem:[%s12 + $0x3c] sm:$0xf]
        %v2631 = vld [vmem:[%s13] sm:$0x1]
        %v2632 = vld [vmem:[%s13 + $0x1] sm:$0x1]
        %v2633 = vld [vmem:[%s13 + $0x2] sm:$0x1]
        %v2634 = vld [vmem:[%s13 + $0x3] sm:$0x1]
        %s2635 = scalar_lea.vmem %s12, 64
        %v2636 = vld [vmem:[%s2635] sm:$0xf]
        %v2637 = vld [vmem:[%s2635 + $0x4] sm:$0xf]
        %v2638 = vld [vmem:[%s2635 + $0x8] sm:$0xf]
        %v2639 = vld [vmem:[%s2635 + $0xc] sm:$0xf]
        %v2640 = vld [vmem:[%s2635 + $0x10] sm:$0xf]
        %v2641 = vld [vmem:[%s2635 + $0x14] sm:$0xf]
        %v2642 = vld [vmem:[%s2635 + $0x18] sm:$0xf]
        %v2643 = vld [vmem:[%s2635 + $0x1c] sm:$0xf]
        %v2644 = vld [vmem:[%s2635 + $0x20] sm:$0xf]
        %v2645 = vld [vmem:[%s2635 + $0x24] sm:$0xf]
        %v2646 = vld [vmem:[%s2635 + $0x28] sm:$0xf]
        %v2647 = vld [vmem:[%s2635 + $0x2c] sm:$0xf]
        %v2648 = vld [vmem:[%s2635 + $0x30] sm:$0xf]
        %v2649 = vld [vmem:[%s2635 + $0x34] sm:$0xf]
        %v2650 = vld [vmem:[%s2635 + $0x38] sm:$0xf]
        %v2651 = vld [vmem:[%s2635 + $0x3c] sm:$0xf]
        %s2652 = scalar_lea.vmem %s13, 4
        %v2653 = vld [vmem:[%s2652] sm:$0x1]
        %v2654 = vld [vmem:[%s2652 + $0x1] sm:$0x1]
        %v2655 = vld [vmem:[%s2652 + $0x2] sm:$0x1]
        %v2656 = vld [vmem:[%s2652 + $0x3] sm:$0x1]
        %s2657 = scalar_lea.vmem %s12, 128
        %v2658 = vld [vmem:[%s2657] sm:$0xf]
        %v2659 = vld [vmem:[%s2657 + $0x4] sm:$0xf]
        %v2660 = vld [vmem:[%s2657 + $0x8] sm:$0xf]
        %v2661 = vld [vmem:[%s2657 + $0xc] sm:$0xf]
        %v2662 = vld [vmem:[%s2657 + $0x10] sm:$0xf]
        %v2663 = vld [vmem:[%s2657 + $0x14] sm:$0xf]
        %v2664 = vld [vmem:[%s2657 + $0x18] sm:$0xf]
        %v2665 = vld [vmem:[%s2657 + $0x1c] sm:$0xf]
        %v2666 = vld [vmem:[%s2657 + $0x20] sm:$0xf]
        %v2667 = vld [vmem:[%s2657 + $0x24] sm:$0xf]
        %v2668 = vld [vmem:[%s2657 + $0x28] sm:$0xf]
        %v2669 = vld [vmem:[%s2657 + $0x2c] sm:$0xf]
        %v2670 = vld [vmem:[%s2657 + $0x30] sm:$0xf]
        %v2671 = vld [vmem:[%s2657 + $0x34] sm:$0xf]
        %v2672 = vld [vmem:[%s2657 + $0x38] sm:$0xf]
        %v2673 = vld [vmem:[%s2657 + $0x3c] sm:$0xf]
        %s2674 = scalar_lea.vmem %s13, 8
        %v2675 = vld [vmem:[%s2674] sm:$0x1]
        %v2676 = vld [vmem:[%s2674 + $0x1] sm:$0x1]
        %v2677 = vld [vmem:[%s2674 + $0x2] sm:$0x1]
        %v2678 = vld [vmem:[%s2674 + $0x3] sm:$0x1]
        %v2679 = vld [vmem:[%s14] sm:$0xf]
        %v2680 = vld [vmem:[%s14 + $0x4] sm:$0xf]
        %v2681 = vld [vmem:[%s14 + $0x8] sm:$0xf]
        %v2682 = vld [vmem:[%s14 + $0xc] sm:$0xf]
        %v2683 = vld [vmem:[%s15] sm:$0x1]
        %v2684 = vpack.c.bf16 %v2614, %v2614
        %v2689 = vperm.slane %v2631, 0
        %v2690 = vperm.slane %v2632, 0
        %v2691 = vperm.slane %v2633, 0
        %v2692 = vperm.slane %v2634, 0
        %v2701 = vunpack.c.l.b16 %v2615
        %v2702 = vunpack.c.l.b16 %v2616
        %v2703 = vunpack.c.l.b16 %v2617
        %v2704 = vunpack.c.l.b16 %v2618
        %v2705 = vpack.c.b16 %v2702, %v2701
        %v2706 = vpack.c.b16 %v2704, %v2703
        %v2710 = vsel %vm807, %v2684, 0
        %2712 = vmatpush.bf16.msra.mxu0 0
        %2713 = vmatpush.bf16.msra.mxu0 0
        %2714 = vmatpush.bf16.msra.mxu0 0
        %2715 = vmatpush.bf16.msra.mxu0 0
        %2716 = vmatpush.bf16.msra.mxu0 0
        %2717 = vmatpush.bf16.msra.mxu0 0
        %2718 = vmatpush.bf16.msra.mxu0 %v2706
        %2719 = vmatpush.bf16.msra.mxu0 %v2705
        %2720 = vmatmul.bf16.gmra.mxu0 %v2710
        %v2721 = vpop.f32.mrf.mxu0
        %v2722 = vadd.f32 %v2689, %v2721
        %v2723 = vpop.f32.mrf.mxu0
        %2724 = vdwg.mxu0
        %v2729 = vunpack.c.l.b16 %v2619
        %v2730 = vunpack.c.l.b16 %v2620
        %v2731 = vunpack.c.l.b16 %v2621
        %v2732 = vunpack.c.l.b16 %v2622
        %v2733 = vpack.c.b16 %v2730, %v2729
        %v2734 = vpack.c.b16 %v2732, %v2731
        %2737 = vmatpush.bf16.msra.mxu0 0
        %2738 = vmatpush.bf16.msra.mxu0 0
        %2739 = vmatpush.bf16.msra.mxu0 0
        %2740 = vmatpush.bf16.msra.mxu0 0
        %2741 = vmatpush.bf16.msra.mxu0 0
        %2742 = vmatpush.bf16.msra.mxu0 0
        %2743 = vmatpush.bf16.msra.mxu0 %v2734
        %2744 = vmatpush.bf16.msra.mxu0 %v2733
        %2745 = vmatmul.bf16.gmra.mxu0 %v2710
        %v2746 = vpop.f32.mrf.mxu0
        %v2747 = vadd.f32 %v2690, %v2746
        %v2748 = vpop.f32.mrf.mxu0
        %2749 = vdwg.mxu0
        %v2754 = vunpack.c.l.b16 %v2623
        %v2755 = vunpack.c.l.b16 %v2624
        %v2756 = vunpack.c.l.b16 %v2625
        %v2757 = vunpack.c.l.b16 %v2626
        %v2758 = vpack.c.b16 %v2755, %v2754
        %v2759 = vpack.c.b16 %v2757, %v2756
        %2762 = vmatpush.bf16.msra.mxu0 0
        %2763 = vmatpush.bf16.msra.mxu0 0
        %2764 = vmatpush.bf16.msra.mxu0 0
        %2765 = vmatpush.bf16.msra.mxu0 0
        %2766 = vmatpush.bf16.msra.mxu0 0
        %2767 = vmatpush.bf16.msra.mxu0 0
        %2768 = vmatpush.bf16.msra.mxu0 %v2759
        %2769 = vmatpush.bf16.msra.mxu0 %v2758
        %2770 = vmatmul.bf16.gmra.mxu0 %v2710
        %v2771 = vpop.f32.mrf.mxu0
        %v2772 = vadd.f32 %v2691, %v2771
        %v2773 = vpop.f32.mrf.mxu0
        %2774 = vdwg.mxu0
        %v2779 = vunpack.c.l.b16 %v2627
        %v2780 = vunpack.c.l.b16 %v2628
        %v2781 = vunpack.c.l.b16 %v2629
        %v2782 = vunpack.c.l.b16 %v2630
        %v2783 = vpack.c.b16 %v2780, %v2779
        %v2784 = vpack.c.b16 %v2782, %v2781
        %2787 = vmatpush.bf16.msra.mxu0 0
        %2788 = vmatpush.bf16.msra.mxu0 0
        %2789 = vmatpush.bf16.msra.mxu0 0
        %2790 = vmatpush.bf16.msra.mxu0 0
        %2791 = vmatpush.bf16.msra.mxu0 0
        %2792 = vmatpush.bf16.msra.mxu0 0
        %2793 = vmatpush.bf16.msra.mxu0 %v2784
        %2794 = vmatpush.bf16.msra.mxu0 %v2783
        %2795 = vmatmul.bf16.gmra.mxu0 %v2710
        %v2796 = vpop.f32.mrf.mxu0
        %v2797 = vadd.f32 %v2692, %v2796
        %v2798 = vpop.f32.mrf.mxu0
        %2799 = vdwg.mxu0
        %v2804 = vperm.slane %v2653, 0
        %v2805 = vperm.slane %v2654, 0
        %v2806 = vperm.slane %v2655, 0
        %v2807 = vperm.slane %v2656, 0
        %v2816 = vunpack.c.l.b16 %v2636
        %v2817 = vunpack.c.l.b16 %v2637
        %v2818 = vunpack.c.l.b16 %v2638
        %v2819 = vunpack.c.l.b16 %v2639
        %v2820 = vpack.c.b16 %v2817, %v2816
        %v2821 = vpack.c.b16 %v2819, %v2818
        %2824 = vmatpush.bf16.msra.mxu0 0
        %2825 = vmatpush.bf16.msra.mxu0 0
        %2826 = vmatpush.bf16.msra.mxu0 0
        %2827 = vmatpush.bf16.msra.mxu0 0
        %2828 = vmatpush.bf16.msra.mxu0 0
        %2829 = vmatpush.bf16.msra.mxu0 0
        %2830 = vmatpush.bf16.msra.mxu0 %v2821
        %2831 = vmatpush.bf16.msra.mxu0 %v2820
        %2832 = vmatmul.bf16.gmra.mxu0 %v2710
        %v2833 = vpop.f32.mrf.mxu0
        %v2834 = vadd.f32 %v2804, %v2833
        %v2835 = vpop.f32.mrf.mxu0
        %2836 = vdwg.mxu0
        %v2841 = vunpack.c.l.b16 %v2640
        %v2842 = vunpack.c.l.b16 %v2641
        %v2843 = vunpack.c.l.b16 %v2642
        %v2844 = vunpack.c.l.b16 %v2643
        %v2845 = vpack.c.b16 %v2842, %v2841
        %v2846 = vpack.c.b16 %v2844, %v2843
        %2849 = vmatpush.bf16.msra.mxu0 0
        %2850 = vmatpush.bf16.msra.mxu0 0
        %2851 = vmatpush.bf16.msra.mxu0 0
        %2852 = vmatpush.bf16.msra.mxu0 0
        %2853 = vmatpush.bf16.msra.mxu0 0
        %2854 = vmatpush.bf16.msra.mxu0 0
        %2855 = vmatpush.bf16.msra.mxu0 %v2846
        %2856 = vmatpush.bf16.msra.mxu0 %v2845
        %2857 = vmatmul.bf16.gmra.mxu0 %v2710
        %v2858 = vpop.f32.mrf.mxu0
        %v2859 = vadd.f32 %v2805, %v2858
        %v2860 = vpop.f32.mrf.mxu0
        %2861 = vdwg.mxu0
        %v2866 = vunpack.c.l.b16 %v2644
        %v2867 = vunpack.c.l.b16 %v2645
        %v2868 = vunpack.c.l.b16 %v2646
        %v2869 = vunpack.c.l.b16 %v2647
        %v2870 = vpack.c.b16 %v2867, %v2866
        %v2871 = vpack.c.b16 %v2869, %v2868
        %2874 = vmatpush.bf16.msra.mxu0 0
        %2875 = vmatpush.bf16.msra.mxu0 0
        %2876 = vmatpush.bf16.msra.mxu0 0
        %2877 = vmatpush.bf16.msra.mxu0 0
        %2878 = vmatpush.bf16.msra.mxu0 0
        %2879 = vmatpush.bf16.msra.mxu0 0
        %2880 = vmatpush.bf16.msra.mxu0 %v2871
        %2881 = vmatpush.bf16.msra.mxu0 %v2870
        %2882 = vmatmul.bf16.gmra.mxu0 %v2710
        %v2883 = vpop.f32.mrf.mxu0
        %v2884 = vadd.f32 %v2806, %v2883
        %v2885 = vpop.f32.mrf.mxu0
        %2886 = vdwg.mxu0
        %v2891 = vunpack.c.l.b16 %v2648
        %v2892 = vunpack.c.l.b16 %v2649
        %v2893 = vunpack.c.l.b16 %v2650
        %v2894 = vunpack.c.l.b16 %v2651
        %v2895 = vpack.c.b16 %v2892, %v2891
        %v2896 = vpack.c.b16 %v2894, %v2893
        %2899 = vmatpush.bf16.msra.mxu0 0
        %2900 = vmatpush.bf16.msra.mxu0 0
        %2901 = vmatpush.bf16.msra.mxu0 0
        %2902 = vmatpush.bf16.msra.mxu0 0
        %2903 = vmatpush.bf16.msra.mxu0 0
        %2904 = vmatpush.bf16.msra.mxu0 0
        %2905 = vmatpush.bf16.msra.mxu0 %v2896
        %2906 = vmatpush.bf16.msra.mxu0 %v2895
        %2907 = vmatmul.bf16.gmra.mxu0 %v2710
        %v2908 = vpop.f32.mrf.mxu0
        %v2909 = vadd.f32 %v2807, %v2908
        %v2910 = vpop.f32.mrf.mxu0
        %2911 = vdwg.mxu0
        %v2916 = vperm.slane %v2675, 0
        %v2917 = vperm.slane %v2676, 0
        %v2918 = vperm.slane %v2677, 0
        %v2919 = vperm.slane %v2678, 0
        %v2928 = vunpack.c.l.b16 %v2658
        %v2929 = vunpack.c.l.b16 %v2659
        %v2930 = vunpack.c.l.b16 %v2660
        %v2931 = vunpack.c.l.b16 %v2661
        %v2932 = vpack.c.b16 %v2929, %v2928
        %v2933 = vpack.c.b16 %v2931, %v2930
        %2936 = vmatpush.bf16.msra.mxu0 0
        %2937 = vmatpush.bf16.msra.mxu0 0
        %2938 = vmatpush.bf16.msra.mxu0 0
        %2939 = vmatpush.bf16.msra.mxu0 0
        %2940 = vmatpush.bf16.msra.mxu0 0
        %2941 = vmatpush.bf16.msra.mxu0 0
        %2942 = vmatpush.bf16.msra.mxu0 %v2933
        %2943 = vmatpush.bf16.msra.mxu0 %v2932
        %2944 = vmatmul.bf16.gmra.mxu0 %v2710
        %v2945 = vpop.f32.mrf.mxu0
        %v2946 = vadd.f32 %v2916, %v2945
        %v2947 = vpop.f32.mrf.mxu0
        %2948 = vdwg.mxu0
        %v2953 = vunpack.c.l.b16 %v2662
        %v2954 = vunpack.c.l.b16 %v2663
        %v2955 = vunpack.c.l.b16 %v2664
        %v2956 = vunpack.c.l.b16 %v2665
        %v2957 = vpack.c.b16 %v2954, %v2953
        %v2958 = vpack.c.b16 %v2956, %v2955
        %2961 = vmatpush.bf16.msra.mxu0 0
        %2962 = vmatpush.bf16.msra.mxu0 0
        %2963 = vmatpush.bf16.msra.mxu0 0
        %2964 = vmatpush.bf16.msra.mxu0 0
        %2965 = vmatpush.bf16.msra.mxu0 0
        %2966 = vmatpush.bf16.msra.mxu0 0
        %2967 = vmatpush.bf16.msra.mxu0 %v2958
        %2968 = vmatpush.bf16.msra.mxu0 %v2957
        %2969 = vmatmul.bf16.gmra.mxu0 %v2710
        %v2970 = vpop.f32.mrf.mxu0
        %v2971 = vadd.f32 %v2917, %v2970
        %v2972 = vpop.f32.mrf.mxu0
        %2973 = vdwg.mxu0
        %v2978 = vunpack.c.l.b16 %v2666
        %v2979 = vunpack.c.l.b16 %v2667
        %v2980 = vunpack.c.l.b16 %v2668
        %v2981 = vunpack.c.l.b16 %v2669
        %v2982 = vpack.c.b16 %v2979, %v2978
        %v2983 = vpack.c.b16 %v2981, %v2980
        %2986 = vmatpush.bf16.msra.mxu0 0
        %2987 = vmatpush.bf16.msra.mxu0 0
        %2988 = vmatpush.bf16.msra.mxu0 0
        %2989 = vmatpush.bf16.msra.mxu0 0
        %2990 = vmatpush.bf16.msra.mxu0 0
        %2991 = vmatpush.bf16.msra.mxu0 0
        %2992 = vmatpush.bf16.msra.mxu0 %v2983
        %2993 = vmatpush.bf16.msra.mxu0 %v2982
        %2994 = vmatmul.bf16.gmra.mxu0 %v2710
        %v2995 = vpop.f32.mrf.mxu0
        %v2996 = vadd.f32 %v2918, %v2995
        %v2997 = vpop.f32.mrf.mxu0
        %2998 = vdwg.mxu0
        %v3003 = vunpack.c.l.b16 %v2670
        %v3004 = vunpack.c.l.b16 %v2671
        %v3005 = vunpack.c.l.b16 %v2672
        %v3006 = vunpack.c.l.b16 %v2673
        %v3007 = vpack.c.b16 %v3004, %v3003
        %v3008 = vpack.c.b16 %v3006, %v3005
        %3011 = vmatpush.bf16.msra.mxu0 0
        %3012 = vmatpush.bf16.msra.mxu0 0
        %3013 = vmatpush.bf16.msra.mxu0 0
        %3014 = vmatpush.bf16.msra.mxu0 0
        %3015 = vmatpush.bf16.msra.mxu0 0
        %3016 = vmatpush.bf16.msra.mxu0 0
        %3017 = vmatpush.bf16.msra.mxu0 %v3008
        %3018 = vmatpush.bf16.msra.mxu0 %v3007
        %3019 = vmatmul.bf16.gmra.mxu0 %v2710
        %v3020 = vpop.f32.mrf.mxu0
        %v3021 = vadd.f32 %v2919, %v3020
        %v3022 = vpop.f32.mrf.mxu0
        %3023 = vdwg.mxu0
        %v3024 = vpack.c.bf16 %v2722, %v2722
        %v3025 = vpack.c.bf16 %v2747, %v2747
        %v3026 = vpack.c.bf16 %v2772, %v2772
        %v3027 = vpack.c.bf16 %v2797, %v2797
        %v3028 = vpack.c.bf16 %v2834, %v2834
        %v3029 = vpack.c.bf16 %v2859, %v2859
        %v3030 = vpack.c.bf16 %v2884, %v2884
        %v3031 = vpack.c.bf16 %v2909, %v2909
        %v3033 = vsel %vm1262, %v3024, 0
        %v3036 = vsel %vm1262, %v3028, 0
        %3038 = vmatpush.bf16.xpose.msra.mxu0 0
        %3039 = vmatpush.bf16.xpose.msra.mxu0 0
        %3040 = vmatpush.bf16.xpose.msra.mxu0 0
        %3041 = vmatpush.bf16.xpose.msra.mxu0 0
        %3042 = vmatpush.bf16.xpose.msra.mxu0 0
        %3043 = vmatpush.bf16.xpose.msra.mxu0 0
        %3044 = vmatpush.bf16.xpose.msra.mxu0 0
        %3045 = vmatpush.bf16.xpose.msra.mxu0 %v3036
        %3046 = vmatmul.bf16.gmra.mxu0 %v3033
        %v3047 = vpop.f32.mrf.mxu0
        %v3048 = vadd.f32 0.0, %v3047
        %v3049 = vpop.f32.mrf.mxu0
        %3050 = vdwg.mxu0
        %v3052 = vsel %vm1262, %v3025, 0
        %v3055 = vsel %vm1262, %v3029, 0
        %3057 = vmatpush.bf16.xpose.msra.mxu0 0
        %3058 = vmatpush.bf16.xpose.msra.mxu0 0
        %3059 = vmatpush.bf16.xpose.msra.mxu0 0
        %3060 = vmatpush.bf16.xpose.msra.mxu0 0
        %3061 = vmatpush.bf16.xpose.msra.mxu0 0
        %3062 = vmatpush.bf16.xpose.msra.mxu0 0
        %3063 = vmatpush.bf16.xpose.msra.mxu0 0
        %3064 = vmatpush.bf16.xpose.msra.mxu0 %v3055
        %3065 = vmatmul.bf16.gmra.mxu0 %v3052
        %v3066 = vpop.f32.mrf.mxu0
        %v3067 = vadd.f32 0.0, %v3066
        %v3068 = vpop.f32.mrf.mxu0
        %3069 = vdwg.mxu0
        %v3071 = vsel %vm1262, %v3026, 0
        %v3074 = vsel %vm1262, %v3030, 0
        %3076 = vmatpush.bf16.xpose.msra.mxu0 0
        %3077 = vmatpush.bf16.xpose.msra.mxu0 0
        %3078 = vmatpush.bf16.xpose.msra.mxu0 0
        %3079 = vmatpush.bf16.xpose.msra.mxu0 0
        %3080 = vmatpush.bf16.xpose.msra.mxu0 0
        %3081 = vmatpush.bf16.xpose.msra.mxu0 0
        %3082 = vmatpush.bf16.xpose.msra.mxu0 0
        %3083 = vmatpush.bf16.xpose.msra.mxu0 %v3074
        %3084 = vmatmul.bf16.gmra.mxu0 %v3071
        %v3085 = vpop.f32.mrf.mxu0
        %v3086 = vadd.f32 0.0, %v3085
        %v3087 = vpop.f32.mrf.mxu0
        %3088 = vdwg.mxu0
        %v3090 = vsel %vm1262, %v3027, 0
        %v3093 = vsel %vm1262, %v3031, 0
        %3095 = vmatpush.bf16.xpose.msra.mxu0 0
        %3096 = vmatpush.bf16.xpose.msra.mxu0 0
        %3097 = vmatpush.bf16.xpose.msra.mxu0 0
        %3098 = vmatpush.bf16.xpose.msra.mxu0 0
        %3099 = vmatpush.bf16.xpose.msra.mxu0 0
        %3100 = vmatpush.bf16.xpose.msra.mxu0 0
        %3101 = vmatpush.bf16.xpose.msra.mxu0 0
        %3102 = vmatpush.bf16.xpose.msra.mxu0 %v3093
        %3103 = vmatmul.bf16.gmra.mxu0 %v3090
        %v3104 = vpop.f32.mrf.mxu0
        %v3105 = vadd.f32 0.0, %v3104
        %v3106 = vpop.f32.mrf.mxu0
        %3107 = vdwg.mxu0
        %v3108 = vmul.f32 %v3048, 0.35355338
        %v3109 = vmul.f32 %v3067, 0.35355338
        %v3110 = vmul.f32 %v3086, 0.35355338
        %v3111 = vmul.f32 %v3105, 0.35355338
        %v3112 = vsel %vm803, 1, 0
        %vm3113 = vcmp.eq.s32.totalorder %v3112, 1
        %v3114 = vsel %vm3113, %v3108, -1e+09
        %v3115 = vsel %vm3113, %v3109, -1e+09
        %v3116 = vsel %vm3113, %v3110, -1e+09
        %v3117 = vsel %vm3113, %v3111, -1e+09
        %v3118 = vsel %vm1262, %v3114, -inf
        %3119 = vmax.xlane.f32.xlu0 %v3118
        %v3120 = vpop.xlane.xlu0 %3119
        %v3121 = vsel %vm1262, %v3115, -inf
        %3122 = vmax.xlane.f32.xlu0 %v3121
        %v3123 = vpop.xlane.xlu0 %3122
        %v3124 = vsel %vm1262, %v3116, -inf
        %3125 = vmax.xlane.f32.xlu0 %v3124
        %v3126 = vpop.xlane.xlu0 %3125
        %v3127 = vsel %vm1262, %v3117, -inf
        %3128 = vmax.xlane.f32.xlu0 %v3127
        %v3129 = vpop.xlane.xlu0 %3128
        %v3130 = vsub.f32 %v3114, %v3120
        %v3131 = vsub.f32 %v3115, %v3123
        %v3132 = vsub.f32 %v3116, %v3126
        %v3133 = vsub.f32 %v3117, %v3129
        %v3134 = vmul.f32 %v3130, 1.442695
        %v3135 = vpow.pop %v3134
        %v3136 = vmul.f32 %v3131, 1.442695
        %v3137 = vpow.pop %v3136
        %v3138 = vmul.f32 %v3132, 1.442695
        %v3139 = vpow.pop %v3138
        %v3140 = vmul.f32 %v3133, 1.442695
        %v3141 = vpow.pop %v3140
        %v3142 = vsel %vm1262, %v3135, 0.0
        %3143 = vadd.xlane.f32.xlu0 %v3142
        %v3144 = vpop.xlane.xlu0 %3143
        %v3145 = vsel %vm1262, %v3137, 0.0
        %3146 = vadd.xlane.f32.xlu0 %v3145
        %v3147 = vpop.xlane.xlu0 %3146
        %v3148 = vsel %vm1262, %v3139, 0.0
        %3149 = vadd.xlane.f32.xlu0 %v3148
        %v3150 = vpop.xlane.xlu0 %3149
        %v3151 = vsel %vm1262, %v3141, 0.0
        %3152 = vadd.xlane.f32.xlu0 %v3151
        %v3153 = vpop.xlane.xlu0 %3152
        %v3154 = vrcp.pop %v3144
        %v3155 = vmul.f32 %v3144, %v3154
        %v3156 = vsub.f32 1.0, %v3155
        %v3157 = vmul.f32 %v3154, %v3156
        %v3158 = vadd.f32 %v3154, %v3157
        %vm3159 = vweird.f32 %v3144
        %vm3160 = vweird.f32 %v3154
        %vm3161 = vmor %vm3159, %vm3160
        %v3162 = vsel %vm3161, %v3154, %v3158
        %v3163 = vand.u32 2147483647, %v3144
        %vm3164 = vcmp.eq.f32.partialorder %v3163, 8.507059e+37
        %v3165 = vand.u32 %v3144, 2147483648
        %v3166 = vor.u32 1.1754944e-38, %v3165
        %v3167 = vsel %vm3164, %v3166, %v3162
        %v3168 = vmul.f32 %v3135, %v3167
        %v3169 = vrcp.pop %v3147
        %v3170 = vmul.f32 %v3147, %v3169
        %v3171 = vsub.f32 1.0, %v3170
        %v3172 = vmul.f32 %v3169, %v3171
        %v3173 = vadd.f32 %v3169, %v3172
        %vm3174 = vweird.f32 %v3147
        %vm3175 = vweird.f32 %v3169
        %vm3176 = vmor %vm3174, %vm3175
        %v3177 = vsel %vm3176, %v3169, %v3173
        %v3178 = vand.u32 2147483647, %v3147
        %vm3179 = vcmp.eq.f32.partialorder %v3178, 8.507059e+37
        %v3180 = vand.u32 %v3147, 2147483648
        %v3181 = vor.u32 1.1754944e-38, %v3180
        %v3182 = vsel %vm3179, %v3181, %v3177
        %v3183 = vmul.f32 %v3137, %v3182
        %v3184 = vrcp.pop %v3150
        %v3185 = vmul.f32 %v3150, %v3184
        %v3186 = vsub.f32 1.0, %v3185
        %v3187 = vmul.f32 %v3184, %v3186
        %v3188 = vadd.f32 %v3184, %v3187
        %vm3189 = vweird.f32 %v3150
        %vm3190 = vweird.f32 %v3184
        %vm3191 = vmor %vm3189, %vm3190
        %v3192 = vsel %vm3191, %v3184, %v3188
        %v3193 = vand.u32 2147483647, %v3150
        %vm3194 = vcmp.eq.f32.partialorder %v3193, 8.507059e+37
        %v3195 = vand.u32 %v3150, 2147483648
        %v3196 = vor.u32 1.1754944e-38, %v3195
        %v3197 = vsel %vm3194, %v3196, %v3192
        %v3198 = vmul.f32 %v3139, %v3197
        %v3199 = vrcp.pop %v3153
        %v3200 = vmul.f32 %v3153, %v3199
        %v3201 = vsub.f32 1.0, %v3200
        %v3202 = vmul.f32 %v3199, %v3201
        %v3203 = vadd.f32 %v3199, %v3202
        %vm3204 = vweird.f32 %v3153
        %vm3205 = vweird.f32 %v3199
        %vm3206 = vmor %vm3204, %vm3205
        %v3207 = vsel %vm3206, %v3199, %v3203
        %v3208 = vand.u32 2147483647, %v3153
        %vm3209 = vcmp.eq.f32.partialorder %v3208, 8.507059e+37
        %v3210 = vand.u32 %v3153, 2147483648
        %v3211 = vor.u32 1.1754944e-38, %v3210
        %v3212 = vsel %vm3209, %v3211, %v3207
        %v3213 = vmul.f32 %v3141, %v3212
        %v3214 = vpack.c.bf16 %v3168, %v3168
        %v3215 = vpack.c.bf16 %v3183, %v3183
        %v3216 = vpack.c.bf16 %v3198, %v3198
        %v3217 = vpack.c.bf16 %v3213, %v3213
        %v3218 = vpack.c.bf16 %v2946, %v2946
        %v3219 = vpack.c.bf16 %v2971, %v2971
        %v3220 = vpack.c.bf16 %v2996, %v2996
        %v3221 = vpack.c.bf16 %v3021, %v3021
        %v3223 = vsel %vm1262, %v3214, 0
        %v3226 = vsel %vm1457, %v3218, 0
        %3228 = vmatpush.bf16.msra.mxu0 0
        %3229 = vmatpush.bf16.msra.mxu0 0
        %3230 = vmatpush.bf16.msra.mxu0 0
        %3231 = vmatpush.bf16.msra.mxu0 0
        %3232 = vmatpush.bf16.msra.mxu0 0
        %3233 = vmatpush.bf16.msra.mxu0 0
        %3234 = vmatpush.bf16.msra.mxu0 0
        %3235 = vmatpush.bf16.msra.mxu0 %v3226
        %3236 = vmatmul.bf16.gmra.mxu0 %v3223
        %v3237 = vpop.f32.mrf.mxu0
        %v3238 = vadd.f32 0.0, %v3237
        %v3239 = vpop.f32.mrf.mxu0
        %3240 = vdwg.mxu0
        %v3242 = vsel %vm1262, %v3215, 0
        %v3245 = vsel %vm1457, %v3219, 0
        %3247 = vmatpush.bf16.msra.mxu0 0
        %3248 = vmatpush.bf16.msra.mxu0 0
        %3249 = vmatpush.bf16.msra.mxu0 0
        %3250 = vmatpush.bf16.msra.mxu0 0
        %3251 = vmatpush.bf16.msra.mxu0 0
        %3252 = vmatpush.bf16.msra.mxu0 0
        %3253 = vmatpush.bf16.msra.mxu0 0
        %3254 = vmatpush.bf16.msra.mxu0 %v3245
        %3255 = vmatmul.bf16.gmra.mxu0 %v3242
        %v3256 = vpop.f32.mrf.mxu0
        %v3257 = vadd.f32 0.0, %v3256
        %v3258 = vpop.f32.mrf.mxu0
        %3259 = vdwg.mxu0
        %v3261 = vsel %vm1262, %v3216, 0
        %v3264 = vsel %vm1457, %v3220, 0
        %3266 = vmatpush.bf16.msra.mxu0 0
        %3267 = vmatpush.bf16.msra.mxu0 0
        %3268 = vmatpush.bf16.msra.mxu0 0
        %3269 = vmatpush.bf16.msra.mxu0 0
        %3270 = vmatpush.bf16.msra.mxu0 0
        %3271 = vmatpush.bf16.msra.mxu0 0
        %3272 = vmatpush.bf16.msra.mxu0 0
        %3273 = vmatpush.bf16.msra.mxu0 %v3264
        %3274 = vmatmul.bf16.gmra.mxu0 %v3261
        %v3275 = vpop.f32.mrf.mxu0
        %v3276 = vadd.f32 0.0, %v3275
        %v3277 = vpop.f32.mrf.mxu0
        %3278 = vdwg.mxu0
        %v3280 = vsel %vm1262, %v3217, 0
        %v3283 = vsel %vm1457, %v3221, 0
        %3285 = vmatpush.bf16.msra.mxu0 0
        %3286 = vmatpush.bf16.msra.mxu0 0
        %3287 = vmatpush.bf16.msra.mxu0 0
        %3288 = vmatpush.bf16.msra.mxu0 0
        %3289 = vmatpush.bf16.msra.mxu0 0
        %3290 = vmatpush.bf16.msra.mxu0 0
        %3291 = vmatpush.bf16.msra.mxu0 0
        %3292 = vmatpush.bf16.msra.mxu0 %v3283
        %3293 = vmatmul.bf16.gmra.mxu0 %v3280
        %v3294 = vpop.f32.mrf.mxu0
        %v3295 = vadd.f32 0.0, %v3294
        %v3296 = vpop.f32.mrf.mxu0
        %3297 = vdwg.mxu0
        %v3298 = vpack.c.bf16 %v3238, %v3238
        %v3299 = vpack.c.bf16 %v3257, %v3257
        %v3300 = vpack.c.bf16 %v3276, %v3276
        %v3301 = vpack.c.bf16 %v3295, %v3295
        %v3303 = vsel %vm1262, %v3298, 0
        %v3306 = vsel %vm1457, %v2679, 0
        %3308 = vmatpush.bf16.msra.mxu0 0
        %3309 = vmatpush.bf16.msra.mxu0 0
        %3310 = vmatpush.bf16.msra.mxu0 0
        %3311 = vmatpush.bf16.msra.mxu0 0
        %3312 = vmatpush.bf16.msra.mxu0 0
        %3313 = vmatpush.bf16.msra.mxu0 0
        %3314 = vmatpush.bf16.msra.mxu0 0
        %3315 = vmatpush.bf16.msra.mxu0 %v3306
        %3316 = vmatmul.bf16.gmra.mxu0 %v3303
        %v3317 = vpop.f32.mrf.mxu0
        %v3318 = vadd.f32 0.0, %v3317
        %v3319 = vpop.f32.mrf.mxu0
        %3320 = vdwg.mxu0
        %v3322 = vsel %vm1262, %v3299, 0
        %v3325 = vsel %vm1457, %v2680, 0
        %3327 = vmatpush.bf16.msra.mxu0 0
        %3328 = vmatpush.bf16.msra.mxu0 0
        %3329 = vmatpush.bf16.msra.mxu0 0
        %3330 = vmatpush.bf16.msra.mxu0 0
        %3331 = vmatpush.bf16.msra.mxu0 0
        %3332 = vmatpush.bf16.msra.mxu0 0
        %3333 = vmatpush.bf16.msra.mxu0 0
        %3334 = vmatpush.bf16.msra.mxu0 %v3325
        %3335 = vmatmul.bf16.gmra.mxu0 %v3322
        %v3336 = vpop.f32.mrf.mxu0
        %v3337 = vadd.f32 0.0, %v3336
        %v3338 = vpop.f32.mrf.mxu0
        %3339 = vdwg.mxu0
        %v3341 = vsel %vm1262, %v3300, 0
        %v3344 = vsel %vm1457, %v2681, 0
        %3346 = vmatpush.bf16.msra.mxu0 0
        %3347 = vmatpush.bf16.msra.mxu0 0
        %3348 = vmatpush.bf16.msra.mxu0 0
        %3349 = vmatpush.bf16.msra.mxu0 0
        %3350 = vmatpush.bf16.msra.mxu0 0
        %3351 = vmatpush.bf16.msra.mxu0 0
        %3352 = vmatpush.bf16.msra.mxu0 0
        %3353 = vmatpush.bf16.msra.mxu0 %v3344
        %3354 = vmatmul.bf16.gmra.mxu0 %v3341
        %v3355 = vpop.f32.mrf.mxu0
        %v3356 = vadd.f32 0.0, %v3355
        %v3357 = vpop.f32.mrf.mxu0
        %3358 = vdwg.mxu0
        %v3360 = vsel %vm1262, %v3301, 0
        %v3363 = vsel %vm1457, %v2682, 0
        %3365 = vmatpush.bf16.msra.mxu0 0
        %3366 = vmatpush.bf16.msra.mxu0 0
        %3367 = vmatpush.bf16.msra.mxu0 0
        %3368 = vmatpush.bf16.msra.mxu0 0
        %3369 = vmatpush.bf16.msra.mxu0 0
        %3370 = vmatpush.bf16.msra.mxu0 0
        %3371 = vmatpush.bf16.msra.mxu0 0
        %3372 = vmatpush.bf16.msra.mxu0 %v3363
        %3373 = vmatmul.bf16.gmra.mxu0 %v3360
        %v3374 = vpop.f32.mrf.mxu0
        %v3375 = vadd.f32 0.0, %v3374
        %v3376 = vpop.f32.mrf.mxu0
        %3377 = vdwg.mxu0
        %v3378 = vsel %vm807, %v3318, 0.0
        %v3379 = vsel %vm807, %v3337, 0.0
        %v3380 = vadd.f32 %v3378, %v3379
        %v3381 = vsel %vm807, %v3356, 0.0
        %v3382 = vadd.f32 %v3380, %v3381
        %v3383 = vsel %vm807, %v3375, 0.0
        %v3384 = vadd.f32 %v3382, %v3383
        %v3386 = vperm.slane %v2683, 0
        %v3388 = vadd.f32 %v3384, %v3386
        %v3389 = vadd.f32 %v788, %v3388
        %s3390 = scalar_lea.vmem %s11, 2
        %v3391 = vld [vmem:[%s3390] sm:$0x1]
        %s3392 = scalar_lea.vmem %s11, 3
        %v3393 = vld [vmem:[%s3392] sm:$0x1]
        %v3394 = vsel %vm807, %v3389, 0.0
        %3395 = vadd.xlane.f32.xlu0 %v3394
        %v3396 = vpop.xlane.xlu0 %3395
        %v3397 = vmul.f32 %v3396, %v817
        %v3398 = vsub.f32 %v3389, %v3397
        %v3399 = vmul.f32 %v3398, %v3398
        %v3400 = vsel %vm807, %v3399, 0.0
        %3401 = vadd.xlane.f32.xlu0 %v3400
        %v3402 = vpop.xlane.xlu0 %3401
        %v3403 = vmul.f32 %v3402, %v817
        %v3404 = vadd.f32 %v3403, 1e-05
        %v3405 = vrsqrt.pop %v3404
        %v3406 = vmul.f32 %v3405, %v3404
        %v3407 = vmul.f32 %v3406, %v3405
        %v3408 = vmul.f32 0.5, %v3407
        %v3409 = vsub.f32 1.5, %v3408
        %v3410 = vmul.f32 %v3405, %v3409
        %vm3411 = vweird.f32 %v3404
        %vm3412 = vweird.f32 %v3405
        %vm3413 = vmor %vm3411, %vm3412
        %v3414 = vsel %vm3413, %v3405, %v3410
        %v3415 = vmul.f32 %v3398, %v3414
        %v3417 = vperm.slane %v3391, 0
        %v3419 = vmul.f32 %v3415, %v3417
        %v3421 = vperm.slane %v3393, 0
        %v3423 = vadd.f32 %v3419, %v3421
        %v3424 = vld [vmem:[%s16] sm:$0xf]
        %v3425 = vld [vmem:[%s16 + $0x4] sm:$0xf]
        %v3426 = vld [vmem:[%s16 + $0x8] sm:$0xf]
        %v3427 = vld [vmem:[%s16 + $0xc] sm:$0xf]
        %v3428 = vld [vmem:[%s16 + $0x10] sm:$0xf]
        %v3429 = vld [vmem:[%s16 + $0x14] sm:$0xf]
        %v3430 = vld [vmem:[%s16 + $0x18] sm:$0xf]
        %v3431 = vld [vmem:[%s16 + $0x1c] sm:$0xf]
        %v3432 = vld [vmem:[%s16 + $0x20] sm:$0xf]
        %v3433 = vld [vmem:[%s16 + $0x24] sm:$0xf]
        %v3434 = vld [vmem:[%s16 + $0x28] sm:$0xf]
        %v3435 = vld [vmem:[%s16 + $0x2c] sm:$0xf]
        %v3436 = vld [vmem:[%s16 + $0x30] sm:$0xf]
        %v3437 = vld [vmem:[%s16 + $0x34] sm:$0xf]
        %v3438 = vld [vmem:[%s16 + $0x38] sm:$0xf]
        %v3439 = vld [vmem:[%s16 + $0x3c] sm:$0xf]
        %v3440 = vld [vmem:[%s17] sm:$0x1]
        %v3441 = vld [vmem:[%s17 + $0x1] sm:$0x1]
        %v3442 = vld [vmem:[%s17 + $0x2] sm:$0x1]
        %v3443 = vld [vmem:[%s17 + $0x3] sm:$0x1]
        %s3444 = scalar_lea.vmem %s16, 64
        %v3445 = vld [vmem:[%s3444] sm:$0xf]
        %v3446 = vld [vmem:[%s3444 + $0x4] sm:$0xf]
        %v3447 = vld [vmem:[%s3444 + $0x8] sm:$0xf]
        %v3448 = vld [vmem:[%s3444 + $0xc] sm:$0xf]
        %v3449 = vld [vmem:[%s3444 + $0x10] sm:$0xf]
        %v3450 = vld [vmem:[%s3444 + $0x14] sm:$0xf]
        %v3451 = vld [vmem:[%s3444 + $0x18] sm:$0xf]
        %v3452 = vld [vmem:[%s3444 + $0x1c] sm:$0xf]
        %v3453 = vld [vmem:[%s3444 + $0x20] sm:$0xf]
        %v3454 = vld [vmem:[%s3444 + $0x24] sm:$0xf]
        %v3455 = vld [vmem:[%s3444 + $0x28] sm:$0xf]
        %v3456 = vld [vmem:[%s3444 + $0x2c] sm:$0xf]
        %v3457 = vld [vmem:[%s3444 + $0x30] sm:$0xf]
        %v3458 = vld [vmem:[%s3444 + $0x34] sm:$0xf]
        %v3459 = vld [vmem:[%s3444 + $0x38] sm:$0xf]
        %v3460 = vld [vmem:[%s3444 + $0x3c] sm:$0xf]
        %s3461 = scalar_lea.vmem %s17, 4
        %v3462 = vld [vmem:[%s3461] sm:$0x1]
        %v3463 = vld [vmem:[%s3461 + $0x1] sm:$0x1]
        %v3464 = vld [vmem:[%s3461 + $0x2] sm:$0x1]
        %v3465 = vld [vmem:[%s3461 + $0x3] sm:$0x1]
        %s3466 = scalar_lea.vmem %s16, 128
        %v3467 = vld [vmem:[%s3466] sm:$0xf]
        %v3468 = vld [vmem:[%s3466 + $0x4] sm:$0xf]
        %v3469 = vld [vmem:[%s3466 + $0x8] sm:$0xf]
        %v3470 = vld [vmem:[%s3466 + $0xc] sm:$0xf]
        %v3471 = vld [vmem:[%s3466 + $0x10] sm:$0xf]
        %v3472 = vld [vmem:[%s3466 + $0x14] sm:$0xf]
        %v3473 = vld [vmem:[%s3466 + $0x18] sm:$0xf]
        %v3474 = vld [vmem:[%s3466 + $0x1c] sm:$0xf]
        %v3475 = vld [vmem:[%s3466 + $0x20] sm:$0xf]
        %v3476 = vld [vmem:[%s3466 + $0x24] sm:$0xf]
        %v3477 = vld [vmem:[%s3466 + $0x28] sm:$0xf]
        %v3478 = vld [vmem:[%s3466 + $0x2c] sm:$0xf]
        %v3479 = vld [vmem:[%s3466 + $0x30] sm:$0xf]
        %v3480 = vld [vmem:[%s3466 + $0x34] sm:$0xf]
        %v3481 = vld [vmem:[%s3466 + $0x38] sm:$0xf]
        %v3482 = vld [vmem:[%s3466 + $0x3c] sm:$0xf]
        %s3483 = scalar_lea.vmem %s17, 8
        %v3484 = vld [vmem:[%s3483] sm:$0x1]
        %v3485 = vld [vmem:[%s3483 + $0x1] sm:$0x1]
        %v3486 = vld [vmem:[%s3483 + $0x2] sm:$0x1]
        %v3487 = vld [vmem:[%s3483 + $0x3] sm:$0x1]
        %v3488 = vld [vmem:[%s18] sm:$0xf]
        %v3489 = vld [vmem:[%s18 + $0x4] sm:$0xf]
        %v3490 = vld [vmem:[%s18 + $0x8] sm:$0xf]
        %v3491 = vld [vmem:[%s18 + $0xc] sm:$0xf]
        %v3492 = vld [vmem:[%s19] sm:$0x1]
        %v3493 = vpack.c.bf16 %v3423, %v3423
        %v3494 = vpack.c.bf16 %v2581, %v2581
        %v3499 = vperm.slane %v3440, 0
        %v3500 = vperm.slane %v3441, 0
        %v3501 = vperm.slane %v3442, 0
        %v3502 = vperm.slane %v3443, 0
        %v3511 = vunpack.c.l.b16 %v3424
        %v3512 = vunpack.c.l.b16 %v3425
        %v3513 = vunpack.c.l.b16 %v3426
        %v3514 = vunpack.c.l.b16 %v3427
        %v3515 = vpack.c.b16 %v3512, %v3511
        %v3516 = vpack.c.b16 %v3514, %v3513
        %v3520 = vsel %vm807, %v3493, 0
        %3522 = vmatpush.bf16.msra.mxu0 0
        %3523 = vmatpush.bf16.msra.mxu0 0
        %3524 = vmatpush.bf16.msra.mxu0 0
        %3525 = vmatpush.bf16.msra.mxu0 0
        %3526 = vmatpush.bf16.msra.mxu0 0
        %3527 = vmatpush.bf16.msra.mxu0 0
        %3528 = vmatpush.bf16.msra.mxu0 %v3516
        %3529 = vmatpush.bf16.msra.mxu0 %v3515
        %3530 = vmatmul.bf16.gmra.mxu0 %v3520
        %v3531 = vpop.f32.mrf.mxu0
        %v3532 = vadd.f32 %v3499, %v3531
        %v3533 = vpop.f32.mrf.mxu0
        %3534 = vdwg.mxu0
        %v3539 = vunpack.c.l.b16 %v3428
        %v3540 = vunpack.c.l.b16 %v3429
        %v3541 = vunpack.c.l.b16 %v3430
        %v3542 = vunpack.c.l.b16 %v3431
        %v3543 = vpack.c.b16 %v3540, %v3539
        %v3544 = vpack.c.b16 %v3542, %v3541
        %3547 = vmatpush.bf16.msra.mxu0 0
        %3548 = vmatpush.bf16.msra.mxu0 0
        %3549 = vmatpush.bf16.msra.mxu0 0
        %3550 = vmatpush.bf16.msra.mxu0 0
        %3551 = vmatpush.bf16.msra.mxu0 0
        %3552 = vmatpush.bf16.msra.mxu0 0
        %3553 = vmatpush.bf16.msra.mxu0 %v3544
        %3554 = vmatpush.bf16.msra.mxu0 %v3543
        %3555 = vmatmul.bf16.gmra.mxu0 %v3520
        %v3556 = vpop.f32.mrf.mxu0
        %v3557 = vadd.f32 %v3500, %v3556
        %v3558 = vpop.f32.mrf.mxu0
        %3559 = vdwg.mxu0
        %v3564 = vunpack.c.l.b16 %v3432
        %v3565 = vunpack.c.l.b16 %v3433
        %v3566 = vunpack.c.l.b16 %v3434
        %v3567 = vunpack.c.l.b16 %v3435
        %v3568 = vpack.c.b16 %v3565, %v3564
        %v3569 = vpack.c.b16 %v3567, %v3566
        %3572 = vmatpush.bf16.msra.mxu0 0
        %3573 = vmatpush.bf16.msra.mxu0 0
        %3574 = vmatpush.bf16.msra.mxu0 0
        %3575 = vmatpush.bf16.msra.mxu0 0
        %3576 = vmatpush.bf16.msra.mxu0 0
        %3577 = vmatpush.bf16.msra.mxu0 0
        %3578 = vmatpush.bf16.msra.mxu0 %v3569
        %3579 = vmatpush.bf16.msra.mxu0 %v3568
        %3580 = vmatmul.bf16.gmra.mxu0 %v3520
        %v3581 = vpop.f32.mrf.mxu0
        %v3582 = vadd.f32 %v3501, %v3581
        %v3583 = vpop.f32.mrf.mxu0
        %3584 = vdwg.mxu0
        %v3589 = vunpack.c.l.b16 %v3436
        %v3590 = vunpack.c.l.b16 %v3437
        %v3591 = vunpack.c.l.b16 %v3438
        %v3592 = vunpack.c.l.b16 %v3439
        %v3593 = vpack.c.b16 %v3590, %v3589
        %v3594 = vpack.c.b16 %v3592, %v3591
        %3597 = vmatpush.bf16.msra.mxu0 0
        %3598 = vmatpush.bf16.msra.mxu0 0
        %3599 = vmatpush.bf16.msra.mxu0 0
        %3600 = vmatpush.bf16.msra.mxu0 0
        %3601 = vmatpush.bf16.msra.mxu0 0
        %3602 = vmatpush.bf16.msra.mxu0 0
        %3603 = vmatpush.bf16.msra.mxu0 %v3594
        %3604 = vmatpush.bf16.msra.mxu0 %v3593
        %3605 = vmatmul.bf16.gmra.mxu0 %v3520
        %v3606 = vpop.f32.mrf.mxu0
        %v3607 = vadd.f32 %v3502, %v3606
        %v3608 = vpop.f32.mrf.mxu0
        %3609 = vdwg.mxu0
        %v3614 = vperm.slane %v3462, 0
        %v3615 = vperm.slane %v3463, 0
        %v3616 = vperm.slane %v3464, 0
        %v3617 = vperm.slane %v3465, 0
        %v3626 = vunpack.c.l.b16 %v3445
        %v3627 = vunpack.c.l.b16 %v3446
        %v3628 = vunpack.c.l.b16 %v3447
        %v3629 = vunpack.c.l.b16 %v3448
        %v3630 = vpack.c.b16 %v3627, %v3626
        %v3631 = vpack.c.b16 %v3629, %v3628
        %v3635 = vsel %vm807, %v3494, 0
        %3637 = vmatpush.bf16.msra.mxu0 0
        %3638 = vmatpush.bf16.msra.mxu0 0
        %3639 = vmatpush.bf16.msra.mxu0 0
        %3640 = vmatpush.bf16.msra.mxu0 0
        %3641 = vmatpush.bf16.msra.mxu0 0
        %3642 = vmatpush.bf16.msra.mxu0 0
        %3643 = vmatpush.bf16.msra.mxu0 %v3631
        %3644 = vmatpush.bf16.msra.mxu0 %v3630
        %3645 = vmatmul.bf16.gmra.mxu0 %v3635
        %v3646 = vpop.f32.mrf.mxu0
        %v3647 = vadd.f32 %v3614, %v3646
        %v3648 = vpop.f32.mrf.mxu0
        %3649 = vdwg.mxu0
        %v3654 = vunpack.c.l.b16 %v3449
        %v3655 = vunpack.c.l.b16 %v3450
        %v3656 = vunpack.c.l.b16 %v3451
        %v3657 = vunpack.c.l.b16 %v3452
        %v3658 = vpack.c.b16 %v3655, %v3654
        %v3659 = vpack.c.b16 %v3657, %v3656
        %3662 = vmatpush.bf16.msra.mxu0 0
        %3663 = vmatpush.bf16.msra.mxu0 0
        %3664 = vmatpush.bf16.msra.mxu0 0
        %3665 = vmatpush.bf16.msra.mxu0 0
        %3666 = vmatpush.bf16.msra.mxu0 0
        %3667 = vmatpush.bf16.msra.mxu0 0
        %3668 = vmatpush.bf16.msra.mxu0 %v3659
        %3669 = vmatpush.bf16.msra.mxu0 %v3658
        %3670 = vmatmul.bf16.gmra.mxu0 %v3635
        %v3671 = vpop.f32.mrf.mxu0
        %v3672 = vadd.f32 %v3615, %v3671
        %v3673 = vpop.f32.mrf.mxu0
        %3674 = vdwg.mxu0
        %v3679 = vunpack.c.l.b16 %v3453
        %v3680 = vunpack.c.l.b16 %v3454
        %v3681 = vunpack.c.l.b16 %v3455
        %v3682 = vunpack.c.l.b16 %v3456
        %v3683 = vpack.c.b16 %v3680, %v3679
        %v3684 = vpack.c.b16 %v3682, %v3681
        %3687 = vmatpush.bf16.msra.mxu0 0
        %3688 = vmatpush.bf16.msra.mxu0 0
        %3689 = vmatpush.bf16.msra.mxu0 0
        %3690 = vmatpush.bf16.msra.mxu0 0
        %3691 = vmatpush.bf16.msra.mxu0 0
        %3692 = vmatpush.bf16.msra.mxu0 0
        %3693 = vmatpush.bf16.msra.mxu0 %v3684
        %3694 = vmatpush.bf16.msra.mxu0 %v3683
        %3695 = vmatmul.bf16.gmra.mxu0 %v3635
        %v3696 = vpop.f32.mrf.mxu0
        %v3697 = vadd.f32 %v3616, %v3696
        %v3698 = vpop.f32.mrf.mxu0
        %3699 = vdwg.mxu0
        %v3704 = vunpack.c.l.b16 %v3457
        %v3705 = vunpack.c.l.b16 %v3458
        %v3706 = vunpack.c.l.b16 %v3459
        %v3707 = vunpack.c.l.b16 %v3460
        %v3708 = vpack.c.b16 %v3705, %v3704
        %v3709 = vpack.c.b16 %v3707, %v3706
        %3712 = vmatpush.bf16.msra.mxu0 0
        %3713 = vmatpush.bf16.msra.mxu0 0
        %3714 = vmatpush.bf16.msra.mxu0 0
        %3715 = vmatpush.bf16.msra.mxu0 0
        %3716 = vmatpush.bf16.msra.mxu0 0
        %3717 = vmatpush.bf16.msra.mxu0 0
        %3718 = vmatpush.bf16.msra.mxu0 %v3709
        %3719 = vmatpush.bf16.msra.mxu0 %v3708
        %3720 = vmatmul.bf16.gmra.mxu0 %v3635
        %v3721 = vpop.f32.mrf.mxu0
        %v3722 = vadd.f32 %v3617, %v3721
        %v3723 = vpop.f32.mrf.mxu0
        %3724 = vdwg.mxu0
        %v3729 = vperm.slane %v3484, 0
        %v3730 = vperm.slane %v3485, 0
        %v3731 = vperm.slane %v3486, 0
        %v3732 = vperm.slane %v3487, 0
        %v3741 = vunpack.c.l.b16 %v3467
        %v3742 = vunpack.c.l.b16 %v3468
        %v3743 = vunpack.c.l.b16 %v3469
        %v3744 = vunpack.c.l.b16 %v3470
        %v3745 = vpack.c.b16 %v3742, %v3741
        %v3746 = vpack.c.b16 %v3744, %v3743
        %3749 = vmatpush.bf16.msra.mxu0 0
        %3750 = vmatpush.bf16.msra.mxu0 0
        %3751 = vmatpush.bf16.msra.mxu0 0
        %3752 = vmatpush.bf16.msra.mxu0 0
        %3753 = vmatpush.bf16.msra.mxu0 0
        %3754 = vmatpush.bf16.msra.mxu0 0
        %3755 = vmatpush.bf16.msra.mxu0 %v3746
        %3756 = vmatpush.bf16.msra.mxu0 %v3745
        %3757 = vmatmul.bf16.gmra.mxu0 %v3635
        %v3758 = vpop.f32.mrf.mxu0
        %v3759 = vadd.f32 %v3729, %v3758
        %v3760 = vpop.f32.mrf.mxu0
        %3761 = vdwg.mxu0
        %v3766 = vunpack.c.l.b16 %v3471
        %v3767 = vunpack.c.l.b16 %v3472
        %v3768 = vunpack.c.l.b16 %v3473
        %v3769 = vunpack.c.l.b16 %v3474
        %v3770 = vpack.c.b16 %v3767, %v3766
        %v3771 = vpack.c.b16 %v3769, %v3768
        %3774 = vmatpush.bf16.msra.mxu0 0
        %3775 = vmatpush.bf16.msra.mxu0 0
        %3776 = vmatpush.bf16.msra.mxu0 0
        %3777 = vmatpush.bf16.msra.mxu0 0
        %3778 = vmatpush.bf16.msra.mxu0 0
        %3779 = vmatpush.bf16.msra.mxu0 0
        %3780 = vmatpush.bf16.msra.mxu0 %v3771
        %3781 = vmatpush.bf16.msra.mxu0 %v3770
        %3782 = vmatmul.bf16.gmra.mxu0 %v3635
        %v3783 = vpop.f32.mrf.mxu0
        %v3784 = vadd.f32 %v3730, %v3783
        %v3785 = vpop.f32.mrf.mxu0
        %3786 = vdwg.mxu0
        %v3791 = vunpack.c.l.b16 %v3475
        %v3792 = vunpack.c.l.b16 %v3476
        %v3793 = vunpack.c.l.b16 %v3477
        %v3794 = vunpack.c.l.b16 %v3478
        %v3795 = vpack.c.b16 %v3792, %v3791
        %v3796 = vpack.c.b16 %v3794, %v3793
        %3799 = vmatpush.bf16.msra.mxu0 0
        %3800 = vmatpush.bf16.msra.mxu0 0
        %3801 = vmatpush.bf16.msra.mxu0 0
        %3802 = vmatpush.bf16.msra.mxu0 0
        %3803 = vmatpush.bf16.msra.mxu0 0
        %3804 = vmatpush.bf16.msra.mxu0 0
        %3805 = vmatpush.bf16.msra.mxu0 %v3796
        %3806 = vmatpush.bf16.msra.mxu0 %v3795
        %3807 = vmatmul.bf16.gmra.mxu0 %v3635
        %v3808 = vpop.f32.mrf.mxu0
        %v3809 = vadd.f32 %v3731, %v3808
        %v3810 = vpop.f32.mrf.mxu0
        %3811 = vdwg.mxu0
        %v3816 = vunpack.c.l.b16 %v3479
        %v3817 = vunpack.c.l.b16 %v3480
        %v3818 = vunpack.c.l.b16 %v3481
        %v3819 = vunpack.c.l.b16 %v3482
        %v3820 = vpack.c.b16 %v3817, %v3816
        %v3821 = vpack.c.b16 %v3819, %v3818
        %3824 = vmatpush.bf16.msra.mxu0 0
        %3825 = vmatpush.bf16.msra.mxu0 0
        %3826 = vmatpush.bf16.msra.mxu0 0
        %3827 = vmatpush.bf16.msra.mxu0 0
        %3828 = vmatpush.bf16.msra.mxu0 0
        %3829 = vmatpush.bf16.msra.mxu0 0
        %3830 = vmatpush.bf16.msra.mxu0 %v3821
        %3831 = vmatpush.bf16.msra.mxu0 %v3820
        %3832 = vmatmul.bf16.gmra.mxu0 %v3635
        %v3833 = vpop.f32.mrf.mxu0
        %v3834 = vadd.f32 %v3732, %v3833
        %v3835 = vpop.f32.mrf.mxu0
        %3836 = vdwg.mxu0
        %v3837 = vpack.c.bf16 %v3532, %v3532
        %v3838 = vpack.c.bf16 %v3557, %v3557
        %v3839 = vpack.c.bf16 %v3582, %v3582
        %v3840 = vpack.c.bf16 %v3607, %v3607
        %v3841 = vpack.c.bf16 %v3647, %v3647
        %v3842 = vpack.c.bf16 %v3672, %v3672
        %v3843 = vpack.c.bf16 %v3697, %v3697
        %v3844 = vpack.c.bf16 %v3722, %v3722
        %v3846 = vsel %vm1262, %v3837, 0
        %v3849 = vsel %vm1262, %v3841, 0
        %3851 = vmatpush.bf16.xpose.msra.mxu0 0
        %3852 = vmatpush.bf16.xpose.msra.mxu0 0
        %3853 = vmatpush.bf16.xpose.msra.mxu0 0
        %3854 = vmatpush.bf16.xpose.msra.mxu0 0
        %3855 = vmatpush.bf16.xpose.msra.mxu0 0
        %3856 = vmatpush.bf16.xpose.msra.mxu0 0
        %3857 = vmatpush.bf16.xpose.msra.mxu0 0
        %3858 = vmatpush.bf16.xpose.msra.mxu0 %v3849
        %3859 = vmatmul.bf16.gmra.mxu0 %v3846
        %v3860 = vpop.f32.mrf.mxu0
        %v3861 = vadd.f32 0.0, %v3860
        %v3862 = vpop.f32.mrf.mxu0
        %3863 = vdwg.mxu0
        %v3865 = vsel %vm1262, %v3838, 0
        %v3868 = vsel %vm1262, %v3842, 0
        %3870 = vmatpush.bf16.xpose.msra.mxu0 0
        %3871 = vmatpush.bf16.xpose.msra.mxu0 0
        %3872 = vmatpush.bf16.xpose.msra.mxu0 0
        %3873 = vmatpush.bf16.xpose.msra.mxu0 0
        %3874 = vmatpush.bf16.xpose.msra.mxu0 0
        %3875 = vmatpush.bf16.xpose.msra.mxu0 0
        %3876 = vmatpush.bf16.xpose.msra.mxu0 0
        %3877 = vmatpush.bf16.xpose.msra.mxu0 %v3868
        %3878 = vmatmul.bf16.gmra.mxu0 %v3865
        %v3879 = vpop.f32.mrf.mxu0
        %v3880 = vadd.f32 0.0, %v3879
        %v3881 = vpop.f32.mrf.mxu0
        %3882 = vdwg.mxu0
        %v3884 = vsel %vm1262, %v3839, 0
        %v3887 = vsel %vm1262, %v3843, 0
        %3889 = vmatpush.bf16.xpose.msra.mxu0 0
        %3890 = vmatpush.bf16.xpose.msra.mxu0 0
        %3891 = vmatpush.bf16.xpose.msra.mxu0 0
        %3892 = vmatpush.bf16.xpose.msra.mxu0 0
        %3893 = vmatpush.bf16.xpose.msra.mxu0 0
        %3894 = vmatpush.bf16.xpose.msra.mxu0 0
        %3895 = vmatpush.bf16.xpose.msra.mxu0 0
        %3896 = vmatpush.bf16.xpose.msra.mxu0 %v3887
        %3897 = vmatmul.bf16.gmra.mxu0 %v3884
        %v3898 = vpop.f32.mrf.mxu0
        %v3899 = vadd.f32 0.0, %v3898
        %v3900 = vpop.f32.mrf.mxu0
        %3901 = vdwg.mxu0
        %v3903 = vsel %vm1262, %v3840, 0
        %v3906 = vsel %vm1262, %v3844, 0
        %3908 = vmatpush.bf16.xpose.msra.mxu0 0
        %3909 = vmatpush.bf16.xpose.msra.mxu0 0
        %3910 = vmatpush.bf16.xpose.msra.mxu0 0
        %3911 = vmatpush.bf16.xpose.msra.mxu0 0
        %3912 = vmatpush.bf16.xpose.msra.mxu0 0
        %3913 = vmatpush.bf16.xpose.msra.mxu0 0
        %3914 = vmatpush.bf16.xpose.msra.mxu0 0
        %3915 = vmatpush.bf16.xpose.msra.mxu0 %v3906
        %3916 = vmatmul.bf16.gmra.mxu0 %v3903
        %v3917 = vpop.f32.mrf.mxu0
        %v3918 = vadd.f32 0.0, %v3917
        %v3919 = vpop.f32.mrf.mxu0
        %3920 = vdwg.mxu0
        %v3921 = vmul.f32 %v3861, 0.35355338
        %v3922 = vmul.f32 %v3880, 0.35355338
        %v3923 = vmul.f32 %v3899, 0.35355338
        %v3924 = vmul.f32 %v3918, 0.35355338
        %v3925 = vsel %vm1345, %v3921, -1e+09
        %v3926 = vsel %vm1345, %v3922, -1e+09
        %v3927 = vsel %vm1345, %v3923, -1e+09
        %v3928 = vsel %vm1345, %v3924, -1e+09
        %v3929 = vsel %vm1262, %v3925, -inf
        %3930 = vmax.xlane.f32.xlu0 %v3929
        %v3931 = vpop.xlane.xlu0 %3930
        %v3932 = vsel %vm1262, %v3926, -inf
        %3933 = vmax.xlane.f32.xlu0 %v3932
        %v3934 = vpop.xlane.xlu0 %3933
        %v3935 = vsel %vm1262, %v3927, -inf
        %3936 = vmax.xlane.f32.xlu0 %v3935
        %v3937 = vpop.xlane.xlu0 %3936
        %v3938 = vsel %vm1262, %v3928, -inf
        %3939 = vmax.xlane.f32.xlu0 %v3938
        %v3940 = vpop.xlane.xlu0 %3939
        %v3941 = vsub.f32 %v3925, %v3931
        %v3942 = vsub.f32 %v3926, %v3934
        %v3943 = vsub.f32 %v3927, %v3937
        %v3944 = vsub.f32 %v3928, %v3940
        %v3945 = vmul.f32 %v3941, 1.442695
        %v3946 = vpow.pop %v3945
        %v3947 = vmul.f32 %v3942, 1.442695
        %v3948 = vpow.pop %v3947
        %v3949 = vmul.f32 %v3943, 1.442695
        %v3950 = vpow.pop %v3949
        %v3951 = vmul.f32 %v3944, 1.442695
        %v3952 = vpow.pop %v3951
        %v3953 = vsel %vm1262, %v3946, 0.0
        %3954 = vadd.xlane.f32.xlu0 %v3953
        %v3955 = vpop.xlane.xlu0 %3954
        %v3956 = vsel %vm1262, %v3948, 0.0
        %3957 = vadd.xlane.f32.xlu0 %v3956
        %v3958 = vpop.xlane.xlu0 %3957
        %v3959 = vsel %vm1262, %v3950, 0.0
        %3960 = vadd.xlane.f32.xlu0 %v3959
        %v3961 = vpop.xlane.xlu0 %3960
        %v3962 = vsel %vm1262, %v3952, 0.0
        %3963 = vadd.xlane.f32.xlu0 %v3962
        %v3964 = vpop.xlane.xlu0 %3963
        %v3965 = vrcp.pop %v3955
        %v3966 = vmul.f32 %v3955, %v3965
        %v3967 = vsub.f32 1.0, %v3966
        %v3968 = vmul.f32 %v3965, %v3967
        %v3969 = vadd.f32 %v3965, %v3968
        %vm3970 = vweird.f32 %v3955
        %vm3971 = vweird.f32 %v3965
        %vm3972 = vmor %vm3970, %vm3971
        %v3973 = vsel %vm3972, %v3965, %v3969
        %v3974 = vand.u32 2147483647, %v3955
        %vm3975 = vcmp.eq.f32.partialorder %v3974, 8.507059e+37
        %v3976 = vand.u32 %v3955, 2147483648
        %v3977 = vor.u32 1.1754944e-38, %v3976
        %v3978 = vsel %vm3975, %v3977, %v3973
        %v3979 = vmul.f32 %v3946, %v3978
        %v3980 = vrcp.pop %v3958
        %v3981 = vmul.f32 %v3958, %v3980
        %v3982 = vsub.f32 1.0, %v3981
        %v3983 = vmul.f32 %v3980, %v3982
        %v3984 = vadd.f32 %v3980, %v3983
        %vm3985 = vweird.f32 %v3958
        %vm3986 = vweird.f32 %v3980
        %vm3987 = vmor %vm3985, %vm3986
        %v3988 = vsel %vm3987, %v3980, %v3984
        %v3989 = vand.u32 2147483647, %v3958
        %vm3990 = vcmp.eq.f32.partialorder %v3989, 8.507059e+37
        %v3991 = vand.u32 %v3958, 2147483648
        %v3992 = vor.u32 1.1754944e-38, %v3991
        %v3993 = vsel %vm3990, %v3992, %v3988
        %v3994 = vmul.f32 %v3948, %v3993
        %v3995 = vrcp.pop %v3961
        %v3996 = vmul.f32 %v3961, %v3995
        %v3997 = vsub.f32 1.0, %v3996
        %v3998 = vmul.f32 %v3995, %v3997
        %v3999 = vadd.f32 %v3995, %v3998
        %vm4000 = vweird.f32 %v3961
        %vm4001 = vweird.f32 %v3995
        %vm4002 = vmor %vm4000, %vm4001
        %v4003 = vsel %vm4002, %v3995, %v3999
        %v4004 = vand.u32 2147483647, %v3961
        %vm4005 = vcmp.eq.f32.partialorder %v4004, 8.507059e+37
        %v4006 = vand.u32 %v3961, 2147483648
        %v4007 = vor.u32 1.1754944e-38, %v4006
        %v4008 = vsel %vm4005, %v4007, %v4003
        %v4009 = vmul.f32 %v3950, %v4008
        %v4010 = vrcp.pop %v3964
        %v4011 = vmul.f32 %v3964, %v4010
        %v4012 = vsub.f32 1.0, %v4011
        %v4013 = vmul.f32 %v4010, %v4012
        %v4014 = vadd.f32 %v4010, %v4013
        %vm4015 = vweird.f32 %v3964
        %vm4016 = vweird.f32 %v4010
        %vm4017 = vmor %vm4015, %vm4016
        %v4018 = vsel %vm4017, %v4010, %v4014
        %v4019 = vand.u32 2147483647, %v3964
        %vm4020 = vcmp.eq.f32.partialorder %v4019, 8.507059e+37
        %v4021 = vand.u32 %v3964, 2147483648
        %v4022 = vor.u32 1.1754944e-38, %v4021
        %v4023 = vsel %vm4020, %v4022, %v4018
        %v4024 = vmul.f32 %v3952, %v4023
        %v4025 = vpack.c.bf16 %v3979, %v3979
        %v4026 = vpack.c.bf16 %v3994, %v3994
        %v4027 = vpack.c.bf16 %v4009, %v4009
        %v4028 = vpack.c.bf16 %v4024, %v4024
        %v4029 = vpack.c.bf16 %v3759, %v3759
        %v4030 = vpack.c.bf16 %v3784, %v3784
        %v4031 = vpack.c.bf16 %v3809, %v3809
        %v4032 = vpack.c.bf16 %v3834, %v3834
        %v4034 = vsel %vm1262, %v4025, 0
        %v4037 = vsel %vm1457, %v4029, 0
        %4039 = vmatpush.bf16.msra.mxu0 0
        %4040 = vmatpush.bf16.msra.mxu0 0
        %4041 = vmatpush.bf16.msra.mxu0 0
        %4042 = vmatpush.bf16.msra.mxu0 0
        %4043 = vmatpush.bf16.msra.mxu0 0
        %4044 = vmatpush.bf16.msra.mxu0 0
        %4045 = vmatpush.bf16.msra.mxu0 0
        %4046 = vmatpush.bf16.msra.mxu0 %v4037
        %4047 = vmatmul.bf16.gmra.mxu0 %v4034
        %v4048 = vpop.f32.mrf.mxu0
        %v4049 = vadd.f32 0.0, %v4048
        %v4050 = vpop.f32.mrf.mxu0
        %4051 = vdwg.mxu0
        %v4053 = vsel %vm1262, %v4026, 0
        %v4056 = vsel %vm1457, %v4030, 0
        %4058 = vmatpush.bf16.msra.mxu0 0
        %4059 = vmatpush.bf16.msra.mxu0 0
        %4060 = vmatpush.bf16.msra.mxu0 0
        %4061 = vmatpush.bf16.msra.mxu0 0
        %4062 = vmatpush.bf16.msra.mxu0 0
        %4063 = vmatpush.bf16.msra.mxu0 0
        %4064 = vmatpush.bf16.msra.mxu0 0
        %4065 = vmatpush.bf16.msra.mxu0 %v4056
        %4066 = vmatmul.bf16.gmra.mxu0 %v4053
        %v4067 = vpop.f32.mrf.mxu0
        %v4068 = vadd.f32 0.0, %v4067
        %v4069 = vpop.f32.mrf.mxu0
        %4070 = vdwg.mxu0
        %v4072 = vsel %vm1262, %v4027, 0
        %v4075 = vsel %vm1457, %v4031, 0
        %4077 = vmatpush.bf16.msra.mxu0 0
        %4078 = vmatpush.bf16.msra.mxu0 0
        %4079 = vmatpush.bf16.msra.mxu0 0
        %4080 = vmatpush.bf16.msra.mxu0 0
        %4081 = vmatpush.bf16.msra.mxu0 0
        %4082 = vmatpush.bf16.msra.mxu0 0
        %4083 = vmatpush.bf16.msra.mxu0 0
        %4084 = vmatpush.bf16.msra.mxu0 %v4075
        %4085 = vmatmul.bf16.gmra.mxu0 %v4072
        %v4086 = vpop.f32.mrf.mxu0
        %v4087 = vadd.f32 0.0, %v4086
        %v4088 = vpop.f32.mrf.mxu0
        %4089 = vdwg.mxu0
        %v4091 = vsel %vm1262, %v4028, 0
        %v4094 = vsel %vm1457, %v4032, 0
        %4096 = vmatpush.bf16.msra.mxu0 0
        %4097 = vmatpush.bf16.msra.mxu0 0
        %4098 = vmatpush.bf16.msra.mxu0 0
        %4099 = vmatpush.bf16.msra.mxu0 0
        %4100 = vmatpush.bf16.msra.mxu0 0
        %4101 = vmatpush.bf16.msra.mxu0 0
        %4102 = vmatpush.bf16.msra.mxu0 0
        %4103 = vmatpush.bf16.msra.mxu0 %v4094
        %4104 = vmatmul.bf16.gmra.mxu0 %v4091
        %v4105 = vpop.f32.mrf.mxu0
        %v4106 = vadd.f32 0.0, %v4105
        %v4107 = vpop.f32.mrf.mxu0
        %4108 = vdwg.mxu0
        %v4109 = vpack.c.bf16 %v4049, %v4049
        %v4110 = vpack.c.bf16 %v4068, %v4068
        %v4111 = vpack.c.bf16 %v4087, %v4087
        %v4112 = vpack.c.bf16 %v4106, %v4106
        %v4114 = vsel %vm1262, %v4109, 0
        %v4117 = vsel %vm1457, %v3488, 0
        %4119 = vmatpush.bf16.msra.mxu0 0
        %4120 = vmatpush.bf16.msra.mxu0 0
        %4121 = vmatpush.bf16.msra.mxu0 0
        %4122 = vmatpush.bf16.msra.mxu0 0
        %4123 = vmatpush.bf16.msra.mxu0 0
        %4124 = vmatpush.bf16.msra.mxu0 0
        %4125 = vmatpush.bf16.msra.mxu0 0
        %4126 = vmatpush.bf16.msra.mxu0 %v4117
        %4127 = vmatmul.bf16.gmra.mxu0 %v4114
        %v4128 = vpop.f32.mrf.mxu0
        %v4129 = vadd.f32 0.0, %v4128
        %v4130 = vpop.f32.mrf.mxu0
        %4131 = vdwg.mxu0
        %v4133 = vsel %vm1262, %v4110, 0
        %v4136 = vsel %vm1457, %v3489, 0
        %4138 = vmatpush.bf16.msra.mxu0 0
        %4139 = vmatpush.bf16.msra.mxu0 0
        %4140 = vmatpush.bf16.msra.mxu0 0
        %4141 = vmatpush.bf16.msra.mxu0 0
        %4142 = vmatpush.bf16.msra.mxu0 0
        %4143 = vmatpush.bf16.msra.mxu0 0
        %4144 = vmatpush.bf16.msra.mxu0 0
        %4145 = vmatpush.bf16.msra.mxu0 %v4136
        %4146 = vmatmul.bf16.gmra.mxu0 %v4133
        %v4147 = vpop.f32.mrf.mxu0
        %v4148 = vadd.f32 0.0, %v4147
        %v4149 = vpop.f32.mrf.mxu0
        %4150 = vdwg.mxu0
        %v4152 = vsel %vm1262, %v4111, 0
        %v4155 = vsel %vm1457, %v3490, 0
        %4157 = vmatpush.bf16.msra.mxu0 0
        %4158 = vmatpush.bf16.msra.mxu0 0
        %4159 = vmatpush.bf16.msra.mxu0 0
        %4160 = vmatpush.bf16.msra.mxu0 0
        %4161 = vmatpush.bf16.msra.mxu0 0
        %4162 = vmatpush.bf16.msra.mxu0 0
        %4163 = vmatpush.bf16.msra.mxu0 0
        %4164 = vmatpush.bf16.msra.mxu0 %v4155
        %4165 = vmatmul.bf16.gmra.mxu0 %v4152
        %v4166 = vpop.f32.mrf.mxu0
        %v4167 = vadd.f32 0.0, %v4166
        %v4168 = vpop.f32.mrf.mxu0
        %4169 = vdwg.mxu0
        %v4171 = vsel %vm1262, %v4112, 0
        %v4174 = vsel %vm1457, %v3491, 0
        %4176 = vmatpush.bf16.msra.mxu0 0
        %4177 = vmatpush.bf16.msra.mxu0 0
        %4178 = vmatpush.bf16.msra.mxu0 0
        %4179 = vmatpush.bf16.msra.mxu0 0
        %4180 = vmatpush.bf16.msra.mxu0 0
        %4181 = vmatpush.bf16.msra.mxu0 0
        %4182 = vmatpush.bf16.msra.mxu0 0
        %4183 = vmatpush.bf16.msra.mxu0 %v4174
        %4184 = vmatmul.bf16.gmra.mxu0 %v4171
        %v4185 = vpop.f32.mrf.mxu0
        %v4186 = vadd.f32 0.0, %v4185
        %v4187 = vpop.f32.mrf.mxu0
        %4188 = vdwg.mxu0
        %v4189 = vsel %vm807, %v4129, 0.0
        %v4190 = vsel %vm807, %v4148, 0.0
        %v4191 = vadd.f32 %v4189, %v4190
        %v4192 = vsel %vm807, %v4167, 0.0
        %v4193 = vadd.f32 %v4191, %v4192
        %v4194 = vsel %vm807, %v4186, 0.0
        %v4195 = vadd.f32 %v4193, %v4194
        %v4197 = vperm.slane %v3492, 0
        %v4199 = vadd.f32 %v4195, %v4197
        %v4200 = vadd.f32 %v3389, %v4199
        %s4201 = scalar_lea.vmem %s11, 4
        %v4202 = vld [vmem:[%s4201] sm:$0x1]
        %s4203 = scalar_lea.vmem %s11, 5
        %v4204 = vld [vmem:[%s4203] sm:$0x1]
        %v4205 = vsel %vm807, %v4200, 0.0
        %4206 = vadd.xlane.f32.xlu0 %v4205
        %v4207 = vpop.xlane.xlu0 %4206
        %v4208 = vmul.f32 %v4207, %v817
        %v4209 = vsub.f32 %v4200, %v4208
        %v4210 = vmul.f32 %v4209, %v4209
        %v4211 = vsel %vm807, %v4210, 0.0
        %4212 = vadd.xlane.f32.xlu0 %v4211
        %v4213 = vpop.xlane.xlu0 %4212
        %v4214 = vmul.f32 %v4213, %v817
        %v4215 = vadd.f32 %v4214, 1e-05
        %v4216 = vrsqrt.pop %v4215
        %v4217 = vmul.f32 %v4216, %v4215
        %v4218 = vmul.f32 %v4217, %v4216
        %v4219 = vmul.f32 0.5, %v4218
        %v4220 = vsub.f32 1.5, %v4219
        %v4221 = vmul.f32 %v4216, %v4220
        %vm4222 = vweird.f32 %v4215
        %vm4223 = vweird.f32 %v4216
        %vm4224 = vmor %vm4222, %vm4223
        %v4225 = vsel %vm4224, %v4216, %v4221
        %v4226 = vmul.f32 %v4209, %v4225
        %v4228 = vperm.slane %v4202, 0
        %v4230 = vmul.f32 %v4226, %v4228
        %v4232 = vperm.slane %v4204, 0
        %v4234 = vadd.f32 %v4230, %v4232
        %v4235 = vld [vmem:[%s20] sm:$0xf]
        %v4236 = vld [vmem:[%s20 + $0x4] sm:$0xf]
        %v4237 = vld [vmem:[%s20 + $0x8] sm:$0xf]
        %v4238 = vld [vmem:[%s20 + $0xc] sm:$0xf]
        %v4239 = vpack.c.bf16 %v4234, %v4234
        %v4240 = vld [vmem:[%s21] sm:$0x1]
        %v4242 = vperm.slane %v4240, 0
        %v4248 = vunpack.c.l.b16 %v4235
        %v4249 = vunpack.c.l.b16 %v4236
        %v4250 = vunpack.c.l.b16 %v4237
        %v4251 = vunpack.c.l.b16 %v4238
        %v4252 = vpack.c.b16 %v4249, %v4248
        %v4253 = vpack.c.b16 %v4251, %v4250
        %v4257 = vsel %vm807, %v4239, 0
        %4259 = vmatpush.bf16.msra.mxu0 0
        %4260 = vmatpush.bf16.msra.mxu0 0
        %4261 = vmatpush.bf16.msra.mxu0 0
        %4262 = vmatpush.bf16.msra.mxu0 0
        %4263 = vmatpush.bf16.msra.mxu0 0
        %4264 = vmatpush.bf16.msra.mxu0 0
        %4265 = vmatpush.bf16.msra.mxu0 %v4253
        %4266 = vmatpush.bf16.msra.mxu0 %v4252
        %4267 = vmatmul.bf16.gmra.mxu0 %v4257
        %v4268 = vpop.f32.mrf.mxu0
        %v4269 = vadd.f32 %v4242, %v4268
        %v4270 = vpop.f32.mrf.mxu0
        %4271 = vdwg.mxu0
        %v4272 = vmax.f32 %v4269, 0.0
        %v4273 = vadd.f32 %v4200, %v4272
        %s4274 = scalar_lea.vmem %s11, 6
        %v4275 = vld [vmem:[%s4274] sm:$0x1]
        %s4276 = scalar_lea.vmem %s11, 7
        %v4277 = vld [vmem:[%s4276] sm:$0x1]
        %v4278 = vsel %vm807, %v4273, 0.0
        %4279 = vadd.xlane.f32.xlu0 %v4278
        %v4280 = vpop.xlane.xlu0 %4279
        %v4281 = vmul.f32 %v4280, %v817
        %v4282 = vsub.f32 %v4273, %v4281
        %v4283 = vmul.f32 %v4282, %v4282
        %v4284 = vsel %vm807, %v4283, 0.0
        %4285 = vadd.xlane.f32.xlu0 %v4284
        %v4286 = vpop.xlane.xlu0 %4285
        %v4287 = vmul.f32 %v4286, %v817
        %v4288 = vadd.f32 %v4287, 1e-05
        %v4289 = vrsqrt.pop %v4288
        %v4290 = vmul.f32 %v4289, %v4288
        %v4291 = vmul.f32 %v4290, %v4289
        %v4292 = vmul.f32 0.5, %v4291
        %v4293 = vsub.f32 1.5, %v4292
        %v4294 = vmul.f32 %v4289, %v4293
        %vm4295 = vweird.f32 %v4288
        %vm4296 = vweird.f32 %v4289
        %vm4297 = vmor %vm4295, %vm4296
        %v4298 = vsel %vm4297, %v4289, %v4294
        %v4299 = vmul.f32 %v4282, %v4298
        %v4301 = vperm.slane %v4275, 0
        %v4303 = vmul.f32 %v4299, %v4301
        %v4305 = vperm.slane %v4277, 0
        %v4307 = vadd.f32 %v4303, %v4305
        %s4308 = scalar_lea.vmem %s12, 192
        %v4309 = vld [vmem:[%s4308] sm:$0xf]
        %v4310 = vld [vmem:[%s4308 + $0x4] sm:$0xf]
        %v4311 = vld [vmem:[%s4308 + $0x8] sm:$0xf]
        %v4312 = vld [vmem:[%s4308 + $0xc] sm:$0xf]
        %v4313 = vld [vmem:[%s4308 + $0x10] sm:$0xf]
        %v4314 = vld [vmem:[%s4308 + $0x14] sm:$0xf]
        %v4315 = vld [vmem:[%s4308 + $0x18] sm:$0xf]
        %v4316 = vld [vmem:[%s4308 + $0x1c] sm:$0xf]
        %v4317 = vld [vmem:[%s4308 + $0x20] sm:$0xf]
        %v4318 = vld [vmem:[%s4308 + $0x24] sm:$0xf]
        %v4319 = vld [vmem:[%s4308 + $0x28] sm:$0xf]
        %v4320 = vld [vmem:[%s4308 + $0x2c] sm:$0xf]
        %v4321 = vld [vmem:[%s4308 + $0x30] sm:$0xf]
        %v4322 = vld [vmem:[%s4308 + $0x34] sm:$0xf]
        %v4323 = vld [vmem:[%s4308 + $0x38] sm:$0xf]
        %v4324 = vld [vmem:[%s4308 + $0x3c] sm:$0xf]
        %s4325 = scalar_lea.vmem %s13, 12
        %v4326 = vld [vmem:[%s4325] sm:$0x1]
        %v4327 = vld [vmem:[%s4325 + $0x1] sm:$0x1]
        %v4328 = vld [vmem:[%s4325 + $0x2] sm:$0x1]
        %v4329 = vld [vmem:[%s4325 + $0x3] sm:$0x1]
        %s4330 = scalar_lea.vmem %s12, 256
        %v4331 = vld [vmem:[%s4330] sm:$0xf]
        %v4332 = vld [vmem:[%s4330 + $0x4] sm:$0xf]
        %v4333 = vld [vmem:[%s4330 + $0x8] sm:$0xf]
        %v4334 = vld [vmem:[%s4330 + $0xc] sm:$0xf]
        %v4335 = vld [vmem:[%s4330 + $0x10] sm:$0xf]
        %v4336 = vld [vmem:[%s4330 + $0x14] sm:$0xf]
        %v4337 = vld [vmem:[%s4330 + $0x18] sm:$0xf]
        %v4338 = vld [vmem:[%s4330 + $0x1c] sm:$0xf]
        %v4339 = vld [vmem:[%s4330 + $0x20] sm:$0xf]
        %v4340 = vld [vmem:[%s4330 + $0x24] sm:$0xf]
        %v4341 = vld [vmem:[%s4330 + $0x28] sm:$0xf]
        %v4342 = vld [vmem:[%s4330 + $0x2c] sm:$0xf]
        %v4343 = vld [vmem:[%s4330 + $0x30] sm:$0xf]
        %v4344 = vld [vmem:[%s4330 + $0x34] sm:$0xf]
        %v4345 = vld [vmem:[%s4330 + $0x38] sm:$0xf]
        %v4346 = vld [vmem:[%s4330 + $0x3c] sm:$0xf]
        %s4347 = scalar_lea.vmem %s13, 16
        %v4348 = vld [vmem:[%s4347] sm:$0x1]
        %v4349 = vld [vmem:[%s4347 + $0x1] sm:$0x1]
        %v4350 = vld [vmem:[%s4347 + $0x2] sm:$0x1]
        %v4351 = vld [vmem:[%s4347 + $0x3] sm:$0x1]
        %s4352 = scalar_lea.vmem %s12, 320
        %v4353 = vld [vmem:[%s4352] sm:$0xf]
        %v4354 = vld [vmem:[%s4352 + $0x4] sm:$0xf]
        %v4355 = vld [vmem:[%s4352 + $0x8] sm:$0xf]
        %v4356 = vld [vmem:[%s4352 + $0xc] sm:$0xf]
        %v4357 = vld [vmem:[%s4352 + $0x10] sm:$0xf]
        %v4358 = vld [vmem:[%s4352 + $0x14] sm:$0xf]
        %v4359 = vld [vmem:[%s4352 + $0x18] sm:$0xf]
        %v4360 = vld [vmem:[%s4352 + $0x1c] sm:$0xf]
        %v4361 = vld [vmem:[%s4352 + $0x20] sm:$0xf]
        %v4362 = vld [vmem:[%s4352 + $0x24] sm:$0xf]
        %v4363 = vld [vmem:[%s4352 + $0x28] sm:$0xf]
        %v4364 = vld [vmem:[%s4352 + $0x2c] sm:$0xf]
        %v4365 = vld [vmem:[%s4352 + $0x30] sm:$0xf]
        %v4366 = vld [vmem:[%s4352 + $0x34] sm:$0xf]
        %v4367 = vld [vmem:[%s4352 + $0x38] sm:$0xf]
        %v4368 = vld [vmem:[%s4352 + $0x3c] sm:$0xf]
        %s4369 = scalar_lea.vmem %s13, 20
        %v4370 = vld [vmem:[%s4369] sm:$0x1]
        %v4371 = vld [vmem:[%s4369 + $0x1] sm:$0x1]
        %v4372 = vld [vmem:[%s4369 + $0x2] sm:$0x1]
        %v4373 = vld [vmem:[%s4369 + $0x3] sm:$0x1]
        %s4374 = scalar_lea.vmem %s14, 16
        %v4375 = vld [vmem:[%s4374] sm:$0xf]
        %v4376 = vld [vmem:[%s4374 + $0x4] sm:$0xf]
        %v4377 = vld [vmem:[%s4374 + $0x8] sm:$0xf]
        %v4378 = vld [vmem:[%s4374 + $0xc] sm:$0xf]
        %s4379 = scalar_lea.vmem %s15, 1
        %v4380 = vld [vmem:[%s4379] sm:$0x1]
        %v4381 = vpack.c.bf16 %v4307, %v4307
        %v4386 = vperm.slane %v4326, 0
        %v4387 = vperm.slane %v4327, 0
        %v4388 = vperm.slane %v4328, 0
        %v4389 = vperm.slane %v4329, 0
        %v4398 = vunpack.c.l.b16 %v4309
        %v4399 = vunpack.c.l.b16 %v4310
        %v4400 = vunpack.c.l.b16 %v4311
        %v4401 = vunpack.c.l.b16 %v4312
        %v4402 = vpack.c.b16 %v4399, %v4398
        %v4403 = vpack.c.b16 %v4401, %v4400
        %v4407 = vsel %vm807, %v4381, 0
        %4409 = vmatpush.bf16.msra.mxu0 0
        %4410 = vmatpush.bf16.msra.mxu0 0
        %4411 = vmatpush.bf16.msra.mxu0 0
        %4412 = vmatpush.bf16.msra.mxu0 0
        %4413 = vmatpush.bf16.msra.mxu0 0
        %4414 = vmatpush.bf16.msra.mxu0 0
        %4415 = vmatpush.bf16.msra.mxu0 %v4403
        %4416 = vmatpush.bf16.msra.mxu0 %v4402
        %4417 = vmatmul.bf16.gmra.mxu0 %v4407
        %v4418 = vpop.f32.mrf.mxu0
        %v4419 = vadd.f32 %v4386, %v4418
        %v4420 = vpop.f32.mrf.mxu0
        %4421 = vdwg.mxu0
        %v4426 = vunpack.c.l.b16 %v4313
        %v4427 = vunpack.c.l.b16 %v4314
        %v4428 = vunpack.c.l.b16 %v4315
        %v4429 = vunpack.c.l.b16 %v4316
        %v4430 = vpack.c.b16 %v4427, %v4426
        %v4431 = vpack.c.b16 %v4429, %v4428
        %4434 = vmatpush.bf16.msra.mxu0 0
        %4435 = vmatpush.bf16.msra.mxu0 0
        %4436 = vmatpush.bf16.msra.mxu0 0
        %4437 = vmatpush.bf16.msra.mxu0 0
        %4438 = vmatpush.bf16.msra.mxu0 0
        %4439 = vmatpush.bf16.msra.mxu0 0
        %4440 = vmatpush.bf16.msra.mxu0 %v4431
        %4441 = vmatpush.bf16.msra.mxu0 %v4430
        %4442 = vmatmul.bf16.gmra.mxu0 %v4407
        %v4443 = vpop.f32.mrf.mxu0
        %v4444 = vadd.f32 %v4387, %v4443
        %v4445 = vpop.f32.mrf.mxu0
        %4446 = vdwg.mxu0
        %v4451 = vunpack.c.l.b16 %v4317
        %v4452 = vunpack.c.l.b16 %v4318
        %v4453 = vunpack.c.l.b16 %v4319
        %v4454 = vunpack.c.l.b16 %v4320
        %v4455 = vpack.c.b16 %v4452, %v4451
        %v4456 = vpack.c.b16 %v4454, %v4453
        %4459 = vmatpush.bf16.msra.mxu0 0
        %4460 = vmatpush.bf16.msra.mxu0 0
        %4461 = vmatpush.bf16.msra.mxu0 0
        %4462 = vmatpush.bf16.msra.mxu0 0
        %4463 = vmatpush.bf16.msra.mxu0 0
        %4464 = vmatpush.bf16.msra.mxu0 0
        %4465 = vmatpush.bf16.msra.mxu0 %v4456
        %4466 = vmatpush.bf16.msra.mxu0 %v4455
        %4467 = vmatmul.bf16.gmra.mxu0 %v4407
        %v4468 = vpop.f32.mrf.mxu0
        %v4469 = vadd.f32 %v4388, %v4468
        %v4470 = vpop.f32.mrf.mxu0
        %4471 = vdwg.mxu0
        %v4476 = vunpack.c.l.b16 %v4321
        %v4477 = vunpack.c.l.b16 %v4322
        %v4478 = vunpack.c.l.b16 %v4323
        %v4479 = vunpack.c.l.b16 %v4324
        %v4480 = vpack.c.b16 %v4477, %v4476
        %v4481 = vpack.c.b16 %v4479, %v4478
        %4484 = vmatpush.bf16.msra.mxu0 0
        %4485 = vmatpush.bf16.msra.mxu0 0
        %4486 = vmatpush.bf16.msra.mxu0 0
        %4487 = vmatpush.bf16.msra.mxu0 0
        %4488 = vmatpush.bf16.msra.mxu0 0
        %4489 = vmatpush.bf16.msra.mxu0 0
        %4490 = vmatpush.bf16.msra.mxu0 %v4481
        %4491 = vmatpush.bf16.msra.mxu0 %v4480
        %4492 = vmatmul.bf16.gmra.mxu0 %v4407
        %v4493 = vpop.f32.mrf.mxu0
        %v4494 = vadd.f32 %v4389, %v4493
        %v4495 = vpop.f32.mrf.mxu0
        %4496 = vdwg.mxu0
        %v4501 = vperm.slane %v4348, 0
        %v4502 = vperm.slane %v4349, 0
        %v4503 = vperm.slane %v4350, 0
        %v4504 = vperm.slane %v4351, 0
        %v4513 = vunpack.c.l.b16 %v4331
        %v4514 = vunpack.c.l.b16 %v4332
        %v4515 = vunpack.c.l.b16 %v4333
        %v4516 = vunpack.c.l.b16 %v4334
        %v4517 = vpack.c.b16 %v4514, %v4513
        %v4518 = vpack.c.b16 %v4516, %v4515
        %4521 = vmatpush.bf16.msra.mxu0 0
        %4522 = vmatpush.bf16.msra.mxu0 0
        %4523 = vmatpush.bf16.msra.mxu0 0
        %4524 = vmatpush.bf16.msra.mxu0 0
        %4525 = vmatpush.bf16.msra.mxu0 0
        %4526 = vmatpush.bf16.msra.mxu0 0
        %4527 = vmatpush.bf16.msra.mxu0 %v4518
        %4528 = vmatpush.bf16.msra.mxu0 %v4517
        %4529 = vmatmul.bf16.gmra.mxu0 %v4407
        %v4530 = vpop.f32.mrf.mxu0
        %v4531 = vadd.f32 %v4501, %v4530
        %v4532 = vpop.f32.mrf.mxu0
        %4533 = vdwg.mxu0
        %v4538 = vunpack.c.l.b16 %v4335
        %v4539 = vunpack.c.l.b16 %v4336
        %v4540 = vunpack.c.l.b16 %v4337
        %v4541 = vunpack.c.l.b16 %v4338
        %v4542 = vpack.c.b16 %v4539, %v4538
        %v4543 = vpack.c.b16 %v4541, %v4540
        %4546 = vmatpush.bf16.msra.mxu0 0
        %4547 = vmatpush.bf16.msra.mxu0 0
        %4548 = vmatpush.bf16.msra.mxu0 0
        %4549 = vmatpush.bf16.msra.mxu0 0
        %4550 = vmatpush.bf16.msra.mxu0 0
        %4551 = vmatpush.bf16.msra.mxu0 0
        %4552 = vmatpush.bf16.msra.mxu0 %v4543
        %4553 = vmatpush.bf16.msra.mxu0 %v4542
        %4554 = vmatmul.bf16.gmra.mxu0 %v4407
        %v4555 = vpop.f32.mrf.mxu0
        %v4556 = vadd.f32 %v4502, %v4555
        %v4557 = vpop.f32.mrf.mxu0
        %4558 = vdwg.mxu0
        %v4563 = vunpack.c.l.b16 %v4339
        %v4564 = vunpack.c.l.b16 %v4340
        %v4565 = vunpack.c.l.b16 %v4341
        %v4566 = vunpack.c.l.b16 %v4342
        %v4567 = vpack.c.b16 %v4564, %v4563
        %v4568 = vpack.c.b16 %v4566, %v4565
        %4571 = vmatpush.bf16.msra.mxu0 0
        %4572 = vmatpush.bf16.msra.mxu0 0
        %4573 = vmatpush.bf16.msra.mxu0 0
        %4574 = vmatpush.bf16.msra.mxu0 0
        %4575 = vmatpush.bf16.msra.mxu0 0
        %4576 = vmatpush.bf16.msra.mxu0 0
        %4577 = vmatpush.bf16.msra.mxu0 %v4568
        %4578 = vmatpush.bf16.msra.mxu0 %v4567
        %4579 = vmatmul.bf16.gmra.mxu0 %v4407
        %v4580 = vpop.f32.mrf.mxu0
        %v4581 = vadd.f32 %v4503, %v4580
        %v4582 = vpop.f32.mrf.mxu0
        %4583 = vdwg.mxu0
        %v4588 = vunpack.c.l.b16 %v4343
        %v4589 = vunpack.c.l.b16 %v4344
        %v4590 = vunpack.c.l.b16 %v4345
        %v4591 = vunpack.c.l.b16 %v4346
        %v4592 = vpack.c.b16 %v4589, %v4588
        %v4593 = vpack.c.b16 %v4591, %v4590
        %4596 = vmatpush.bf16.msra.mxu0 0
        %4597 = vmatpush.bf16.msra.mxu0 0
        %4598 = vmatpush.bf16.msra.mxu0 0
        %4599 = vmatpush.bf16.msra.mxu0 0
        %4600 = vmatpush.bf16.msra.mxu0 0
        %4601 = vmatpush.bf16.msra.mxu0 0
        %4602 = vmatpush.bf16.msra.mxu0 %v4593
        %4603 = vmatpush.bf16.msra.mxu0 %v4592
        %4604 = vmatmul.bf16.gmra.mxu0 %v4407
        %v4605 = vpop.f32.mrf.mxu0
        %v4606 = vadd.f32 %v4504, %v4605
        %v4607 = vpop.f32.mrf.mxu0
        %4608 = vdwg.mxu0
        %v4613 = vperm.slane %v4370, 0
        %v4614 = vperm.slane %v4371, 0
        %v4615 = vperm.slane %v4372, 0
        %v4616 = vperm.slane %v4373, 0
        %v4625 = vunpack.c.l.b16 %v4353
        %v4626 = vunpack.c.l.b16 %v4354
        %v4627 = vunpack.c.l.b16 %v4355
        %v4628 = vunpack.c.l.b16 %v4356
        %v4629 = vpack.c.b16 %v4626, %v4625
        %v4630 = vpack.c.b16 %v4628, %v4627
        %4633 = vmatpush.bf16.msra.mxu0 0
        %4634 = vmatpush.bf16.msra.mxu0 0
        %4635 = vmatpush.bf16.msra.mxu0 0
        %4636 = vmatpush.bf16.msra.mxu0 0
        %4637 = vmatpush.bf16.msra.mxu0 0
        %4638 = vmatpush.bf16.msra.mxu0 0
        %4639 = vmatpush.bf16.msra.mxu0 %v4630
        %4640 = vmatpush.bf16.msra.mxu0 %v4629
        %4641 = vmatmul.bf16.gmra.mxu0 %v4407
        %v4642 = vpop.f32.mrf.mxu0
        %v4643 = vadd.f32 %v4613, %v4642
        %v4644 = vpop.f32.mrf.mxu0
        %4645 = vdwg.mxu0
        %v4650 = vunpack.c.l.b16 %v4357
        %v4651 = vunpack.c.l.b16 %v4358
        %v4652 = vunpack.c.l.b16 %v4359
        %v4653 = vunpack.c.l.b16 %v4360
        %v4654 = vpack.c.b16 %v4651, %v4650
        %v4655 = vpack.c.b16 %v4653, %v4652
        %4658 = vmatpush.bf16.msra.mxu0 0
        %4659 = vmatpush.bf16.msra.mxu0 0
        %4660 = vmatpush.bf16.msra.mxu0 0
        %4661 = vmatpush.bf16.msra.mxu0 0
        %4662 = vmatpush.bf16.msra.mxu0 0
        %4663 = vmatpush.bf16.msra.mxu0 0
        %4664 = vmatpush.bf16.msra.mxu0 %v4655
        %4665 = vmatpush.bf16.msra.mxu0 %v4654
        %4666 = vmatmul.bf16.gmra.mxu0 %v4407
        %v4667 = vpop.f32.mrf.mxu0
        %v4668 = vadd.f32 %v4614, %v4667
        %v4669 = vpop.f32.mrf.mxu0
        %4670 = vdwg.mxu0
        %v4675 = vunpack.c.l.b16 %v4361
        %v4676 = vunpack.c.l.b16 %v4362
        %v4677 = vunpack.c.l.b16 %v4363
        %v4678 = vunpack.c.l.b16 %v4364
        %v4679 = vpack.c.b16 %v4676, %v4675
        %v4680 = vpack.c.b16 %v4678, %v4677
        %4683 = vmatpush.bf16.msra.mxu0 0
        %4684 = vmatpush.bf16.msra.mxu0 0
        %4685 = vmatpush.bf16.msra.mxu0 0
        %4686 = vmatpush.bf16.msra.mxu0 0
        %4687 = vmatpush.bf16.msra.mxu0 0
        %4688 = vmatpush.bf16.msra.mxu0 0
        %4689 = vmatpush.bf16.msra.mxu0 %v4680
        %4690 = vmatpush.bf16.msra.mxu0 %v4679
        %4691 = vmatmul.bf16.gmra.mxu0 %v4407
        %v4692 = vpop.f32.mrf.mxu0
        %v4693 = vadd.f32 %v4615, %v4692
        %v4694 = vpop.f32.mrf.mxu0
        %4695 = vdwg.mxu0
        %v4700 = vunpack.c.l.b16 %v4365
        %v4701 = vunpack.c.l.b16 %v4366
        %v4702 = vunpack.c.l.b16 %v4367
        %v4703 = vunpack.c.l.b16 %v4368
        %v4704 = vpack.c.b16 %v4701, %v4700
        %v4705 = vpack.c.b16 %v4703, %v4702
        %4708 = vmatpush.bf16.msra.mxu0 0
        %4709 = vmatpush.bf16.msra.mxu0 0
        %4710 = vmatpush.bf16.msra.mxu0 0
        %4711 = vmatpush.bf16.msra.mxu0 0
        %4712 = vmatpush.bf16.msra.mxu0 0
        %4713 = vmatpush.bf16.msra.mxu0 0
        %4714 = vmatpush.bf16.msra.mxu0 %v4705
        %4715 = vmatpush.bf16.msra.mxu0 %v4704
        %4716 = vmatmul.bf16.gmra.mxu0 %v4407
        %v4717 = vpop.f32.mrf.mxu0
        %v4718 = vadd.f32 %v4616, %v4717
        %v4719 = vpop.f32.mrf.mxu0
        %4720 = vdwg.mxu0
        %v4721 = vpack.c.bf16 %v4419, %v4419
        %v4722 = vpack.c.bf16 %v4444, %v4444
        %v4723 = vpack.c.bf16 %v4469, %v4469
        %v4724 = vpack.c.bf16 %v4494, %v4494
        %v4725 = vpack.c.bf16 %v4531, %v4531
        %v4726 = vpack.c.bf16 %v4556, %v4556
        %v4727 = vpack.c.bf16 %v4581, %v4581
        %v4728 = vpack.c.bf16 %v4606, %v4606
        %v4730 = vsel %vm1262, %v4721, 0
        %v4733 = vsel %vm1262, %v4725, 0
        %4735 = vmatpush.bf16.xpose.msra.mxu0 0
        %4736 = vmatpush.bf16.xpose.msra.mxu0 0
        %4737 = vmatpush.bf16.xpose.msra.mxu0 0
        %4738 = vmatpush.bf16.xpose.msra.mxu0 0
        %4739 = vmatpush.bf16.xpose.msra.mxu0 0
        %4740 = vmatpush.bf16.xpose.msra.mxu0 0
        %4741 = vmatpush.bf16.xpose.msra.mxu0 0
        %4742 = vmatpush.bf16.xpose.msra.mxu0 %v4733
        %4743 = vmatmul.bf16.gmra.mxu0 %v4730
        %v4744 = vpop.f32.mrf.mxu0
        %v4745 = vadd.f32 0.0, %v4744
        %v4746 = vpop.f32.mrf.mxu0
        %4747 = vdwg.mxu0
        %v4749 = vsel %vm1262, %v4722, 0
        %v4752 = vsel %vm1262, %v4726, 0
        %4754 = vmatpush.bf16.xpose.msra.mxu0 0
        %4755 = vmatpush.bf16.xpose.msra.mxu0 0
        %4756 = vmatpush.bf16.xpose.msra.mxu0 0
        %4757 = vmatpush.bf16.xpose.msra.mxu0 0
        %4758 = vmatpush.bf16.xpose.msra.mxu0 0
        %4759 = vmatpush.bf16.xpose.msra.mxu0 0
        %4760 = vmatpush.bf16.xpose.msra.mxu0 0
        %4761 = vmatpush.bf16.xpose.msra.mxu0 %v4752
        %4762 = vmatmul.bf16.gmra.mxu0 %v4749
        %v4763 = vpop.f32.mrf.mxu0
        %v4764 = vadd.f32 0.0, %v4763
        %v4765 = vpop.f32.mrf.mxu0
        %4766 = vdwg.mxu0
        %v4768 = vsel %vm1262, %v4723, 0
        %v4771 = vsel %vm1262, %v4727, 0
        %4773 = vmatpush.bf16.xpose.msra.mxu0 0
        %4774 = vmatpush.bf16.xpose.msra.mxu0 0
        %4775 = vmatpush.bf16.xpose.msra.mxu0 0
        %4776 = vmatpush.bf16.xpose.msra.mxu0 0
        %4777 = vmatpush.bf16.xpose.msra.mxu0 0
        %4778 = vmatpush.bf16.xpose.msra.mxu0 0
        %4779 = vmatpush.bf16.xpose.msra.mxu0 0
        %4780 = vmatpush.bf16.xpose.msra.mxu0 %v4771
        %4781 = vmatmul.bf16.gmra.mxu0 %v4768
        %v4782 = vpop.f32.mrf.mxu0
        %v4783 = vadd.f32 0.0, %v4782
        %v4784 = vpop.f32.mrf.mxu0
        %4785 = vdwg.mxu0
        %v4787 = vsel %vm1262, %v4724, 0
        %v4790 = vsel %vm1262, %v4728, 0
        %4792 = vmatpush.bf16.xpose.msra.mxu0 0
        %4793 = vmatpush.bf16.xpose.msra.mxu0 0
        %4794 = vmatpush.bf16.xpose.msra.mxu0 0
        %4795 = vmatpush.bf16.xpose.msra.mxu0 0
        %4796 = vmatpush.bf16.xpose.msra.mxu0 0
        %4797 = vmatpush.bf16.xpose.msra.mxu0 0
        %4798 = vmatpush.bf16.xpose.msra.mxu0 0
        %4799 = vmatpush.bf16.xpose.msra.mxu0 %v4790
        %4800 = vmatmul.bf16.gmra.mxu0 %v4787
        %v4801 = vpop.f32.mrf.mxu0
        %v4802 = vadd.f32 0.0, %v4801
        %v4803 = vpop.f32.mrf.mxu0
        %4804 = vdwg.mxu0
        %v4805 = vmul.f32 %v4745, 0.35355338
        %v4806 = vmul.f32 %v4764, 0.35355338
        %v4807 = vmul.f32 %v4783, 0.35355338
        %v4808 = vmul.f32 %v4802, 0.35355338
        %v4809 = vsel %vm3113, %v4805, -1e+09
        %v4810 = vsel %vm3113, %v4806, -1e+09
        %v4811 = vsel %vm3113, %v4807, -1e+09
        %v4812 = vsel %vm3113, %v4808, -1e+09
        %v4813 = vsel %vm1262, %v4809, -inf
        %4814 = vmax.xlane.f32.xlu0 %v4813
        %v4815 = vpop.xlane.xlu0 %4814
        %v4816 = vsel %vm1262, %v4810, -inf
        %4817 = vmax.xlane.f32.xlu0 %v4816
        %v4818 = vpop.xlane.xlu0 %4817
        %v4819 = vsel %vm1262, %v4811, -inf
        %4820 = vmax.xlane.f32.xlu0 %v4819
        %v4821 = vpop.xlane.xlu0 %4820
        %v4822 = vsel %vm1262, %v4812, -inf
        %4823 = vmax.xlane.f32.xlu0 %v4822
        %v4824 = vpop.xlane.xlu0 %4823
        %v4825 = vsub.f32 %v4809, %v4815
        %v4826 = vsub.f32 %v4810, %v4818
        %v4827 = vsub.f32 %v4811, %v4821
        %v4828 = vsub.f32 %v4812, %v4824
        %v4829 = vmul.f32 %v4825, 1.442695
        %v4830 = vpow.pop %v4829
        %v4831 = vmul.f32 %v4826, 1.442695
        %v4832 = vpow.pop %v4831
        %v4833 = vmul.f32 %v4827, 1.442695
        %v4834 = vpow.pop %v4833
        %v4835 = vmul.f32 %v4828, 1.442695
        %v4836 = vpow.pop %v4835
        %v4837 = vsel %vm1262, %v4830, 0.0
        %4838 = vadd.xlane.f32.xlu0 %v4837
        %v4839 = vpop.xlane.xlu0 %4838
        %v4840 = vsel %vm1262, %v4832, 0.0
        %4841 = vadd.xlane.f32.xlu0 %v4840
        %v4842 = vpop.xlane.xlu0 %4841
        %v4843 = vsel %vm1262, %v4834, 0.0
        %4844 = vadd.xlane.f32.xlu0 %v4843
        %v4845 = vpop.xlane.xlu0 %4844
        %v4846 = vsel %vm1262, %v4836, 0.0
        %4847 = vadd.xlane.f32.xlu0 %v4846
        %v4848 = vpop.xlane.xlu0 %4847
        %v4849 = vrcp.pop %v4839
        %v4850 = vmul.f32 %v4839, %v4849
        %v4851 = vsub.f32 1.0, %v4850
        %v4852 = vmul.f32 %v4849, %v4851
        %v4853 = vadd.f32 %v4849, %v4852
        %vm4854 = vweird.f32 %v4839
        %vm4855 = vweird.f32 %v4849
        %vm4856 = vmor %vm4854, %vm4855
        %v4857 = vsel %vm4856, %v4849, %v4853
        %v4858 = vand.u32 2147483647, %v4839
        %vm4859 = vcmp.eq.f32.partialorder %v4858, 8.507059e+37
        %v4860 = vand.u32 %v4839, 2147483648
        %v4861 = vor.u32 1.1754944e-38, %v4860
        %v4862 = vsel %vm4859, %v4861, %v4857
        %v4863 = vmul.f32 %v4830, %v4862
        %v4864 = vrcp.pop %v4842
        %v4865 = vmul.f32 %v4842, %v4864
        %v4866 = vsub.f32 1.0, %v4865
        %v4867 = vmul.f32 %v4864, %v4866
        %v4868 = vadd.f32 %v4864, %v4867
        %vm4869 = vweird.f32 %v4842
        %vm4870 = vweird.f32 %v4864
        %vm4871 = vmor %vm4869, %vm4870
        %v4872 = vsel %vm4871, %v4864, %v4868
        %v4873 = vand.u32 2147483647, %v4842
        %vm4874 = vcmp.eq.f32.partialorder %v4873, 8.507059e+37
        %v4875 = vand.u32 %v4842, 2147483648
        %v4876 = vor.u32 1.1754944e-38, %v4875
        %v4877 = vsel %vm4874, %v4876, %v4872
        %v4878 = vmul.f32 %v4832, %v4877
        %v4879 = vrcp.pop %v4845
        %v4880 = vmul.f32 %v4845, %v4879
        %v4881 = vsub.f32 1.0, %v4880
        %v4882 = vmul.f32 %v4879, %v4881
        %v4883 = vadd.f32 %v4879, %v4882
        %vm4884 = vweird.f32 %v4845
        %vm4885 = vweird.f32 %v4879
        %vm4886 = vmor %vm4884, %vm4885
        %v4887 = vsel %vm4886, %v4879, %v4883
        %v4888 = vand.u32 2147483647, %v4845
        %vm4889 = vcmp.eq.f32.partialorder %v4888, 8.507059e+37
        %v4890 = vand.u32 %v4845, 2147483648
        %v4891 = vor.u32 1.1754944e-38, %v4890
        %v4892 = vsel %vm4889, %v4891, %v4887
        %v4893 = vmul.f32 %v4834, %v4892
        %v4894 = vrcp.pop %v4848
        %v4895 = vmul.f32 %v4848, %v4894
        %v4896 = vsub.f32 1.0, %v4895
        %v4897 = vmul.f32 %v4894, %v4896
        %v4898 = vadd.f32 %v4894, %v4897
        %vm4899 = vweird.f32 %v4848
        %vm4900 = vweird.f32 %v4894
        %vm4901 = vmor %vm4899, %vm4900
        %v4902 = vsel %vm4901, %v4894, %v4898
        %v4903 = vand.u32 2147483647, %v4848
        %vm4904 = vcmp.eq.f32.partialorder %v4903, 8.507059e+37
        %v4905 = vand.u32 %v4848, 2147483648
        %v4906 = vor.u32 1.1754944e-38, %v4905
        %v4907 = vsel %vm4904, %v4906, %v4902
        %v4908 = vmul.f32 %v4836, %v4907
        %v4909 = vpack.c.bf16 %v4863, %v4863
        %v4910 = vpack.c.bf16 %v4878, %v4878
        %v4911 = vpack.c.bf16 %v4893, %v4893
        %v4912 = vpack.c.bf16 %v4908, %v4908
        %v4913 = vpack.c.bf16 %v4643, %v4643
        %v4914 = vpack.c.bf16 %v4668, %v4668
        %v4915 = vpack.c.bf16 %v4693, %v4693
        %v4916 = vpack.c.bf16 %v4718, %v4718
        %v4918 = vsel %vm1262, %v4909, 0
        %v4921 = vsel %vm1457, %v4913, 0
        %4923 = vmatpush.bf16.msra.mxu0 0
        %4924 = vmatpush.bf16.msra.mxu0 0
        %4925 = vmatpush.bf16.msra.mxu0 0
        %4926 = vmatpush.bf16.msra.mxu0 0
        %4927 = vmatpush.bf16.msra.mxu0 0
        %4928 = vmatpush.bf16.msra.mxu0 0
        %4929 = vmatpush.bf16.msra.mxu0 0
        %4930 = vmatpush.bf16.msra.mxu0 %v4921
        %4931 = vmatmul.bf16.gmra.mxu0 %v4918
        %v4932 = vpop.f32.mrf.mxu0
        %v4933 = vadd.f32 0.0, %v4932
        %v4934 = vpop.f32.mrf.mxu0
        %4935 = vdwg.mxu0
        %v4937 = vsel %vm1262, %v4910, 0
        %v4940 = vsel %vm1457, %v4914, 0
        %4942 = vmatpush.bf16.msra.mxu0 0
        %4943 = vmatpush.bf16.msra.mxu0 0
        %4944 = vmatpush.bf16.msra.mxu0 0
        %4945 = vmatpush.bf16.msra.mxu0 0
        %4946 = vmatpush.bf16.msra.mxu0 0
        %4947 = vmatpush.bf16.msra.mxu0 0
        %4948 = vmatpush.bf16.msra.mxu0 0
        %4949 = vmatpush.bf16.msra.mxu0 %v4940
        %4950 = vmatmul.bf16.gmra.mxu0 %v4937
        %v4951 = vpop.f32.mrf.mxu0
        %v4952 = vadd.f32 0.0, %v4951
        %v4953 = vpop.f32.mrf.mxu0
        %4954 = vdwg.mxu0
        %v4956 = vsel %vm1262, %v4911, 0
        %v4959 = vsel %vm1457, %v4915, 0
        %4961 = vmatpush.bf16.msra.mxu0 0
        %4962 = vmatpush.bf16.msra.mxu0 0
        %4963 = vmatpush.bf16.msra.mxu0 0
        %4964 = vmatpush.bf16.msra.mxu0 0
        %4965 = vmatpush.bf16.msra.mxu0 0
        %4966 = vmatpush.bf16.msra.mxu0 0
        %4967 = vmatpush.bf16.msra.mxu0 0
        %4968 = vmatpush.bf16.msra.mxu0 %v4959
        %4969 = vmatmul.bf16.gmra.mxu0 %v4956
        %v4970 = vpop.f32.mrf.mxu0
        %v4971 = vadd.f32 0.0, %v4970
        %v4972 = vpop.f32.mrf.mxu0
        %4973 = vdwg.mxu0
        %v4975 = vsel %vm1262, %v4912, 0
        %v4978 = vsel %vm1457, %v4916, 0
        %4980 = vmatpush.bf16.msra.mxu0 0
        %4981 = vmatpush.bf16.msra.mxu0 0
        %4982 = vmatpush.bf16.msra.mxu0 0
        %4983 = vmatpush.bf16.msra.mxu0 0
        %4984 = vmatpush.bf16.msra.mxu0 0
        %4985 = vmatpush.bf16.msra.mxu0 0
        %4986 = vmatpush.bf16.msra.mxu0 0
        %4987 = vmatpush.bf16.msra.mxu0 %v4978
        %4988 = vmatmul.bf16.gmra.mxu0 %v4975
        %v4989 = vpop.f32.mrf.mxu0
        %v4990 = vadd.f32 0.0, %v4989
        %v4991 = vpop.f32.mrf.mxu0
        %4992 = vdwg.mxu0
        %v4993 = vpack.c.bf16 %v4933, %v4933
        %v4994 = vpack.c.bf16 %v4952, %v4952
        %v4995 = vpack.c.bf16 %v4971, %v4971
        %v4996 = vpack.c.bf16 %v4990, %v4990
        %v4998 = vsel %vm1262, %v4993, 0
        %v5001 = vsel %vm1457, %v4375, 0
        %5003 = vmatpush.bf16.msra.mxu0 0
        %5004 = vmatpush.bf16.msra.mxu0 0
        %5005 = vmatpush.bf16.msra.mxu0 0
        %5006 = vmatpush.bf16.msra.mxu0 0
        %5007 = vmatpush.bf16.msra.mxu0 0
        %5008 = vmatpush.bf16.msra.mxu0 0
        %5009 = vmatpush.bf16.msra.mxu0 0
        %5010 = vmatpush.bf16.msra.mxu0 %v5001
        %5011 = vmatmul.bf16.gmra.mxu0 %v4998
        %v5012 = vpop.f32.mrf.mxu0
        %v5013 = vadd.f32 0.0, %v5012
        %v5014 = vpop.f32.mrf.mxu0
        %5015 = vdwg.mxu0
        %v5017 = vsel %vm1262, %v4994, 0
        %v5020 = vsel %vm1457, %v4376, 0
        %5022 = vmatpush.bf16.msra.mxu0 0
        %5023 = vmatpush.bf16.msra.mxu0 0
        %5024 = vmatpush.bf16.msra.mxu0 0
        %5025 = vmatpush.bf16.msra.mxu0 0
        %5026 = vmatpush.bf16.msra.mxu0 0
        %5027 = vmatpush.bf16.msra.mxu0 0
        %5028 = vmatpush.bf16.msra.mxu0 0
        %5029 = vmatpush.bf16.msra.mxu0 %v5020
        %5030 = vmatmul.bf16.gmra.mxu0 %v5017
        %v5031 = vpop.f32.mrf.mxu0
        %v5032 = vadd.f32 0.0, %v5031
        %v5033 = vpop.f32.mrf.mxu0
        %5034 = vdwg.mxu0
        %v5036 = vsel %vm1262, %v4995, 0
        %v5039 = vsel %vm1457, %v4377, 0
        %5041 = vmatpush.bf16.msra.mxu0 0
        %5042 = vmatpush.bf16.msra.mxu0 0
        %5043 = vmatpush.bf16.msra.mxu0 0
        %5044 = vmatpush.bf16.msra.mxu0 0
        %5045 = vmatpush.bf16.msra.mxu0 0
        %5046 = vmatpush.bf16.msra.mxu0 0
        %5047 = vmatpush.bf16.msra.mxu0 0
        %5048 = vmatpush.bf16.msra.mxu0 %v5039
        %5049 = vmatmul.bf16.gmra.mxu0 %v5036
        %v5050 = vpop.f32.mrf.mxu0
        %v5051 = vadd.f32 0.0, %v5050
        %v5052 = vpop.f32.mrf.mxu0
        %5053 = vdwg.mxu0
        %v5055 = vsel %vm1262, %v4996, 0
        %v5058 = vsel %vm1457, %v4378, 0
        %5060 = vmatpush.bf16.msra.mxu0 0
        %5061 = vmatpush.bf16.msra.mxu0 0
        %5062 = vmatpush.bf16.msra.mxu0 0
        %5063 = vmatpush.bf16.msra.mxu0 0
        %5064 = vmatpush.bf16.msra.mxu0 0
        %5065 = vmatpush.bf16.msra.mxu0 0
        %5066 = vmatpush.bf16.msra.mxu0 0
        %5067 = vmatpush.bf16.msra.mxu0 %v5058
        %5068 = vmatmul.bf16.gmra.mxu0 %v5055
        %v5069 = vpop.f32.mrf.mxu0
        %v5070 = vadd.f32 0.0, %v5069
        %v5071 = vpop.f32.mrf.mxu0
        %5072 = vdwg.mxu0
        %v5073 = vsel %vm807, %v5013, 0.0
        %v5074 = vsel %vm807, %v5032, 0.0
        %v5075 = vadd.f32 %v5073, %v5074
        %v5076 = vsel %vm807, %v5051, 0.0
        %v5077 = vadd.f32 %v5075, %v5076
        %v5078 = vsel %vm807, %v5070, 0.0
        %v5079 = vadd.f32 %v5077, %v5078
        %v5081 = vperm.slane %v4380, 0
        %v5083 = vadd.f32 %v5079, %v5081
        %v5084 = vadd.f32 %v4273, %v5083
        %s5085 = scalar_lea.vmem %s11, 8
        %v5086 = vld [vmem:[%s5085] sm:$0x1]
        %s5087 = scalar_lea.vmem %s11, 9
        %v5088 = vld [vmem:[%s5087] sm:$0x1]
        %v5089 = vsel %vm807, %v5084, 0.0
        %5090 = vadd.xlane.f32.xlu0 %v5089
        %v5091 = vpop.xlane.xlu0 %5090
        %v5092 = vmul.f32 %v5091, %v817
        %v5093 = vsub.f32 %v5084, %v5092
        %v5094 = vmul.f32 %v5093, %v5093
        %v5095 = vsel %vm807, %v5094, 0.0
        %5096 = vadd.xlane.f32.xlu0 %v5095
        %v5097 = vpop.xlane.xlu0 %5096
        %v5098 = vmul.f32 %v5097, %v817
        %v5099 = vadd.f32 %v5098, 1e-05
        %v5100 = vrsqrt.pop %v5099
        %v5101 = vmul.f32 %v5100, %v5099
        %v5102 = vmul.f32 %v5101, %v5100
        %v5103 = vmul.f32 0.5, %v5102
        %v5104 = vsub.f32 1.5, %v5103
        %v5105 = vmul.f32 %v5100, %v5104
        %vm5106 = vweird.f32 %v5099
        %vm5107 = vweird.f32 %v5100
        %vm5108 = vmor %vm5106, %vm5107
        %v5109 = vsel %vm5108, %v5100, %v5105
        %v5110 = vmul.f32 %v5093, %v5109
        %v5112 = vperm.slane %v5086, 0
        %v5114 = vmul.f32 %v5110, %v5112
        %v5116 = vperm.slane %v5088, 0
        %v5118 = vadd.f32 %v5114, %v5116
        %s5119 = scalar_lea.vmem %s16, 192
        %v5120 = vld [vmem:[%s5119] sm:$0xf]
        %v5121 = vld [vmem:[%s5119 + $0x4] sm:$0xf]
        %v5122 = vld [vmem:[%s5119 + $0x8] sm:$0xf]
        %v5123 = vld [vmem:[%s5119 + $0xc] sm:$0xf]
        %v5124 = vld [vmem:[%s5119 + $0x10] sm:$0xf]
        %v5125 = vld [vmem:[%s5119 + $0x14] sm:$0xf]
        %v5126 = vld [vmem:[%s5119 + $0x18] sm:$0xf]
        %v5127 = vld [vmem:[%s5119 + $0x1c] sm:$0xf]
        %v5128 = vld [vmem:[%s5119 + $0x20] sm:$0xf]
        %v5129 = vld [vmem:[%s5119 + $0x24] sm:$0xf]
        %v5130 = vld [vmem:[%s5119 + $0x28] sm:$0xf]
        %v5131 = vld [vmem:[%s5119 + $0x2c] sm:$0xf]
        %v5132 = vld [vmem:[%s5119 + $0x30] sm:$0xf]
        %v5133 = vld [vmem:[%s5119 + $0x34] sm:$0xf]
        %v5134 = vld [vmem:[%s5119 + $0x38] sm:$0xf]
        %v5135 = vld [vmem:[%s5119 + $0x3c] sm:$0xf]
        %s5136 = scalar_lea.vmem %s17, 12
        %v5137 = vld [vmem:[%s5136] sm:$0x1]
        %v5138 = vld [vmem:[%s5136 + $0x1] sm:$0x1]
        %v5139 = vld [vmem:[%s5136 + $0x2] sm:$0x1]
        %v5140 = vld [vmem:[%s5136 + $0x3] sm:$0x1]
        %s5141 = scalar_lea.vmem %s16, 256
        %v5142 = vld [vmem:[%s5141] sm:$0xf]
        %v5143 = vld [vmem:[%s5141 + $0x4] sm:$0xf]
        %v5144 = vld [vmem:[%s5141 + $0x8] sm:$0xf]
        %v5145 = vld [vmem:[%s5141 + $0xc] sm:$0xf]
        %v5146 = vld [vmem:[%s5141 + $0x10] sm:$0xf]
        %v5147 = vld [vmem:[%s5141 + $0x14] sm:$0xf]
        %v5148 = vld [vmem:[%s5141 + $0x18] sm:$0xf]
        %v5149 = vld [vmem:[%s5141 + $0x1c] sm:$0xf]
        %v5150 = vld [vmem:[%s5141 + $0x20] sm:$0xf]
        %v5151 = vld [vmem:[%s5141 + $0x24] sm:$0xf]
        %v5152 = vld [vmem:[%s5141 + $0x28] sm:$0xf]
        %v5153 = vld [vmem:[%s5141 + $0x2c] sm:$0xf]
        %v5154 = vld [vmem:[%s5141 + $0x30] sm:$0xf]
        %v5155 = vld [vmem:[%s5141 + $0x34] sm:$0xf]
        %v5156 = vld [vmem:[%s5141 + $0x38] sm:$0xf]
        %v5157 = vld [vmem:[%s5141 + $0x3c] sm:$0xf]
        %s5158 = scalar_lea.vmem %s17, 16
        %v5159 = vld [vmem:[%s5158] sm:$0x1]
        %v5160 = vld [vmem:[%s5158 + $0x1] sm:$0x1]
        %v5161 = vld [vmem:[%s5158 + $0x2] sm:$0x1]
        %v5162 = vld [vmem:[%s5158 + $0x3] sm:$0x1]
        %s5163 = scalar_lea.vmem %s16, 320
        %v5164 = vld [vmem:[%s5163] sm:$0xf]
        %v5165 = vld [vmem:[%s5163 + $0x4] sm:$0xf]
        %v5166 = vld [vmem:[%s5163 + $0x8] sm:$0xf]
        %v5167 = vld [vmem:[%s5163 + $0xc] sm:$0xf]
        %v5168 = vld [vmem:[%s5163 + $0x10] sm:$0xf]
        %v5169 = vld [vmem:[%s5163 + $0x14] sm:$0xf]
        %v5170 = vld [vmem:[%s5163 + $0x18] sm:$0xf]
        %v5171 = vld [vmem:[%s5163 + $0x1c] sm:$0xf]
        %v5172 = vld [vmem:[%s5163 + $0x20] sm:$0xf]
        %v5173 = vld [vmem:[%s5163 + $0x24] sm:$0xf]
        %v5174 = vld [vmem:[%s5163 + $0x28] sm:$0xf]
        %v5175 = vld [vmem:[%s5163 + $0x2c] sm:$0xf]
        %v5176 = vld [vmem:[%s5163 + $0x30] sm:$0xf]
        %v5177 = vld [vmem:[%s5163 + $0x34] sm:$0xf]
        %v5178 = vld [vmem:[%s5163 + $0x38] sm:$0xf]
        %v5179 = vld [vmem:[%s5163 + $0x3c] sm:$0xf]
        %s5180 = scalar_lea.vmem %s17, 20
        %v5181 = vld [vmem:[%s5180] sm:$0x1]
        %v5182 = vld [vmem:[%s5180 + $0x1] sm:$0x1]
        %v5183 = vld [vmem:[%s5180 + $0x2] sm:$0x1]
        %v5184 = vld [vmem:[%s5180 + $0x3] sm:$0x1]
        %s5185 = scalar_lea.vmem %s18, 16
        %v5186 = vld [vmem:[%s5185] sm:$0xf]
        %v5187 = vld [vmem:[%s5185 + $0x4] sm:$0xf]
        %v5188 = vld [vmem:[%s5185 + $0x8] sm:$0xf]
        %v5189 = vld [vmem:[%s5185 + $0xc] sm:$0xf]
        %s5190 = scalar_lea.vmem %s19, 1
        %v5191 = vld [vmem:[%s5190] sm:$0x1]
        %v5192 = vpack.c.bf16 %v5118, %v5118
        %v5197 = vperm.slane %v5137, 0
        %v5198 = vperm.slane %v5138, 0
        %v5199 = vperm.slane %v5139, 0
        %v5200 = vperm.slane %v5140, 0
        %v5209 = vunpack.c.l.b16 %v5120
        %v5210 = vunpack.c.l.b16 %v5121
        %v5211 = vunpack.c.l.b16 %v5122
        %v5212 = vunpack.c.l.b16 %v5123
        %v5213 = vpack.c.b16 %v5210, %v5209
        %v5214 = vpack.c.b16 %v5212, %v5211
        %v5218 = vsel %vm807, %v5192, 0
        %5220 = vmatpush.bf16.msra.mxu0 0
        %5221 = vmatpush.bf16.msra.mxu0 0
        %5222 = vmatpush.bf16.msra.mxu0 0
        %5223 = vmatpush.bf16.msra.mxu0 0
        %5224 = vmatpush.bf16.msra.mxu0 0
        %5225 = vmatpush.bf16.msra.mxu0 0
        %5226 = vmatpush.bf16.msra.mxu0 %v5214
        %5227 = vmatpush.bf16.msra.mxu0 %v5213
        %5228 = vmatmul.bf16.gmra.mxu0 %v5218
        %v5229 = vpop.f32.mrf.mxu0
        %v5230 = vadd.f32 %v5197, %v5229
        %v5231 = vpop.f32.mrf.mxu0
        %5232 = vdwg.mxu0
        %v5237 = vunpack.c.l.b16 %v5124
        %v5238 = vunpack.c.l.b16 %v5125
        %v5239 = vunpack.c.l.b16 %v5126
        %v5240 = vunpack.c.l.b16 %v5127
        %v5241 = vpack.c.b16 %v5238, %v5237
        %v5242 = vpack.c.b16 %v5240, %v5239
        %5245 = vmatpush.bf16.msra.mxu0 0
        %5246 = vmatpush.bf16.msra.mxu0 0
        %5247 = vmatpush.bf16.msra.mxu0 0
        %5248 = vmatpush.bf16.msra.mxu0 0
        %5249 = vmatpush.bf16.msra.mxu0 0
        %5250 = vmatpush.bf16.msra.mxu0 0
        %5251 = vmatpush.bf16.msra.mxu0 %v5242
        %5252 = vmatpush.bf16.msra.mxu0 %v5241
        %5253 = vmatmul.bf16.gmra.mxu0 %v5218
        %v5254 = vpop.f32.mrf.mxu0
        %v5255 = vadd.f32 %v5198, %v5254
        %v5256 = vpop.f32.mrf.mxu0
        %5257 = vdwg.mxu0
        %v5262 = vunpack.c.l.b16 %v5128
        %v5263 = vunpack.c.l.b16 %v5129
        %v5264 = vunpack.c.l.b16 %v5130
        %v5265 = vunpack.c.l.b16 %v5131
        %v5266 = vpack.c.b16 %v5263, %v5262
        %v5267 = vpack.c.b16 %v5265, %v5264
        %5270 = vmatpush.bf16.msra.mxu0 0
        %5271 = vmatpush.bf16.msra.mxu0 0
        %5272 = vmatpush.bf16.msra.mxu0 0
        %5273 = vmatpush.bf16.msra.mxu0 0
        %5274 = vmatpush.bf16.msra.mxu0 0
        %5275 = vmatpush.bf16.msra.mxu0 0
        %5276 = vmatpush.bf16.msra.mxu0 %v5267
        %5277 = vmatpush.bf16.msra.mxu0 %v5266
        %5278 = vmatmul.bf16.gmra.mxu0 %v5218
        %v5279 = vpop.f32.mrf.mxu0
        %v5280 = vadd.f32 %v5199, %v5279
        %v5281 = vpop.f32.mrf.mxu0
        %5282 = vdwg.mxu0
        %v5287 = vunpack.c.l.b16 %v5132
        %v5288 = vunpack.c.l.b16 %v5133
        %v5289 = vunpack.c.l.b16 %v5134
        %v5290 = vunpack.c.l.b16 %v5135
        %v5291 = vpack.c.b16 %v5288, %v5287
        %v5292 = vpack.c.b16 %v5290, %v5289
        %5295 = vmatpush.bf16.msra.mxu0 0
        %5296 = vmatpush.bf16.msra.mxu0 0
        %5297 = vmatpush.bf16.msra.mxu0 0
        %5298 = vmatpush.bf16.msra.mxu0 0
        %5299 = vmatpush.bf16.msra.mxu0 0
        %5300 = vmatpush.bf16.msra.mxu0 0
        %5301 = vmatpush.bf16.msra.mxu0 %v5292
        %5302 = vmatpush.bf16.msra.mxu0 %v5291
        %5303 = vmatmul.bf16.gmra.mxu0 %v5218
        %v5304 = vpop.f32.mrf.mxu0
        %v5305 = vadd.f32 %v5200, %v5304
        %v5306 = vpop.f32.mrf.mxu0
        %5307 = vdwg.mxu0
        %v5312 = vperm.slane %v5159, 0
        %v5313 = vperm.slane %v5160, 0
        %v5314 = vperm.slane %v5161, 0
        %v5315 = vperm.slane %v5162, 0
        %v5324 = vunpack.c.l.b16 %v5142
        %v5325 = vunpack.c.l.b16 %v5143
        %v5326 = vunpack.c.l.b16 %v5144
        %v5327 = vunpack.c.l.b16 %v5145
        %v5328 = vpack.c.b16 %v5325, %v5324
        %v5329 = vpack.c.b16 %v5327, %v5326
        %5332 = vmatpush.bf16.msra.mxu0 0
        %5333 = vmatpush.bf16.msra.mxu0 0
        %5334 = vmatpush.bf16.msra.mxu0 0
        %5335 = vmatpush.bf16.msra.mxu0 0
        %5336 = vmatpush.bf16.msra.mxu0 0
        %5337 = vmatpush.bf16.msra.mxu0 0
        %5338 = vmatpush.bf16.msra.mxu0 %v5329
        %5339 = vmatpush.bf16.msra.mxu0 %v5328
        %5340 = vmatmul.bf16.gmra.mxu0 %v3635
        %v5341 = vpop.f32.mrf.mxu0
        %v5342 = vadd.f32 %v5312, %v5341
        %v5343 = vpop.f32.mrf.mxu0
        %5344 = vdwg.mxu0
        %v5349 = vunpack.c.l.b16 %v5146
        %v5350 = vunpack.c.l.b16 %v5147
        %v5351 = vunpack.c.l.b16 %v5148
        %v5352 = vunpack.c.l.b16 %v5149
        %v5353 = vpack.c.b16 %v5350, %v5349
        %v5354 = vpack.c.b16 %v5352, %v5351
        %5357 = vmatpush.bf16.msra.mxu0 0
        %5358 = vmatpush.bf16.msra.mxu0 0
        %5359 = vmatpush.bf16.msra.mxu0 0
        %5360 = vmatpush.bf16.msra.mxu0 0
        %5361 = vmatpush.bf16.msra.mxu0 0
        %5362 = vmatpush.bf16.msra.mxu0 0
        %5363 = vmatpush.bf16.msra.mxu0 %v5354
        %5364 = vmatpush.bf16.msra.mxu0 %v5353
        %5365 = vmatmul.bf16.gmra.mxu0 %v3635
        %v5366 = vpop.f32.mrf.mxu0
        %v5367 = vadd.f32 %v5313, %v5366
        %v5368 = vpop.f32.mrf.mxu0
        %5369 = vdwg.mxu0
        %v5374 = vunpack.c.l.b16 %v5150
        %v5375 = vunpack.c.l.b16 %v5151
        %v5376 = vunpack.c.l.b16 %v5152
        %v5377 = vunpack.c.l.b16 %v5153
        %v5378 = vpack.c.b16 %v5375, %v5374
        %v5379 = vpack.c.b16 %v5377, %v5376
        %5382 = vmatpush.bf16.msra.mxu0 0
        %5383 = vmatpush.bf16.msra.mxu0 0
        %5384 = vmatpush.bf16.msra.mxu0 0
        %5385 = vmatpush.bf16.msra.mxu0 0
        %5386 = vmatpush.bf16.msra.mxu0 0
        %5387 = vmatpush.bf16.msra.mxu0 0
        %5388 = vmatpush.bf16.msra.mxu0 %v5379
        %5389 = vmatpush.bf16.msra.mxu0 %v5378
        %5390 = vmatmul.bf16.gmra.mxu0 %v3635
        %v5391 = vpop.f32.mrf.mxu0
        %v5392 = vadd.f32 %v5314, %v5391
        %v5393 = vpop.f32.mrf.mxu0
        %5394 = vdwg.mxu0
        %v5399 = vunpack.c.l.b16 %v5154
        %v5400 = vunpack.c.l.b16 %v5155
        %v5401 = vunpack.c.l.b16 %v5156
        %v5402 = vunpack.c.l.b16 %v5157
        %v5403 = vpack.c.b16 %v5400, %v5399
        %v5404 = vpack.c.b16 %v5402, %v5401
        %5407 = vmatpush.bf16.msra.mxu0 0
        %5408 = vmatpush.bf16.msra.mxu0 0
        %5409 = vmatpush.bf16.msra.mxu0 0
        %5410 = vmatpush.bf16.msra.mxu0 0
        %5411 = vmatpush.bf16.msra.mxu0 0
        %5412 = vmatpush.bf16.msra.mxu0 0
        %5413 = vmatpush.bf16.msra.mxu0 %v5404
        %5414 = vmatpush.bf16.msra.mxu0 %v5403
        %5415 = vmatmul.bf16.gmra.mxu0 %v3635
        %v5416 = vpop.f32.mrf.mxu0
        %v5417 = vadd.f32 %v5315, %v5416
        %v5418 = vpop.f32.mrf.mxu0
        %5419 = vdwg.mxu0
        %v5424 = vperm.slane %v5181, 0
        %v5425 = vperm.slane %v5182, 0
        %v5426 = vperm.slane %v5183, 0
        %v5427 = vperm.slane %v5184, 0
        %v5436 = vunpack.c.l.b16 %v5164
        %v5437 = vunpack.c.l.b16 %v5165
        %v5438 = vunpack.c.l.b16 %v5166
        %v5439 = vunpack.c.l.b16 %v5167
        %v5440 = vpack.c.b16 %v5437, %v5436
        %v5441 = vpack.c.b16 %v5439, %v5438
        %5444 = vmatpush.bf16.msra.mxu0 0
        %5445 = vmatpush.bf16.msra.mxu0 0
        %5446 = vmatpush.bf16.msra.mxu0 0
        %5447 = vmatpush.bf16.msra.mxu0 0
        %5448 = vmatpush.bf16.msra.mxu0 0
        %5449 = vmatpush.bf16.msra.mxu0 0
        %5450 = vmatpush.bf16.msra.mxu0 %v5441
        %5451 = vmatpush.bf16.msra.mxu0 %v5440
        %5452 = vmatmul.bf16.gmra.mxu0 %v3635
        %v5453 = vpop.f32.mrf.mxu0
        %v5454 = vadd.f32 %v5424, %v5453
        %v5455 = vpop.f32.mrf.mxu0
        %5456 = vdwg.mxu0
        %v5461 = vunpack.c.l.b16 %v5168
        %v5462 = vunpack.c.l.b16 %v5169
        %v5463 = vunpack.c.l.b16 %v5170
        %v5464 = vunpack.c.l.b16 %v5171
        %v5465 = vpack.c.b16 %v5462, %v5461
        %v5466 = vpack.c.b16 %v5464, %v5463
        %5469 = vmatpush.bf16.msra.mxu0 0
        %5470 = vmatpush.bf16.msra.mxu0 0
        %5471 = vmatpush.bf16.msra.mxu0 0
        %5472 = vmatpush.bf16.msra.mxu0 0
        %5473 = vmatpush.bf16.msra.mxu0 0
        %5474 = vmatpush.bf16.msra.mxu0 0
        %5475 = vmatpush.bf16.msra.mxu0 %v5466
        %5476 = vmatpush.bf16.msra.mxu0 %v5465
        %5477 = vmatmul.bf16.gmra.mxu0 %v3635
        %v5478 = vpop.f32.mrf.mxu0
        %v5479 = vadd.f32 %v5425, %v5478
        %v5480 = vpop.f32.mrf.mxu0
        %5481 = vdwg.mxu0
        %v5486 = vunpack.c.l.b16 %v5172
        %v5487 = vunpack.c.l.b16 %v5173
        %v5488 = vunpack.c.l.b16 %v5174
        %v5489 = vunpack.c.l.b16 %v5175
        %v5490 = vpack.c.b16 %v5487, %v5486
        %v5491 = vpack.c.b16 %v5489, %v5488
        %5494 = vmatpush.bf16.msra.mxu0 0
        %5495 = vmatpush.bf16.msra.mxu0 0
        %5496 = vmatpush.bf16.msra.mxu0 0
        %5497 = vmatpush.bf16.msra.mxu0 0
        %5498 = vmatpush.bf16.msra.mxu0 0
        %5499 = vmatpush.bf16.msra.mxu0 0
        %5500 = vmatpush.bf16.msra.mxu0 %v5491
        %5501 = vmatpush.bf16.msra.mxu0 %v5490
        %5502 = vmatmul.bf16.gmra.mxu0 %v3635
        %v5503 = vpop.f32.mrf.mxu0
        %v5504 = vadd.f32 %v5426, %v5503
        %v5505 = vpop.f32.mrf.mxu0
        %5506 = vdwg.mxu0
        %v5511 = vunpack.c.l.b16 %v5176
        %v5512 = vunpack.c.l.b16 %v5177
        %v5513 = vunpack.c.l.b16 %v5178
        %v5514 = vunpack.c.l.b16 %v5179
        %v5515 = vpack.c.b16 %v5512, %v5511
        %v5516 = vpack.c.b16 %v5514, %v5513
        %5519 = vmatpush.bf16.msra.mxu0 0
        %5520 = vmatpush.bf16.msra.mxu0 0
        %5521 = vmatpush.bf16.msra.mxu0 0
        %5522 = vmatpush.bf16.msra.mxu0 0
        %5523 = vmatpush.bf16.msra.mxu0 0
        %5524 = vmatpush.bf16.msra.mxu0 0
        %5525 = vmatpush.bf16.msra.mxu0 %v5516
        %5526 = vmatpush.bf16.msra.mxu0 %v5515
        %5527 = vmatmul.bf16.gmra.mxu0 %v3635
        %v5528 = vpop.f32.mrf.mxu0
        %v5529 = vadd.f32 %v5427, %v5528
        %v5530 = vpop.f32.mrf.mxu0
        %5531 = vdwg.mxu0
        %v5532 = vpack.c.bf16 %v5230, %v5230
        %v5533 = vpack.c.bf16 %v5255, %v5255
        %v5534 = vpack.c.bf16 %v5280, %v5280
        %v5535 = vpack.c.bf16 %v5305, %v5305
        %v5536 = vpack.c.bf16 %v5342, %v5342
        %v5537 = vpack.c.bf16 %v5367, %v5367
        %v5538 = vpack.c.bf16 %v5392, %v5392
        %v5539 = vpack.c.bf16 %v5417, %v5417
        %v5541 = vsel %vm1262, %v5532, 0
        %v5544 = vsel %vm1262, %v5536, 0
        %5546 = vmatpush.bf16.xpose.msra.mxu0 0
        %5547 = vmatpush.bf16.xpose.msra.mxu0 0
        %5548 = vmatpush.bf16.xpose.msra.mxu0 0
        %5549 = vmatpush.bf16.xpose.msra.mxu0 0
        %5550 = vmatpush.bf16.xpose.msra.mxu0 0
        %5551 = vmatpush.bf16.xpose.msra.mxu0 0
        %5552 = vmatpush.bf16.xpose.msra.mxu0 0
        %5553 = vmatpush.bf16.xpose.msra.mxu0 %v5544
        %5554 = vmatmul.bf16.gmra.mxu0 %v5541
        %v5555 = vpop.f32.mrf.mxu0
        %v5556 = vadd.f32 0.0, %v5555
        %v5557 = vpop.f32.mrf.mxu0
        %5558 = vdwg.mxu0
        %v5560 = vsel %vm1262, %v5533, 0
        %v5563 = vsel %vm1262, %v5537, 0
        %5565 = vmatpush.bf16.xpose.msra.mxu0 0
        %5566 = vmatpush.bf16.xpose.msra.mxu0 0
        %5567 = vmatpush.bf16.xpose.msra.mxu0 0
        %5568 = vmatpush.bf16.xpose.msra.mxu0 0
        %5569 = vmatpush.bf16.xpose.msra.mxu0 0
        %5570 = vmatpush.bf16.xpose.msra.mxu0 0
        %5571 = vmatpush.bf16.xpose.msra.mxu0 0
        %5572 = vmatpush.bf16.xpose.msra.mxu0 %v5563
        %5573 = vmatmul.bf16.gmra.mxu0 %v5560
        %v5574 = vpop.f32.mrf.mxu0
        %v5575 = vadd.f32 0.0, %v5574
        %v5576 = vpop.f32.mrf.mxu0
        %5577 = vdwg.mxu0
        %v5579 = vsel %vm1262, %v5534, 0
        %v5582 = vsel %vm1262, %v5538, 0
        %5584 = vmatpush.bf16.xpose.msra.mxu0 0
        %5585 = vmatpush.bf16.xpose.msra.mxu0 0
        %5586 = vmatpush.bf16.xpose.msra.mxu0 0
        %5587 = vmatpush.bf16.xpose.msra.mxu0 0
        %5588 = vmatpush.bf16.xpose.msra.mxu0 0
        %5589 = vmatpush.bf16.xpose.msra.mxu0 0
        %5590 = vmatpush.bf16.xpose.msra.mxu0 0
        %5591 = vmatpush.bf16.xpose.msra.mxu0 %v5582
        %5592 = vmatmul.bf16.gmra.mxu0 %v5579
        %v5593 = vpop.f32.mrf.mxu0
        %v5594 = vadd.f32 0.0, %v5593
        %v5595 = vpop.f32.mrf.mxu0
        %5596 = vdwg.mxu0
        %v5598 = vsel %vm1262, %v5535, 0
        %v5601 = vsel %vm1262, %v5539, 0
        %5603 = vmatpush.bf16.xpose.msra.mxu0 0
        %5604 = vmatpush.bf16.xpose.msra.mxu0 0
        %5605 = vmatpush.bf16.xpose.msra.mxu0 0
        %5606 = vmatpush.bf16.xpose.msra.mxu0 0
        %5607 = vmatpush.bf16.xpose.msra.mxu0 0
        %5608 = vmatpush.bf16.xpose.msra.mxu0 0
        %5609 = vmatpush.bf16.xpose.msra.mxu0 0
        %5610 = vmatpush.bf16.xpose.msra.mxu0 %v5601
        %5611 = vmatmul.bf16.gmra.mxu0 %v5598
        %v5612 = vpop.f32.mrf.mxu0
        %v5613 = vadd.f32 0.0, %v5612
        %v5614 = vpop.f32.mrf.mxu0
        %5615 = vdwg.mxu0
        %v5616 = vmul.f32 %v5556, 0.35355338
        %v5617 = vmul.f32 %v5575, 0.35355338
        %v5618 = vmul.f32 %v5594, 0.35355338
        %v5619 = vmul.f32 %v5613, 0.35355338
        %v5620 = vsel %vm1345, %v5616, -1e+09
        %v5621 = vsel %vm1345, %v5617, -1e+09
        %v5622 = vsel %vm1345, %v5618, -1e+09
        %v5623 = vsel %vm1345, %v5619, -1e+09
        %v5624 = vsel %vm1262, %v5620, -inf
        %5625 = vmax.xlane.f32.xlu0 %v5624
        %v5626 = vpop.xlane.xlu0 %5625
        %v5627 = vsel %vm1262, %v5621, -inf
        %5628 = vmax.xlane.f32.xlu0 %v5627
        %v5629 = vpop.xlane.xlu0 %5628
        %v5630 = vsel %vm1262, %v5622, -inf
        %5631 = vmax.xlane.f32.xlu0 %v5630
        %v5632 = vpop.xlane.xlu0 %5631
        %v5633 = vsel %vm1262, %v5623, -inf
        %5634 = vmax.xlane.f32.xlu0 %v5633
        %v5635 = vpop.xlane.xlu0 %5634
        %v5636 = vsub.f32 %v5620, %v5626
        %v5637 = vsub.f32 %v5621, %v5629
        %v5638 = vsub.f32 %v5622, %v5632
        %v5639 = vsub.f32 %v5623, %v5635
        %v5640 = vmul.f32 %v5636, 1.442695
        %v5641 = vpow.pop %v5640
        %v5642 = vmul.f32 %v5637, 1.442695
        %v5643 = vpow.pop %v5642
        %v5644 = vmul.f32 %v5638, 1.442695
        %v5645 = vpow.pop %v5644
        %v5646 = vmul.f32 %v5639, 1.442695
        %v5647 = vpow.pop %v5646
        %v5648 = vsel %vm1262, %v5641, 0.0
        %5649 = vadd.xlane.f32.xlu0 %v5648
        %v5650 = vpop.xlane.xlu0 %5649
        %v5651 = vsel %vm1262, %v5643, 0.0
        %5652 = vadd.xlane.f32.xlu0 %v5651
        %v5653 = vpop.xlane.xlu0 %5652
        %v5654 = vsel %vm1262, %v5645, 0.0
        %5655 = vadd.xlane.f32.xlu0 %v5654
        %v5656 = vpop.xlane.xlu0 %5655
        %v5657 = vsel %vm1262, %v5647, 0.0
        %5658 = vadd.xlane.f32.xlu0 %v5657
        %v5659 = vpop.xlane.xlu0 %5658
        %v5660 = vrcp.pop %v5650
        %v5661 = vmul.f32 %v5650, %v5660
        %v5662 = vsub.f32 1.0, %v5661
        %v5663 = vmul.f32 %v5660, %v5662
        %v5664 = vadd.f32 %v5660, %v5663
        %vm5665 = vweird.f32 %v5650
        %vm5666 = vweird.f32 %v5660
        %vm5667 = vmor %vm5665, %vm5666
        %v5668 = vsel %vm5667, %v5660, %v5664
        %v5669 = vand.u32 2147483647, %v5650
        %vm5670 = vcmp.eq.f32.partialorder %v5669, 8.507059e+37
        %v5671 = vand.u32 %v5650, 2147483648
        %v5672 = vor.u32 1.1754944e-38, %v5671
        %v5673 = vsel %vm5670, %v5672, %v5668
        %v5674 = vmul.f32 %v5641, %v5673
        %v5675 = vrcp.pop %v5653
        %v5676 = vmul.f32 %v5653, %v5675
        %v5677 = vsub.f32 1.0, %v5676
        %v5678 = vmul.f32 %v5675, %v5677
        %v5679 = vadd.f32 %v5675, %v5678
        %vm5680 = vweird.f32 %v5653
        %vm5681 = vweird.f32 %v5675
        %vm5682 = vmor %vm5680, %vm5681
        %v5683 = vsel %vm5682, %v5675, %v5679
        %v5684 = vand.u32 2147483647, %v5653
        %vm5685 = vcmp.eq.f32.partialorder %v5684, 8.507059e+37
        %v5686 = vand.u32 %v5653, 2147483648
        %v5687 = vor.u32 1.1754944e-38, %v5686
        %v5688 = vsel %vm5685, %v5687, %v5683
        %v5689 = vmul.f32 %v5643, %v5688
        %v5690 = vrcp.pop %v5656
        %v5691 = vmul.f32 %v5656, %v5690
        %v5692 = vsub.f32 1.0, %v5691
        %v5693 = vmul.f32 %v5690, %v5692
        %v5694 = vadd.f32 %v5690, %v5693
        %vm5695 = vweird.f32 %v5656
        %vm5696 = vweird.f32 %v5690
        %vm5697 = vmor %vm5695, %vm5696
        %v5698 = vsel %vm5697, %v5690, %v5694
        %v5699 = vand.u32 2147483647, %v5656
        %vm5700 = vcmp.eq.f32.partialorder %v5699, 8.507059e+37
        %v5701 = vand.u32 %v5656, 2147483648
        %v5702 = vor.u32 1.1754944e-38, %v5701
        %v5703 = vsel %vm5700, %v5702, %v5698
        %v5704 = vmul.f32 %v5645, %v5703
        %v5705 = vrcp.pop %v5659
        %v5706 = vmul.f32 %v5659, %v5705
        %v5707 = vsub.f32 1.0, %v5706
        %v5708 = vmul.f32 %v5705, %v5707
        %v5709 = vadd.f32 %v5705, %v5708
        %vm5710 = vweird.f32 %v5659
        %vm5711 = vweird.f32 %v5705
        %vm5712 = vmor %vm5710, %vm5711
        %v5713 = vsel %vm5712, %v5705, %v5709
        %v5714 = vand.u32 2147483647, %v5659
        %vm5715 = vcmp.eq.f32.partialorder %v5714, 8.507059e+37
        %v5716 = vand.u32 %v5659, 2147483648
        %v5717 = vor.u32 1.1754944e-38, %v5716
        %v5718 = vsel %vm5715, %v5717, %v5713
        %v5719 = vmul.f32 %v5647, %v5718
        %v5720 = vpack.c.bf16 %v5674, %v5674
        %v5721 = vpack.c.bf16 %v5689, %v5689
        %v5722 = vpack.c.bf16 %v5704, %v5704
        %v5723 = vpack.c.bf16 %v5719, %v5719
        %v5724 = vpack.c.bf16 %v5454, %v5454
        %v5725 = vpack.c.bf16 %v5479, %v5479
        %v5726 = vpack.c.bf16 %v5504, %v5504
        %v5727 = vpack.c.bf16 %v5529, %v5529
        %v5729 = vsel %vm1262, %v5720, 0
        %v5732 = vsel %vm1457, %v5724, 0
        %5734 = vmatpush.bf16.msra.mxu0 0
        %5735 = vmatpush.bf16.msra.mxu0 0
        %5736 = vmatpush.bf16.msra.mxu0 0
        %5737 = vmatpush.bf16.msra.mxu0 0
        %5738 = vmatpush.bf16.msra.mxu0 0
        %5739 = vmatpush.bf16.msra.mxu0 0
        %5740 = vmatpush.bf16.msra.mxu0 0
        %5741 = vmatpush.bf16.msra.mxu0 %v5732
        %5742 = vmatmul.bf16.gmra.mxu0 %v5729
        %v5743 = vpop.f32.mrf.mxu0
        %v5744 = vadd.f32 0.0, %v5743
        %v5745 = vpop.f32.mrf.mxu0
        %5746 = vdwg.mxu0
        %v5748 = vsel %vm1262, %v5721, 0
        %v5751 = vsel %vm1457, %v5725, 0
        %5753 = vmatpush.bf16.msra.mxu0 0
        %5754 = vmatpush.bf16.msra.mxu0 0
        %5755 = vmatpush.bf16.msra.mxu0 0
        %5756 = vmatpush.bf16.msra.mxu0 0
        %5757 = vmatpush.bf16.msra.mxu0 0
        %5758 = vmatpush.bf16.msra.mxu0 0
        %5759 = vmatpush.bf16.msra.mxu0 0
        %5760 = vmatpush.bf16.msra.mxu0 %v5751
        %5761 = vmatmul.bf16.gmra.mxu0 %v5748
        %v5762 = vpop.f32.mrf.mxu0
        %v5763 = vadd.f32 0.0, %v5762
        %v5764 = vpop.f32.mrf.mxu0
        %5765 = vdwg.mxu0
        %v5767 = vsel %vm1262, %v5722, 0
        %v5770 = vsel %vm1457, %v5726, 0
        %5772 = vmatpush.bf16.msra.mxu0 0
        %5773 = vmatpush.bf16.msra.mxu0 0
        %5774 = vmatpush.bf16.msra.mxu0 0
        %5775 = vmatpush.bf16.msra.mxu0 0
        %5776 = vmatpush.bf16.msra.mxu0 0
        %5777 = vmatpush.bf16.msra.mxu0 0
        %5778 = vmatpush.bf16.msra.mxu0 0
        %5779 = vmatpush.bf16.msra.mxu0 %v5770
        %5780 = vmatmul.bf16.gmra.mxu0 %v5767
        %v5781 = vpop.f32.mrf.mxu0
        %v5782 = vadd.f32 0.0, %v5781
        %v5783 = vpop.f32.mrf.mxu0
        %5784 = vdwg.mxu0
        %v5786 = vsel %vm1262, %v5723, 0
        %v5789 = vsel %vm1457, %v5727, 0
        %5791 = vmatpush.bf16.msra.mxu0 0
        %5792 = vmatpush.bf16.msra.mxu0 0
        %5793 = vmatpush.bf16.msra.mxu0 0
        %5794 = vmatpush.bf16.msra.mxu0 0
        %5795 = vmatpush.bf16.msra.mxu0 0
        %5796 = vmatpush.bf16.msra.mxu0 0
        %5797 = vmatpush.bf16.msra.mxu0 0
        %5798 = vmatpush.bf16.msra.mxu0 %v5789
        %5799 = vmatmul.bf16.gmra.mxu0 %v5786
        %v5800 = vpop.f32.mrf.mxu0
        %v5801 = vadd.f32 0.0, %v5800
        %v5802 = vpop.f32.mrf.mxu0
        %5803 = vdwg.mxu0
        %v5804 = vpack.c.bf16 %v5744, %v5744
        %v5805 = vpack.c.bf16 %v5763, %v5763
        %v5806 = vpack.c.bf16 %v5782, %v5782
        %v5807 = vpack.c.bf16 %v5801, %v5801
        %v5809 = vsel %vm1262, %v5804, 0
        %v5812 = vsel %vm1457, %v5186, 0
        %5814 = vmatpush.bf16.msra.mxu0 0
        %5815 = vmatpush.bf16.msra.mxu0 0
        %5816 = vmatpush.bf16.msra.mxu0 0
        %5817 = vmatpush.bf16.msra.mxu0 0
        %5818 = vmatpush.bf16.msra.mxu0 0
        %5819 = vmatpush.bf16.msra.mxu0 0
        %5820 = vmatpush.bf16.msra.mxu0 0
        %5821 = vmatpush.bf16.msra.mxu0 %v5812
        %5822 = vmatmul.bf16.gmra.mxu0 %v5809
        %v5823 = vpop.f32.mrf.mxu0
        %v5824 = vadd.f32 0.0, %v5823
        %v5825 = vpop.f32.mrf.mxu0
        %5826 = vdwg.mxu0
        %v5828 = vsel %vm1262, %v5805, 0
        %v5831 = vsel %vm1457, %v5187, 0
        %5833 = vmatpush.bf16.msra.mxu0 0
        %5834 = vmatpush.bf16.msra.mxu0 0
        %5835 = vmatpush.bf16.msra.mxu0 0
        %5836 = vmatpush.bf16.msra.mxu0 0
        %5837 = vmatpush.bf16.msra.mxu0 0
        %5838 = vmatpush.bf16.msra.mxu0 0
        %5839 = vmatpush.bf16.msra.mxu0 0
        %5840 = vmatpush.bf16.msra.mxu0 %v5831
        %5841 = vmatmul.bf16.gmra.mxu0 %v5828
        %v5842 = vpop.f32.mrf.mxu0
        %v5843 = vadd.f32 0.0, %v5842
        %v5844 = vpop.f32.mrf.mxu0
        %5845 = vdwg.mxu0
        %v5847 = vsel %vm1262, %v5806, 0
        %v5850 = vsel %vm1457, %v5188, 0
        %5852 = vmatpush.bf16.msra.mxu0 0
        %5853 = vmatpush.bf16.msra.mxu0 0
        %5854 = vmatpush.bf16.msra.mxu0 0
        %5855 = vmatpush.bf16.msra.mxu0 0
        %5856 = vmatpush.bf16.msra.mxu0 0
        %5857 = vmatpush.bf16.msra.mxu0 0
        %5858 = vmatpush.bf16.msra.mxu0 0
        %5859 = vmatpush.bf16.msra.mxu0 %v5850
        %5860 = vmatmul.bf16.gmra.mxu0 %v5847
        %v5861 = vpop.f32.mrf.mxu0
        %v5862 = vadd.f32 0.0, %v5861
        %v5863 = vpop.f32.mrf.mxu0
        %5864 = vdwg.mxu0
        %v5866 = vsel %vm1262, %v5807, 0
        %v5869 = vsel %vm1457, %v5189, 0
        %5871 = vmatpush.bf16.msra.mxu0 0
        %5872 = vmatpush.bf16.msra.mxu0 0
        %5873 = vmatpush.bf16.msra.mxu0 0
        %5874 = vmatpush.bf16.msra.mxu0 0
        %5875 = vmatpush.bf16.msra.mxu0 0
        %5876 = vmatpush.bf16.msra.mxu0 0
        %5877 = vmatpush.bf16.msra.mxu0 0
        %5878 = vmatpush.bf16.msra.mxu0 %v5869
        %5879 = vmatmul.bf16.gmra.mxu0 %v5866
        %v5880 = vpop.f32.mrf.mxu0
        %v5881 = vadd.f32 0.0, %v5880
        %v5882 = vpop.f32.mrf.mxu0
        %5883 = vdwg.mxu0
        %v5884 = vsel %vm807, %v5824, 0.0
        %v5885 = vsel %vm807, %v5843, 0.0
        %v5886 = vadd.f32 %v5884, %v5885
        %v5887 = vsel %vm807, %v5862, 0.0
        %v5888 = vadd.f32 %v5886, %v5887
        %v5889 = vsel %vm807, %v5881, 0.0
        %v5890 = vadd.f32 %v5888, %v5889
        %v5892 = vperm.slane %v5191, 0
        %v5894 = vadd.f32 %v5890, %v5892
        %v5895 = vadd.f32 %v5084, %v5894
        %s5896 = scalar_lea.vmem %s11, 10
        %v5897 = vld [vmem:[%s5896] sm:$0x1]
        %s5898 = scalar_lea.vmem %s11, 11
        %v5899 = vld [vmem:[%s5898] sm:$0x1]
        %v5900 = vsel %vm807, %v5895, 0.0
        %5901 = vadd.xlane.f32.xlu0 %v5900
        %v5902 = vpop.xlane.xlu0 %5901
        %v5903 = vmul.f32 %v5902, %v817
        %v5904 = vsub.f32 %v5895, %v5903
        %v5905 = vmul.f32 %v5904, %v5904
        %v5906 = vsel %vm807, %v5905, 0.0
        %5907 = vadd.xlane.f32.xlu0 %v5906
        %v5908 = vpop.xlane.xlu0 %5907
        %v5909 = vmul.f32 %v5908, %v817
        %v5910 = vadd.f32 %v5909, 1e-05
        %v5911 = vrsqrt.pop %v5910
        %v5912 = vmul.f32 %v5911, %v5910
        %v5913 = vmul.f32 %v5912, %v5911
        %v5914 = vmul.f32 0.5, %v5913
        %v5915 = vsub.f32 1.5, %v5914
        %v5916 = vmul.f32 %v5911, %v5915
        %vm5917 = vweird.f32 %v5910
        %vm5918 = vweird.f32 %v5911
        %vm5919 = vmor %vm5917, %vm5918
        %v5920 = vsel %vm5919, %v5911, %v5916
        %v5921 = vmul.f32 %v5904, %v5920
        %v5923 = vperm.slane %v5897, 0
        %v5925 = vmul.f32 %v5921, %v5923
        %v5927 = vperm.slane %v5899, 0
        %v5929 = vadd.f32 %v5925, %v5927
        %s5930 = scalar_lea.vmem %s20, 16
        %v5931 = vld [vmem:[%s5930] sm:$0xf]
        %v5932 = vld [vmem:[%s5930 + $0x4] sm:$0xf]
        %v5933 = vld [vmem:[%s5930 + $0x8] sm:$0xf]
        %v5934 = vld [vmem:[%s5930 + $0xc] sm:$0xf]
        %v5935 = vpack.c.bf16 %v5929, %v5929
        %s5936 = scalar_lea.vmem %s21, 1
        %v5937 = vld [vmem:[%s5936] sm:$0x1]
        %v5939 = vperm.slane %v5937, 0
        %v5945 = vunpack.c.l.b16 %v5931
        %v5946 = vunpack.c.l.b16 %v5932
        %v5947 = vunpack.c.l.b16 %v5933
        %v5948 = vunpack.c.l.b16 %v5934
        %v5949 = vpack.c.b16 %v5946, %v5945
        %v5950 = vpack.c.b16 %v5948, %v5947
        %v5954 = vsel %vm807, %v5935, 0
        %5956 = vmatpush.bf16.msra.mxu0 0
        %5957 = vmatpush.bf16.msra.mxu0 0
        %5958 = vmatpush.bf16.msra.mxu0 0
        %5959 = vmatpush.bf16.msra.mxu0 0
        %5960 = vmatpush.bf16.msra.mxu0 0
        %5961 = vmatpush.bf16.msra.mxu0 0
        %5962 = vmatpush.bf16.msra.mxu0 %v5950
        %5963 = vmatpush.bf16.msra.mxu0 %v5949
        %5964 = vmatmul.bf16.gmra.mxu0 %v5954
        %v5965 = vpop.f32.mrf.mxu0
        %v5966 = vadd.f32 %v5939, %v5965
        %v5967 = vpop.f32.mrf.mxu0
        %5968 = vdwg.mxu0
        %v5969 = vmax.f32 %v5966, 0.0
        %v5970 = vadd.f32 %v5895, %v5969
        %v5971 = vpack.c.bf16 %v5970, %v5970
        %v5973 = vperm.slane %v786, 0
        %v5979 = vunpack.c.l.b16 %v782
        %v5980 = vunpack.c.l.b16 %v783
        %v5981 = vunpack.c.l.b16 %v784
        %v5982 = vunpack.c.l.b16 %v785
        %v5983 = vpack.c.b16 %v5980, %v5979
        %v5984 = vpack.c.b16 %v5982, %v5981
        %v5988 = vsel %vm807, %v5971, 0
        %5990 = vmatpush.bf16.msra.mxu0 0
        %5991 = vmatpush.bf16.msra.mxu0 0
        %5992 = vmatpush.bf16.msra.mxu0 0
        %5993 = vmatpush.bf16.msra.mxu0 0
        %5994 = vmatpush.bf16.msra.mxu0 0
        %5995 = vmatpush.bf16.msra.mxu0 0
        %5996 = vmatpush.bf16.msra.mxu0 %v5984
        %5997 = vmatpush.bf16.msra.mxu0 %v5983
        %5998 = vmatmul.bf16.gmra.mxu0 %v5988
        %v5999 = vpop.f32.mrf.mxu0
        %v6000 = vadd.f32 %v5973, %v5999
        %v6001 = vpop.f32.mrf.mxu0
        %6002 = vdwg.mxu0
        %6003 = vst [vmem:[%s765] sm:$0xff] %v6000
        %s6004 = sand.u32 %s570, 1
        %s6005 = scalar_lea.sflag [#allocation3], %s6004
        %s6006 = sand.u32 %s570, 1
        %s6007 = smul.addr %s6006, 8
        %s6008 = scalar_lea.vmem [#allocation2], %s6007
        // Predicated region
        $region117: #{transformer_forward.1} parent=115 // pred_check
          %p6009 = pneg %p580
        $region118: #{transformer_forward.1} parent=115 // pred_check_branch
          %6011 = sbr.rel (%p6009) target = $region120
        $region119: #{transformer_forward.1} parent=115 // pred_region
          %6013 = vsyncadd %s6005, 0
          %s6014 = smul.addr %s38, 8
          %s6015 = scalar_lea.hbm %s24, %s6014
          %s6017 = sshll.u32 %s6008, 4
          %s6018 = int_to_ptr.vmem [resolvable:$true] %s6017
          %s6019 = sshll.u32 %s6015, 4
          %s6020 = int_to_ptr.hbm [resolvable:$true] %s6019
          %6022 = dma.vmem_to_hbm [thread:$0]  %s6018, 128, %s6020, %s6005
        $region120: #{transformer_forward.1} parent=115 // pred_fallthru
          _
      $region116: #{transformer_forward.1} parent=5 // pred_fallthru
        _
      %p6023 = scmp.le.s32.totalorder 2, %s33
      // Predicated region
      $region121: #{transformer_forward.1} parent=5 // pred_check
        %p6024 = pneg %p6023
      $region122: #{transformer_forward.1} parent=5 // pred_check_branch
        %6026 = sbr.rel (%p6024) target = $region124
      $region123: #{transformer_forward.1} parent=5 // pred_region
        %s6027 = ssub.s32 %s33, 2
        // Predicated region
        $region125: #{transformer_forward.1} parent=123 // pred_check
          %p6028 = pneg %p586
        $region126: #{transformer_forward.1} parent=123 // pred_check_branch
          %6030 = sbr.rel (%p6028) target = $region128
        $region127: #{transformer_forward.1} parent=123 // pred_region
          %s6031 = sand.u32 %s571, 1
          %s6032 = scalar_lea.sflag [#allocation3], %s6031
          %s6033 = sand.u32 %s571, 1
          %s6034 = smul.addr %s6033, 8
          %s6035 = scalar_lea.vmem [#allocation2], %s6034
          %6037 = dma.done %s6032, 128
        $region128: #{transformer_forward.1} parent=123 // pred_fallthru
          _
      $region124: #{transformer_forward.1} parent=5 // pred_fallthru
        _
    $region6: #{transformer_forward.1} parent=1 // loop_footer
      %s37 = sadd.s32 1, %s33
    $region7: #{transformer_forward.1} parent=1 // loop_footer_branch
      %32 = sbr.rel target = $region3
    $region8: #{transformer_forward.1} parent=1 // loop_exit
      _
    %6038 = vsyncpa [#allocation3], 1
    %s6039 = scalar_lea.sflag [#allocation3], 1
    %6040 = vsyncpa %s6039, 1

</llo_original>
